<compile_context>
chip_gen: v5e
topology: v5e:2x2
jax: 0.10.0
libtpu: 0.0.40
codegen_flags: <defaults>
</compile_context>

<pallas_src>
import functools

import jax
import jax.numpy as jnp
from jax.experimental import pallas as pl
from jax.experimental.pallas import tpu as pltpu


K = 5          # conv filter size (fixed by the module)
PAD = K // 2   # 'same' padding


# ---------------------------------------------------------------------------
# Fused Pallas kernel: whole forward pass for one image, entirely in VMEM.
# ---------------------------------------------------------------------------
def _spatialnet_kernel(x_ref, w1_ref, b1_ref, w2_ref, b2_ref, o_ref,
                       p1_ref, s1_ref, s2_ref):
    """
    x_ref : (1, H+4, W+4, C)   spatially pre-padded NHWC input
    w1_ref: (25, C,  F1)       conv1 weights, tap-major (di*5+dj, cin, cout)
    b1_ref: (1, F1)
    w2_ref: (25, F1, F2)
    b2_ref: (1, F2)
    o_ref : (1, H//4, W//4, F2)
    p1_ref: VMEM (H//2+4, W//2+4, F1)  zero-padded pool1 output (conv2 input)
    s1_ref: VMEM (H, W, F1)            conv1+tanh staging (for pooling)
    s2_ref: VMEM (H//2, W//2, F2)      conv2+tanh staging (for pooling)
    """
    _, hp, wp, c = x_ref.shape
    h, w = hp - 2 * PAD, wp - 2 * PAD
    f1 = w1_ref.shape[2]
    f2 = w2_ref.shape[2]
    h2, w2 = h // 2, w // 2
    h4, w4 = h2 // 2, w2 // 2

    # ---------------- conv1 (5x5, stride 1) + tanh ----------------
    xpad = x_ref[0]                                            # (hp, wp, c)
    acc1 = jnp.zeros((h * w, f1), jnp.float32)
    for di in range(K):
        for dj in range(K):
            xs = xpad[di:di + h, dj:dj + w, :]                 # (h, w, c)
            acc1 = acc1 + jnp.dot(xs.reshape(h * w, c),
                                  w1_ref[di * K + dj],
                                  preferred_element_type=jnp.float32)
    y1 = jnp.tanh(acc1 + b1_ref[...])                          # (h*w, f1)
    s1_ref[...] = y1.reshape(h, w, f1)

    # ---------------- maxpool 2x2 stride 2 ----------------
    colmax = jnp.maximum(s1_ref[:, pl.ds(0, w2, 2), :],
                         s1_ref[:, pl.ds(1, w2, 2), :])        # (h, w2, f1)
    pooled1 = jnp.max(colmax.reshape(h2, 2, w2, f1), axis=1)   # (h2, w2, f1)

    # ---------------- zero-pad pool1 output for conv2 ----------------
    p1_ref[...] = jnp.zeros_like(p1_ref)
    p1_ref[PAD:PAD + h2, PAD:PAD + w2, :] = pooled1

    # ---------------- conv2 (5x5, stride 1) + tanh ----------------
    p1 = p1_ref[...]                                           # (h2+4, w2+4, f1)
    acc2 = jnp.zeros((h2 * w2, f2), jnp.float32)
    for di in range(K):
        for dj in range(K):
            xs = p1[di:di + h2, dj:dj + w2, :]                 # (h2, w2, f1)
            acc2 = acc2 + jnp.dot(xs.reshape(h2 * w2, f1),
                                  w2_ref[di * K + dj],
                                  preferred_element_type=jnp.float32)
    y2 = jnp.tanh(acc2 + b2_ref[...])                          # (h2*w2, f2)
    s2_ref[...] = y2.reshape(h2, w2, f2)

    # ---------------- maxpool 2x2 stride 2 ----------------
    colmax2 = jnp.maximum(s2_ref[:, pl.ds(0, w4, 2), :],
                          s2_ref[:, pl.ds(1, w4, 2), :])       # (h2, w4, f2)
    o_ref[0] = jnp.max(colmax2.reshape(h4, 2, w4, f2), axis=1)  # (h4, w4, f2)


# ---------------------------------------------------------------------------
# Wrapper: one pallas_call per forward pass, gridded over batch.
# ---------------------------------------------------------------------------
def _spatialnet_forward(xp, w1m, b1, w2m, b2):
    """xp: (N, H+4, W+4, C) pre-padded NHWC input -> (N, H//4, W//4, F2)."""
    n, hp, wp, c = xp.shape
    h, w = hp - 2 * PAD, wp - 2 * PAD
    f1 = w1m.shape[2]
    f2 = w2m.shape[2]
    h2, w2 = h // 2, w // 2
    h4, w4 = h2 // 2, w2 // 2

    flops = 2 * n * (h * w * K * K * c * f1 + h2 * w2 * K * K * f1 * f2)
    transcendentals = n * (h * w * f1 + h2 * w2 * f2)
    bytes_accessed = 4 * (xp.size + w1m.size + b1.size + w2m.size + b2.size
                          + n * h4 * w4 * f2)

    return pl.pallas_call(
        _spatialnet_kernel,
        out_shape=jax.ShapeDtypeStruct((n, h4, w4, f2), jnp.float32),
        grid=(n,),
        in_specs=[
            pl.BlockSpec((1, hp, wp, c), lambda i: (i, 0, 0, 0)),
            pl.BlockSpec((K * K, c, f1), lambda i: (0, 0, 0)),
            pl.BlockSpec((1, f1), lambda i: (0, 0)),
            pl.BlockSpec((K * K, f1, f2), lambda i: (0, 0, 0)),
            pl.BlockSpec((1, f2), lambda i: (0, 0)),
        ],
        out_specs=pl.BlockSpec((1, h4, w4, f2), lambda i: (i, 0, 0, 0)),
        scratch_shapes=[
            pltpu.VMEM((h2 + 2 * PAD, w2 + 2 * PAD, f1), jnp.float32),
            pltpu.VMEM((h, w, f1), jnp.float32),
            pltpu.VMEM((h2, w2, f2), jnp.float32),
        ],
        compiler_params=pltpu.CompilerParams(
            dimension_semantics=("parallel",)),
        cost_estimate=pl.CostEstimate(
            flops=flops, transcendentals=transcendentals,
            bytes_accessed=bytes_accessed),
    )(xp, w1m, b1, w2m, b2)


class SpatialNetPallas:
    """Mirror of the PyTorch SpatialNet forward pass (NCHW in / NCHW out)."""

    def __init__(self, input_dim, n_fltrs1, n_fltrs2, step_size=None, key=None):
        assert step_size is None or step_size == [1, 1], \
            "only stride-1 convolutions implemented (module default)"
        self.input_dim = input_dim
        key = jax.random.PRNGKey(42) if key is None else key
        k1, k2, k3, k4 = jax.random.split(key, 4)
        # deterministic synthetic parameters, PyTorch Conv2d weight layout OIHW
        self.w1 = 0.1 * jax.random.normal(k1, (n_fltrs1, input_dim, K, K), jnp.float32)
        self.b1 = 0.1 * jax.random.normal(k2, (n_fltrs1,), jnp.float32)
        self.w2 = 0.1 * jax.random.normal(k3, (n_fltrs2, n_fltrs1, K, K), jnp.float32)
        self.b2 = 0.1 * jax.random.normal(k4, (n_fltrs2,), jnp.float32)
        # kernel-friendly layouts: tap-major weights (di*5+dj, cin, cout), 2D bias
        self.w1m = jnp.transpose(self.w1, (2, 3, 1, 0)).reshape(K * K, input_dim, n_fltrs1)
        self.w2m = jnp.transpose(self.w2, (2, 3, 1, 0)).reshape(K * K, n_fltrs1, n_fltrs2)
        self.b1m = self.b1.reshape(1, n_fltrs1)
        self.b2m = self.b2.reshape(1, n_fltrs2)

    @functools.partial(jax.jit, static_argnums=0)
    def __call__(self, x_nchw):
        n, c, h, w = x_nchw.shape
        assert c == self.input_dim
        # Fused-kernel layout requirements: two 2x2 pools need h % 4 == 0;
        # sublane-clean in-kernel reshapes need w and w//2 to be multiples of 8.
        assert h % 4 == 0 and w % 16 == 0, (h, w)
        x = jnp.transpose(x_nchw, (0, 2, 3, 1)).astype(jnp.float32)   # NCHW -> NHWC
        xp = jnp.pad(x, ((0, 0), (PAD, PAD), (PAD, PAD), (0, 0)))
        out = _spatialnet_forward(xp, self.w1m, self.b1m, self.w2m, self.b2m)
        return jnp.transpose(out, (0, 3, 1, 2))                       # NHWC -> NCHW


# ---------------------------------------------------------------------------
# Pure-XLA reference (same math as the PyTorch module), for a sanity check.
# ---------------------------------------------------------------------------
def _reference_forward(x_nchw, w1, b1, w2, b2):
    def conv_tanh(x, wt, b):
        y = jax.lax.conv_general_dilated(
            x, jnp.transpose(wt, (2, 3, 1, 0)), (1, 1), "SAME",
            dimension_numbers=("NHWC", "HWIO", "NHWC"),
            precision=jax.lax.Precision.HIGHEST)
        return jnp.tanh(y + b)

    def pool(x):
        return jax.lax.reduce_window(x, -jnp.inf, jax.lax.max,
                                     (1, 2, 2, 1), (1, 2, 2, 1), "VALID")

    x = jnp.transpose(x_nchw, (0, 2, 3, 1))
    x = pool(conv_tanh(x, w1, b1))
    x = pool(conv_tanh(x, w2, b2))
    return jnp.transpose(x, (0, 3, 1, 2))


if __name__ == "__main__":
    # small shapes consistent with the module: batch=2, channels=4, spatial=16
    N, C, H, W = 2, 4, 16, 16
    n_fltrs1, n_fltrs2 = 8, 16

    x = jax.random.normal(jax.random.PRNGKey(0), (N, C, H, W), jnp.float32)

    net = SpatialNetPallas(C, n_fltrs1, n_fltrs2)
    out = jax.block_until_ready(net(x))

    expected_shape = (N, n_fltrs2, H // 4, W // 4)
    assert out.shape == expected_shape, (out.shape, expected_shape)
    assert bool(jnp.all(jnp.isfinite(out)))

    ref = _reference_forward(x, net.w1, net.b1, net.w2, net.b2)
    assert bool(jnp.allclose(out, ref, atol=5e-3, rtol=5e-3)), \
        float(jnp.max(jnp.abs(out - ref)))
    print("KERNEL_OK")
</pallas_src>

<mosaic_0001>
module attributes {stable_mosaic.version = 11 : i64} {
  func.func @_spatialnet_kernel(%arg0: i32, %arg1: memref<1x20x20x4xf32, #tpu.memory_space<vmem>>, %arg2: memref<25x4x8xf32, #tpu.memory_space<vmem>>, %arg3: memref<1x8xf32, #tpu.memory_space<vmem>>, %arg4: memref<25x8x16xf32, #tpu.memory_space<vmem>>, %arg5: memref<1x16xf32, #tpu.memory_space<vmem>>, %arg6: memref<1x4x4x16xf32, #tpu.memory_space<vmem>>, %arg7: memref<12x12x8xf32, #tpu.memory_space<vmem>>, %arg8: memref<16x16x8xf32, #tpu.memory_space<vmem>>, %arg9: memref<8x8x16xf32, #tpu.memory_space<vmem>>) attributes {dimension_semantics = [#tpu.dimension_semantics<parallel>], iteration_bounds = array<i64: 2>, scalar_prefetch = 0 : i64, scratch_operands = 3 : i64, tpu.core_type = #tpu.core_type<tc>, window_params = [{transform_indices = @transform_0, window_bounds = array<i64: 1, 20, 20, 4>}, {pipeline_mode = #tpu.pipeline_mode<synchronous>, transform_indices = @transform_1, window_bounds = array<i64: 25, 4, 8>}, {pipeline_mode = #tpu.pipeline_mode<synchronous>, transform_indices = @transform_2, window_bounds = array<i64: 1, 8>}, {pipeline_mode = #tpu.pipeline_mode<synchronous>, transform_indices = @transform_3, window_bounds = array<i64: 25, 8, 16>}, {pipeline_mode = #tpu.pipeline_mode<synchronous>, transform_indices = @transform_4, window_bounds = array<i64: 1, 16>}, {transform_indices = @transform_5, window_bounds = array<i64: 1, 4, 4, 16>}]} {
    %c0 = arith.constant 0 : index
    %c0_0 = arith.constant 0 : index
    %c0_1 = arith.constant 0 : index
    %c0_2 = arith.constant 0 : index
    %0 = vector.load %arg1[%c0, %c0_0, %c0_1, %c0_2] : memref<1x20x20x4xf32, #tpu.memory_space<vmem>>, vector<1x20x20x4xf32>
    %1 = vector.shape_cast %0 : vector<1x20x20x4xf32> to vector<20x20x4xf32>
    %cst = arith.constant 0.000000e+00 : f32
    %2 = vector.broadcast %cst : f32 to vector<256x8xf32>
    %3 = vector.extract_strided_slice %1 {offsets = [0, 0, 0], sizes = [16, 16, 4], strides = [1, 1, 1]} : vector<20x20x4xf32> to vector<16x16x4xf32>
    %4 = vector.shape_cast %3 : vector<16x16x4xf32> to vector<256x4xf32>
    %c0_3 = arith.constant 0 : index
    %c0_4 = arith.constant 0 : index
    %c0_5 = arith.constant 0 : index
    %5 = vector.load %arg2[%c0_3, %c0_4, %c0_5] : memref<25x4x8xf32, #tpu.memory_space<vmem>>, vector<1x4x8xf32>
    %6 = vector.shape_cast %5 : vector<1x4x8xf32> to vector<4x8xf32>
    %cst_6 = arith.constant dense<0.000000e+00> : vector<256x8xf32>
    %7 = tpu.matmul %4, %6, %cst_6 {dimension_numbers = #tpu.dot_dimension_numbers<[1], [0], [0], [1], [0, 0, 1, 1], [], []>} : vector<256x4xf32>, vector<4x8xf32>, vector<256x8xf32> -> vector<256x8xf32>
    %8 = arith.addf %2, %7 : vector<256x8xf32>
    %9 = vector.extract_strided_slice %1 {offsets = [0, 1, 0], sizes = [16, 16, 4], strides = [1, 1, 1]} : vector<20x20x4xf32> to vector<16x16x4xf32>
    %10 = vector.shape_cast %9 : vector<16x16x4xf32> to vector<256x4xf32>
    %c1 = arith.constant 1 : index
    %c0_7 = arith.constant 0 : index
    %c0_8 = arith.constant 0 : index
    %11 = vector.load %arg2[%c1, %c0_7, %c0_8] : memref<25x4x8xf32, #tpu.memory_space<vmem>>, vector<1x4x8xf32>
    %12 = vector.shape_cast %11 : vector<1x4x8xf32> to vector<4x8xf32>
    %cst_9 = arith.constant dense<0.000000e+00> : vector<256x8xf32>
    %13 = tpu.matmul %10, %12, %cst_9 {dimension_numbers = #tpu.dot_dimension_numbers<[1], [0], [0], [1], [0, 0, 1, 1], [], []>} : vector<256x4xf32>, vector<4x8xf32>, vector<256x8xf32> -> vector<256x8xf32>
    %14 = arith.addf %8, %13 : vector<256x8xf32>
    %15 = vector.extract_strided_slice %1 {offsets = [0, 2, 0], sizes = [16, 16, 4], strides = [1, 1, 1]} : vector<20x20x4xf32> to vector<16x16x4xf32>
    %16 = vector.shape_cast %15 : vector<16x16x4xf32> to vector<256x4xf32>
    %c2 = arith.constant 2 : index
    %c0_10 = arith.constant 0 : index
    %c0_11 = arith.constant 0 : index
    %17 = vector.load %arg2[%c2, %c0_10, %c0_11] : memref<25x4x8xf32, #tpu.memory_space<vmem>>, vector<1x4x8xf32>
    %18 = vector.shape_cast %17 : vector<1x4x8xf32> to vector<4x8xf32>
    %cst_12 = arith.constant dense<0.000000e+00> : vector<256x8xf32>
    %19 = tpu.matmul %16, %18, %cst_12 {dimension_numbers = #tpu.dot_dimension_numbers<[1], [0], [0], [1], [0, 0, 1, 1], [], []>} : vector<256x4xf32>, vector<4x8xf32>, vector<256x8xf32> -> vector<256x8xf32>
    %20 = arith.addf %14, %19 : vector<256x8xf32>
    %21 = vector.extract_strided_slice %1 {offsets = [0, 3, 0], sizes = [16, 16, 4], strides = [1, 1, 1]} : vector<20x20x4xf32> to vector<16x16x4xf32>
    %22 = vector.shape_cast %21 : vector<16x16x4xf32> to vector<256x4xf32>
    %c3 = arith.constant 3 : index
    %c0_13 = arith.constant 0 : index
    %c0_14 = arith.constant 0 : index
    %23 = vector.load %arg2[%c3, %c0_13, %c0_14] : memref<25x4x8xf32, #tpu.memory_space<vmem>>, vector<1x4x8xf32>
    %24 = vector.shape_cast %23 : vector<1x4x8xf32> to vector<4x8xf32>
    %cst_15 = arith.constant dense<0.000000e+00> : vector<256x8xf32>
    %25 = tpu.matmul %22, %24, %cst_15 {dimension_numbers = #tpu.dot_dimension_numbers<[1], [0], [0], [1], [0, 0, 1, 1], [], []>} : vector<256x4xf32>, vector<4x8xf32>, vector<256x8xf32> -> vector<256x8xf32>
    %26 = arith.addf %20, %25 : vector<256x8xf32>
    %27 = vector.extract_strided_slice %1 {offsets = [0, 4, 0], sizes = [16, 16, 4], strides = [1, 1, 1]} : vector<20x20x4xf32> to vector<16x16x4xf32>
    %28 = vector.shape_cast %27 : vector<16x16x4xf32> to vector<256x4xf32>
    %c4 = arith.constant 4 : index
    %c0_16 = arith.constant 0 : index
    %c0_17 = arith.constant 0 : index
    %29 = vector.load %arg2[%c4, %c0_16, %c0_17] : memref<25x4x8xf32, #tpu.memory_space<vmem>>, vector<1x4x8xf32>
    %30 = vector.shape_cast %29 : vector<1x4x8xf32> to vector<4x8xf32>
    %cst_18 = arith.constant dense<0.000000e+00> : vector<256x8xf32>
    %31 = tpu.matmul %28, %30, %cst_18 {dimension_numbers = #tpu.dot_dimension_numbers<[1], [0], [0], [1], [0, 0, 1, 1], [], []>} : vector<256x4xf32>, vector<4x8xf32>, vector<256x8xf32> -> vector<256x8xf32>
    %32 = arith.addf %26, %31 : vector<256x8xf32>
    %33 = vector.extract_strided_slice %1 {offsets = [1, 0, 0], sizes = [16, 16, 4], strides = [1, 1, 1]} : vector<20x20x4xf32> to vector<16x16x4xf32>
    %34 = vector.shape_cast %33 : vector<16x16x4xf32> to vector<256x4xf32>
    %c5 = arith.constant 5 : index
    %c0_19 = arith.constant 0 : index
    %c0_20 = arith.constant 0 : index
    %35 = vector.load %arg2[%c5, %c0_19, %c0_20] : memref<25x4x8xf32, #tpu.memory_space<vmem>>, vector<1x4x8xf32>
    %36 = vector.shape_cast %35 : vector<1x4x8xf32> to vector<4x8xf32>
    %cst_21 = arith.constant dense<0.000000e+00> : vector<256x8xf32>
    %37 = tpu.matmul %34, %36, %cst_21 {dimension_numbers = #tpu.dot_dimension_numbers<[1], [0], [0], [1], [0, 0, 1, 1], [], []>} : vector<256x4xf32>, vector<4x8xf32>, vector<256x8xf32> -> vector<256x8xf32>
    %38 = arith.addf %32, %37 : vector<256x8xf32>
    %39 = vector.extract_strided_slice %1 {offsets = [1, 1, 0], sizes = [16, 16, 4], strides = [1, 1, 1]} : vector<20x20x4xf32> to vector<16x16x4xf32>
    %40 = vector.shape_cast %39 : vector<16x16x4xf32> to vector<256x4xf32>
    %c6 = arith.constant 6 : index
    %c0_22 = arith.constant 0 : index
    %c0_23 = arith.constant 0 : index
    %41 = vector.load %arg2[%c6, %c0_22, %c0_23] : memref<25x4x8xf32, #tpu.memory_space<vmem>>, vector<1x4x8xf32>
    %42 = vector.shape_cast %41 : vector<1x4x8xf32> to vector<4x8xf32>
    %cst_24 = arith.constant dense<0.000000e+00> : vector<256x8xf32>
    %43 = tpu.matmul %40, %42, %cst_24 {dimension_numbers = #tpu.dot_dimension_numbers<[1], [0], [0], [1], [0, 0, 1, 1], [], []>} : vector<256x4xf32>, vector<4x8xf32>, vector<256x8xf32> -> vector<256x8xf32>
    %44 = arith.addf %38, %43 : vector<256x8xf32>
    %45 = vector.extract_strided_slice %1 {offsets = [1, 2, 0], sizes = [16, 16, 4], strides = [1, 1, 1]} : vector<20x20x4xf32> to vector<16x16x4xf32>
    %46 = vector.shape_cast %45 : vector<16x16x4xf32> to vector<256x4xf32>
    %c7 = arith.constant 7 : index
    %c0_25 = arith.constant 0 : index
    %c0_26 = arith.constant 0 : index
    %47 = vector.load %arg2[%c7, %c0_25, %c0_26] : memref<25x4x8xf32, #tpu.memory_space<vmem>>, vector<1x4x8xf32>
    %48 = vector.shape_cast %47 : vector<1x4x8xf32> to vector<4x8xf32>
    %cst_27 = arith.constant dense<0.000000e+00> : vector<256x8xf32>
    %49 = tpu.matmul %46, %48, %cst_27 {dimension_numbers = #tpu.dot_dimension_numbers<[1], [0], [0], [1], [0, 0, 1, 1], [], []>} : vector<256x4xf32>, vector<4x8xf32>, vector<256x8xf32> -> vector<256x8xf32>
    %50 = arith.addf %44, %49 : vector<256x8xf32>
    %51 = vector.extract_strided_slice %1 {offsets = [1, 3, 0], sizes = [16, 16, 4], strides = [1, 1, 1]} : vector<20x20x4xf32> to vector<16x16x4xf32>
    %52 = vector.shape_cast %51 : vector<16x16x4xf32> to vector<256x4xf32>
    %c8 = arith.constant 8 : index
    %c0_28 = arith.constant 0 : index
    %c0_29 = arith.constant 0 : index
    %53 = vector.load %arg2[%c8, %c0_28, %c0_29] : memref<25x4x8xf32, #tpu.memory_space<vmem>>, vector<1x4x8xf32>
    %54 = vector.shape_cast %53 : vector<1x4x8xf32> to vector<4x8xf32>
    %cst_30 = arith.constant dense<0.000000e+00> : vector<256x8xf32>
    %55 = tpu.matmul %52, %54, %cst_30 {dimension_numbers = #tpu.dot_dimension_numbers<[1], [0], [0], [1], [0, 0, 1, 1], [], []>} : vector<256x4xf32>, vector<4x8xf32>, vector<256x8xf32> -> vector<256x8xf32>
    %56 = arith.addf %50, %55 : vector<256x8xf32>
    %57 = vector.extract_strided_slice %1 {offsets = [1, 4, 0], sizes = [16, 16, 4], strides = [1, 1, 1]} : vector<20x20x4xf32> to vector<16x16x4xf32>
    %58 = vector.shape_cast %57 : vector<16x16x4xf32> to vector<256x4xf32>
    %c9 = arith.constant 9 : index
    %c0_31 = arith.constant 0 : index
    %c0_32 = arith.constant 0 : index
    %59 = vector.load %arg2[%c9, %c0_31, %c0_32] : memref<25x4x8xf32, #tpu.memory_space<vmem>>, vector<1x4x8xf32>
    %60 = vector.shape_cast %59 : vector<1x4x8xf32> to vector<4x8xf32>
    %cst_33 = arith.constant dense<0.000000e+00> : vector<256x8xf32>
    %61 = tpu.matmul %58, %60, %cst_33 {dimension_numbers = #tpu.dot_dimension_numbers<[1], [0], [0], [1], [0, 0, 1, 1], [], []>} : vector<256x4xf32>, vector<4x8xf32>, vector<256x8xf32> -> vector<256x8xf32>
    %62 = arith.addf %56, %61 : vector<256x8xf32>
    %63 = vector.extract_strided_slice %1 {offsets = [2, 0, 0], sizes = [16, 16, 4], strides = [1, 1, 1]} : vector<20x20x4xf32> to vector<16x16x4xf32>
    %64 = vector.shape_cast %63 : vector<16x16x4xf32> to vector<256x4xf32>
    %c10 = arith.constant 10 : index
    %c0_34 = arith.constant 0 : index
    %c0_35 = arith.constant 0 : index
    %65 = vector.load %arg2[%c10, %c0_34, %c0_35] : memref<25x4x8xf32, #tpu.memory_space<vmem>>, vector<1x4x8xf32>
    %66 = vector.shape_cast %65 : vector<1x4x8xf32> to vector<4x8xf32>
    %cst_36 = arith.constant dense<0.000000e+00> : vector<256x8xf32>
    %67 = tpu.matmul %64, %66, %cst_36 {dimension_numbers = #tpu.dot_dimension_numbers<[1], [0], [0], [1], [0, 0, 1, 1], [], []>} : vector<256x4xf32>, vector<4x8xf32>, vector<256x8xf32> -> vector<256x8xf32>
    %68 = arith.addf %62, %67 : vector<256x8xf32>
    %69 = vector.extract_strided_slice %1 {offsets = [2, 1, 0], sizes = [16, 16, 4], strides = [1, 1, 1]} : vector<20x20x4xf32> to vector<16x16x4xf32>
    %70 = vector.shape_cast %69 : vector<16x16x4xf32> to vector<256x4xf32>
    %c11 = arith.constant 11 : index
    %c0_37 = arith.constant 0 : index
    %c0_38 = arith.constant 0 : index
    %71 = vector.load %arg2[%c11, %c0_37, %c0_38] : memref<25x4x8xf32, #tpu.memory_space<vmem>>, vector<1x4x8xf32>
    %72 = vector.shape_cast %71 : vector<1x4x8xf32> to vector<4x8xf32>
    %cst_39 = arith.constant dense<0.000000e+00> : vector<256x8xf32>
    %73 = tpu.matmul %70, %72, %cst_39 {dimension_numbers = #tpu.dot_dimension_numbers<[1], [0], [0], [1], [0, 0, 1, 1], [], []>} : vector<256x4xf32>, vector<4x8xf32>, vector<256x8xf32> -> vector<256x8xf32>
    %74 = arith.addf %68, %73 : vector<256x8xf32>
    %75 = vector.extract_strided_slice %1 {offsets = [2, 2, 0], sizes = [16, 16, 4], strides = [1, 1, 1]} : vector<20x20x4xf32> to vector<16x16x4xf32>
    %76 = vector.shape_cast %75 : vector<16x16x4xf32> to vector<256x4xf32>
    %c12 = arith.constant 12 : index
    %c0_40 = arith.constant 0 : index
    %c0_41 = arith.constant 0 : index
    %77 = vector.load %arg2[%c12, %c0_40, %c0_41] : memref<25x4x8xf32, #tpu.memory_space<vmem>>, vector<1x4x8xf32>
    %78 = vector.shape_cast %77 : vector<1x4x8xf32> to vector<4x8xf32>
    %cst_42 = arith.constant dense<0.000000e+00> : vector<256x8xf32>
    %79 = tpu.matmul %76, %78, %cst_42 {dimension_numbers = #tpu.dot_dimension_numbers<[1], [0], [0], [1], [0, 0, 1, 1], [], []>} : vector<256x4xf32>, vector<4x8xf32>, vector<256x8xf32> -> vector<256x8xf32>
    %80 = arith.addf %74, %79 : vector<256x8xf32>
    %81 = vector.extract_strided_slice %1 {offsets = [2, 3, 0], sizes = [16, 16, 4], strides = [1, 1, 1]} : vector<20x20x4xf32> to vector<16x16x4xf32>
    %82 = vector.shape_cast %81 : vector<16x16x4xf32> to vector<256x4xf32>
    %c13 = arith.constant 13 : index
    %c0_43 = arith.constant 0 : index
    %c0_44 = arith.constant 0 : index
    %83 = vector.load %arg2[%c13, %c0_43, %c0_44] : memref<25x4x8xf32, #tpu.memory_space<vmem>>, vector<1x4x8xf32>
    %84 = vector.shape_cast %83 : vector<1x4x8xf32> to vector<4x8xf32>
    %cst_45 = arith.constant dense<0.000000e+00> : vector<256x8xf32>
    %85 = tpu.matmul %82, %84, %cst_45 {dimension_numbers = #tpu.dot_dimension_numbers<[1], [0], [0], [1], [0, 0, 1, 1], [], []>} : vector<256x4xf32>, vector<4x8xf32>, vector<256x8xf32> -> vector<256x8xf32>
    %86 = arith.addf %80, %85 : vector<256x8xf32>
    %87 = vector.extract_strided_slice %1 {offsets = [2, 4, 0], sizes = [16, 16, 4], strides = [1, 1, 1]} : vector<20x20x4xf32> to vector<16x16x4xf32>
    %88 = vector.shape_cast %87 : vector<16x16x4xf32> to vector<256x4xf32>
    %c14 = arith.constant 14 : index
    %c0_46 = arith.constant 0 : index
    %c0_47 = arith.constant 0 : index
    %89 = vector.load %arg2[%c14, %c0_46, %c0_47] : memref<25x4x8xf32, #tpu.memory_space<vmem>>, vector<1x4x8xf32>
    %90 = vector.shape_cast %89 : vector<1x4x8xf32> to vector<4x8xf32>
    %cst_48 = arith.constant dense<0.000000e+00> : vector<256x8xf32>
    %91 = tpu.matmul %88, %90, %cst_48 {dimension_numbers = #tpu.dot_dimension_numbers<[1], [0], [0], [1], [0, 0, 1, 1], [], []>} : vector<256x4xf32>, vector<4x8xf32>, vector<256x8xf32> -> vector<256x8xf32>
    %92 = arith.addf %86, %91 : vector<256x8xf32>
    %93 = vector.extract_strided_slice %1 {offsets = [3, 0, 0], sizes = [16, 16, 4], strides = [1, 1, 1]} : vector<20x20x4xf32> to vector<16x16x4xf32>
    %94 = vector.shape_cast %93 : vector<16x16x4xf32> to vector<256x4xf32>
    %c15 = arith.constant 15 : index
    %c0_49 = arith.constant 0 : index
    %c0_50 = arith.constant 0 : index
    %95 = vector.load %arg2[%c15, %c0_49, %c0_50] : memref<25x4x8xf32, #tpu.memory_space<vmem>>, vector<1x4x8xf32>
    %96 = vector.shape_cast %95 : vector<1x4x8xf32> to vector<4x8xf32>
    %cst_51 = arith.constant dense<0.000000e+00> : vector<256x8xf32>
    %97 = tpu.matmul %94, %96, %cst_51 {dimension_numbers = #tpu.dot_dimension_numbers<[1], [0], [0], [1], [0, 0, 1, 1], [], []>} : vector<256x4xf32>, vector<4x8xf32>, vector<256x8xf32> -> vector<256x8xf32>
    %98 = arith.addf %92, %97 : vector<256x8xf32>
    %99 = vector.extract_strided_slice %1 {offsets = [3, 1, 0], sizes = [16, 16, 4], strides = [1, 1, 1]} : vector<20x20x4xf32> to vector<16x16x4xf32>
    %100 = vector.shape_cast %99 : vector<16x16x4xf32> to vector<256x4xf32>
    %c16 = arith.constant 16 : index
    %c0_52 = arith.constant 0 : index
    %c0_53 = arith.constant 0 : index
    %101 = vector.load %arg2[%c16, %c0_52, %c0_53] : memref<25x4x8xf32, #tpu.memory_space<vmem>>, vector<1x4x8xf32>
    %102 = vector.shape_cast %101 : vector<1x4x8xf32> to vector<4x8xf32>
    %cst_54 = arith.constant dense<0.000000e+00> : vector<256x8xf32>
    %103 = tpu.matmul %100, %102, %cst_54 {dimension_numbers = #tpu.dot_dimension_numbers<[1], [0], [0], [1], [0, 0, 1, 1], [], []>} : vector<256x4xf32>, vector<4x8xf32>, vector<256x8xf32> -> vector<256x8xf32>
    %104 = arith.addf %98, %103 : vector<256x8xf32>
    %105 = vector.extract_strided_slice %1 {offsets = [3, 2, 0], sizes = [16, 16, 4], strides = [1, 1, 1]} : vector<20x20x4xf32> to vector<16x16x4xf32>
    %106 = vector.shape_cast %105 : vector<16x16x4xf32> to vector<256x4xf32>
    %c17 = arith.constant 17 : index
    %c0_55 = arith.constant 0 : index
    %c0_56 = arith.constant 0 : index
    %107 = vector.load %arg2[%c17, %c0_55, %c0_56] : memref<25x4x8xf32, #tpu.memory_space<vmem>>, vector<1x4x8xf32>
    %108 = vector.shape_cast %107 : vector<1x4x8xf32> to vector<4x8xf32>
    %cst_57 = arith.constant dense<0.000000e+00> : vector<256x8xf32>
    %109 = tpu.matmul %106, %108, %cst_57 {dimension_numbers = #tpu.dot_dimension_numbers<[1], [0], [0], [1], [0, 0, 1, 1], [], []>} : vector<256x4xf32>, vector<4x8xf32>, vector<256x8xf32> -> vector<256x8xf32>
    %110 = arith.addf %104, %109 : vector<256x8xf32>
    %111 = vector.extract_strided_slice %1 {offsets = [3, 3, 0], sizes = [16, 16, 4], strides = [1, 1, 1]} : vector<20x20x4xf32> to vector<16x16x4xf32>
    %112 = vector.shape_cast %111 : vector<16x16x4xf32> to vector<256x4xf32>
    %c18 = arith.constant 18 : index
    %c0_58 = arith.constant 0 : index
    %c0_59 = arith.constant 0 : index
    %113 = vector.load %arg2[%c18, %c0_58, %c0_59] : memref<25x4x8xf32, #tpu.memory_space<vmem>>, vector<1x4x8xf32>
    %114 = vector.shape_cast %113 : vector<1x4x8xf32> to vector<4x8xf32>
    %cst_60 = arith.constant dense<0.000000e+00> : vector<256x8xf32>
    %115 = tpu.matmul %112, %114, %cst_60 {dimension_numbers = #tpu.dot_dimension_numbers<[1], [0], [0], [1], [0, 0, 1, 1], [], []>} : vector<256x4xf32>, vector<4x8xf32>, vector<256x8xf32> -> vector<256x8xf32>
    %116 = arith.addf %110, %115 : vector<256x8xf32>
    %117 = vector.extract_strided_slice %1 {offsets = [3, 4, 0], sizes = [16, 16, 4], strides = [1, 1, 1]} : vector<20x20x4xf32> to vector<16x16x4xf32>
    %118 = vector.shape_cast %117 : vector<16x16x4xf32> to vector<256x4xf32>
    %c19 = arith.constant 19 : index
    %c0_61 = arith.constant 0 : index
    %c0_62 = arith.constant 0 : index
    %119 = vector.load %arg2[%c19, %c0_61, %c0_62] : memref<25x4x8xf32, #tpu.memory_space<vmem>>, vector<1x4x8xf32>
    %120 = vector.shape_cast %119 : vector<1x4x8xf32> to vector<4x8xf32>
    %cst_63 = arith.constant dense<0.000000e+00> : vector<256x8xf32>
    %121 = tpu.matmul %118, %120, %cst_63 {dimension_numbers = #tpu.dot_dimension_numbers<[1], [0], [0], [1], [0, 0, 1, 1], [], []>} : vector<256x4xf32>, vector<4x8xf32>, vector<256x8xf32> -> vector<256x8xf32>
    %122 = arith.addf %116, %121 : vector<256x8xf32>
    %123 = vector.extract_strided_slice %1 {offsets = [4, 0, 0], sizes = [16, 16, 4], strides = [1, 1, 1]} : vector<20x20x4xf32> to vector<16x16x4xf32>
    %124 = vector.shape_cast %123 : vector<16x16x4xf32> to vector<256x4xf32>
    %c20 = arith.constant 20 : index
    %c0_64 = arith.constant 0 : index
    %c0_65 = arith.constant 0 : index
    %125 = vector.load %arg2[%c20, %c0_64, %c0_65] : memref<25x4x8xf32, #tpu.memory_space<vmem>>, vector<1x4x8xf32>
    %126 = vector.shape_cast %125 : vector<1x4x8xf32> to vector<4x8xf32>
    %cst_66 = arith.constant dense<0.000000e+00> : vector<256x8xf32>
    %127 = tpu.matmul %124, %126, %cst_66 {dimension_numbers = #tpu.dot_dimension_numbers<[1], [0], [0], [1], [0, 0, 1, 1], [], []>} : vector<256x4xf32>, vector<4x8xf32>, vector<256x8xf32> -> vector<256x8xf32>
    %128 = arith.addf %122, %127 : vector<256x8xf32>
    %129 = vector.extract_strided_slice %1 {offsets = [4, 1, 0], sizes = [16, 16, 4], strides = [1, 1, 1]} : vector<20x20x4xf32> to vector<16x16x4xf32>
    %130 = vector.shape_cast %129 : vector<16x16x4xf32> to vector<256x4xf32>
    %c21 = arith.constant 21 : index
    %c0_67 = arith.constant 0 : index
    %c0_68 = arith.constant 0 : index
    %131 = vector.load %arg2[%c21, %c0_67, %c0_68] : memref<25x4x8xf32, #tpu.memory_space<vmem>>, vector<1x4x8xf32>
    %132 = vector.shape_cast %131 : vector<1x4x8xf32> to vector<4x8xf32>
    %cst_69 = arith.constant dense<0.000000e+00> : vector<256x8xf32>
    %133 = tpu.matmul %130, %132, %cst_69 {dimension_numbers = #tpu.dot_dimension_numbers<[1], [0], [0], [1], [0, 0, 1, 1], [], []>} : vector<256x4xf32>, vector<4x8xf32>, vector<256x8xf32> -> vector<256x8xf32>
    %134 = arith.addf %128, %133 : vector<256x8xf32>
    %135 = vector.extract_strided_slice %1 {offsets = [4, 2, 0], sizes = [16, 16, 4], strides = [1, 1, 1]} : vector<20x20x4xf32> to vector<16x16x4xf32>
    %136 = vector.shape_cast %135 : vector<16x16x4xf32> to vector<256x4xf32>
    %c22 = arith.constant 22 : index
    %c0_70 = arith.constant 0 : index
    %c0_71 = arith.constant 0 : index
    %137 = vector.load %arg2[%c22, %c0_70, %c0_71] : memref<25x4x8xf32, #tpu.memory_space<vmem>>, vector<1x4x8xf32>
    %138 = vector.shape_cast %137 : vector<1x4x8xf32> to vector<4x8xf32>
    %cst_72 = arith.constant dense<0.000000e+00> : vector<256x8xf32>
    %139 = tpu.matmul %136, %138, %cst_72 {dimension_numbers = #tpu.dot_dimension_numbers<[1], [0], [0], [1], [0, 0, 1, 1], [], []>} : vector<256x4xf32>, vector<4x8xf32>, vector<256x8xf32> -> vector<256x8xf32>
    %140 = arith.addf %134, %139 : vector<256x8xf32>
    %141 = vector.extract_strided_slice %1 {offsets = [4, 3, 0], sizes = [16, 16, 4], strides = [1, 1, 1]} : vector<20x20x4xf32> to vector<16x16x4xf32>
    %142 = vector.shape_cast %141 : vector<16x16x4xf32> to vector<256x4xf32>
    %c23 = arith.constant 23 : index
    %c0_73 = arith.constant 0 : index
    %c0_74 = arith.constant 0 : index
    %143 = vector.load %arg2[%c23, %c0_73, %c0_74] : memref<25x4x8xf32, #tpu.memory_space<vmem>>, vector<1x4x8xf32>
    %144 = vector.shape_cast %143 : vector<1x4x8xf32> to vector<4x8xf32>
    %cst_75 = arith.constant dense<0.000000e+00> : vector<256x8xf32>
    %145 = tpu.matmul %142, %144, %cst_75 {dimension_numbers = #tpu.dot_dimension_numbers<[1], [0], [0], [1], [0, 0, 1, 1], [], []>} : vector<256x4xf32>, vector<4x8xf32>, vector<256x8xf32> -> vector<256x8xf32>
    %146 = arith.addf %140, %145 : vector<256x8xf32>
    %147 = vector.extract_strided_slice %1 {offsets = [4, 4, 0], sizes = [16, 16, 4], strides = [1, 1, 1]} : vector<20x20x4xf32> to vector<16x16x4xf32>
    %148 = vector.shape_cast %147 : vector<16x16x4xf32> to vector<256x4xf32>
    %c24 = arith.constant 24 : index
    %c0_76 = arith.constant 0 : index
    %c0_77 = arith.constant 0 : index
    %149 = vector.load %arg2[%c24, %c0_76, %c0_77] : memref<25x4x8xf32, #tpu.memory_space<vmem>>, vector<1x4x8xf32>
    %150 = vector.shape_cast %149 : vector<1x4x8xf32> to vector<4x8xf32>
    %cst_78 = arith.constant dense<0.000000e+00> : vector<256x8xf32>
    %151 = tpu.matmul %148, %150, %cst_78 {dimension_numbers = #tpu.dot_dimension_numbers<[1], [0], [0], [1], [0, 0, 1, 1], [], []>} : vector<256x4xf32>, vector<4x8xf32>, vector<256x8xf32> -> vector<256x8xf32>
    %152 = arith.addf %146, %151 : vector<256x8xf32>
    %c0_79 = arith.constant 0 : index
    %c0_80 = arith.constant 0 : index
    %153 = vector.load %arg3[%c0_79, %c0_80] : memref<1x8xf32, #tpu.memory_space<vmem>>, vector<1x8xf32>
    %154 = vector.broadcast %153 : vector<1x8xf32> to vector<256x8xf32>
    %155 = arith.addf %152, %154 : vector<256x8xf32>
    %156 = math.tanh %155 : vector<256x8xf32>
    %157 = vector.shape_cast %156 : vector<256x8xf32> to vector<16x16x8xf32>
    %c0_81 = arith.constant 0 : index
    %c0_82 = arith.constant 0 : index
    %c0_83 = arith.constant 0 : index
    %158 = vector.load %arg8[%c0_81, %c0_82, %c0_83] : memref<16x16x8xf32, #tpu.memory_space<vmem>>, vector<16x16x8xf32>
    tpu.vector_store %arg8[%c0_81, %c0_82, %c0_83], %157 {strides = array<i32>} : memref<16x16x8xf32, #tpu.memory_space<vmem>>, vector<16x16x8xf32>,
    %c0_84 = arith.constant 0 : index
    %c0_85 = arith.constant 0 : index
    %c0_86 = arith.constant 0 : index
    %159 = tpu.strided_load %arg8[%c0_84, %c0_85, %c0_86] {strides = array<i32: 1, 2, 1>} : memref<16x16x8xf32, #tpu.memory_space<vmem>>, vector<16x8x8xf32>
    %c0_87 = arith.constant 0 : index
    %c1_88 = arith.constant 1 : index
    %c0_89 = arith.constant 0 : index
    %160 = tpu.strided_load %arg8[%c0_87, %c1_88, %c0_89] {strides = array<i32: 1, 2, 1>} : memref<16x16x8xf32, #tpu.memory_space<vmem>>, vector<16x8x8xf32>
    %161 = arith.maximumf %159, %160 : vector<16x8x8xf32>
    %162 = vector.shape_cast %161 : vector<16x8x8xf32> to vector<8x2x8x8xf32>
    %cst_90 = arith.constant dense<0xFF800000> : vector<8x8x8xf32>
    %163 = vector.multi_reduction <maximumf>, %162, %cst_90 [1] : vector<8x2x8x8xf32> to vector<8x8x8xf32>
    %cst_91 = arith.constant 0.000000e+00 : f32
    %164 = vector.broadcast %cst_91 : f32 to vector<12x12x8xf32>
    %c0_92 = arith.constant 0 : index
    %c0_93 = arith.constant 0 : index
    %c0_94 = arith.constant 0 : index
    %165 = vector.load %arg7[%c0_92, %c0_93, %c0_94] : memref<12x12x8xf32, #tpu.memory_space<vmem>>, vector<12x12x8xf32>
    tpu.vector_store %arg7[%c0_92, %c0_93, %c0_94], %164 {strides = array<i32>} : memref<12x12x8xf32, #tpu.memory_space<vmem>>, vector<12x12x8xf32>,
    %c2_95 = arith.constant 2 : index
    %c2_96 = arith.constant 2 : index
    %c0_97 = arith.constant 0 : index
    %166 = vector.load %arg7[%c2_95, %c2_96, %c0_97] : memref<12x12x8xf32, #tpu.memory_space<vmem>>, vector<8x8x8xf32>
    tpu.vector_store %arg7[%c2_95, %c2_96, %c0_97], %163 {strides = array<i32>} : memref<12x12x8xf32, #tpu.memory_space<vmem>>, vector<8x8x8xf32>,
    %c0_98 = arith.constant 0 : index
    %c0_99 = arith.constant 0 : index
    %c0_100 = arith.constant 0 : index
    %167 = vector.load %arg7[%c0_98, %c0_99, %c0_100] : memref<12x12x8xf32, #tpu.memory_space<vmem>>, vector<12x12x8xf32>
    %cst_101 = arith.constant 0.000000e+00 : f32
    %168 = vector.broadcast %cst_101 : f32 to vector<64x16xf32>
    %169 = vector.extract_strided_slice %167 {offsets = [0, 0, 0], sizes = [8, 8, 8], strides = [1, 1, 1]} : vector<12x12x8xf32> to vector<8x8x8xf32>
    %170 = vector.shape_cast %169 : vector<8x8x8xf32> to vector<64x8xf32>
    %c0_102 = arith.constant 0 : index
    %c0_103 = arith.constant 0 : index
    %c0_104 = arith.constant 0 : index
    %171 = vector.load %arg4[%c0_102, %c0_103, %c0_104] : memref<25x8x16xf32, #tpu.memory_space<vmem>>, vector<1x8x16xf32>
    %172 = vector.shape_cast %171 : vector<1x8x16xf32> to vector<8x16xf32>
    %cst_105 = arith.constant dense<0.000000e+00> : vector<64x16xf32>
    %173 = tpu.matmul %170, %172, %cst_105 {dimension_numbers = #tpu.dot_dimension_numbers<[1], [0], [0], [1], [0, 0, 1, 1], [], []>} : vector<64x8xf32>, vector<8x16xf32>, vector<64x16xf32> -> vector<64x16xf32>
    %174 = arith.addf %168, %173 : vector<64x16xf32>
    %175 = vector.extract_strided_slice %167 {offsets = [0, 1, 0], sizes = [8, 8, 8], strides = [1, 1, 1]} : vector<12x12x8xf32> to vector<8x8x8xf32>
    %176 = vector.shape_cast %175 : vector<8x8x8xf32> to vector<64x8xf32>
    %c1_106 = arith.constant 1 : index
    %c0_107 = arith.constant 0 : index
    %c0_108 = arith.constant 0 : index
    %177 = vector.load %arg4[%c1_106, %c0_107, %c0_108] : memref<25x8x16xf32, #tpu.memory_space<vmem>>, vector<1x8x16xf32>
    %178 = vector.shape_cast %177 : vector<1x8x16xf32> to vector<8x16xf32>
    %cst_109 = arith.constant dense<0.000000e+00> : vector<64x16xf32>
    %179 = tpu.matmul %176, %178, %cst_109 {dimension_numbers = #tpu.dot_dimension_numbers<[1], [0], [0], [1], [0, 0, 1, 1], [], []>} : vector<64x8xf32>, vector<8x16xf32>, vector<64x16xf32> -> vector<64x16xf32>
    %180 = arith.addf %174, %179 : vector<64x16xf32>
    %181 = vector.extract_strided_slice %167 {offsets = [0, 2, 0], sizes = [8, 8, 8], strides = [1, 1, 1]} : vector<12x12x8xf32> to vector<8x8x8xf32>
    %182 = vector.shape_cast %181 : vector<8x8x8xf32> to vector<64x8xf32>
    %c2_110 = arith.constant 2 : index
    %c0_111 = arith.constant 0 : index
    %c0_112 = arith.constant 0 : index
    %183 = vector.load %arg4[%c2_110, %c0_111, %c0_112] : memref<25x8x16xf32, #tpu.memory_space<vmem>>, vector<1x8x16xf32>
    %184 = vector.shape_cast %183 : vector<1x8x16xf32> to vector<8x16xf32>
    %cst_113 = arith.constant dense<0.000000e+00> : vector<64x16xf32>
    %185 = tpu.matmul %182, %184, %cst_113 {dimension_numbers = #tpu.dot_dimension_numbers<[1], [0], [0], [1], [0, 0, 1, 1], [], []>} : vector<64x8xf32>, vector<8x16xf32>, vector<64x16xf32> -> vector<64x16xf32>
    %186 = arith.addf %180, %185 : vector<64x16xf32>
    %187 = vector.extract_strided_slice %167 {offsets = [0, 3, 0], sizes = [8, 8, 8], strides = [1, 1, 1]} : vector<12x12x8xf32> to vector<8x8x8xf32>
    %188 = vector.shape_cast %187 : vector<8x8x8xf32> to vector<64x8xf32>
    %c3_114 = arith.constant 3 : index
    %c0_115 = arith.constant 0 : index
    %c0_116 = arith.constant 0 : index
    %189 = vector.load %arg4[%c3_114, %c0_115, %c0_116] : memref<25x8x16xf32, #tpu.memory_space<vmem>>, vector<1x8x16xf32>
    %190 = vector.shape_cast %189 : vector<1x8x16xf32> to vector<8x16xf32>
    %cst_117 = arith.constant dense<0.000000e+00> : vector<64x16xf32>
    %191 = tpu.matmul %188, %190, %cst_117 {dimension_numbers = #tpu.dot_dimension_numbers<[1], [0], [0], [1], [0, 0, 1, 1], [], []>} : vector<64x8xf32>, vector<8x16xf32>, vector<64x16xf32> -> vector<64x16xf32>
    %192 = arith.addf %186, %191 : vector<64x16xf32>
    %193 = vector.extract_strided_slice %167 {offsets = [0, 4, 0], sizes = [8, 8, 8], strides = [1, 1, 1]} : vector<12x12x8xf32> to vector<8x8x8xf32>
    %194 = vector.shape_cast %193 : vector<8x8x8xf32> to vector<64x8xf32>
    %c4_118 = arith.constant 4 : index
    %c0_119 = arith.constant 0 : index
    %c0_120 = arith.constant 0 : index
    %195 = vector.load %arg4[%c4_118, %c0_119, %c0_120] : memref<25x8x16xf32, #tpu.memory_space<vmem>>, vector<1x8x16xf32>
    %196 = vector.shape_cast %195 : vector<1x8x16xf32> to vector<8x16xf32>
    %cst_121 = arith.constant dense<0.000000e+00> : vector<64x16xf32>
    %197 = tpu.matmul %194, %196, %cst_121 {dimension_numbers = #tpu.dot_dimension_numbers<[1], [0], [0], [1], [0, 0, 1, 1], [], []>} : vector<64x8xf32>, vector<8x16xf32>, vector<64x16xf32> -> vector<64x16xf32>
    %198 = arith.addf %192, %197 : vector<64x16xf32>
    %199 = vector.extract_strided_slice %167 {offsets = [1, 0, 0], sizes = [8, 8, 8], strides = [1, 1, 1]} : vector<12x12x8xf32> to vector<8x8x8xf32>
    %200 = vector.shape_cast %199 : vector<8x8x8xf32> to vector<64x8xf32>
    %c5_122 = arith.constant 5 : index
    %c0_123 = arith.constant 0 : index
    %c0_124 = arith.constant 0 : index
    %201 = vector.load %arg4[%c5_122, %c0_123, %c0_124] : memref<25x8x16xf32, #tpu.memory_space<vmem>>, vector<1x8x16xf32>
    %202 = vector.shape_cast %201 : vector<1x8x16xf32> to vector<8x16xf32>
    %cst_125 = arith.constant dense<0.000000e+00> : vector<64x16xf32>
    %203 = tpu.matmul %200, %202, %cst_125 {dimension_numbers = #tpu.dot_dimension_numbers<[1], [0], [0], [1], [0, 0, 1, 1], [], []>} : vector<64x8xf32>, vector<8x16xf32>, vector<64x16xf32> -> vector<64x16xf32>
    %204 = arith.addf %198, %203 : vector<64x16xf32>
    %205 = vector.extract_strided_slice %167 {offsets = [1, 1, 0], sizes = [8, 8, 8], strides = [1, 1, 1]} : vector<12x12x8xf32> to vector<8x8x8xf32>
    %206 = vector.shape_cast %205 : vector<8x8x8xf32> to vector<64x8xf32>
    %c6_126 = arith.constant 6 : index
    %c0_127 = arith.constant 0 : index
    %c0_128 = arith.constant 0 : index
    %207 = vector.load %arg4[%c6_126, %c0_127, %c0_128] : memref<25x8x16xf32, #tpu.memory_space<vmem>>, vector<1x8x16xf32>
    %208 = vector.shape_cast %207 : vector<1x8x16xf32> to vector<8x16xf32>
    %cst_129 = arith.constant dense<0.000000e+00> : vector<64x16xf32>
    %209 = tpu.matmul %206, %208, %cst_129 {dimension_numbers = #tpu.dot_dimension_numbers<[1], [0], [0], [1], [0, 0, 1, 1], [], []>} : vector<64x8xf32>, vector<8x16xf32>, vector<64x16xf32> -> vector<64x16xf32>
    %210 = arith.addf %204, %209 : vector<64x16xf32>
    %211 = vector.extract_strided_slice %167 {offsets = [1, 2, 0], sizes = [8, 8, 8], strides = [1, 1, 1]} : vector<12x12x8xf32> to vector<8x8x8xf32>
    %212 = vector.shape_cast %211 : vector<8x8x8xf32> to vector<64x8xf32>
    %c7_130 = arith.constant 7 : index
    %c0_131 = arith.constant 0 : index
    %c0_132 = arith.constant 0 : index
    %213 = vector.load %arg4[%c7_130, %c0_131, %c0_132] : memref<25x8x16xf32, #tpu.memory_space<vmem>>, vector<1x8x16xf32>
    %214 = vector.shape_cast %213 : vector<1x8x16xf32> to vector<8x16xf32>
    %cst_133 = arith.constant dense<0.000000e+00> : vector<64x16xf32>
    %215 = tpu.matmul %212, %214, %cst_133 {dimension_numbers = #tpu.dot_dimension_numbers<[1], [0], [0], [1], [0, 0, 1, 1], [], []>} : vector<64x8xf32>, vector<8x16xf32>, vector<64x16xf32> -> vector<64x16xf32>
    %216 = arith.addf %210, %215 : vector<64x16xf32>
    %217 = vector.extract_strided_slice %167 {offsets = [1, 3, 0], sizes = [8, 8, 8], strides = [1, 1, 1]} : vector<12x12x8xf32> to vector<8x8x8xf32>
    %218 = vector.shape_cast %217 : vector<8x8x8xf32> to vector<64x8xf32>
    %c8_134 = arith.constant 8 : index
    %c0_135 = arith.constant 0 : index
    %c0_136 = arith.constant 0 : index
    %219 = vector.load %arg4[%c8_134, %c0_135, %c0_136] : memref<25x8x16xf32, #tpu.memory_space<vmem>>, vector<1x8x16xf32>
    %220 = vector.shape_cast %219 : vector<1x8x16xf32> to vector<8x16xf32>
    %cst_137 = arith.constant dense<0.000000e+00> : vector<64x16xf32>
    %221 = tpu.matmul %218, %220, %cst_137 {dimension_numbers = #tpu.dot_dimension_numbers<[1], [0], [0], [1], [0, 0, 1, 1], [], []>} : vector<64x8xf32>, vector<8x16xf32>, vector<64x16xf32> -> vector<64x16xf32>
    %222 = arith.addf %216, %221 : vector<64x16xf32>
    %223 = vector.extract_strided_slice %167 {offsets = [1, 4, 0], sizes = [8, 8, 8], strides = [1, 1, 1]} : vector<12x12x8xf32> to vector<8x8x8xf32>
    %224 = vector.shape_cast %223 : vector<8x8x8xf32> to vector<64x8xf32>
    %c9_138 = arith.constant 9 : index
    %c0_139 = arith.constant 0 : index
    %c0_140 = arith.constant 0 : index
    %225 = vector.load %arg4[%c9_138, %c0_139, %c0_140] : memref<25x8x16xf32, #tpu.memory_space<vmem>>, vector<1x8x16xf32>
    %226 = vector.shape_cast %225 : vector<1x8x16xf32> to vector<8x16xf32>
    %cst_141 = arith.constant dense<0.000000e+00> : vector<64x16xf32>
    %227 = tpu.matmul %224, %226, %cst_141 {dimension_numbers = #tpu.dot_dimension_numbers<[1], [0], [0], [1], [0, 0, 1, 1], [], []>} : vector<64x8xf32>, vector<8x16xf32>, vector<64x16xf32> -> vector<64x16xf32>
    %228 = arith.addf %222, %227 : vector<64x16xf32>
    %229 = vector.extract_strided_slice %167 {offsets = [2, 0, 0], sizes = [8, 8, 8], strides = [1, 1, 1]} : vector<12x12x8xf32> to vector<8x8x8xf32>
    %230 = vector.shape_cast %229 : vector<8x8x8xf32> to vector<64x8xf32>
    %c10_142 = arith.constant 10 : index
    %c0_143 = arith.constant 0 : index
    %c0_144 = arith.constant 0 : index
    %231 = vector.load %arg4[%c10_142, %c0_143, %c0_144] : memref<25x8x16xf32, #tpu.memory_space<vmem>>, vector<1x8x16xf32>
    %232 = vector.shape_cast %231 : vector<1x8x16xf32> to vector<8x16xf32>
    %cst_145 = arith.constant dense<0.000000e+00> : vector<64x16xf32>
    %233 = tpu.matmul %230, %232, %cst_145 {dimension_numbers = #tpu.dot_dimension_numbers<[1], [0], [0], [1], [0, 0, 1, 1], [], []>} : vector<64x8xf32>, vector<8x16xf32>, vector<64x16xf32> -> vector<64x16xf32>
    %234 = arith.addf %228, %233 : vector<64x16xf32>
    %235 = vector.extract_strided_slice %167 {offsets = [2, 1, 0], sizes = [8, 8, 8], strides = [1, 1, 1]} : vector<12x12x8xf32> to vector<8x8x8xf32>
    %236 = vector.shape_cast %235 : vector<8x8x8xf32> to vector<64x8xf32>
    %c11_146 = arith.constant 11 : index
    %c0_147 = arith.constant 0 : index
    %c0_148 = arith.constant 0 : index
    %237 = vector.load %arg4[%c11_146, %c0_147, %c0_148] : memref<25x8x16xf32, #tpu.memory_space<vmem>>, vector<1x8x16xf32>
    %238 = vector.shape_cast %237 : vector<1x8x16xf32> to vector<8x16xf32>
    %cst_149 = arith.constant dense<0.000000e+00> : vector<64x16xf32>
    %239 = tpu.matmul %236, %238, %cst_149 {dimension_numbers = #tpu.dot_dimension_numbers<[1], [0], [0], [1], [0, 0, 1, 1], [], []>} : vector<64x8xf32>, vector<8x16xf32>, vector<64x16xf32> -> vector<64x16xf32>
    %240 = arith.addf %234, %239 : vector<64x16xf32>
    %241 = vector.extract_strided_slice %167 {offsets = [2, 2, 0], sizes = [8, 8, 8], strides = [1, 1, 1]} : vector<12x12x8xf32> to vector<8x8x8xf32>
    %242 = vector.shape_cast %241 : vector<8x8x8xf32> to vector<64x8xf32>
    %c12_150 = arith.constant 12 : index
    %c0_151 = arith.constant 0 : index
    %c0_152 = arith.constant 0 : index
    %243 = vector.load %arg4[%c12_150, %c0_151, %c0_152] : memref<25x8x16xf32, #tpu.memory_space<vmem>>, vector<1x8x16xf32>
    %244 = vector.shape_cast %243 : vector<1x8x16xf32> to vector<8x16xf32>
    %cst_153 = arith.constant dense<0.000000e+00> : vector<64x16xf32>
    %245 = tpu.matmul %242, %244, %cst_153 {dimension_numbers = #tpu.dot_dimension_numbers<[1], [0], [0], [1], [0, 0, 1, 1], [], []>} : vector<64x8xf32>, vector<8x16xf32>, vector<64x16xf32> -> vector<64x16xf32>
    %246 = arith.addf %240, %245 : vector<64x16xf32>
    %247 = vector.extract_strided_slice %167 {offsets = [2, 3, 0], sizes = [8, 8, 8], strides = [1, 1, 1]} : vector<12x12x8xf32> to vector<8x8x8xf32>
    %248 = vector.shape_cast %247 : vector<8x8x8xf32> to vector<64x8xf32>
    %c13_154 = arith.constant 13 : index
    %c0_155 = arith.constant 0 : index
    %c0_156 = arith.constant 0 : index
    %249 = vector.load %arg4[%c13_154, %c0_155, %c0_156] : memref<25x8x16xf32, #tpu.memory_space<vmem>>, vector<1x8x16xf32>
    %250 = vector.shape_cast %249 : vector<1x8x16xf32> to vector<8x16xf32>
    %cst_157 = arith.constant dense<0.000000e+00> : vector<64x16xf32>
    %251 = tpu.matmul %248, %250, %cst_157 {dimension_numbers = #tpu.dot_dimension_numbers<[1], [0], [0], [1], [0, 0, 1, 1], [], []>} : vector<64x8xf32>, vector<8x16xf32>, vector<64x16xf32> -> vector<64x16xf32>
    %252 = arith.addf %246, %251 : vector<64x16xf32>
    %253 = vector.extract_strided_slice %167 {offsets = [2, 4, 0], sizes = [8, 8, 8], strides = [1, 1, 1]} : vector<12x12x8xf32> to vector<8x8x8xf32>
    %254 = vector.shape_cast %253 : vector<8x8x8xf32> to vector<64x8xf32>
    %c14_158 = arith.constant 14 : index
    %c0_159 = arith.constant 0 : index
    %c0_160 = arith.constant 0 : index
    %255 = vector.load %arg4[%c14_158, %c0_159, %c0_160] : memref<25x8x16xf32, #tpu.memory_space<vmem>>, vector<1x8x16xf32>
    %256 = vector.shape_cast %255 : vector<1x8x16xf32> to vector<8x16xf32>
    %cst_161 = arith.constant dense<0.000000e+00> : vector<64x16xf32>
    %257 = tpu.matmul %254, %256, %cst_161 {dimension_numbers = #tpu.dot_dimension_numbers<[1], [0], [0], [1], [0, 0, 1, 1], [], []>} : vector<64x8xf32>, vector<8x16xf32>, vector<64x16xf32> -> vector<64x16xf32>
    %258 = arith.addf %252, %257 : vector<64x16xf32>
    %259 = vector.extract_strided_slice %167 {offsets = [3, 0, 0], sizes = [8, 8, 8], strides = [1, 1, 1]} : vector<12x12x8xf32> to vector<8x8x8xf32>
    %260 = vector.shape_cast %259 : vector<8x8x8xf32> to vector<64x8xf32>
    %c15_162 = arith.constant 15 : index
    %c0_163 = arith.constant 0 : index
    %c0_164 = arith.constant 0 : index
    %261 = vector.load %arg4[%c15_162, %c0_163, %c0_164] : memref<25x8x16xf32, #tpu.memory_space<vmem>>, vector<1x8x16xf32>
    %262 = vector.shape_cast %261 : vector<1x8x16xf32> to vector<8x16xf32>
    %cst_165 = arith.constant dense<0.000000e+00> : vector<64x16xf32>
    %263 = tpu.matmul %260, %262, %cst_165 {dimension_numbers = #tpu.dot_dimension_numbers<[1], [0], [0], [1], [0, 0, 1, 1], [], []>} : vector<64x8xf32>, vector<8x16xf32>, vector<64x16xf32> -> vector<64x16xf32>
    %264 = arith.addf %258, %263 : vector<64x16xf32>
    %265 = vector.extract_strided_slice %167 {offsets = [3, 1, 0], sizes = [8, 8, 8], strides = [1, 1, 1]} : vector<12x12x8xf32> to vector<8x8x8xf32>
    %266 = vector.shape_cast %265 : vector<8x8x8xf32> to vector<64x8xf32>
    %c16_166 = arith.constant 16 : index
    %c0_167 = arith.constant 0 : index
    %c0_168 = arith.constant 0 : index
    %267 = vector.load %arg4[%c16_166, %c0_167, %c0_168] : memref<25x8x16xf32, #tpu.memory_space<vmem>>, vector<1x8x16xf32>
    %268 = vector.shape_cast %267 : vector<1x8x16xf32> to vector<8x16xf32>
    %cst_169 = arith.constant dense<0.000000e+00> : vector<64x16xf32>
    %269 = tpu.matmul %266, %268, %cst_169 {dimension_numbers = #tpu.dot_dimension_numbers<[1], [0], [0], [1], [0, 0, 1, 1], [], []>} : vector<64x8xf32>, vector<8x16xf32>, vector<64x16xf32> -> vector<64x16xf32>
    %270 = arith.addf %264, %269 : vector<64x16xf32>
    %271 = vector.extract_strided_slice %167 {offsets = [3, 2, 0], sizes = [8, 8, 8], strides = [1, 1, 1]} : vector<12x12x8xf32> to vector<8x8x8xf32>
    %272 = vector.shape_cast %271 : vector<8x8x8xf32> to vector<64x8xf32>
    %c17_170 = arith.constant 17 : index
    %c0_171 = arith.constant 0 : index
    %c0_172 = arith.constant 0 : index
    %273 = vector.load %arg4[%c17_170, %c0_171, %c0_172] : memref<25x8x16xf32, #tpu.memory_space<vmem>>, vector<1x8x16xf32>
    %274 = vector.shape_cast %273 : vector<1x8x16xf32> to vector<8x16xf32>
    %cst_173 = arith.constant dense<0.000000e+00> : vector<64x16xf32>
    %275 = tpu.matmul %272, %274, %cst_173 {dimension_numbers = #tpu.dot_dimension_numbers<[1], [0], [0], [1], [0, 0, 1, 1], [], []>} : vector<64x8xf32>, vector<8x16xf32>, vector<64x16xf32> -> vector<64x16xf32>
    %276 = arith.addf %270, %275 : vector<64x16xf32>
    %277 = vector.extract_strided_slice %167 {offsets = [3, 3, 0], sizes = [8, 8, 8], strides = [1, 1, 1]} : vector<12x12x8xf32> to vector<8x8x8xf32>
    %278 = vector.shape_cast %277 : vector<8x8x8xf32> to vector<64x8xf32>
    %c18_174 = arith.constant 18 : index
    %c0_175 = arith.constant 0 : index
    %c0_176 = arith.constant 0 : index
    %279 = vector.load %arg4[%c18_174, %c0_175, %c0_176] : memref<25x8x16xf32, #tpu.memory_space<vmem>>, vector<1x8x16xf32>
    %280 = vector.shape_cast %279 : vector<1x8x16xf32> to vector<8x16xf32>
    %cst_177 = arith.constant dense<0.000000e+00> : vector<64x16xf32>
    %281 = tpu.matmul %278, %280, %cst_177 {dimension_numbers = #tpu.dot_dimension_numbers<[1], [0], [0], [1], [0, 0, 1, 1], [], []>} : vector<64x8xf32>, vector<8x16xf32>, vector<64x16xf32> -> vector<64x16xf32>
    %282 = arith.addf %276, %281 : vector<64x16xf32>
    %283 = vector.extract_strided_slice %167 {offsets = [3, 4, 0], sizes = [8, 8, 8], strides = [1, 1, 1]} : vector<12x12x8xf32> to vector<8x8x8xf32>
    %284 = vector.shape_cast %283 : vector<8x8x8xf32> to vector<64x8xf32>
    %c19_178 = arith.constant 19 : index
    %c0_179 = arith.constant 0 : index
    %c0_180 = arith.constant 0 : index
    %285 = vector.load %arg4[%c19_178, %c0_179, %c0_180] : memref<25x8x16xf32, #tpu.memory_space<vmem>>, vector<1x8x16xf32>
    %286 = vector.shape_cast %285 : vector<1x8x16xf32> to vector<8x16xf32>
    %cst_181 = arith.constant dense<0.000000e+00> : vector<64x16xf32>
    %287 = tpu.matmul %284, %286, %cst_181 {dimension_numbers = #tpu.dot_dimension_numbers<[1], [0], [0], [1], [0, 0, 1, 1], [], []>} : vector<64x8xf32>, vector<8x16xf32>, vector<64x16xf32> -> vector<64x16xf32>
    %288 = arith.addf %282, %287 : vector<64x16xf32>
    %289 = vector.extract_strided_slice %167 {offsets = [4, 0, 0], sizes = [8, 8, 8], strides = [1, 1, 1]} : vector<12x12x8xf32> to vector<8x8x8xf32>
    %290 = vector.shape_cast %289 : vector<8x8x8xf32> to vector<64x8xf32>
    %c20_182 = arith.constant 20 : index
    %c0_183 = arith.constant 0 : index
    %c0_184 = arith.constant 0 : index
    %291 = vector.load %arg4[%c20_182, %c0_183, %c0_184] : memref<25x8x16xf32, #tpu.memory_space<vmem>>, vector<1x8x16xf32>
    %292 = vector.shape_cast %291 : vector<1x8x16xf32> to vector<8x16xf32>
    %cst_185 = arith.constant dense<0.000000e+00> : vector<64x16xf32>
    %293 = tpu.matmul %290, %292, %cst_185 {dimension_numbers = #tpu.dot_dimension_numbers<[1], [0], [0], [1], [0, 0, 1, 1], [], []>} : vector<64x8xf32>, vector<8x16xf32>, vector<64x16xf32> -> vector<64x16xf32>
    %294 = arith.addf %288, %293 : vector<64x16xf32>
    %295 = vector.extract_strided_slice %167 {offsets = [4, 1, 0], sizes = [8, 8, 8], strides = [1, 1, 1]} : vector<12x12x8xf32> to vector<8x8x8xf32>
    %296 = vector.shape_cast %295 : vector<8x8x8xf32> to vector<64x8xf32>
    %c21_186 = arith.constant 21 : index
    %c0_187 = arith.constant 0 : index
    %c0_188 = arith.constant 0 : index
    %297 = vector.load %arg4[%c21_186, %c0_187, %c0_188] : memref<25x8x16xf32, #tpu.memory_space<vmem>>, vector<1x8x16xf32>
    %298 = vector.shape_cast %297 : vector<1x8x16xf32> to vector<8x16xf32>
    %cst_189 = arith.constant dense<0.000000e+00> : vector<64x16xf32>
    %299 = tpu.matmul %296, %298, %cst_189 {dimension_numbers = #tpu.dot_dimension_numbers<[1], [0], [0], [1], [0, 0, 1, 1], [], []>} : vector<64x8xf32>, vector<8x16xf32>, vector<64x16xf32> -> vector<64x16xf32>
    %300 = arith.addf %294, %299 : vector<64x16xf32>
    %301 = vector.extract_strided_slice %167 {offsets = [4, 2, 0], sizes = [8, 8, 8], strides = [1, 1, 1]} : vector<12x12x8xf32> to vector<8x8x8xf32>
    %302 = vector.shape_cast %301 : vector<8x8x8xf32> to vector<64x8xf32>
    %c22_190 = arith.constant 22 : index
    %c0_191 = arith.constant 0 : index
    %c0_192 = arith.constant 0 : index
    %303 = vector.load %arg4[%c22_190, %c0_191, %c0_192] : memref<25x8x16xf32, #tpu.memory_space<vmem>>, vector<1x8x16xf32>
    %304 = vector.shape_cast %303 : vector<1x8x16xf32> to vector<8x16xf32>
    %cst_193 = arith.constant dense<0.000000e+00> : vector<64x16xf32>
    %305 = tpu.matmul %302, %304, %cst_193 {dimension_numbers = #tpu.dot_dimension_numbers<[1], [0], [0], [1], [0, 0, 1, 1], [], []>} : vector<64x8xf32>, vector<8x16xf32>, vector<64x16xf32> -> vector<64x16xf32>
    %306 = arith.addf %300, %305 : vector<64x16xf32>
    %307 = vector.extract_strided_slice %167 {offsets = [4, 3, 0], sizes = [8, 8, 8], strides = [1, 1, 1]} : vector<12x12x8xf32> to vector<8x8x8xf32>
    %308 = vector.shape_cast %307 : vector<8x8x8xf32> to vector<64x8xf32>
    %c23_194 = arith.constant 23 : index
    %c0_195 = arith.constant 0 : index
    %c0_196 = arith.constant 0 : index
    %309 = vector.load %arg4[%c23_194, %c0_195, %c0_196] : memref<25x8x16xf32, #tpu.memory_space<vmem>>, vector<1x8x16xf32>
    %310 = vector.shape_cast %309 : vector<1x8x16xf32> to vector<8x16xf32>
    %cst_197 = arith.constant dense<0.000000e+00> : vector<64x16xf32>
    %311 = tpu.matmul %308, %310, %cst_197 {dimension_numbers = #tpu.dot_dimension_numbers<[1], [0], [0], [1], [0, 0, 1, 1], [], []>} : vector<64x8xf32>, vector<8x16xf32>, vector<64x16xf32> -> vector<64x16xf32>
    %312 = arith.addf %306, %311 : vector<64x16xf32>
    %313 = vector.extract_strided_slice %167 {offsets = [4, 4, 0], sizes = [8, 8, 8], strides = [1, 1, 1]} : vector<12x12x8xf32> to vector<8x8x8xf32>
    %314 = vector.shape_cast %313 : vector<8x8x8xf32> to vector<64x8xf32>
    %c24_198 = arith.constant 24 : index
    %c0_199 = arith.constant 0 : index
    %c0_200 = arith.constant 0 : index
    %315 = vector.load %arg4[%c24_198, %c0_199, %c0_200] : memref<25x8x16xf32, #tpu.memory_space<vmem>>, vector<1x8x16xf32>
    %316 = vector.shape_cast %315 : vector<1x8x16xf32> to vector<8x16xf32>
    %cst_201 = arith.constant dense<0.000000e+00> : vector<64x16xf32>
    %317 = tpu.matmul %314, %316, %cst_201 {dimension_numbers = #tpu.dot_dimension_numbers<[1], [0], [0], [1], [0, 0, 1, 1], [], []>} : vector<64x8xf32>, vector<8x16xf32>, vector<64x16xf32> -> vector<64x16xf32>
    %318 = arith.addf %312, %317 : vector<64x16xf32>
    %c0_202 = arith.constant 0 : index
    %c0_203 = arith.constant 0 : index
    %319 = vector.load %arg5[%c0_202, %c0_203] : memref<1x16xf32, #tpu.memory_space<vmem>>, vector<1x16xf32>
    %320 = vector.broadcast %319 : vector<1x16xf32> to vector<64x16xf32>
    %321 = arith.addf %318, %320 : vector<64x16xf32>
    %322 = math.tanh %321 : vector<64x16xf32>
    %323 = vector.shape_cast %322 : vector<64x16xf32> to vector<8x8x16xf32>
    %c0_204 = arith.constant 0 : index
    %c0_205 = arith.constant 0 : index
    %c0_206 = arith.constant 0 : index
    %324 = vector.load %arg9[%c0_204, %c0_205, %c0_206] : memref<8x8x16xf32, #tpu.memory_space<vmem>>, vector<8x8x16xf32>
    tpu.vector_store %arg9[%c0_204, %c0_205, %c0_206], %323 {strides = array<i32>} : memref<8x8x16xf32, #tpu.memory_space<vmem>>, vector<8x8x16xf32>,
    %c0_207 = arith.constant 0 : index
    %c0_208 = arith.constant 0 : index
    %c0_209 = arith.constant 0 : index
    %325 = tpu.strided_load %arg9[%c0_207, %c0_208, %c0_209] {strides = array<i32: 1, 2, 1>} : memref<8x8x16xf32, #tpu.memory_space<vmem>>, vector<8x4x16xf32>
    %c0_210 = arith.constant 0 : index
    %c1_211 = arith.constant 1 : index
    %c0_212 = arith.constant 0 : index
    %326 = tpu.strided_load %arg9[%c0_210, %c1_211, %c0_212] {strides = array<i32: 1, 2, 1>} : memref<8x8x16xf32, #tpu.memory_space<vmem>>, vector<8x4x16xf32>
    %327 = arith.maximumf %325, %326 : vector<8x4x16xf32>
    %328 = vector.shape_cast %327 : vector<8x4x16xf32> to vector<4x2x4x16xf32>
    %cst_213 = arith.constant dense<0xFF800000> : vector<4x4x16xf32>
    %329 = vector.multi_reduction <maximumf>, %328, %cst_213 [1] : vector<4x2x4x16xf32> to vector<4x4x16xf32>
    %c0_214 = arith.constant 0 : index
    %c0_215 = arith.constant 0 : index
    %c0_216 = arith.constant 0 : index
    %c0_217 = arith.constant 0 : index
    %330 = vector.load %arg6[%c0_214, %c0_215, %c0_216, %c0_217] : memref<1x4x4x16xf32, #tpu.memory_space<vmem>>, vector<1x4x4x16xf32>
    %331 = vector.shape_cast %330 : vector<1x4x4x16xf32> to vector<4x4x16xf32>
    %332 = vector.shape_cast %329 : vector<4x4x16xf32> to vector<1x4x4x16xf32>
    tpu.vector_store %arg6[%c0_214, %c0_215, %c0_216, %c0_217], %332 {strides = array<i32>} : memref<1x4x4x16xf32, #tpu.memory_space<vmem>>, vector<1x4x4x16xf32>,
    return
  }
  func.func @transform_0(%arg0: i32) -> (i32, i32, i32, i32) {
    %c0_i32 = arith.constant 0 : i32
    %c0_i32_0 = arith.constant 0 : i32
    %c0_i32_1 = arith.constant 0 : i32
    %c0_i32_2 = arith.constant 0 : i32
    return %arg0, %c0_i32, %c0_i32_0, %c0_i32_1 : i32, i32, i32, i32
  }
  func.func @transform_1(%arg0: i32) -> (i32, i32, i32) {
    %c0_i32 = arith.constant 0 : i32
    %c0_i32_0 = arith.constant 0 : i32
    %c0_i32_1 = arith.constant 0 : i32
    %c0_i32_2 = arith.constant 0 : i32
    return %c0_i32, %c0_i32_0, %c0_i32_1 : i32, i32, i32
  }
  func.func @transform_2(%arg0: i32) -> (i32, i32) {
    %c0_i32 = arith.constant 0 : i32
    %c0_i32_0 = arith.constant 0 : i32
    %c0_i32_1 = arith.constant 0 : i32
    return %c0_i32, %c0_i32_0 : i32, i32
  }
  func.func @transform_3(%arg0: i32) -> (i32, i32, i32) {
    %c0_i32 = arith.constant 0 : i32
    %c0_i32_0 = arith.constant 0 : i32
    %c0_i32_1 = arith.constant 0 : i32
    %c0_i32_2 = arith.constant 0 : i32
    return %c0_i32, %c0_i32_0, %c0_i32_1 : i32, i32, i32
  }
  func.func @transform_4(%arg0: i32) -> (i32, i32) {
    %c0_i32 = arith.constant 0 : i32
    %c0_i32_0 = arith.constant 0 : i32
    %c0_i32_1 = arith.constant 0 : i32
    return %c0_i32, %c0_i32_0 : i32, i32
  }
  func.func @transform_5(%arg0: i32) -> (i32, i32, i32, i32) {
    %c0_i32 = arith.constant 0 : i32
    %c0_i32_0 = arith.constant 0 : i32
    %c0_i32_1 = arith.constant 0 : i32
    %c0_i32_2 = arith.constant 0 : i32
    return %arg0, %c0_i32, %c0_i32_0, %c0_i32_1 : i32, i32, i32, i32
  }
}

</mosaic_0001>

<llo_original>
// kernel: a_call__.1
$region0: #{a_call__.1}
  #allocation0 [shape = 'u32[]', space=smem, size = 0x4, offset = 0x4, fixed_abs, tag = 'smem constant byte address 0x4 - core index']
  #allocation1 [shape = 'u32[72,128]{1,0:T(1,128)}', space=vmem, size = 0x9000, scoped, tag = 'internal scratch']
  #allocation2 [shape = 'f32[12,12,8]{2,1,0:T(8,128)}', space=vmem, size = 0x18000, scoped, tag = 'scratch operand']
  #allocation3 [shape = 'f32[16,16,8]{2,1,0:T(8,128)}', space=vmem, size = 0x20000, scoped, tag = 'scratch operand']
  #allocation4 [shape = 'f32[8,8,16]{2,1,0:T(8,128)}', space=vmem, size = 0x8000, scoped, tag = 'scratch operand']
  %s0 = inlined_call_operand.vmem [shape: f32[2,20,20,4], index: 0, kind: input, shape index: {}]
  %s1 = inlined_call_operand.vmem [shape: f32[25,4,8], index: 1, kind: input, shape index: {}]
  %s2 = inlined_call_operand.vmem [shape: f32[1,8], index: 2, kind: input, shape index: {}]
  %s3 = inlined_call_operand.vmem [shape: f32[25,8,16], index: 3, kind: input, shape index: {}]
  %s4 = inlined_call_operand.vmem [shape: f32[1,16], index: 4, kind: input, shape index: {}]
  %s5 = inlined_call_operand.hbm [shape: f32[2,4,4,16], index: 5, kind: output, shape index: {}]
  %s6 = sld [smem:[#allocation0]]
  $region53: #{a_call__.1} parent=0
    _
  %s8 = ssub.s32 1, %s6
  %s9 = scalar_select 0, %s8, %s6
  $region1: #{a_call__.1} parent=0
    #allocation5 [shape = 'u8[16384]{0}', space=vmem, size = 0x4000, scoped, tag = 'output window, operand 0']
    #allocation6 [shape = 's32[2]{0}', space=sflag, size = 0x8, scoped, tag = 'scoped memory for a_call__.1']
    %10 = vsyncpa [#allocation6], 0
    %s11 = scalar_lea.sflag [#allocation6], 1
    %12 = vsyncpa %s11, 0
    loop: start=0, step=1, limit=4
    $region2: #{a_call__.1} parent=1 // loop_pre_header
      _
    $region3: #{a_call__.1} parent=1 // loop_header
      %s14 = sphi 0, %s18
      %p15 = scmp.ge.s32.totalorder %s14, 4
      %s24 = sphi 0, %s26
      %s27 = sphi 0, %s24
      %s28 = sphi 0, %s27
      %s44 = sphi 0, %s28
      %s48 = sphi 0, %s48
      %s50 = sphi 0, %s48
      %s51 = sphi 0, %s50
      %s65 = sphi 0, %s51
      %s69 = sphi 0, %s69
      %s71 = sphi 0, %s69
      %s72 = sphi 0, %s71
      %s86 = sphi 0, %s72
      %s90 = sphi 0, %s90
      %s92 = sphi 0, %s90
      %s93 = sphi 0, %s92
      %s107 = sphi 0, %s93
      %s111 = sphi 0, %s111
      %s113 = sphi 0, %s111
      %s114 = sphi 0, %s113
      %s128 = sphi 0, %s114
      %s134 = sphi 0, %s136
      %s137 = sphi 0, %s134
      %s138 = sphi 0, %s137
      %s154 = sphi 0, %s138
    $region4: #{a_call__.1} parent=1 // loop_header_branch
      %17 = sbr.rel (%p15) target = $region8
    $region5: #{a_call__.1} parent=1 // loop_body
      %s19 = ssub.s32 %s14, 1
      %s20 = ssub.s32 %s14, 2
      %s21 = sadd.s32 %s14, 1
      %s22 = ssub.s32 %s14, %s21
      %p23 = scmp.eq.s32.totalorder %s22, 0
      %s25 = sadd.s32 %s24, 1
      %s26 = scalar_select %p23, %s24, %s25
      %p29 = pneg %p23
      %p30 = scmp.eq.s32.totalorder %s14, 1
      %p31 = por %p29, %p30
      %p32 = scmp.ne.s32.totalorder %s24, %s27
      %p33 = scmp.eq.s32.totalorder %s14, 0
      %p34 = por %p32, %p33
      %p35 = scmp.ne.s32.totalorder %s24, %s27
      %p36 = scmp.eq.s32.totalorder %s19, 1
      %p37 = por %p35, %p36
      %p38 = scmp.ne.s32.totalorder %s27, %s28
      %p39 = scmp.eq.s32.totalorder %s19, 0
      %p40 = por %p38, %p39
      %p41 = scmp.ne.s32.totalorder %s27, %s28
      %p42 = scmp.eq.s32.totalorder %s20, 1
      %p43 = por %p41, %p42
      %p45 = scmp.ne.s32.totalorder %s28, %s44
      %p46 = scmp.eq.s32.totalorder %s20, 0
      %p47 = por %p45, %p46
      %s49 = sadd.s32 %s48, 1
      %p52 = scmp.eq.s32.totalorder %s14, 1
      %p53 = scmp.ne.s32.totalorder %s48, %s50
      %p54 = scmp.eq.s32.totalorder %s14, 0
      %p55 = por %p53, %p54
      %p56 = scmp.ne.s32.totalorder %s48, %s50
      %p57 = scmp.eq.s32.totalorder %s19, 1
      %p58 = por %p56, %p57
      %p59 = scmp.ne.s32.totalorder %s50, %s51
      %p60 = scmp.eq.s32.totalorder %s19, 0
      %p61 = por %p59, %p60
      %p62 = scmp.ne.s32.totalorder %s50, %s51
      %p63 = scmp.eq.s32.totalorder %s20, 1
      %p64 = por %p62, %p63
      %p66 = scmp.ne.s32.totalorder %s51, %s65
      %p67 = scmp.eq.s32.totalorder %s20, 0
      %p68 = por %p66, %p67
      %s70 = sadd.s32 %s69, 1
      %p73 = scmp.eq.s32.totalorder %s14, 1
      %p74 = scmp.ne.s32.totalorder %s69, %s71
      %p75 = scmp.eq.s32.totalorder %s14, 0
      %p76 = por %p74, %p75
      %p77 = scmp.ne.s32.totalorder %s69, %s71
      %p78 = scmp.eq.s32.totalorder %s19, 1
      %p79 = por %p77, %p78
      %p80 = scmp.ne.s32.totalorder %s71, %s72
      %p81 = scmp.eq.s32.totalorder %s19, 0
      %p82 = por %p80, %p81
      %p83 = scmp.ne.s32.totalorder %s71, %s72
      %p84 = scmp.eq.s32.totalorder %s20, 1
      %p85 = por %p83, %p84
      %p87 = scmp.ne.s32.totalorder %s72, %s86
      %p88 = scmp.eq.s32.totalorder %s20, 0
      %p89 = por %p87, %p88
      %s91 = sadd.s32 %s90, 1
      %p94 = scmp.eq.s32.totalorder %s14, 1
      %p95 = scmp.ne.s32.totalorder %s90, %s92
      %p96 = scmp.eq.s32.totalorder %s14, 0
      %p97 = por %p95, %p96
      %p98 = scmp.ne.s32.totalorder %s90, %s92
      %p99 = scmp.eq.s32.totalorder %s19, 1
      %p100 = por %p98, %p99
      %p101 = scmp.ne.s32.totalorder %s92, %s93
      %p102 = scmp.eq.s32.totalorder %s19, 0
      %p103 = por %p101, %p102
      %p104 = scmp.ne.s32.totalorder %s92, %s93
      %p105 = scmp.eq.s32.totalorder %s20, 1
      %p106 = por %p104, %p105
      %p108 = scmp.ne.s32.totalorder %s93, %s107
      %p109 = scmp.eq.s32.totalorder %s20, 0
      %p110 = por %p108, %p109
      %s112 = sadd.s32 %s111, 1
      %p115 = scmp.eq.s32.totalorder %s14, 1
      %p116 = scmp.ne.s32.totalorder %s111, %s113
      %p117 = scmp.eq.s32.totalorder %s14, 0
      %p118 = por %p116, %p117
      %p119 = scmp.ne.s32.totalorder %s111, %s113
      %p120 = scmp.eq.s32.totalorder %s19, 1
      %p121 = por %p119, %p120
      %p122 = scmp.ne.s32.totalorder %s113, %s114
      %p123 = scmp.eq.s32.totalorder %s19, 0
      %p124 = por %p122, %p123
      %p125 = scmp.ne.s32.totalorder %s113, %s114
      %p126 = scmp.eq.s32.totalorder %s20, 1
      %p127 = por %p125, %p126
      %p129 = scmp.ne.s32.totalorder %s114, %s128
      %p130 = scmp.eq.s32.totalorder %s20, 0
      %p131 = por %p129, %p130
      %s132 = ssub.s32 %s14, %s21
      %p133 = scmp.eq.s32.totalorder %s132, 0
      %s135 = sadd.s32 %s134, 1
      %s136 = scalar_select %p133, %s134, %s135
      %p139 = pneg %p133
      %p140 = scmp.eq.s32.totalorder %s14, 1
      %p141 = por %p139, %p140
      %p142 = scmp.ne.s32.totalorder %s134, %s137
      %p143 = scmp.eq.s32.totalorder %s14, 0
      %p144 = por %p142, %p143
      %p145 = scmp.ne.s32.totalorder %s134, %s137
      %p146 = scmp.eq.s32.totalorder %s19, 1
      %p147 = por %p145, %p146
      %p148 = scmp.ne.s32.totalorder %s137, %s138
      %p149 = scmp.eq.s32.totalorder %s19, 0
      %p150 = por %p148, %p149
      %p151 = scmp.ne.s32.totalorder %s137, %s138
      %p152 = scmp.eq.s32.totalorder %s20, 1
      %p153 = por %p151, %p152
      %p155 = scmp.ne.s32.totalorder %s138, %s154
      %p156 = scmp.eq.s32.totalorder %s20, 0
      %p157 = por %p155, %p156
      %p158 = scmp.le.s32.totalorder 1, %s14
      %p159 = scmp.lt.s32.totalorder %s14, 3
      %p160 = pnand %p158, %p159
      %p161 = pneg %p160
      // Predicated region
      $region9: #{a_call__.1} parent=5 // pred_check
        _
      $region10: #{a_call__.1} parent=5 // pred_check_branch
        %163 = sbr.rel (%p160) target = $region12
      $region11: #{a_call__.1} parent=5 // pred_region
        %s164 = ssub.s32 %s14, 1
        // Predicated region
        $region13: #{a_call__.1} parent=11 // pred_check
          %p165 = pneg %p61
        $region14: #{a_call__.1} parent=11 // pred_check_branch
          %167 = sbr.rel (%p165) target = $region16
        $region15: #{a_call__.1} parent=11 // pred_region
          _
        $region16: #{a_call__.1} parent=11 // pred_fallthru
          _
        // Predicated region
        $region17: #{a_call__.1} parent=11 // pred_check
          %p168 = pneg %p82
        $region18: #{a_call__.1} parent=11 // pred_check_branch
          %170 = sbr.rel (%p168) target = $region20
        $region19: #{a_call__.1} parent=11 // pred_region
          _
        $region20: #{a_call__.1} parent=11 // pred_fallthru
          _
        // Predicated region
        $region21: #{a_call__.1} parent=11 // pred_check
          %p171 = pneg %p103
        $region22: #{a_call__.1} parent=11 // pred_check_branch
          %173 = sbr.rel (%p171) target = $region24
        $region23: #{a_call__.1} parent=11 // pred_region
          _
        $region24: #{a_call__.1} parent=11 // pred_fallthru
          _
        // Predicated region
        $region25: #{a_call__.1} parent=11 // pred_check
          %p174 = pneg %p124
        $region26: #{a_call__.1} parent=11 // pred_check_branch
          %176 = sbr.rel (%p174) target = $region28
        $region27: #{a_call__.1} parent=11 // pred_region
          _
        $region28: #{a_call__.1} parent=11 // pred_fallthru
          _
      $region12: #{a_call__.1} parent=5 // pred_fallthru
        _
      %p177 = scmp.lt.s32.totalorder %s14, 2
      // Predicated region
      $region29: #{a_call__.1} parent=5 // pred_check
        %p178 = pneg %p177
      $region30: #{a_call__.1} parent=5 // pred_check_branch
        %180 = sbr.rel (%p178) target = $region32
      $region31: #{a_call__.1} parent=5 // pred_region
        // Predicated region
        $region33: #{a_call__.1} parent=31 // pred_check
          %p181 = pneg %p34
        $region34: #{a_call__.1} parent=31 // pred_check_branch
          %183 = sbr.rel (%p181) target = $region36
        $region35: #{a_call__.1} parent=31 // pred_region
          %p184 = scmp.lt.s32.totalorder %s14, 1
          %s185 = scalar_select %p184, %s14, 1
          %s186 = smul.addr %s185, 60
          %s187 = smul.addr %s186, 8
          %s188 = scalar_lea.vmem %s0, %s187
        $region36: #{a_call__.1} parent=31 // pred_fallthru
          _
      $region32: #{a_call__.1} parent=5 // pred_fallthru
        _
      %p189 = scmp.le.s32.totalorder 1, %s14
      %p190 = scmp.lt.s32.totalorder %s14, 3
      %p191 = pnand %p189, %p190
      %p192 = pneg %p191
      // Predicated region
      $region37: #{a_call__.1} parent=5 // pred_check
        _
      $region38: #{a_call__.1} parent=5 // pred_check_branch
        %194 = sbr.rel (%p191) target = $region40
      $region39: #{a_call__.1} parent=5 // pred_region
        %s195 = ssub.s32 %s14, 1
        %p196 = scmp.lt.s32.totalorder %s19, 1
        %s197 = scalar_select %p196, %s19, 1
        %s198 = smul.addr %s197, 60
        %s199 = smul.addr %s198, 8
        %s200 = scalar_lea.vmem %s0, %s199
        %p201 = pneg %p40
        %p202 = pneg %p37
        %p203 = pneg %p61
        %p204 = pneg %p58
        %p205 = pneg %p82
        %p206 = pneg %p79
        %p207 = pneg %p103
        %p208 = pneg %p100
        %p209 = pneg %p124
        %p210 = pneg %p121
        %p211 = pneg %p150
        %p212 = pneg %p147
        %s213 = sand.u32 %s137, 1
        %s214 = scalar_lea.sflag [#allocation6], %s213
        %s215 = sand.u32 %s137, 1
        %s216 = smul.addr %s215, 16
        %s217 = scalar_lea.vmem [#allocation5], %s216
        %p218 = scmp.lt.s32.totalorder %s19, 1
        %s219 = scalar_select %p218, %s19, 1
        %s220 = smul.addr %s219, 60
        %s221 = smul.addr %s220, 8
        %s222 = scalar_lea.vmem %s0, %s221
        %v223 = vld [vmem:[%s222] sm:$0xff]
        %v224 = vld [vmem:[%s222 + $0x8] sm:$0xff]
        %v225 = vld [vmem:[%s222 + $0x10] sm:$0xf]
        %v226 = vld [vmem:[%s222 + $0x18] sm:$0xff]
        %v227 = vld [vmem:[%s222 + $0x20] sm:$0xff]
        %v228 = vld [vmem:[%s222 + $0x28] sm:$0xf]
        %v229 = vld [vmem:[%s222 + $0x30] sm:$0xff]
        %v230 = vld [vmem:[%s222 + $0x38] sm:$0xff]
        %v231 = vld [vmem:[%s222 + $0x40] sm:$0xf]
        %v232 = vld [vmem:[%s222 + $0x48] sm:$0xff]
        %v233 = vld [vmem:[%s222 + $0x50] sm:$0xff]
        %v234 = vld [vmem:[%s222 + $0x58] sm:$0xf]
        %v235 = vld [vmem:[%s222 + $0x60] sm:$0xff]
        %v236 = vld [vmem:[%s222 + $0x68] sm:$0xff]
        %v237 = vld [vmem:[%s222 + $0x70] sm:$0xf]
        %v238 = vld [vmem:[%s222 + $0x78] sm:$0xff]
        %v239 = vld [vmem:[%s222 + $0x80] sm:$0xff]
        %v240 = vld [vmem:[%s222 + $0x88] sm:$0xf]
        %v241 = vld [vmem:[%s222 + $0x90] sm:$0xff]
        %v242 = vld [vmem:[%s222 + $0x98] sm:$0xff]
        %v243 = vld [vmem:[%s222 + $0xa0] sm:$0xf]
        %v244 = vld [vmem:[%s222 + $0xa8] sm:$0xff]
        %v245 = vld [vmem:[%s222 + $0xb0] sm:$0xff]
        %v246 = vld [vmem:[%s222 + $0xb8] sm:$0xf]
        %v247 = vld [vmem:[%s222 + $0xc0] sm:$0xff]
        %v248 = vld [vmem:[%s222 + $0xc8] sm:$0xff]
        %v249 = vld [vmem:[%s222 + $0xd0] sm:$0xf]
        %v250 = vld [vmem:[%s222 + $0xd8] sm:$0xff]
        %v251 = vld [vmem:[%s222 + $0xe0] sm:$0xff]
        %v252 = vld [vmem:[%s222 + $0xe8] sm:$0xf]
        %v253 = vld [vmem:[%s222 + $0xf0] sm:$0xff]
        %v254 = vld [vmem:[%s222 + $0xf8] sm:$0xff]
        %v255 = vld [vmem:[%s222 + $0x100] sm:$0xf]
        %v256 = vld [vmem:[%s222 + $0x108] sm:$0xff]
        %v257 = vld [vmem:[%s222 + $0x110] sm:$0xff]
        %v258 = vld [vmem:[%s222 + $0x118] sm:$0xf]
        %v259 = vld [vmem:[%s222 + $0x120] sm:$0xff]
        %v260 = vld [vmem:[%s222 + $0x128] sm:$0xff]
        %v261 = vld [vmem:[%s222 + $0x130] sm:$0xf]
        %v262 = vld [vmem:[%s222 + $0x138] sm:$0xff]
        %v263 = vld [vmem:[%s222 + $0x140] sm:$0xff]
        %v264 = vld [vmem:[%s222 + $0x148] sm:$0xf]
        %v265 = vld [vmem:[%s222 + $0x150] sm:$0xff]
        %v266 = vld [vmem:[%s222 + $0x158] sm:$0xff]
        %v267 = vld [vmem:[%s222 + $0x160] sm:$0xf]
        %v268 = vld [vmem:[%s222 + $0x168] sm:$0xff]
        %v269 = vld [vmem:[%s222 + $0x170] sm:$0xff]
        %v270 = vld [vmem:[%s222 + $0x178] sm:$0xf]
        %v271 = vld [vmem:[%s222 + $0x180] sm:$0xff]
        %v272 = vld [vmem:[%s222 + $0x188] sm:$0xff]
        %v273 = vld [vmem:[%s222 + $0x190] sm:$0xf]
        %v274 = vld [vmem:[%s222 + $0x198] sm:$0xff]
        %v275 = vld [vmem:[%s222 + $0x1a0] sm:$0xff]
        %v276 = vld [vmem:[%s222 + $0x1a8] sm:$0xf]
        %v277 = vld [vmem:[%s222 + $0x1b0] sm:$0xff]
        %v278 = vld [vmem:[%s222 + $0x1b8] sm:$0xff]
        %v279 = vld [vmem:[%s222 + $0x1c0] sm:$0xf]
        %v280 = vld [vmem:[%s222 + $0x1c8] sm:$0xff]
        %v281 = vld [vmem:[%s222 + $0x1d0] sm:$0xff]
        %v282 = vld [vmem:[%s222 + $0x1d8] sm:$0xf]
        %v283 = vld [vmem:[%s1] sm:$0xf]
        %vm332 = vcmask 1046528
        %v333 = vrot.slane %v223, 1
        %v334 = vrot.slane %v224, 1
        %v335 = vsel %vm332, %v333, %v334
        %v336 = vrot.slane %v225, 1
        %v337 = vsel %vm332, %v334, %v336
        %v338 = vrot.slane %v226, 1
        %v339 = vrot.slane %v227, 1
        %v340 = vsel %vm332, %v338, %v339
        %v341 = vrot.slane %v228, 1
        %v342 = vsel %vm332, %v339, %v341
        %v343 = vrot.slane %v229, 1
        %v344 = vrot.slane %v230, 1
        %v345 = vsel %vm332, %v343, %v344
        %v346 = vrot.slane %v231, 1
        %v347 = vsel %vm332, %v344, %v346
        %v348 = vrot.slane %v232, 1
        %v349 = vrot.slane %v233, 1
        %v350 = vsel %vm332, %v348, %v349
        %v351 = vrot.slane %v234, 1
        %v352 = vsel %vm332, %v349, %v351
        %v353 = vrot.slane %v235, 1
        %v354 = vrot.slane %v236, 1
        %v355 = vsel %vm332, %v353, %v354
        %v356 = vrot.slane %v237, 1
        %v357 = vsel %vm332, %v354, %v356
        %v358 = vrot.slane %v238, 1
        %v359 = vrot.slane %v239, 1
        %v360 = vsel %vm332, %v358, %v359
        %v361 = vrot.slane %v240, 1
        %v362 = vsel %vm332, %v359, %v361
        %v363 = vrot.slane %v241, 1
        %v364 = vrot.slane %v242, 1
        %v365 = vsel %vm332, %v363, %v364
        %v366 = vrot.slane %v243, 1
        %v367 = vsel %vm332, %v364, %v366
        %v368 = vrot.slane %v244, 1
        %v369 = vrot.slane %v245, 1
        %v370 = vsel %vm332, %v368, %v369
        %v371 = vrot.slane %v246, 1
        %v372 = vsel %vm332, %v369, %v371
        %v373 = vrot.slane %v247, 1
        %v374 = vrot.slane %v248, 1
        %v375 = vsel %vm332, %v373, %v374
        %v376 = vrot.slane %v249, 1
        %v377 = vsel %vm332, %v374, %v376
        %v378 = vrot.slane %v250, 1
        %v379 = vrot.slane %v251, 1
        %v380 = vsel %vm332, %v378, %v379
        %v381 = vrot.slane %v252, 1
        %v382 = vsel %vm332, %v379, %v381
        %v383 = vrot.slane %v253, 1
        %v384 = vrot.slane %v254, 1
        %v385 = vsel %vm332, %v383, %v384
        %v386 = vrot.slane %v255, 1
        %v387 = vsel %vm332, %v384, %v386
        %v388 = vrot.slane %v256, 1
        %v389 = vrot.slane %v257, 1
        %v390 = vsel %vm332, %v388, %v389
        %v391 = vrot.slane %v258, 1
        %v392 = vsel %vm332, %v389, %v391
        %v393 = vrot.slane %v259, 1
        %v394 = vrot.slane %v260, 1
        %v395 = vsel %vm332, %v393, %v394
        %v396 = vrot.slane %v261, 1
        %v397 = vsel %vm332, %v394, %v396
        %v398 = vrot.slane %v262, 1
        %v399 = vrot.slane %v263, 1
        %v400 = vsel %vm332, %v398, %v399
        %v401 = vrot.slane %v264, 1
        %v402 = vsel %vm332, %v399, %v401
        %v403 = vrot.slane %v265, 1
        %v404 = vrot.slane %v266, 1
        %v405 = vsel %vm332, %v403, %v404
        %v406 = vrot.slane %v267, 1
        %v407 = vsel %vm332, %v404, %v406
        %v408 = vrot.slane %v268, 1
        %v409 = vrot.slane %v269, 1
        %v410 = vsel %vm332, %v408, %v409
        %v411 = vrot.slane %v270, 1
        %v412 = vsel %vm332, %v409, %v411
        %s413 = scalar_lea.vmem %s1, 4
        %v414 = vld [vmem:[%s413] sm:$0xf]
        %vm415 = vcmask 31744
        %v416 = vsel %vm415, %v335, 0
        %v418 = vsel %vm415, %v337, 0
        %v420 = vsel %vm415, %v340, 0
        %v422 = vsel %vm415, %v342, 0
        %v424 = vsel %vm415, %v345, 0
        %v426 = vsel %vm415, %v347, 0
        %v428 = vsel %vm415, %v350, 0
        %v430 = vsel %vm415, %v352, 0
        %v432 = vsel %vm415, %v355, 0
        %v434 = vsel %vm415, %v357, 0
        %v436 = vsel %vm415, %v360, 0
        %v438 = vsel %vm415, %v362, 0
        %v440 = vsel %vm415, %v365, 0
        %v442 = vsel %vm415, %v367, 0
        %v444 = vsel %vm415, %v370, 0
        %v446 = vsel %vm415, %v372, 0
        %v448 = vsel %vm415, %v375, 0
        %v450 = vsel %vm415, %v377, 0
        %v452 = vsel %vm415, %v380, 0
        %v454 = vsel %vm415, %v382, 0
        %v456 = vsel %vm415, %v385, 0
        %v458 = vsel %vm415, %v387, 0
        %v460 = vsel %vm415, %v390, 0
        %v462 = vsel %vm415, %v392, 0
        %v464 = vsel %vm415, %v395, 0
        %v466 = vsel %vm415, %v397, 0
        %v468 = vsel %vm415, %v400, 0
        %v470 = vsel %vm415, %v402, 0
        %v472 = vsel %vm415, %v405, 0
        %v474 = vsel %vm415, %v407, 0
        %v476 = vsel %vm415, %v410, 0
        %v478 = vsel %vm415, %v412, 0
        %vm480 = vcmask 1043456
        %v482 = vsel %vm480, %v414, 0
        %484 = vmatpush.msra.mxu0 0.0
        %485 = vmatpush.msra.mxu0 0.0
        %486 = vmatpush.msra.mxu0 0.0
        %487 = vmatpush.msra.mxu0 0.0
        %488 = vmatpush.msra.mxu0 0.0
        %489 = vmatpush.msra.mxu0 0.0
        %490 = vmatpush.msra.mxu0 0.0
        %491 = vmatpush.msra.mxu0 0.0
        %492 = vmatpush.msra.mxu0 0.0
        %493 = vmatpush.msra.mxu0 0.0
        %494 = vmatpush.msra.mxu0 0.0
        %495 = vmatpush.msra.mxu0 0.0
        %496 = vmatpush.msra.mxu0 0.0
        %497 = vmatpush.msra.mxu0 0.0
        %498 = vmatpush.msra.mxu0 0.0
        %499 = vmatpush.msra.mxu0 %v482
        %500 = vmatmul.f32.gmra.mxu0 %v416
        %v501 = vpop.f32.mrf.mxu0
        %v502 = vadd.f32 0.0, %v501
        %503 = vmatmul.f32.gmra.mxu0 %v418
        %v504 = vpop.f32.mrf.mxu0
        %v505 = vadd.f32 0.0, %v504
        %506 = vmatmul.f32.gmra.mxu0 %v420
        %v507 = vpop.f32.mrf.mxu0
        %v508 = vadd.f32 0.0, %v507
        %509 = vmatmul.f32.gmra.mxu0 %v422
        %v510 = vpop.f32.mrf.mxu0
        %v511 = vadd.f32 0.0, %v510
        %512 = vmatmul.f32.gmra.mxu0 %v424
        %v513 = vpop.f32.mrf.mxu0
        %v514 = vadd.f32 0.0, %v513
        %515 = vmatmul.f32.gmra.mxu0 %v426
        %v516 = vpop.f32.mrf.mxu0
        %v517 = vadd.f32 0.0, %v516
        %518 = vmatmul.f32.gmra.mxu0 %v428
        %v519 = vpop.f32.mrf.mxu0
        %v520 = vadd.f32 0.0, %v519
        %521 = vmatmul.f32.gmra.mxu0 %v430
        %v522 = vpop.f32.mrf.mxu0
        %v523 = vadd.f32 0.0, %v522
        %524 = vmatmul.f32.gmra.mxu0 %v432
        %v525 = vpop.f32.mrf.mxu0
        %v526 = vadd.f32 0.0, %v525
        %527 = vmatmul.f32.gmra.mxu0 %v434
        %v528 = vpop.f32.mrf.mxu0
        %v529 = vadd.f32 0.0, %v528
        %530 = vmatmul.f32.gmra.mxu0 %v436
        %v531 = vpop.f32.mrf.mxu0
        %v532 = vadd.f32 0.0, %v531
        %533 = vmatmul.f32.gmra.mxu0 %v438
        %v534 = vpop.f32.mrf.mxu0
        %v535 = vadd.f32 0.0, %v534
        %536 = vmatmul.f32.gmra.mxu0 %v440
        %v537 = vpop.f32.mrf.mxu0
        %v538 = vadd.f32 0.0, %v537
        %539 = vmatmul.f32.gmra.mxu0 %v442
        %v540 = vpop.f32.mrf.mxu0
        %v541 = vadd.f32 0.0, %v540
        %542 = vmatmul.f32.gmra.mxu0 %v444
        %v543 = vpop.f32.mrf.mxu0
        %v544 = vadd.f32 0.0, %v543
        %545 = vmatmul.f32.gmra.mxu0 %v446
        %v546 = vpop.f32.mrf.mxu0
        %v547 = vadd.f32 0.0, %v546
        %548 = vmatmul.f32.gmra.mxu0 %v448
        %v549 = vpop.f32.mrf.mxu0
        %v550 = vadd.f32 0.0, %v549
        %551 = vmatmul.f32.gmra.mxu0 %v450
        %v552 = vpop.f32.mrf.mxu0
        %v553 = vadd.f32 0.0, %v552
        %554 = vmatmul.f32.gmra.mxu0 %v452
        %v555 = vpop.f32.mrf.mxu0
        %v556 = vadd.f32 0.0, %v555
        %557 = vmatmul.f32.gmra.mxu0 %v454
        %v558 = vpop.f32.mrf.mxu0
        %v559 = vadd.f32 0.0, %v558
        %560 = vmatmul.f32.gmra.mxu0 %v456
        %v561 = vpop.f32.mrf.mxu0
        %v562 = vadd.f32 0.0, %v561
        %563 = vmatmul.f32.gmra.mxu0 %v458
        %v564 = vpop.f32.mrf.mxu0
        %v565 = vadd.f32 0.0, %v564
        %566 = vmatmul.f32.gmra.mxu0 %v460
        %v567 = vpop.f32.mrf.mxu0
        %v568 = vadd.f32 0.0, %v567
        %569 = vmatmul.f32.gmra.mxu0 %v462
        %v570 = vpop.f32.mrf.mxu0
        %v571 = vadd.f32 0.0, %v570
        %572 = vmatmul.f32.gmra.mxu0 %v464
        %v573 = vpop.f32.mrf.mxu0
        %v574 = vadd.f32 0.0, %v573
        %575 = vmatmul.f32.gmra.mxu0 %v466
        %v576 = vpop.f32.mrf.mxu0
        %v577 = vadd.f32 0.0, %v576
        %578 = vmatmul.f32.gmra.mxu0 %v468
        %v579 = vpop.f32.mrf.mxu0
        %v580 = vadd.f32 0.0, %v579
        %581 = vmatmul.f32.gmra.mxu0 %v470
        %v582 = vpop.f32.mrf.mxu0
        %v583 = vadd.f32 0.0, %v582
        %584 = vmatmul.f32.gmra.mxu0 %v472
        %v585 = vpop.f32.mrf.mxu0
        %v586 = vadd.f32 0.0, %v585
        %587 = vmatmul.f32.gmra.mxu0 %v474
        %v588 = vpop.f32.mrf.mxu0
        %v589 = vadd.f32 0.0, %v588
        %590 = vmatmul.f32.gmra.mxu0 %v476
        %v591 = vpop.f32.mrf.mxu0
        %v592 = vadd.f32 0.0, %v591
        %593 = vmatmul.f32.gmra.mxu0 %v478
        %v594 = vpop.f32.mrf.mxu0
        %v595 = vadd.f32 0.0, %v594
        %596 = vdwg.mxu0
        %v597 = vsel %vm415, %v223, 0
        %v599 = vsel %vm415, %v224, 0
        %v601 = vsel %vm415, %v226, 0
        %v603 = vsel %vm415, %v227, 0
        %v605 = vsel %vm415, %v229, 0
        %v607 = vsel %vm415, %v230, 0
        %v609 = vsel %vm415, %v232, 0
        %v611 = vsel %vm415, %v233, 0
        %v613 = vsel %vm415, %v235, 0
        %v615 = vsel %vm415, %v236, 0
        %v617 = vsel %vm415, %v238, 0
        %v619 = vsel %vm415, %v239, 0
        %v621 = vsel %vm415, %v241, 0
        %v623 = vsel %vm415, %v242, 0
        %v625 = vsel %vm415, %v244, 0
        %v627 = vsel %vm415, %v245, 0
        %v629 = vsel %vm415, %v247, 0
        %v631 = vsel %vm415, %v248, 0
        %v633 = vsel %vm415, %v250, 0
        %v635 = vsel %vm415, %v251, 0
        %v637 = vsel %vm415, %v253, 0
        %v639 = vsel %vm415, %v254, 0
        %v641 = vsel %vm415, %v256, 0
        %v643 = vsel %vm415, %v257, 0
        %v645 = vsel %vm415, %v259, 0
        %v647 = vsel %vm415, %v260, 0
        %v649 = vsel %vm415, %v262, 0
        %v651 = vsel %vm415, %v263, 0
        %v653 = vsel %vm415, %v265, 0
        %v655 = vsel %vm415, %v266, 0
        %v657 = vsel %vm415, %v268, 0
        %v659 = vsel %vm415, %v269, 0
        %v662 = vsel %vm480, %v283, 0
        %664 = vmatpush.msra.mxu0 0.0
        %665 = vmatpush.msra.mxu0 0.0
        %666 = vmatpush.msra.mxu0 0.0
        %667 = vmatpush.msra.mxu0 0.0
        %668 = vmatpush.msra.mxu0 0.0
        %669 = vmatpush.msra.mxu0 0.0
        %670 = vmatpush.msra.mxu0 0.0
        %671 = vmatpush.msra.mxu0 0.0
        %672 = vmatpush.msra.mxu0 0.0
        %673 = vmatpush.msra.mxu0 0.0
        %674 = vmatpush.msra.mxu0 0.0
        %675 = vmatpush.msra.mxu0 0.0
        %676 = vmatpush.msra.mxu0 0.0
        %677 = vmatpush.msra.mxu0 0.0
        %678 = vmatpush.msra.mxu0 0.0
        %679 = vmatpush.msra.mxu0 %v662
        %680 = vmatmul.f32.gmra.mxu0 %v597
        %v681 = vpop.f32.mrf.mxu0
        %v682 = vadd.f32 %v502, %v681
        %683 = vmatmul.f32.gmra.mxu0 %v599
        %v684 = vpop.f32.mrf.mxu0
        %v685 = vadd.f32 %v505, %v684
        %686 = vmatmul.f32.gmra.mxu0 %v601
        %v687 = vpop.f32.mrf.mxu0
        %v688 = vadd.f32 %v508, %v687
        %689 = vmatmul.f32.gmra.mxu0 %v603
        %v690 = vpop.f32.mrf.mxu0
        %v691 = vadd.f32 %v511, %v690
        %692 = vmatmul.f32.gmra.mxu0 %v605
        %v693 = vpop.f32.mrf.mxu0
        %v694 = vadd.f32 %v514, %v693
        %695 = vmatmul.f32.gmra.mxu0 %v607
        %v696 = vpop.f32.mrf.mxu0
        %v697 = vadd.f32 %v517, %v696
        %698 = vmatmul.f32.gmra.mxu0 %v609
        %v699 = vpop.f32.mrf.mxu0
        %v700 = vadd.f32 %v520, %v699
        %701 = vmatmul.f32.gmra.mxu0 %v611
        %v702 = vpop.f32.mrf.mxu0
        %v703 = vadd.f32 %v523, %v702
        %704 = vmatmul.f32.gmra.mxu0 %v613
        %v705 = vpop.f32.mrf.mxu0
        %v706 = vadd.f32 %v526, %v705
        %707 = vmatmul.f32.gmra.mxu0 %v615
        %v708 = vpop.f32.mrf.mxu0
        %v709 = vadd.f32 %v529, %v708
        %710 = vmatmul.f32.gmra.mxu0 %v617
        %v711 = vpop.f32.mrf.mxu0
        %v712 = vadd.f32 %v532, %v711
        %713 = vmatmul.f32.gmra.mxu0 %v619
        %v714 = vpop.f32.mrf.mxu0
        %v715 = vadd.f32 %v535, %v714
        %716 = vmatmul.f32.gmra.mxu0 %v621
        %v717 = vpop.f32.mrf.mxu0
        %v718 = vadd.f32 %v538, %v717
        %719 = vmatmul.f32.gmra.mxu0 %v623
        %v720 = vpop.f32.mrf.mxu0
        %v721 = vadd.f32 %v541, %v720
        %722 = vmatmul.f32.gmra.mxu0 %v625
        %v723 = vpop.f32.mrf.mxu0
        %v724 = vadd.f32 %v544, %v723
        %725 = vmatmul.f32.gmra.mxu0 %v627
        %v726 = vpop.f32.mrf.mxu0
        %v727 = vadd.f32 %v547, %v726
        %728 = vmatmul.f32.gmra.mxu0 %v629
        %v729 = vpop.f32.mrf.mxu0
        %v730 = vadd.f32 %v550, %v729
        %731 = vmatmul.f32.gmra.mxu0 %v631
        %v732 = vpop.f32.mrf.mxu0
        %v733 = vadd.f32 %v553, %v732
        %734 = vmatmul.f32.gmra.mxu0 %v633
        %v735 = vpop.f32.mrf.mxu0
        %v736 = vadd.f32 %v556, %v735
        %737 = vmatmul.f32.gmra.mxu0 %v635
        %v738 = vpop.f32.mrf.mxu0
        %v739 = vadd.f32 %v559, %v738
        %740 = vmatmul.f32.gmra.mxu0 %v637
        %v741 = vpop.f32.mrf.mxu0
        %v742 = vadd.f32 %v562, %v741
        %743 = vmatmul.f32.gmra.mxu0 %v639
        %v744 = vpop.f32.mrf.mxu0
        %v745 = vadd.f32 %v565, %v744
        %746 = vmatmul.f32.gmra.mxu0 %v641
        %v747 = vpop.f32.mrf.mxu0
        %v748 = vadd.f32 %v568, %v747
        %749 = vmatmul.f32.gmra.mxu0 %v643
        %v750 = vpop.f32.mrf.mxu0
        %v751 = vadd.f32 %v571, %v750
        %752 = vmatmul.f32.gmra.mxu0 %v645
        %v753 = vpop.f32.mrf.mxu0
        %v754 = vadd.f32 %v574, %v753
        %755 = vmatmul.f32.gmra.mxu0 %v647
        %v756 = vpop.f32.mrf.mxu0
        %v757 = vadd.f32 %v577, %v756
        %758 = vmatmul.f32.gmra.mxu0 %v649
        %v759 = vpop.f32.mrf.mxu0
        %v760 = vadd.f32 %v580, %v759
        %761 = vmatmul.f32.gmra.mxu0 %v651
        %v762 = vpop.f32.mrf.mxu0
        %v763 = vadd.f32 %v583, %v762
        %764 = vmatmul.f32.gmra.mxu0 %v653
        %v765 = vpop.f32.mrf.mxu0
        %v766 = vadd.f32 %v586, %v765
        %767 = vmatmul.f32.gmra.mxu0 %v655
        %v768 = vpop.f32.mrf.mxu0
        %v769 = vadd.f32 %v589, %v768
        %770 = vmatmul.f32.gmra.mxu0 %v657
        %v771 = vpop.f32.mrf.mxu0
        %v772 = vadd.f32 %v592, %v771
        %773 = vmatmul.f32.gmra.mxu0 %v659
        %v774 = vpop.f32.mrf.mxu0
        %v775 = vadd.f32 %v595, %v774
        %776 = vdwg.mxu0
        %vm777 = vcmask 1045504
        %v778 = vrot.slane %v223, 2
        %v779 = vrot.slane %v224, 2
        %v780 = vsel %vm777, %v778, %v779
        %v781 = vrot.slane %v225, 2
        %v782 = vsel %vm777, %v779, %v781
        %v783 = vrot.slane %v226, 2
        %v784 = vrot.slane %v227, 2
        %v785 = vsel %vm777, %v783, %v784
        %v786 = vrot.slane %v228, 2
        %v787 = vsel %vm777, %v784, %v786
        %v788 = vrot.slane %v229, 2
        %v789 = vrot.slane %v230, 2
        %v790 = vsel %vm777, %v788, %v789
        %v791 = vrot.slane %v231, 2
        %v792 = vsel %vm777, %v789, %v791
        %v793 = vrot.slane %v232, 2
        %v794 = vrot.slane %v233, 2
        %v795 = vsel %vm777, %v793, %v794
        %v796 = vrot.slane %v234, 2
        %v797 = vsel %vm777, %v794, %v796
        %v798 = vrot.slane %v235, 2
        %v799 = vrot.slane %v236, 2
        %v800 = vsel %vm777, %v798, %v799
        %v801 = vrot.slane %v237, 2
        %v802 = vsel %vm777, %v799, %v801
        %v803 = vrot.slane %v238, 2
        %v804 = vrot.slane %v239, 2
        %v805 = vsel %vm777, %v803, %v804
        %v806 = vrot.slane %v240, 2
        %v807 = vsel %vm777, %v804, %v806
        %v808 = vrot.slane %v241, 2
        %v809 = vrot.slane %v242, 2
        %v810 = vsel %vm777, %v808, %v809
        %v811 = vrot.slane %v243, 2
        %v812 = vsel %vm777, %v809, %v811
        %v813 = vrot.slane %v244, 2
        %v814 = vrot.slane %v245, 2
        %v815 = vsel %vm777, %v813, %v814
        %v816 = vrot.slane %v246, 2
        %v817 = vsel %vm777, %v814, %v816
        %v818 = vrot.slane %v247, 2
        %v819 = vrot.slane %v248, 2
        %v820 = vsel %vm777, %v818, %v819
        %v821 = vrot.slane %v249, 2
        %v822 = vsel %vm777, %v819, %v821
        %v823 = vrot.slane %v250, 2
        %v824 = vrot.slane %v251, 2
        %v825 = vsel %vm777, %v823, %v824
        %v826 = vrot.slane %v252, 2
        %v827 = vsel %vm777, %v824, %v826
        %v828 = vrot.slane %v253, 2
        %v829 = vrot.slane %v254, 2
        %v830 = vsel %vm777, %v828, %v829
        %v831 = vrot.slane %v255, 2
        %v832 = vsel %vm777, %v829, %v831
        %v833 = vrot.slane %v256, 2
        %v834 = vrot.slane %v257, 2
        %v835 = vsel %vm777, %v833, %v834
        %v836 = vrot.slane %v258, 2
        %v837 = vsel %vm777, %v834, %v836
        %v838 = vrot.slane %v259, 2
        %v839 = vrot.slane %v260, 2
        %v840 = vsel %vm777, %v838, %v839
        %v841 = vrot.slane %v261, 2
        %v842 = vsel %vm777, %v839, %v841
        %v843 = vrot.slane %v262, 2
        %v844 = vrot.slane %v263, 2
        %v845 = vsel %vm777, %v843, %v844
        %v846 = vrot.slane %v264, 2
        %v847 = vsel %vm777, %v844, %v846
        %v848 = vrot.slane %v265, 2
        %v849 = vrot.slane %v266, 2
        %v850 = vsel %vm777, %v848, %v849
        %v851 = vrot.slane %v267, 2
        %v852 = vsel %vm777, %v849, %v851
        %v853 = vrot.slane %v268, 2
        %v854 = vrot.slane %v269, 2
        %v855 = vsel %vm777, %v853, %v854
        %v856 = vrot.slane %v270, 2
        %v857 = vsel %vm777, %v854, %v856
        %s858 = scalar_lea.vmem %s1, 8
        %v859 = vld [vmem:[%s858] sm:$0xf]
        %v860 = vsel %vm415, %v780, 0
        %v862 = vsel %vm415, %v782, 0
        %v864 = vsel %vm415, %v785, 0
        %v866 = vsel %vm415, %v787, 0
        %v868 = vsel %vm415, %v790, 0
        %v870 = vsel %vm415, %v792, 0
        %v872 = vsel %vm415, %v795, 0
        %v874 = vsel %vm415, %v797, 0
        %v876 = vsel %vm415, %v800, 0
        %v878 = vsel %vm415, %v802, 0
        %v880 = vsel %vm415, %v805, 0
        %v882 = vsel %vm415, %v807, 0
        %v884 = vsel %vm415, %v810, 0
        %v886 = vsel %vm415, %v812, 0
        %v888 = vsel %vm415, %v815, 0
        %v890 = vsel %vm415, %v817, 0
        %v892 = vsel %vm415, %v820, 0
        %v894 = vsel %vm415, %v822, 0
        %v896 = vsel %vm415, %v825, 0
        %v898 = vsel %vm415, %v827, 0
        %v900 = vsel %vm415, %v830, 0
        %v902 = vsel %vm415, %v832, 0
        %v904 = vsel %vm415, %v835, 0
        %v906 = vsel %vm415, %v837, 0
        %v908 = vsel %vm415, %v840, 0
        %v910 = vsel %vm415, %v842, 0
        %v912 = vsel %vm415, %v845, 0
        %v914 = vsel %vm415, %v847, 0
        %v916 = vsel %vm415, %v850, 0
        %v918 = vsel %vm415, %v852, 0
        %v920 = vsel %vm415, %v855, 0
        %v922 = vsel %vm415, %v857, 0
        %v925 = vsel %vm480, %v859, 0
        %927 = vmatpush.msra.mxu0 0.0
        %928 = vmatpush.msra.mxu0 0.0
        %929 = vmatpush.msra.mxu0 0.0
        %930 = vmatpush.msra.mxu0 0.0
        %931 = vmatpush.msra.mxu0 0.0
        %932 = vmatpush.msra.mxu0 0.0
        %933 = vmatpush.msra.mxu0 0.0
        %934 = vmatpush.msra.mxu0 0.0
        %935 = vmatpush.msra.mxu0 0.0
        %936 = vmatpush.msra.mxu0 0.0
        %937 = vmatpush.msra.mxu0 0.0
        %938 = vmatpush.msra.mxu0 0.0
        %939 = vmatpush.msra.mxu0 0.0
        %940 = vmatpush.msra.mxu0 0.0
        %941 = vmatpush.msra.mxu0 0.0
        %942 = vmatpush.msra.mxu0 %v925
        %943 = vmatmul.f32.gmra.mxu0 %v860
        %v944 = vpop.f32.mrf.mxu0
        %v945 = vadd.f32 0.0, %v944
        %946 = vmatmul.f32.gmra.mxu0 %v862
        %v947 = vpop.f32.mrf.mxu0
        %v948 = vadd.f32 0.0, %v947
        %949 = vmatmul.f32.gmra.mxu0 %v864
        %v950 = vpop.f32.mrf.mxu0
        %v951 = vadd.f32 0.0, %v950
        %952 = vmatmul.f32.gmra.mxu0 %v866
        %v953 = vpop.f32.mrf.mxu0
        %v954 = vadd.f32 0.0, %v953
        %955 = vmatmul.f32.gmra.mxu0 %v868
        %v956 = vpop.f32.mrf.mxu0
        %v957 = vadd.f32 0.0, %v956
        %958 = vmatmul.f32.gmra.mxu0 %v870
        %v959 = vpop.f32.mrf.mxu0
        %v960 = vadd.f32 0.0, %v959
        %961 = vmatmul.f32.gmra.mxu0 %v872
        %v962 = vpop.f32.mrf.mxu0
        %v963 = vadd.f32 0.0, %v962
        %964 = vmatmul.f32.gmra.mxu0 %v874
        %v965 = vpop.f32.mrf.mxu0
        %v966 = vadd.f32 0.0, %v965
        %967 = vmatmul.f32.gmra.mxu0 %v876
        %v968 = vpop.f32.mrf.mxu0
        %v969 = vadd.f32 0.0, %v968
        %970 = vmatmul.f32.gmra.mxu0 %v878
        %v971 = vpop.f32.mrf.mxu0
        %v972 = vadd.f32 0.0, %v971
        %973 = vmatmul.f32.gmra.mxu0 %v880
        %v974 = vpop.f32.mrf.mxu0
        %v975 = vadd.f32 0.0, %v974
        %976 = vmatmul.f32.gmra.mxu0 %v882
        %v977 = vpop.f32.mrf.mxu0
        %v978 = vadd.f32 0.0, %v977
        %979 = vmatmul.f32.gmra.mxu0 %v884
        %v980 = vpop.f32.mrf.mxu0
        %v981 = vadd.f32 0.0, %v980
        %982 = vmatmul.f32.gmra.mxu0 %v886
        %v983 = vpop.f32.mrf.mxu0
        %v984 = vadd.f32 0.0, %v983
        %985 = vmatmul.f32.gmra.mxu0 %v888
        %v986 = vpop.f32.mrf.mxu0
        %v987 = vadd.f32 0.0, %v986
        %988 = vmatmul.f32.gmra.mxu0 %v890
        %v989 = vpop.f32.mrf.mxu0
        %v990 = vadd.f32 0.0, %v989
        %991 = vmatmul.f32.gmra.mxu0 %v892
        %v992 = vpop.f32.mrf.mxu0
        %v993 = vadd.f32 0.0, %v992
        %994 = vmatmul.f32.gmra.mxu0 %v894
        %v995 = vpop.f32.mrf.mxu0
        %v996 = vadd.f32 0.0, %v995
        %997 = vmatmul.f32.gmra.mxu0 %v896
        %v998 = vpop.f32.mrf.mxu0
        %v999 = vadd.f32 0.0, %v998
        %1000 = vmatmul.f32.gmra.mxu0 %v898
        %v1001 = vpop.f32.mrf.mxu0
        %v1002 = vadd.f32 0.0, %v1001
        %1003 = vmatmul.f32.gmra.mxu0 %v900
        %v1004 = vpop.f32.mrf.mxu0
        %v1005 = vadd.f32 0.0, %v1004
        %1006 = vmatmul.f32.gmra.mxu0 %v902
        %v1007 = vpop.f32.mrf.mxu0
        %v1008 = vadd.f32 0.0, %v1007
        %1009 = vmatmul.f32.gmra.mxu0 %v904
        %v1010 = vpop.f32.mrf.mxu0
        %v1011 = vadd.f32 0.0, %v1010
        %1012 = vmatmul.f32.gmra.mxu0 %v906
        %v1013 = vpop.f32.mrf.mxu0
        %v1014 = vadd.f32 0.0, %v1013
        %1015 = vmatmul.f32.gmra.mxu0 %v908
        %v1016 = vpop.f32.mrf.mxu0
        %v1017 = vadd.f32 0.0, %v1016
        %1018 = vmatmul.f32.gmra.mxu0 %v910
        %v1019 = vpop.f32.mrf.mxu0
        %v1020 = vadd.f32 0.0, %v1019
        %1021 = vmatmul.f32.gmra.mxu0 %v912
        %v1022 = vpop.f32.mrf.mxu0
        %v1023 = vadd.f32 0.0, %v1022
        %1024 = vmatmul.f32.gmra.mxu0 %v914
        %v1025 = vpop.f32.mrf.mxu0
        %v1026 = vadd.f32 0.0, %v1025
        %1027 = vmatmul.f32.gmra.mxu0 %v916
        %v1028 = vpop.f32.mrf.mxu0
        %v1029 = vadd.f32 0.0, %v1028
        %1030 = vmatmul.f32.gmra.mxu0 %v918
        %v1031 = vpop.f32.mrf.mxu0
        %v1032 = vadd.f32 0.0, %v1031
        %1033 = vmatmul.f32.gmra.mxu0 %v920
        %v1034 = vpop.f32.mrf.mxu0
        %v1035 = vadd.f32 0.0, %v1034
        %1036 = vmatmul.f32.gmra.mxu0 %v922
        %v1037 = vpop.f32.mrf.mxu0
        %v1038 = vadd.f32 0.0, %v1037
        %1039 = vdwg.mxu0
        %v1040 = vadd.f32 %v682, %v945
        %v1041 = vadd.f32 %v685, %v948
        %v1042 = vadd.f32 %v688, %v951
        %v1043 = vadd.f32 %v691, %v954
        %v1044 = vadd.f32 %v694, %v957
        %v1045 = vadd.f32 %v697, %v960
        %v1046 = vadd.f32 %v700, %v963
        %v1047 = vadd.f32 %v703, %v966
        %v1048 = vadd.f32 %v706, %v969
        %v1049 = vadd.f32 %v709, %v972
        %v1050 = vadd.f32 %v712, %v975
        %v1051 = vadd.f32 %v715, %v978
        %v1052 = vadd.f32 %v718, %v981
        %v1053 = vadd.f32 %v721, %v984
        %v1054 = vadd.f32 %v724, %v987
        %v1055 = vadd.f32 %v727, %v990
        %v1056 = vadd.f32 %v730, %v993
        %v1057 = vadd.f32 %v733, %v996
        %v1058 = vadd.f32 %v736, %v999
        %v1059 = vadd.f32 %v739, %v1002
        %v1060 = vadd.f32 %v742, %v1005
        %v1061 = vadd.f32 %v745, %v1008
        %v1062 = vadd.f32 %v748, %v1011
        %v1063 = vadd.f32 %v751, %v1014
        %v1064 = vadd.f32 %v754, %v1017
        %v1065 = vadd.f32 %v757, %v1020
        %v1066 = vadd.f32 %v760, %v1023
        %v1067 = vadd.f32 %v763, %v1026
        %v1068 = vadd.f32 %v766, %v1029
        %v1069 = vadd.f32 %v769, %v1032
        %v1070 = vadd.f32 %v772, %v1035
        %v1071 = vadd.f32 %v775, %v1038
        %vm1072 = vcmask 1044480
        %v1073 = vrot.slane %v223, 3
        %v1074 = vrot.slane %v224, 3
        %v1075 = vsel %vm1072, %v1073, %v1074
        %v1076 = vrot.slane %v225, 3
        %v1077 = vsel %vm1072, %v1074, %v1076
        %v1078 = vrot.slane %v226, 3
        %v1079 = vrot.slane %v227, 3
        %v1080 = vsel %vm1072, %v1078, %v1079
        %v1081 = vrot.slane %v228, 3
        %v1082 = vsel %vm1072, %v1079, %v1081
        %v1083 = vrot.slane %v229, 3
        %v1084 = vrot.slane %v230, 3
        %v1085 = vsel %vm1072, %v1083, %v1084
        %v1086 = vrot.slane %v231, 3
        %v1087 = vsel %vm1072, %v1084, %v1086
        %v1088 = vrot.slane %v232, 3
        %v1089 = vrot.slane %v233, 3
        %v1090 = vsel %vm1072, %v1088, %v1089
        %v1091 = vrot.slane %v234, 3
        %v1092 = vsel %vm1072, %v1089, %v1091
        %v1093 = vrot.slane %v235, 3
        %v1094 = vrot.slane %v236, 3
        %v1095 = vsel %vm1072, %v1093, %v1094
        %v1096 = vrot.slane %v237, 3
        %v1097 = vsel %vm1072, %v1094, %v1096
        %v1098 = vrot.slane %v238, 3
        %v1099 = vrot.slane %v239, 3
        %v1100 = vsel %vm1072, %v1098, %v1099
        %v1101 = vrot.slane %v240, 3
        %v1102 = vsel %vm1072, %v1099, %v1101
        %v1103 = vrot.slane %v241, 3
        %v1104 = vrot.slane %v242, 3
        %v1105 = vsel %vm1072, %v1103, %v1104
        %v1106 = vrot.slane %v243, 3
        %v1107 = vsel %vm1072, %v1104, %v1106
        %v1108 = vrot.slane %v244, 3
        %v1109 = vrot.slane %v245, 3
        %v1110 = vsel %vm1072, %v1108, %v1109
        %v1111 = vrot.slane %v246, 3
        %v1112 = vsel %vm1072, %v1109, %v1111
        %v1113 = vrot.slane %v247, 3
        %v1114 = vrot.slane %v248, 3
        %v1115 = vsel %vm1072, %v1113, %v1114
        %v1116 = vrot.slane %v249, 3
        %v1117 = vsel %vm1072, %v1114, %v1116
        %v1118 = vrot.slane %v250, 3
        %v1119 = vrot.slane %v251, 3
        %v1120 = vsel %vm1072, %v1118, %v1119
        %v1121 = vrot.slane %v252, 3
        %v1122 = vsel %vm1072, %v1119, %v1121
        %v1123 = vrot.slane %v253, 3
        %v1124 = vrot.slane %v254, 3
        %v1125 = vsel %vm1072, %v1123, %v1124
        %v1126 = vrot.slane %v255, 3
        %v1127 = vsel %vm1072, %v1124, %v1126
        %v1128 = vrot.slane %v256, 3
        %v1129 = vrot.slane %v257, 3
        %v1130 = vsel %vm1072, %v1128, %v1129
        %v1131 = vrot.slane %v258, 3
        %v1132 = vsel %vm1072, %v1129, %v1131
        %v1133 = vrot.slane %v259, 3
        %v1134 = vrot.slane %v260, 3
        %v1135 = vsel %vm1072, %v1133, %v1134
        %v1136 = vrot.slane %v261, 3
        %v1137 = vsel %vm1072, %v1134, %v1136
        %v1138 = vrot.slane %v262, 3
        %v1139 = vrot.slane %v263, 3
        %v1140 = vsel %vm1072, %v1138, %v1139
        %v1141 = vrot.slane %v264, 3
        %v1142 = vsel %vm1072, %v1139, %v1141
        %v1143 = vrot.slane %v265, 3
        %v1144 = vrot.slane %v266, 3
        %v1145 = vsel %vm1072, %v1143, %v1144
        %v1146 = vrot.slane %v267, 3
        %v1147 = vsel %vm1072, %v1144, %v1146
        %v1148 = vrot.slane %v268, 3
        %v1149 = vrot.slane %v269, 3
        %v1150 = vsel %vm1072, %v1148, %v1149
        %v1151 = vrot.slane %v270, 3
        %v1152 = vsel %vm1072, %v1149, %v1151
        %s1153 = scalar_lea.vmem %s1, 12
        %v1154 = vld [vmem:[%s1153] sm:$0xf]
        %v1155 = vsel %vm415, %v1075, 0
        %v1157 = vsel %vm415, %v1077, 0
        %v1159 = vsel %vm415, %v1080, 0
        %v1161 = vsel %vm415, %v1082, 0
        %v1163 = vsel %vm415, %v1085, 0
        %v1165 = vsel %vm415, %v1087, 0
        %v1167 = vsel %vm415, %v1090, 0
        %v1169 = vsel %vm415, %v1092, 0
        %v1171 = vsel %vm415, %v1095, 0
        %v1173 = vsel %vm415, %v1097, 0
        %v1175 = vsel %vm415, %v1100, 0
        %v1177 = vsel %vm415, %v1102, 0
        %v1179 = vsel %vm415, %v1105, 0
        %v1181 = vsel %vm415, %v1107, 0
        %v1183 = vsel %vm415, %v1110, 0
        %v1185 = vsel %vm415, %v1112, 0
        %v1187 = vsel %vm415, %v1115, 0
        %v1189 = vsel %vm415, %v1117, 0
        %v1191 = vsel %vm415, %v1120, 0
        %v1193 = vsel %vm415, %v1122, 0
        %v1195 = vsel %vm415, %v1125, 0
        %v1197 = vsel %vm415, %v1127, 0
        %v1199 = vsel %vm415, %v1130, 0
        %v1201 = vsel %vm415, %v1132, 0
        %v1203 = vsel %vm415, %v1135, 0
        %v1205 = vsel %vm415, %v1137, 0
        %v1207 = vsel %vm415, %v1140, 0
        %v1209 = vsel %vm415, %v1142, 0
        %v1211 = vsel %vm415, %v1145, 0
        %v1213 = vsel %vm415, %v1147, 0
        %v1215 = vsel %vm415, %v1150, 0
        %v1217 = vsel %vm415, %v1152, 0
        %v1220 = vsel %vm480, %v1154, 0
        %1222 = vmatpush.msra.mxu0 0.0
        %1223 = vmatpush.msra.mxu0 0.0
        %1224 = vmatpush.msra.mxu0 0.0
        %1225 = vmatpush.msra.mxu0 0.0
        %1226 = vmatpush.msra.mxu0 0.0
        %1227 = vmatpush.msra.mxu0 0.0
        %1228 = vmatpush.msra.mxu0 0.0
        %1229 = vmatpush.msra.mxu0 0.0
        %1230 = vmatpush.msra.mxu0 0.0
        %1231 = vmatpush.msra.mxu0 0.0
        %1232 = vmatpush.msra.mxu0 0.0
        %1233 = vmatpush.msra.mxu0 0.0
        %1234 = vmatpush.msra.mxu0 0.0
        %1235 = vmatpush.msra.mxu0 0.0
        %1236 = vmatpush.msra.mxu0 0.0
        %1237 = vmatpush.msra.mxu0 %v1220
        %1238 = vmatmul.f32.gmra.mxu0 %v1155
        %v1239 = vpop.f32.mrf.mxu0
        %v1240 = vadd.f32 0.0, %v1239
        %1241 = vmatmul.f32.gmra.mxu0 %v1157
        %v1242 = vpop.f32.mrf.mxu0
        %v1243 = vadd.f32 0.0, %v1242
        %1244 = vmatmul.f32.gmra.mxu0 %v1159
        %v1245 = vpop.f32.mrf.mxu0
        %v1246 = vadd.f32 0.0, %v1245
        %1247 = vmatmul.f32.gmra.mxu0 %v1161
        %v1248 = vpop.f32.mrf.mxu0
        %v1249 = vadd.f32 0.0, %v1248
        %1250 = vmatmul.f32.gmra.mxu0 %v1163
        %v1251 = vpop.f32.mrf.mxu0
        %v1252 = vadd.f32 0.0, %v1251
        %1253 = vmatmul.f32.gmra.mxu0 %v1165
        %v1254 = vpop.f32.mrf.mxu0
        %v1255 = vadd.f32 0.0, %v1254
        %1256 = vmatmul.f32.gmra.mxu0 %v1167
        %v1257 = vpop.f32.mrf.mxu0
        %v1258 = vadd.f32 0.0, %v1257
        %1259 = vmatmul.f32.gmra.mxu0 %v1169
        %v1260 = vpop.f32.mrf.mxu0
        %v1261 = vadd.f32 0.0, %v1260
        %1262 = vmatmul.f32.gmra.mxu0 %v1171
        %v1263 = vpop.f32.mrf.mxu0
        %v1264 = vadd.f32 0.0, %v1263
        %1265 = vmatmul.f32.gmra.mxu0 %v1173
        %v1266 = vpop.f32.mrf.mxu0
        %v1267 = vadd.f32 0.0, %v1266
        %1268 = vmatmul.f32.gmra.mxu0 %v1175
        %v1269 = vpop.f32.mrf.mxu0
        %v1270 = vadd.f32 0.0, %v1269
        %1271 = vmatmul.f32.gmra.mxu0 %v1177
        %v1272 = vpop.f32.mrf.mxu0
        %v1273 = vadd.f32 0.0, %v1272
        %1274 = vmatmul.f32.gmra.mxu0 %v1179
        %v1275 = vpop.f32.mrf.mxu0
        %v1276 = vadd.f32 0.0, %v1275
        %1277 = vmatmul.f32.gmra.mxu0 %v1181
        %v1278 = vpop.f32.mrf.mxu0
        %v1279 = vadd.f32 0.0, %v1278
        %1280 = vmatmul.f32.gmra.mxu0 %v1183
        %v1281 = vpop.f32.mrf.mxu0
        %v1282 = vadd.f32 0.0, %v1281
        %1283 = vmatmul.f32.gmra.mxu0 %v1185
        %v1284 = vpop.f32.mrf.mxu0
        %v1285 = vadd.f32 0.0, %v1284
        %1286 = vmatmul.f32.gmra.mxu0 %v1187
        %v1287 = vpop.f32.mrf.mxu0
        %v1288 = vadd.f32 0.0, %v1287
        %1289 = vmatmul.f32.gmra.mxu0 %v1189
        %v1290 = vpop.f32.mrf.mxu0
        %v1291 = vadd.f32 0.0, %v1290
        %1292 = vmatmul.f32.gmra.mxu0 %v1191
        %v1293 = vpop.f32.mrf.mxu0
        %v1294 = vadd.f32 0.0, %v1293
        %1295 = vmatmul.f32.gmra.mxu0 %v1193
        %v1296 = vpop.f32.mrf.mxu0
        %v1297 = vadd.f32 0.0, %v1296
        %1298 = vmatmul.f32.gmra.mxu0 %v1195
        %v1299 = vpop.f32.mrf.mxu0
        %v1300 = vadd.f32 0.0, %v1299
        %1301 = vmatmul.f32.gmra.mxu0 %v1197
        %v1302 = vpop.f32.mrf.mxu0
        %v1303 = vadd.f32 0.0, %v1302
        %1304 = vmatmul.f32.gmra.mxu0 %v1199
        %v1305 = vpop.f32.mrf.mxu0
        %v1306 = vadd.f32 0.0, %v1305
        %1307 = vmatmul.f32.gmra.mxu0 %v1201
        %v1308 = vpop.f32.mrf.mxu0
        %v1309 = vadd.f32 0.0, %v1308
        %1310 = vmatmul.f32.gmra.mxu0 %v1203
        %v1311 = vpop.f32.mrf.mxu0
        %v1312 = vadd.f32 0.0, %v1311
        %1313 = vmatmul.f32.gmra.mxu0 %v1205
        %v1314 = vpop.f32.mrf.mxu0
        %v1315 = vadd.f32 0.0, %v1314
        %1316 = vmatmul.f32.gmra.mxu0 %v1207
        %v1317 = vpop.f32.mrf.mxu0
        %v1318 = vadd.f32 0.0, %v1317
        %1319 = vmatmul.f32.gmra.mxu0 %v1209
        %v1320 = vpop.f32.mrf.mxu0
        %v1321 = vadd.f32 0.0, %v1320
        %1322 = vmatmul.f32.gmra.mxu0 %v1211
        %v1323 = vpop.f32.mrf.mxu0
        %v1324 = vadd.f32 0.0, %v1323
        %1325 = vmatmul.f32.gmra.mxu0 %v1213
        %v1326 = vpop.f32.mrf.mxu0
        %v1327 = vadd.f32 0.0, %v1326
        %1328 = vmatmul.f32.gmra.mxu0 %v1215
        %v1329 = vpop.f32.mrf.mxu0
        %v1330 = vadd.f32 0.0, %v1329
        %1331 = vmatmul.f32.gmra.mxu0 %v1217
        %v1332 = vpop.f32.mrf.mxu0
        %v1333 = vadd.f32 0.0, %v1332
        %1334 = vdwg.mxu0
        %v1335 = vadd.f32 %v1040, %v1240
        %v1336 = vadd.f32 %v1041, %v1243
        %v1337 = vadd.f32 %v1042, %v1246
        %v1338 = vadd.f32 %v1043, %v1249
        %v1339 = vadd.f32 %v1044, %v1252
        %v1340 = vadd.f32 %v1045, %v1255
        %v1341 = vadd.f32 %v1046, %v1258
        %v1342 = vadd.f32 %v1047, %v1261
        %v1343 = vadd.f32 %v1048, %v1264
        %v1344 = vadd.f32 %v1049, %v1267
        %v1345 = vadd.f32 %v1050, %v1270
        %v1346 = vadd.f32 %v1051, %v1273
        %v1347 = vadd.f32 %v1052, %v1276
        %v1348 = vadd.f32 %v1053, %v1279
        %v1349 = vadd.f32 %v1054, %v1282
        %v1350 = vadd.f32 %v1055, %v1285
        %v1351 = vadd.f32 %v1056, %v1288
        %v1352 = vadd.f32 %v1057, %v1291
        %v1353 = vadd.f32 %v1058, %v1294
        %v1354 = vadd.f32 %v1059, %v1297
        %v1355 = vadd.f32 %v1060, %v1300
        %v1356 = vadd.f32 %v1061, %v1303
        %v1357 = vadd.f32 %v1062, %v1306
        %v1358 = vadd.f32 %v1063, %v1309
        %v1359 = vadd.f32 %v1064, %v1312
        %v1360 = vadd.f32 %v1065, %v1315
        %v1361 = vadd.f32 %v1066, %v1318
        %v1362 = vadd.f32 %v1067, %v1321
        %v1363 = vadd.f32 %v1068, %v1324
        %v1364 = vadd.f32 %v1069, %v1327
        %v1365 = vadd.f32 %v1070, %v1330
        %v1366 = vadd.f32 %v1071, %v1333
        %v1367 = vrot.slane %v223, 4
        %v1368 = vrot.slane %v224, 4
        %v1369 = vsel %vm480, %v1367, %v1368
        %v1370 = vrot.slane %v225, 4
        %v1371 = vsel %vm480, %v1368, %v1370
        %v1372 = vrot.slane %v226, 4
        %v1373 = vrot.slane %v227, 4
        %v1374 = vsel %vm480, %v1372, %v1373
        %v1375 = vrot.slane %v228, 4
        %v1376 = vsel %vm480, %v1373, %v1375
        %v1377 = vrot.slane %v229, 4
        %v1378 = vrot.slane %v230, 4
        %v1379 = vsel %vm480, %v1377, %v1378
        %v1380 = vrot.slane %v231, 4
        %v1381 = vsel %vm480, %v1378, %v1380
        %v1382 = vrot.slane %v232, 4
        %v1383 = vrot.slane %v233, 4
        %v1384 = vsel %vm480, %v1382, %v1383
        %v1385 = vrot.slane %v234, 4
        %v1386 = vsel %vm480, %v1383, %v1385
        %v1387 = vrot.slane %v235, 4
        %v1388 = vrot.slane %v236, 4
        %v1389 = vsel %vm480, %v1387, %v1388
        %v1390 = vrot.slane %v237, 4
        %v1391 = vsel %vm480, %v1388, %v1390
        %v1392 = vrot.slane %v238, 4
        %v1393 = vrot.slane %v239, 4
        %v1394 = vsel %vm480, %v1392, %v1393
        %v1395 = vrot.slane %v240, 4
        %v1396 = vsel %vm480, %v1393, %v1395
        %v1397 = vrot.slane %v241, 4
        %v1398 = vrot.slane %v242, 4
        %v1399 = vsel %vm480, %v1397, %v1398
        %v1400 = vrot.slane %v243, 4
        %v1401 = vsel %vm480, %v1398, %v1400
        %v1402 = vrot.slane %v244, 4
        %v1403 = vrot.slane %v245, 4
        %v1404 = vsel %vm480, %v1402, %v1403
        %v1405 = vrot.slane %v246, 4
        %v1406 = vsel %vm480, %v1403, %v1405
        %v1407 = vrot.slane %v247, 4
        %v1408 = vrot.slane %v248, 4
        %v1409 = vsel %vm480, %v1407, %v1408
        %v1410 = vrot.slane %v249, 4
        %v1411 = vsel %vm480, %v1408, %v1410
        %v1412 = vrot.slane %v250, 4
        %v1413 = vrot.slane %v251, 4
        %v1414 = vsel %vm480, %v1412, %v1413
        %v1415 = vrot.slane %v252, 4
        %v1416 = vsel %vm480, %v1413, %v1415
        %v1417 = vrot.slane %v253, 4
        %v1418 = vrot.slane %v254, 4
        %v1419 = vsel %vm480, %v1417, %v1418
        %v1420 = vrot.slane %v255, 4
        %v1421 = vsel %vm480, %v1418, %v1420
        %v1422 = vrot.slane %v256, 4
        %v1423 = vrot.slane %v257, 4
        %v1424 = vsel %vm480, %v1422, %v1423
        %v1425 = vrot.slane %v258, 4
        %v1426 = vsel %vm480, %v1423, %v1425
        %v1427 = vrot.slane %v259, 4
        %v1428 = vrot.slane %v260, 4
        %v1429 = vsel %vm480, %v1427, %v1428
        %v1430 = vrot.slane %v261, 4
        %v1431 = vsel %vm480, %v1428, %v1430
        %v1432 = vrot.slane %v262, 4
        %v1433 = vrot.slane %v263, 4
        %v1434 = vsel %vm480, %v1432, %v1433
        %v1435 = vrot.slane %v264, 4
        %v1436 = vsel %vm480, %v1433, %v1435
        %v1437 = vrot.slane %v265, 4
        %v1438 = vrot.slane %v266, 4
        %v1439 = vsel %vm480, %v1437, %v1438
        %v1440 = vrot.slane %v267, 4
        %v1441 = vsel %vm480, %v1438, %v1440
        %v1442 = vrot.slane %v268, 4
        %v1443 = vrot.slane %v269, 4
        %v1444 = vsel %vm480, %v1442, %v1443
        %v1445 = vrot.slane %v270, 4
        %v1446 = vsel %vm480, %v1443, %v1445
        %s1447 = scalar_lea.vmem %s1, 16
        %v1448 = vld [vmem:[%s1447] sm:$0xf]
        %v1449 = vsel %vm415, %v1369, 0
        %v1451 = vsel %vm415, %v1371, 0
        %v1453 = vsel %vm415, %v1374, 0
        %v1455 = vsel %vm415, %v1376, 0
        %v1457 = vsel %vm415, %v1379, 0
        %v1459 = vsel %vm415, %v1381, 0
        %v1461 = vsel %vm415, %v1384, 0
        %v1463 = vsel %vm415, %v1386, 0
        %v1465 = vsel %vm415, %v1389, 0
        %v1467 = vsel %vm415, %v1391, 0
        %v1469 = vsel %vm415, %v1394, 0
        %v1471 = vsel %vm415, %v1396, 0
        %v1473 = vsel %vm415, %v1399, 0
        %v1475 = vsel %vm415, %v1401, 0
        %v1477 = vsel %vm415, %v1404, 0
        %v1479 = vsel %vm415, %v1406, 0
        %v1481 = vsel %vm415, %v1409, 0
        %v1483 = vsel %vm415, %v1411, 0
        %v1485 = vsel %vm415, %v1414, 0
        %v1487 = vsel %vm415, %v1416, 0
        %v1489 = vsel %vm415, %v1419, 0
        %v1491 = vsel %vm415, %v1421, 0
        %v1493 = vsel %vm415, %v1424, 0
        %v1495 = vsel %vm415, %v1426, 0
        %v1497 = vsel %vm415, %v1429, 0
        %v1499 = vsel %vm415, %v1431, 0
        %v1501 = vsel %vm415, %v1434, 0
        %v1503 = vsel %vm415, %v1436, 0
        %v1505 = vsel %vm415, %v1439, 0
        %v1507 = vsel %vm415, %v1441, 0
        %v1509 = vsel %vm415, %v1444, 0
        %v1511 = vsel %vm415, %v1446, 0
        %v1514 = vsel %vm480, %v1448, 0
        %1516 = vmatpush.msra.mxu0 0.0
        %1517 = vmatpush.msra.mxu0 0.0
        %1518 = vmatpush.msra.mxu0 0.0
        %1519 = vmatpush.msra.mxu0 0.0
        %1520 = vmatpush.msra.mxu0 0.0
        %1521 = vmatpush.msra.mxu0 0.0
        %1522 = vmatpush.msra.mxu0 0.0
        %1523 = vmatpush.msra.mxu0 0.0
        %1524 = vmatpush.msra.mxu0 0.0
        %1525 = vmatpush.msra.mxu0 0.0
        %1526 = vmatpush.msra.mxu0 0.0
        %1527 = vmatpush.msra.mxu0 0.0
        %1528 = vmatpush.msra.mxu0 0.0
        %1529 = vmatpush.msra.mxu0 0.0
        %1530 = vmatpush.msra.mxu0 0.0
        %1531 = vmatpush.msra.mxu0 %v1514
        %1532 = vmatmul.f32.gmra.mxu0 %v1449
        %v1533 = vpop.f32.mrf.mxu0
        %v1534 = vadd.f32 0.0, %v1533
        %1535 = vmatmul.f32.gmra.mxu0 %v1451
        %v1536 = vpop.f32.mrf.mxu0
        %v1537 = vadd.f32 0.0, %v1536
        %1538 = vmatmul.f32.gmra.mxu0 %v1453
        %v1539 = vpop.f32.mrf.mxu0
        %v1540 = vadd.f32 0.0, %v1539
        %1541 = vmatmul.f32.gmra.mxu0 %v1455
        %v1542 = vpop.f32.mrf.mxu0
        %v1543 = vadd.f32 0.0, %v1542
        %1544 = vmatmul.f32.gmra.mxu0 %v1457
        %v1545 = vpop.f32.mrf.mxu0
        %v1546 = vadd.f32 0.0, %v1545
        %1547 = vmatmul.f32.gmra.mxu0 %v1459
        %v1548 = vpop.f32.mrf.mxu0
        %v1549 = vadd.f32 0.0, %v1548
        %1550 = vmatmul.f32.gmra.mxu0 %v1461
        %v1551 = vpop.f32.mrf.mxu0
        %v1552 = vadd.f32 0.0, %v1551
        %1553 = vmatmul.f32.gmra.mxu0 %v1463
        %v1554 = vpop.f32.mrf.mxu0
        %v1555 = vadd.f32 0.0, %v1554
        %1556 = vmatmul.f32.gmra.mxu0 %v1465
        %v1557 = vpop.f32.mrf.mxu0
        %v1558 = vadd.f32 0.0, %v1557
        %1559 = vmatmul.f32.gmra.mxu0 %v1467
        %v1560 = vpop.f32.mrf.mxu0
        %v1561 = vadd.f32 0.0, %v1560
        %1562 = vmatmul.f32.gmra.mxu0 %v1469
        %v1563 = vpop.f32.mrf.mxu0
        %v1564 = vadd.f32 0.0, %v1563
        %1565 = vmatmul.f32.gmra.mxu0 %v1471
        %v1566 = vpop.f32.mrf.mxu0
        %v1567 = vadd.f32 0.0, %v1566
        %1568 = vmatmul.f32.gmra.mxu0 %v1473
        %v1569 = vpop.f32.mrf.mxu0
        %v1570 = vadd.f32 0.0, %v1569
        %1571 = vmatmul.f32.gmra.mxu0 %v1475
        %v1572 = vpop.f32.mrf.mxu0
        %v1573 = vadd.f32 0.0, %v1572
        %1574 = vmatmul.f32.gmra.mxu0 %v1477
        %v1575 = vpop.f32.mrf.mxu0
        %v1576 = vadd.f32 0.0, %v1575
        %1577 = vmatmul.f32.gmra.mxu0 %v1479
        %v1578 = vpop.f32.mrf.mxu0
        %v1579 = vadd.f32 0.0, %v1578
        %1580 = vmatmul.f32.gmra.mxu0 %v1481
        %v1581 = vpop.f32.mrf.mxu0
        %v1582 = vadd.f32 0.0, %v1581
        %1583 = vmatmul.f32.gmra.mxu0 %v1483
        %v1584 = vpop.f32.mrf.mxu0
        %v1585 = vadd.f32 0.0, %v1584
        %1586 = vmatmul.f32.gmra.mxu0 %v1485
        %v1587 = vpop.f32.mrf.mxu0
        %v1588 = vadd.f32 0.0, %v1587
        %1589 = vmatmul.f32.gmra.mxu0 %v1487
        %v1590 = vpop.f32.mrf.mxu0
        %v1591 = vadd.f32 0.0, %v1590
        %1592 = vmatmul.f32.gmra.mxu0 %v1489
        %v1593 = vpop.f32.mrf.mxu0
        %v1594 = vadd.f32 0.0, %v1593
        %1595 = vmatmul.f32.gmra.mxu0 %v1491
        %v1596 = vpop.f32.mrf.mxu0
        %v1597 = vadd.f32 0.0, %v1596
        %1598 = vmatmul.f32.gmra.mxu0 %v1493
        %v1599 = vpop.f32.mrf.mxu0
        %v1600 = vadd.f32 0.0, %v1599
        %1601 = vmatmul.f32.gmra.mxu0 %v1495
        %v1602 = vpop.f32.mrf.mxu0
        %v1603 = vadd.f32 0.0, %v1602
        %1604 = vmatmul.f32.gmra.mxu0 %v1497
        %v1605 = vpop.f32.mrf.mxu0
        %v1606 = vadd.f32 0.0, %v1605
        %1607 = vmatmul.f32.gmra.mxu0 %v1499
        %v1608 = vpop.f32.mrf.mxu0
        %v1609 = vadd.f32 0.0, %v1608
        %1610 = vmatmul.f32.gmra.mxu0 %v1501
        %v1611 = vpop.f32.mrf.mxu0
        %v1612 = vadd.f32 0.0, %v1611
        %1613 = vmatmul.f32.gmra.mxu0 %v1503
        %v1614 = vpop.f32.mrf.mxu0
        %v1615 = vadd.f32 0.0, %v1614
        %1616 = vmatmul.f32.gmra.mxu0 %v1505
        %v1617 = vpop.f32.mrf.mxu0
        %v1618 = vadd.f32 0.0, %v1617
        %1619 = vmatmul.f32.gmra.mxu0 %v1507
        %v1620 = vpop.f32.mrf.mxu0
        %v1621 = vadd.f32 0.0, %v1620
        %1622 = vmatmul.f32.gmra.mxu0 %v1509
        %v1623 = vpop.f32.mrf.mxu0
        %v1624 = vadd.f32 0.0, %v1623
        %1625 = vmatmul.f32.gmra.mxu0 %v1511
        %v1626 = vpop.f32.mrf.mxu0
        %v1627 = vadd.f32 0.0, %v1626
        %1628 = vdwg.mxu0
        %v1629 = vadd.f32 %v1335, %v1534
        %v1630 = vadd.f32 %v1336, %v1537
        %v1631 = vadd.f32 %v1337, %v1540
        %v1632 = vadd.f32 %v1338, %v1543
        %v1633 = vadd.f32 %v1339, %v1546
        %v1634 = vadd.f32 %v1340, %v1549
        %v1635 = vadd.f32 %v1341, %v1552
        %v1636 = vadd.f32 %v1342, %v1555
        %v1637 = vadd.f32 %v1343, %v1558
        %v1638 = vadd.f32 %v1344, %v1561
        %v1639 = vadd.f32 %v1345, %v1564
        %v1640 = vadd.f32 %v1346, %v1567
        %v1641 = vadd.f32 %v1347, %v1570
        %v1642 = vadd.f32 %v1348, %v1573
        %v1643 = vadd.f32 %v1349, %v1576
        %v1644 = vadd.f32 %v1350, %v1579
        %v1645 = vadd.f32 %v1351, %v1582
        %v1646 = vadd.f32 %v1352, %v1585
        %v1647 = vadd.f32 %v1353, %v1588
        %v1648 = vadd.f32 %v1354, %v1591
        %v1649 = vadd.f32 %v1355, %v1594
        %v1650 = vadd.f32 %v1356, %v1597
        %v1651 = vadd.f32 %v1357, %v1600
        %v1652 = vadd.f32 %v1358, %v1603
        %v1653 = vadd.f32 %v1359, %v1606
        %v1654 = vadd.f32 %v1360, %v1609
        %v1655 = vadd.f32 %v1361, %v1612
        %v1656 = vadd.f32 %v1362, %v1615
        %v1657 = vadd.f32 %v1363, %v1618
        %v1658 = vadd.f32 %v1364, %v1621
        %v1659 = vadd.f32 %v1365, %v1624
        %v1660 = vadd.f32 %v1366, %v1627
        %s1661 = scalar_lea.vmem %s1, 20
        %v1662 = vld [vmem:[%s1661] sm:$0xf]
        %v1664 = vsel %vm415, %v271, 0
        %v1667 = vsel %vm415, %v272, 0
        %v1670 = vsel %vm480, %v1662, 0
        %1672 = vmatpush.msra.mxu0 0.0
        %1673 = vmatpush.msra.mxu0 0.0
        %1674 = vmatpush.msra.mxu0 0.0
        %1675 = vmatpush.msra.mxu0 0.0
        %1676 = vmatpush.msra.mxu0 0.0
        %1677 = vmatpush.msra.mxu0 0.0
        %1678 = vmatpush.msra.mxu0 0.0
        %1679 = vmatpush.msra.mxu0 0.0
        %1680 = vmatpush.msra.mxu0 0.0
        %1681 = vmatpush.msra.mxu0 0.0
        %1682 = vmatpush.msra.mxu0 0.0
        %1683 = vmatpush.msra.mxu0 0.0
        %1684 = vmatpush.msra.mxu0 0.0
        %1685 = vmatpush.msra.mxu0 0.0
        %1686 = vmatpush.msra.mxu0 0.0
        %1687 = vmatpush.msra.mxu0 %v1670
        %1688 = vmatmul.f32.gmra.mxu0 %v601
        %v1689 = vpop.f32.mrf.mxu0
        %v1690 = vadd.f32 0.0, %v1689
        %1691 = vmatmul.f32.gmra.mxu0 %v603
        %v1692 = vpop.f32.mrf.mxu0
        %v1693 = vadd.f32 0.0, %v1692
        %1694 = vmatmul.f32.gmra.mxu0 %v605
        %v1695 = vpop.f32.mrf.mxu0
        %v1696 = vadd.f32 0.0, %v1695
        %1697 = vmatmul.f32.gmra.mxu0 %v607
        %v1698 = vpop.f32.mrf.mxu0
        %v1699 = vadd.f32 0.0, %v1698
        %1700 = vmatmul.f32.gmra.mxu0 %v609
        %v1701 = vpop.f32.mrf.mxu0
        %v1702 = vadd.f32 0.0, %v1701
        %1703 = vmatmul.f32.gmra.mxu0 %v611
        %v1704 = vpop.f32.mrf.mxu0
        %v1705 = vadd.f32 0.0, %v1704
        %1706 = vmatmul.f32.gmra.mxu0 %v613
        %v1707 = vpop.f32.mrf.mxu0
        %v1708 = vadd.f32 0.0, %v1707
        %1709 = vmatmul.f32.gmra.mxu0 %v615
        %v1710 = vpop.f32.mrf.mxu0
        %v1711 = vadd.f32 0.0, %v1710
        %1712 = vmatmul.f32.gmra.mxu0 %v617
        %v1713 = vpop.f32.mrf.mxu0
        %v1714 = vadd.f32 0.0, %v1713
        %1715 = vmatmul.f32.gmra.mxu0 %v619
        %v1716 = vpop.f32.mrf.mxu0
        %v1717 = vadd.f32 0.0, %v1716
        %1718 = vmatmul.f32.gmra.mxu0 %v621
        %v1719 = vpop.f32.mrf.mxu0
        %v1720 = vadd.f32 0.0, %v1719
        %1721 = vmatmul.f32.gmra.mxu0 %v623
        %v1722 = vpop.f32.mrf.mxu0
        %v1723 = vadd.f32 0.0, %v1722
        %1724 = vmatmul.f32.gmra.mxu0 %v625
        %v1725 = vpop.f32.mrf.mxu0
        %v1726 = vadd.f32 0.0, %v1725
        %1727 = vmatmul.f32.gmra.mxu0 %v627
        %v1728 = vpop.f32.mrf.mxu0
        %v1729 = vadd.f32 0.0, %v1728
        %1730 = vmatmul.f32.gmra.mxu0 %v629
        %v1731 = vpop.f32.mrf.mxu0
        %v1732 = vadd.f32 0.0, %v1731
        %1733 = vmatmul.f32.gmra.mxu0 %v631
        %v1734 = vpop.f32.mrf.mxu0
        %v1735 = vadd.f32 0.0, %v1734
        %1736 = vmatmul.f32.gmra.mxu0 %v633
        %v1737 = vpop.f32.mrf.mxu0
        %v1738 = vadd.f32 0.0, %v1737
        %1739 = vmatmul.f32.gmra.mxu0 %v635
        %v1740 = vpop.f32.mrf.mxu0
        %v1741 = vadd.f32 0.0, %v1740
        %1742 = vmatmul.f32.gmra.mxu0 %v637
        %v1743 = vpop.f32.mrf.mxu0
        %v1744 = vadd.f32 0.0, %v1743
        %1745 = vmatmul.f32.gmra.mxu0 %v639
        %v1746 = vpop.f32.mrf.mxu0
        %v1747 = vadd.f32 0.0, %v1746
        %1748 = vmatmul.f32.gmra.mxu0 %v641
        %v1749 = vpop.f32.mrf.mxu0
        %v1750 = vadd.f32 0.0, %v1749
        %1751 = vmatmul.f32.gmra.mxu0 %v643
        %v1752 = vpop.f32.mrf.mxu0
        %v1753 = vadd.f32 0.0, %v1752
        %1754 = vmatmul.f32.gmra.mxu0 %v645
        %v1755 = vpop.f32.mrf.mxu0
        %v1756 = vadd.f32 0.0, %v1755
        %1757 = vmatmul.f32.gmra.mxu0 %v647
        %v1758 = vpop.f32.mrf.mxu0
        %v1759 = vadd.f32 0.0, %v1758
        %1760 = vmatmul.f32.gmra.mxu0 %v649
        %v1761 = vpop.f32.mrf.mxu0
        %v1762 = vadd.f32 0.0, %v1761
        %1763 = vmatmul.f32.gmra.mxu0 %v651
        %v1764 = vpop.f32.mrf.mxu0
        %v1765 = vadd.f32 0.0, %v1764
        %1766 = vmatmul.f32.gmra.mxu0 %v653
        %v1767 = vpop.f32.mrf.mxu0
        %v1768 = vadd.f32 0.0, %v1767
        %1769 = vmatmul.f32.gmra.mxu0 %v655
        %v1770 = vpop.f32.mrf.mxu0
        %v1771 = vadd.f32 0.0, %v1770
        %1772 = vmatmul.f32.gmra.mxu0 %v657
        %v1773 = vpop.f32.mrf.mxu0
        %v1774 = vadd.f32 0.0, %v1773
        %1775 = vmatmul.f32.gmra.mxu0 %v659
        %v1776 = vpop.f32.mrf.mxu0
        %v1777 = vadd.f32 0.0, %v1776
        %1778 = vmatmul.f32.gmra.mxu0 %v1664
        %v1779 = vpop.f32.mrf.mxu0
        %v1780 = vadd.f32 0.0, %v1779
        %1781 = vmatmul.f32.gmra.mxu0 %v1667
        %v1782 = vpop.f32.mrf.mxu0
        %v1783 = vadd.f32 0.0, %v1782
        %1784 = vdwg.mxu0
        %v1785 = vadd.f32 %v1629, %v1690
        %v1786 = vadd.f32 %v1630, %v1693
        %v1787 = vadd.f32 %v1631, %v1696
        %v1788 = vadd.f32 %v1632, %v1699
        %v1789 = vadd.f32 %v1633, %v1702
        %v1790 = vadd.f32 %v1634, %v1705
        %v1791 = vadd.f32 %v1635, %v1708
        %v1792 = vadd.f32 %v1636, %v1711
        %v1793 = vadd.f32 %v1637, %v1714
        %v1794 = vadd.f32 %v1638, %v1717
        %v1795 = vadd.f32 %v1639, %v1720
        %v1796 = vadd.f32 %v1640, %v1723
        %v1797 = vadd.f32 %v1641, %v1726
        %v1798 = vadd.f32 %v1642, %v1729
        %v1799 = vadd.f32 %v1643, %v1732
        %v1800 = vadd.f32 %v1644, %v1735
        %v1801 = vadd.f32 %v1645, %v1738
        %v1802 = vadd.f32 %v1646, %v1741
        %v1803 = vadd.f32 %v1647, %v1744
        %v1804 = vadd.f32 %v1648, %v1747
        %v1805 = vadd.f32 %v1649, %v1750
        %v1806 = vadd.f32 %v1650, %v1753
        %v1807 = vadd.f32 %v1651, %v1756
        %v1808 = vadd.f32 %v1652, %v1759
        %v1809 = vadd.f32 %v1653, %v1762
        %v1810 = vadd.f32 %v1654, %v1765
        %v1811 = vadd.f32 %v1655, %v1768
        %v1812 = vadd.f32 %v1656, %v1771
        %v1813 = vadd.f32 %v1657, %v1774
        %v1814 = vadd.f32 %v1658, %v1777
        %v1815 = vadd.f32 %v1659, %v1780
        %v1816 = vadd.f32 %v1660, %v1783
        %v1818 = vrot.slane %v271, 1
        %v1819 = vrot.slane %v272, 1
        %v1820 = vsel %vm332, %v1818, %v1819
        %v1821 = vrot.slane %v273, 1
        %v1822 = vsel %vm332, %v1819, %v1821
        %s1823 = scalar_lea.vmem %s1, 24
        %v1824 = vld [vmem:[%s1823] sm:$0xf]
        %v1825 = vsel %vm415, %v1820, 0
        %v1827 = vsel %vm415, %v1822, 0
        %v1830 = vsel %vm480, %v1824, 0
        %1832 = vmatpush.msra.mxu0 0.0
        %1833 = vmatpush.msra.mxu0 0.0
        %1834 = vmatpush.msra.mxu0 0.0
        %1835 = vmatpush.msra.mxu0 0.0
        %1836 = vmatpush.msra.mxu0 0.0
        %1837 = vmatpush.msra.mxu0 0.0
        %1838 = vmatpush.msra.mxu0 0.0
        %1839 = vmatpush.msra.mxu0 0.0
        %1840 = vmatpush.msra.mxu0 0.0
        %1841 = vmatpush.msra.mxu0 0.0
        %1842 = vmatpush.msra.mxu0 0.0
        %1843 = vmatpush.msra.mxu0 0.0
        %1844 = vmatpush.msra.mxu0 0.0
        %1845 = vmatpush.msra.mxu0 0.0
        %1846 = vmatpush.msra.mxu0 0.0
        %1847 = vmatpush.msra.mxu0 %v1830
        %1848 = vmatmul.f32.gmra.mxu0 %v420
        %v1849 = vpop.f32.mrf.mxu0
        %v1850 = vadd.f32 0.0, %v1849
        %1851 = vmatmul.f32.gmra.mxu0 %v422
        %v1852 = vpop.f32.mrf.mxu0
        %v1853 = vadd.f32 0.0, %v1852
        %1854 = vmatmul.f32.gmra.mxu0 %v424
        %v1855 = vpop.f32.mrf.mxu0
        %v1856 = vadd.f32 0.0, %v1855
        %1857 = vmatmul.f32.gmra.mxu0 %v426
        %v1858 = vpop.f32.mrf.mxu0
        %v1859 = vadd.f32 0.0, %v1858
        %1860 = vmatmul.f32.gmra.mxu0 %v428
        %v1861 = vpop.f32.mrf.mxu0
        %v1862 = vadd.f32 0.0, %v1861
        %1863 = vmatmul.f32.gmra.mxu0 %v430
        %v1864 = vpop.f32.mrf.mxu0
        %v1865 = vadd.f32 0.0, %v1864
        %1866 = vmatmul.f32.gmra.mxu0 %v432
        %v1867 = vpop.f32.mrf.mxu0
        %v1868 = vadd.f32 0.0, %v1867
        %1869 = vmatmul.f32.gmra.mxu0 %v434
        %v1870 = vpop.f32.mrf.mxu0
        %v1871 = vadd.f32 0.0, %v1870
        %1872 = vmatmul.f32.gmra.mxu0 %v436
        %v1873 = vpop.f32.mrf.mxu0
        %v1874 = vadd.f32 0.0, %v1873
        %1875 = vmatmul.f32.gmra.mxu0 %v438
        %v1876 = vpop.f32.mrf.mxu0
        %v1877 = vadd.f32 0.0, %v1876
        %1878 = vmatmul.f32.gmra.mxu0 %v440
        %v1879 = vpop.f32.mrf.mxu0
        %v1880 = vadd.f32 0.0, %v1879
        %1881 = vmatmul.f32.gmra.mxu0 %v442
        %v1882 = vpop.f32.mrf.mxu0
        %v1883 = vadd.f32 0.0, %v1882
        %1884 = vmatmul.f32.gmra.mxu0 %v444
        %v1885 = vpop.f32.mrf.mxu0
        %v1886 = vadd.f32 0.0, %v1885
        %1887 = vmatmul.f32.gmra.mxu0 %v446
        %v1888 = vpop.f32.mrf.mxu0
        %v1889 = vadd.f32 0.0, %v1888
        %1890 = vmatmul.f32.gmra.mxu0 %v448
        %v1891 = vpop.f32.mrf.mxu0
        %v1892 = vadd.f32 0.0, %v1891
        %1893 = vmatmul.f32.gmra.mxu0 %v450
        %v1894 = vpop.f32.mrf.mxu0
        %v1895 = vadd.f32 0.0, %v1894
        %1896 = vmatmul.f32.gmra.mxu0 %v452
        %v1897 = vpop.f32.mrf.mxu0
        %v1898 = vadd.f32 0.0, %v1897
        %1899 = vmatmul.f32.gmra.mxu0 %v454
        %v1900 = vpop.f32.mrf.mxu0
        %v1901 = vadd.f32 0.0, %v1900
        %1902 = vmatmul.f32.gmra.mxu0 %v456
        %v1903 = vpop.f32.mrf.mxu0
        %v1904 = vadd.f32 0.0, %v1903
        %1905 = vmatmul.f32.gmra.mxu0 %v458
        %v1906 = vpop.f32.mrf.mxu0
        %v1907 = vadd.f32 0.0, %v1906
        %1908 = vmatmul.f32.gmra.mxu0 %v460
        %v1909 = vpop.f32.mrf.mxu0
        %v1910 = vadd.f32 0.0, %v1909
        %1911 = vmatmul.f32.gmra.mxu0 %v462
        %v1912 = vpop.f32.mrf.mxu0
        %v1913 = vadd.f32 0.0, %v1912
        %1914 = vmatmul.f32.gmra.mxu0 %v464
        %v1915 = vpop.f32.mrf.mxu0
        %v1916 = vadd.f32 0.0, %v1915
        %1917 = vmatmul.f32.gmra.mxu0 %v466
        %v1918 = vpop.f32.mrf.mxu0
        %v1919 = vadd.f32 0.0, %v1918
        %1920 = vmatmul.f32.gmra.mxu0 %v468
        %v1921 = vpop.f32.mrf.mxu0
        %v1922 = vadd.f32 0.0, %v1921
        %1923 = vmatmul.f32.gmra.mxu0 %v470
        %v1924 = vpop.f32.mrf.mxu0
        %v1925 = vadd.f32 0.0, %v1924
        %1926 = vmatmul.f32.gmra.mxu0 %v472
        %v1927 = vpop.f32.mrf.mxu0
        %v1928 = vadd.f32 0.0, %v1927
        %1929 = vmatmul.f32.gmra.mxu0 %v474
        %v1930 = vpop.f32.mrf.mxu0
        %v1931 = vadd.f32 0.0, %v1930
        %1932 = vmatmul.f32.gmra.mxu0 %v476
        %v1933 = vpop.f32.mrf.mxu0
        %v1934 = vadd.f32 0.0, %v1933
        %1935 = vmatmul.f32.gmra.mxu0 %v478
        %v1936 = vpop.f32.mrf.mxu0
        %v1937 = vadd.f32 0.0, %v1936
        %1938 = vmatmul.f32.gmra.mxu0 %v1825
        %v1939 = vpop.f32.mrf.mxu0
        %v1940 = vadd.f32 0.0, %v1939
        %1941 = vmatmul.f32.gmra.mxu0 %v1827
        %v1942 = vpop.f32.mrf.mxu0
        %v1943 = vadd.f32 0.0, %v1942
        %1944 = vdwg.mxu0
        %v1945 = vadd.f32 %v1785, %v1850
        %v1946 = vadd.f32 %v1786, %v1853
        %v1947 = vadd.f32 %v1787, %v1856
        %v1948 = vadd.f32 %v1788, %v1859
        %v1949 = vadd.f32 %v1789, %v1862
        %v1950 = vadd.f32 %v1790, %v1865
        %v1951 = vadd.f32 %v1791, %v1868
        %v1952 = vadd.f32 %v1792, %v1871
        %v1953 = vadd.f32 %v1793, %v1874
        %v1954 = vadd.f32 %v1794, %v1877
        %v1955 = vadd.f32 %v1795, %v1880
        %v1956 = vadd.f32 %v1796, %v1883
        %v1957 = vadd.f32 %v1797, %v1886
        %v1958 = vadd.f32 %v1798, %v1889
        %v1959 = vadd.f32 %v1799, %v1892
        %v1960 = vadd.f32 %v1800, %v1895
        %v1961 = vadd.f32 %v1801, %v1898
        %v1962 = vadd.f32 %v1802, %v1901
        %v1963 = vadd.f32 %v1803, %v1904
        %v1964 = vadd.f32 %v1804, %v1907
        %v1965 = vadd.f32 %v1805, %v1910
        %v1966 = vadd.f32 %v1806, %v1913
        %v1967 = vadd.f32 %v1807, %v1916
        %v1968 = vadd.f32 %v1808, %v1919
        %v1969 = vadd.f32 %v1809, %v1922
        %v1970 = vadd.f32 %v1810, %v1925
        %v1971 = vadd.f32 %v1811, %v1928
        %v1972 = vadd.f32 %v1812, %v1931
        %v1973 = vadd.f32 %v1813, %v1934
        %v1974 = vadd.f32 %v1814, %v1937
        %v1975 = vadd.f32 %v1815, %v1940
        %v1976 = vadd.f32 %v1816, %v1943
        %v1977 = vrot.slane %v271, 2
        %v1978 = vrot.slane %v272, 2
        %v1979 = vsel %vm777, %v1977, %v1978
        %v1980 = vrot.slane %v273, 2
        %v1981 = vsel %vm777, %v1978, %v1980
        %s1982 = scalar_lea.vmem %s1, 28
        %v1983 = vld [vmem:[%s1982] sm:$0xf]
        %v1984 = vsel %vm415, %v1979, 0
        %v1986 = vsel %vm415, %v1981, 0
        %v1989 = vsel %vm480, %v1983, 0
        %1991 = vmatpush.msra.mxu0 0.0
        %1992 = vmatpush.msra.mxu0 0.0
        %1993 = vmatpush.msra.mxu0 0.0
        %1994 = vmatpush.msra.mxu0 0.0
        %1995 = vmatpush.msra.mxu0 0.0
        %1996 = vmatpush.msra.mxu0 0.0
        %1997 = vmatpush.msra.mxu0 0.0
        %1998 = vmatpush.msra.mxu0 0.0
        %1999 = vmatpush.msra.mxu0 0.0
        %2000 = vmatpush.msra.mxu0 0.0
        %2001 = vmatpush.msra.mxu0 0.0
        %2002 = vmatpush.msra.mxu0 0.0
        %2003 = vmatpush.msra.mxu0 0.0
        %2004 = vmatpush.msra.mxu0 0.0
        %2005 = vmatpush.msra.mxu0 0.0
        %2006 = vmatpush.msra.mxu0 %v1989
        %2007 = vmatmul.f32.gmra.mxu0 %v864
        %v2008 = vpop.f32.mrf.mxu0
        %v2009 = vadd.f32 0.0, %v2008
        %2010 = vmatmul.f32.gmra.mxu0 %v866
        %v2011 = vpop.f32.mrf.mxu0
        %v2012 = vadd.f32 0.0, %v2011
        %2013 = vmatmul.f32.gmra.mxu0 %v868
        %v2014 = vpop.f32.mrf.mxu0
        %v2015 = vadd.f32 0.0, %v2014
        %2016 = vmatmul.f32.gmra.mxu0 %v870
        %v2017 = vpop.f32.mrf.mxu0
        %v2018 = vadd.f32 0.0, %v2017
        %2019 = vmatmul.f32.gmra.mxu0 %v872
        %v2020 = vpop.f32.mrf.mxu0
        %v2021 = vadd.f32 0.0, %v2020
        %2022 = vmatmul.f32.gmra.mxu0 %v874
        %v2023 = vpop.f32.mrf.mxu0
        %v2024 = vadd.f32 0.0, %v2023
        %2025 = vmatmul.f32.gmra.mxu0 %v876
        %v2026 = vpop.f32.mrf.mxu0
        %v2027 = vadd.f32 0.0, %v2026
        %2028 = vmatmul.f32.gmra.mxu0 %v878
        %v2029 = vpop.f32.mrf.mxu0
        %v2030 = vadd.f32 0.0, %v2029
        %2031 = vmatmul.f32.gmra.mxu0 %v880
        %v2032 = vpop.f32.mrf.mxu0
        %v2033 = vadd.f32 0.0, %v2032
        %2034 = vmatmul.f32.gmra.mxu0 %v882
        %v2035 = vpop.f32.mrf.mxu0
        %v2036 = vadd.f32 0.0, %v2035
        %2037 = vmatmul.f32.gmra.mxu0 %v884
        %v2038 = vpop.f32.mrf.mxu0
        %v2039 = vadd.f32 0.0, %v2038
        %2040 = vmatmul.f32.gmra.mxu0 %v886
        %v2041 = vpop.f32.mrf.mxu0
        %v2042 = vadd.f32 0.0, %v2041
        %2043 = vmatmul.f32.gmra.mxu0 %v888
        %v2044 = vpop.f32.mrf.mxu0
        %v2045 = vadd.f32 0.0, %v2044
        %2046 = vmatmul.f32.gmra.mxu0 %v890
        %v2047 = vpop.f32.mrf.mxu0
        %v2048 = vadd.f32 0.0, %v2047
        %2049 = vmatmul.f32.gmra.mxu0 %v892
        %v2050 = vpop.f32.mrf.mxu0
        %v2051 = vadd.f32 0.0, %v2050
        %2052 = vmatmul.f32.gmra.mxu0 %v894
        %v2053 = vpop.f32.mrf.mxu0
        %v2054 = vadd.f32 0.0, %v2053
        %2055 = vmatmul.f32.gmra.mxu0 %v896
        %v2056 = vpop.f32.mrf.mxu0
        %v2057 = vadd.f32 0.0, %v2056
        %2058 = vmatmul.f32.gmra.mxu0 %v898
        %v2059 = vpop.f32.mrf.mxu0
        %v2060 = vadd.f32 0.0, %v2059
        %2061 = vmatmul.f32.gmra.mxu0 %v900
        %v2062 = vpop.f32.mrf.mxu0
        %v2063 = vadd.f32 0.0, %v2062
        %2064 = vmatmul.f32.gmra.mxu0 %v902
        %v2065 = vpop.f32.mrf.mxu0
        %v2066 = vadd.f32 0.0, %v2065
        %2067 = vmatmul.f32.gmra.mxu0 %v904
        %v2068 = vpop.f32.mrf.mxu0
        %v2069 = vadd.f32 0.0, %v2068
        %2070 = vmatmul.f32.gmra.mxu0 %v906
        %v2071 = vpop.f32.mrf.mxu0
        %v2072 = vadd.f32 0.0, %v2071
        %2073 = vmatmul.f32.gmra.mxu0 %v908
        %v2074 = vpop.f32.mrf.mxu0
        %v2075 = vadd.f32 0.0, %v2074
        %2076 = vmatmul.f32.gmra.mxu0 %v910
        %v2077 = vpop.f32.mrf.mxu0
        %v2078 = vadd.f32 0.0, %v2077
        %2079 = vmatmul.f32.gmra.mxu0 %v912
        %v2080 = vpop.f32.mrf.mxu0
        %v2081 = vadd.f32 0.0, %v2080
        %2082 = vmatmul.f32.gmra.mxu0 %v914
        %v2083 = vpop.f32.mrf.mxu0
        %v2084 = vadd.f32 0.0, %v2083
        %2085 = vmatmul.f32.gmra.mxu0 %v916
        %v2086 = vpop.f32.mrf.mxu0
        %v2087 = vadd.f32 0.0, %v2086
        %2088 = vmatmul.f32.gmra.mxu0 %v918
        %v2089 = vpop.f32.mrf.mxu0
        %v2090 = vadd.f32 0.0, %v2089
        %2091 = vmatmul.f32.gmra.mxu0 %v920
        %v2092 = vpop.f32.mrf.mxu0
        %v2093 = vadd.f32 0.0, %v2092
        %2094 = vmatmul.f32.gmra.mxu0 %v922
        %v2095 = vpop.f32.mrf.mxu0
        %v2096 = vadd.f32 0.0, %v2095
        %2097 = vmatmul.f32.gmra.mxu0 %v1984
        %v2098 = vpop.f32.mrf.mxu0
        %v2099 = vadd.f32 0.0, %v2098
        %2100 = vmatmul.f32.gmra.mxu0 %v1986
        %v2101 = vpop.f32.mrf.mxu0
        %v2102 = vadd.f32 0.0, %v2101
        %2103 = vdwg.mxu0
        %v2104 = vadd.f32 %v1945, %v2009
        %v2105 = vadd.f32 %v1946, %v2012
        %v2106 = vadd.f32 %v1947, %v2015
        %v2107 = vadd.f32 %v1948, %v2018
        %v2108 = vadd.f32 %v1949, %v2021
        %v2109 = vadd.f32 %v1950, %v2024
        %v2110 = vadd.f32 %v1951, %v2027
        %v2111 = vadd.f32 %v1952, %v2030
        %v2112 = vadd.f32 %v1953, %v2033
        %v2113 = vadd.f32 %v1954, %v2036
        %v2114 = vadd.f32 %v1955, %v2039
        %v2115 = vadd.f32 %v1956, %v2042
        %v2116 = vadd.f32 %v1957, %v2045
        %v2117 = vadd.f32 %v1958, %v2048
        %v2118 = vadd.f32 %v1959, %v2051
        %v2119 = vadd.f32 %v1960, %v2054
        %v2120 = vadd.f32 %v1961, %v2057
        %v2121 = vadd.f32 %v1962, %v2060
        %v2122 = vadd.f32 %v1963, %v2063
        %v2123 = vadd.f32 %v1964, %v2066
        %v2124 = vadd.f32 %v1965, %v2069
        %v2125 = vadd.f32 %v1966, %v2072
        %v2126 = vadd.f32 %v1967, %v2075
        %v2127 = vadd.f32 %v1968, %v2078
        %v2128 = vadd.f32 %v1969, %v2081
        %v2129 = vadd.f32 %v1970, %v2084
        %v2130 = vadd.f32 %v1971, %v2087
        %v2131 = vadd.f32 %v1972, %v2090
        %v2132 = vadd.f32 %v1973, %v2093
        %v2133 = vadd.f32 %v1974, %v2096
        %v2134 = vadd.f32 %v1975, %v2099
        %v2135 = vadd.f32 %v1976, %v2102
        %v2136 = vrot.slane %v271, 3
        %v2137 = vrot.slane %v272, 3
        %v2138 = vsel %vm1072, %v2136, %v2137
        %v2139 = vrot.slane %v273, 3
        %v2140 = vsel %vm1072, %v2137, %v2139
        %s2141 = scalar_lea.vmem %s1, 32
        %v2142 = vld [vmem:[%s2141] sm:$0xf]
        %v2143 = vsel %vm415, %v2138, 0
        %v2145 = vsel %vm415, %v2140, 0
        %v2148 = vsel %vm480, %v2142, 0
        %2150 = vmatpush.msra.mxu0 0.0
        %2151 = vmatpush.msra.mxu0 0.0
        %2152 = vmatpush.msra.mxu0 0.0
        %2153 = vmatpush.msra.mxu0 0.0
        %2154 = vmatpush.msra.mxu0 0.0
        %2155 = vmatpush.msra.mxu0 0.0
        %2156 = vmatpush.msra.mxu0 0.0
        %2157 = vmatpush.msra.mxu0 0.0
        %2158 = vmatpush.msra.mxu0 0.0
        %2159 = vmatpush.msra.mxu0 0.0
        %2160 = vmatpush.msra.mxu0 0.0
        %2161 = vmatpush.msra.mxu0 0.0
        %2162 = vmatpush.msra.mxu0 0.0
        %2163 = vmatpush.msra.mxu0 0.0
        %2164 = vmatpush.msra.mxu0 0.0
        %2165 = vmatpush.msra.mxu0 %v2148
        %2166 = vmatmul.f32.gmra.mxu0 %v1159
        %v2167 = vpop.f32.mrf.mxu0
        %v2168 = vadd.f32 0.0, %v2167
        %2169 = vmatmul.f32.gmra.mxu0 %v1161
        %v2170 = vpop.f32.mrf.mxu0
        %v2171 = vadd.f32 0.0, %v2170
        %2172 = vmatmul.f32.gmra.mxu0 %v1163
        %v2173 = vpop.f32.mrf.mxu0
        %v2174 = vadd.f32 0.0, %v2173
        %2175 = vmatmul.f32.gmra.mxu0 %v1165
        %v2176 = vpop.f32.mrf.mxu0
        %v2177 = vadd.f32 0.0, %v2176
        %2178 = vmatmul.f32.gmra.mxu0 %v1167
        %v2179 = vpop.f32.mrf.mxu0
        %v2180 = vadd.f32 0.0, %v2179
        %2181 = vmatmul.f32.gmra.mxu0 %v1169
        %v2182 = vpop.f32.mrf.mxu0
        %v2183 = vadd.f32 0.0, %v2182
        %2184 = vmatmul.f32.gmra.mxu0 %v1171
        %v2185 = vpop.f32.mrf.mxu0
        %v2186 = vadd.f32 0.0, %v2185
        %2187 = vmatmul.f32.gmra.mxu0 %v1173
        %v2188 = vpop.f32.mrf.mxu0
        %v2189 = vadd.f32 0.0, %v2188
        %2190 = vmatmul.f32.gmra.mxu0 %v1175
        %v2191 = vpop.f32.mrf.mxu0
        %v2192 = vadd.f32 0.0, %v2191
        %2193 = vmatmul.f32.gmra.mxu0 %v1177
        %v2194 = vpop.f32.mrf.mxu0
        %v2195 = vadd.f32 0.0, %v2194
        %2196 = vmatmul.f32.gmra.mxu0 %v1179
        %v2197 = vpop.f32.mrf.mxu0
        %v2198 = vadd.f32 0.0, %v2197
        %2199 = vmatmul.f32.gmra.mxu0 %v1181
        %v2200 = vpop.f32.mrf.mxu0
        %v2201 = vadd.f32 0.0, %v2200
        %2202 = vmatmul.f32.gmra.mxu0 %v1183
        %v2203 = vpop.f32.mrf.mxu0
        %v2204 = vadd.f32 0.0, %v2203
        %2205 = vmatmul.f32.gmra.mxu0 %v1185
        %v2206 = vpop.f32.mrf.mxu0
        %v2207 = vadd.f32 0.0, %v2206
        %2208 = vmatmul.f32.gmra.mxu0 %v1187
        %v2209 = vpop.f32.mrf.mxu0
        %v2210 = vadd.f32 0.0, %v2209
        %2211 = vmatmul.f32.gmra.mxu0 %v1189
        %v2212 = vpop.f32.mrf.mxu0
        %v2213 = vadd.f32 0.0, %v2212
        %2214 = vmatmul.f32.gmra.mxu0 %v1191
        %v2215 = vpop.f32.mrf.mxu0
        %v2216 = vadd.f32 0.0, %v2215
        %2217 = vmatmul.f32.gmra.mxu0 %v1193
        %v2218 = vpop.f32.mrf.mxu0
        %v2219 = vadd.f32 0.0, %v2218
        %2220 = vmatmul.f32.gmra.mxu0 %v1195
        %v2221 = vpop.f32.mrf.mxu0
        %v2222 = vadd.f32 0.0, %v2221
        %2223 = vmatmul.f32.gmra.mxu0 %v1197
        %v2224 = vpop.f32.mrf.mxu0
        %v2225 = vadd.f32 0.0, %v2224
        %2226 = vmatmul.f32.gmra.mxu0 %v1199
        %v2227 = vpop.f32.mrf.mxu0
        %v2228 = vadd.f32 0.0, %v2227
        %2229 = vmatmul.f32.gmra.mxu0 %v1201
        %v2230 = vpop.f32.mrf.mxu0
        %v2231 = vadd.f32 0.0, %v2230
        %2232 = vmatmul.f32.gmra.mxu0 %v1203
        %v2233 = vpop.f32.mrf.mxu0
        %v2234 = vadd.f32 0.0, %v2233
        %2235 = vmatmul.f32.gmra.mxu0 %v1205
        %v2236 = vpop.f32.mrf.mxu0
        %v2237 = vadd.f32 0.0, %v2236
        %2238 = vmatmul.f32.gmra.mxu0 %v1207
        %v2239 = vpop.f32.mrf.mxu0
        %v2240 = vadd.f32 0.0, %v2239
        %2241 = vmatmul.f32.gmra.mxu0 %v1209
        %v2242 = vpop.f32.mrf.mxu0
        %v2243 = vadd.f32 0.0, %v2242
        %2244 = vmatmul.f32.gmra.mxu0 %v1211
        %v2245 = vpop.f32.mrf.mxu0
        %v2246 = vadd.f32 0.0, %v2245
        %2247 = vmatmul.f32.gmra.mxu0 %v1213
        %v2248 = vpop.f32.mrf.mxu0
        %v2249 = vadd.f32 0.0, %v2248
        %2250 = vmatmul.f32.gmra.mxu0 %v1215
        %v2251 = vpop.f32.mrf.mxu0
        %v2252 = vadd.f32 0.0, %v2251
        %2253 = vmatmul.f32.gmra.mxu0 %v1217
        %v2254 = vpop.f32.mrf.mxu0
        %v2255 = vadd.f32 0.0, %v2254
        %2256 = vmatmul.f32.gmra.mxu0 %v2143
        %v2257 = vpop.f32.mrf.mxu0
        %v2258 = vadd.f32 0.0, %v2257
        %2259 = vmatmul.f32.gmra.mxu0 %v2145
        %v2260 = vpop.f32.mrf.mxu0
        %v2261 = vadd.f32 0.0, %v2260
        %2262 = vdwg.mxu0
        %v2263 = vadd.f32 %v2104, %v2168
        %v2264 = vadd.f32 %v2105, %v2171
        %v2265 = vadd.f32 %v2106, %v2174
        %v2266 = vadd.f32 %v2107, %v2177
        %v2267 = vadd.f32 %v2108, %v2180
        %v2268 = vadd.f32 %v2109, %v2183
        %v2269 = vadd.f32 %v2110, %v2186
        %v2270 = vadd.f32 %v2111, %v2189
        %v2271 = vadd.f32 %v2112, %v2192
        %v2272 = vadd.f32 %v2113, %v2195
        %v2273 = vadd.f32 %v2114, %v2198
        %v2274 = vadd.f32 %v2115, %v2201
        %v2275 = vadd.f32 %v2116, %v2204
        %v2276 = vadd.f32 %v2117, %v2207
        %v2277 = vadd.f32 %v2118, %v2210
        %v2278 = vadd.f32 %v2119, %v2213
        %v2279 = vadd.f32 %v2120, %v2216
        %v2280 = vadd.f32 %v2121, %v2219
        %v2281 = vadd.f32 %v2122, %v2222
        %v2282 = vadd.f32 %v2123, %v2225
        %v2283 = vadd.f32 %v2124, %v2228
        %v2284 = vadd.f32 %v2125, %v2231
        %v2285 = vadd.f32 %v2126, %v2234
        %v2286 = vadd.f32 %v2127, %v2237
        %v2287 = vadd.f32 %v2128, %v2240
        %v2288 = vadd.f32 %v2129, %v2243
        %v2289 = vadd.f32 %v2130, %v2246
        %v2290 = vadd.f32 %v2131, %v2249
        %v2291 = vadd.f32 %v2132, %v2252
        %v2292 = vadd.f32 %v2133, %v2255
        %v2293 = vadd.f32 %v2134, %v2258
        %v2294 = vadd.f32 %v2135, %v2261
        %v2295 = vrot.slane %v271, 4
        %v2296 = vrot.slane %v272, 4
        %v2297 = vsel %vm480, %v2295, %v2296
        %v2298 = vrot.slane %v273, 4
        %v2299 = vsel %vm480, %v2296, %v2298
        %s2300 = scalar_lea.vmem %s1, 36
        %v2301 = vld [vmem:[%s2300] sm:$0xf]
        %v2302 = vsel %vm415, %v2297, 0
        %v2304 = vsel %vm415, %v2299, 0
        %v2307 = vsel %vm480, %v2301, 0
        %2309 = vmatpush.msra.mxu0 0.0
        %2310 = vmatpush.msra.mxu0 0.0
        %2311 = vmatpush.msra.mxu0 0.0
        %2312 = vmatpush.msra.mxu0 0.0
        %2313 = vmatpush.msra.mxu0 0.0
        %2314 = vmatpush.msra.mxu0 0.0
        %2315 = vmatpush.msra.mxu0 0.0
        %2316 = vmatpush.msra.mxu0 0.0
        %2317 = vmatpush.msra.mxu0 0.0
        %2318 = vmatpush.msra.mxu0 0.0
        %2319 = vmatpush.msra.mxu0 0.0
        %2320 = vmatpush.msra.mxu0 0.0
        %2321 = vmatpush.msra.mxu0 0.0
        %2322 = vmatpush.msra.mxu0 0.0
        %2323 = vmatpush.msra.mxu0 0.0
        %2324 = vmatpush.msra.mxu0 %v2307
        %2325 = vmatmul.f32.gmra.mxu0 %v1453
        %v2326 = vpop.f32.mrf.mxu0
        %v2327 = vadd.f32 0.0, %v2326
        %2328 = vmatmul.f32.gmra.mxu0 %v1455
        %v2329 = vpop.f32.mrf.mxu0
        %v2330 = vadd.f32 0.0, %v2329
        %2331 = vmatmul.f32.gmra.mxu0 %v1457
        %v2332 = vpop.f32.mrf.mxu0
        %v2333 = vadd.f32 0.0, %v2332
        %2334 = vmatmul.f32.gmra.mxu0 %v1459
        %v2335 = vpop.f32.mrf.mxu0
        %v2336 = vadd.f32 0.0, %v2335
        %2337 = vmatmul.f32.gmra.mxu0 %v1461
        %v2338 = vpop.f32.mrf.mxu0
        %v2339 = vadd.f32 0.0, %v2338
        %2340 = vmatmul.f32.gmra.mxu0 %v1463
        %v2341 = vpop.f32.mrf.mxu0
        %v2342 = vadd.f32 0.0, %v2341
        %2343 = vmatmul.f32.gmra.mxu0 %v1465
        %v2344 = vpop.f32.mrf.mxu0
        %v2345 = vadd.f32 0.0, %v2344
        %2346 = vmatmul.f32.gmra.mxu0 %v1467
        %v2347 = vpop.f32.mrf.mxu0
        %v2348 = vadd.f32 0.0, %v2347
        %2349 = vmatmul.f32.gmra.mxu0 %v1469
        %v2350 = vpop.f32.mrf.mxu0
        %v2351 = vadd.f32 0.0, %v2350
        %2352 = vmatmul.f32.gmra.mxu0 %v1471
        %v2353 = vpop.f32.mrf.mxu0
        %v2354 = vadd.f32 0.0, %v2353
        %2355 = vmatmul.f32.gmra.mxu0 %v1473
        %v2356 = vpop.f32.mrf.mxu0
        %v2357 = vadd.f32 0.0, %v2356
        %2358 = vmatmul.f32.gmra.mxu0 %v1475
        %v2359 = vpop.f32.mrf.mxu0
        %v2360 = vadd.f32 0.0, %v2359
        %2361 = vmatmul.f32.gmra.mxu0 %v1477
        %v2362 = vpop.f32.mrf.mxu0
        %v2363 = vadd.f32 0.0, %v2362
        %2364 = vmatmul.f32.gmra.mxu0 %v1479
        %v2365 = vpop.f32.mrf.mxu0
        %v2366 = vadd.f32 0.0, %v2365
        %2367 = vmatmul.f32.gmra.mxu0 %v1481
        %v2368 = vpop.f32.mrf.mxu0
        %v2369 = vadd.f32 0.0, %v2368
        %2370 = vmatmul.f32.gmra.mxu0 %v1483
        %v2371 = vpop.f32.mrf.mxu0
        %v2372 = vadd.f32 0.0, %v2371
        %2373 = vmatmul.f32.gmra.mxu0 %v1485
        %v2374 = vpop.f32.mrf.mxu0
        %v2375 = vadd.f32 0.0, %v2374
        %2376 = vmatmul.f32.gmra.mxu0 %v1487
        %v2377 = vpop.f32.mrf.mxu0
        %v2378 = vadd.f32 0.0, %v2377
        %2379 = vmatmul.f32.gmra.mxu0 %v1489
        %v2380 = vpop.f32.mrf.mxu0
        %v2381 = vadd.f32 0.0, %v2380
        %2382 = vmatmul.f32.gmra.mxu0 %v1491
        %v2383 = vpop.f32.mrf.mxu0
        %v2384 = vadd.f32 0.0, %v2383
        %2385 = vmatmul.f32.gmra.mxu0 %v1493
        %v2386 = vpop.f32.mrf.mxu0
        %v2387 = vadd.f32 0.0, %v2386
        %2388 = vmatmul.f32.gmra.mxu0 %v1495
        %v2389 = vpop.f32.mrf.mxu0
        %v2390 = vadd.f32 0.0, %v2389
        %2391 = vmatmul.f32.gmra.mxu0 %v1497
        %v2392 = vpop.f32.mrf.mxu0
        %v2393 = vadd.f32 0.0, %v2392
        %2394 = vmatmul.f32.gmra.mxu0 %v1499
        %v2395 = vpop.f32.mrf.mxu0
        %v2396 = vadd.f32 0.0, %v2395
        %2397 = vmatmul.f32.gmra.mxu0 %v1501
        %v2398 = vpop.f32.mrf.mxu0
        %v2399 = vadd.f32 0.0, %v2398
        %2400 = vmatmul.f32.gmra.mxu0 %v1503
        %v2401 = vpop.f32.mrf.mxu0
        %v2402 = vadd.f32 0.0, %v2401
        %2403 = vmatmul.f32.gmra.mxu0 %v1505
        %v2404 = vpop.f32.mrf.mxu0
        %v2405 = vadd.f32 0.0, %v2404
        %2406 = vmatmul.f32.gmra.mxu0 %v1507
        %v2407 = vpop.f32.mrf.mxu0
        %v2408 = vadd.f32 0.0, %v2407
        %2409 = vmatmul.f32.gmra.mxu0 %v1509
        %v2410 = vpop.f32.mrf.mxu0
        %v2411 = vadd.f32 0.0, %v2410
        %2412 = vmatmul.f32.gmra.mxu0 %v1511
        %v2413 = vpop.f32.mrf.mxu0
        %v2414 = vadd.f32 0.0, %v2413
        %2415 = vmatmul.f32.gmra.mxu0 %v2302
        %v2416 = vpop.f32.mrf.mxu0
        %v2417 = vadd.f32 0.0, %v2416
        %2418 = vmatmul.f32.gmra.mxu0 %v2304
        %v2419 = vpop.f32.mrf.mxu0
        %v2420 = vadd.f32 0.0, %v2419
        %2421 = vdwg.mxu0
        %v2422 = vadd.f32 %v2263, %v2327
        %v2423 = vadd.f32 %v2264, %v2330
        %v2424 = vadd.f32 %v2265, %v2333
        %v2425 = vadd.f32 %v2266, %v2336
        %v2426 = vadd.f32 %v2267, %v2339
        %v2427 = vadd.f32 %v2268, %v2342
        %v2428 = vadd.f32 %v2269, %v2345
        %v2429 = vadd.f32 %v2270, %v2348
        %v2430 = vadd.f32 %v2271, %v2351
        %v2431 = vadd.f32 %v2272, %v2354
        %v2432 = vadd.f32 %v2273, %v2357
        %v2433 = vadd.f32 %v2274, %v2360
        %v2434 = vadd.f32 %v2275, %v2363
        %v2435 = vadd.f32 %v2276, %v2366
        %v2436 = vadd.f32 %v2277, %v2369
        %v2437 = vadd.f32 %v2278, %v2372
        %v2438 = vadd.f32 %v2279, %v2375
        %v2439 = vadd.f32 %v2280, %v2378
        %v2440 = vadd.f32 %v2281, %v2381
        %v2441 = vadd.f32 %v2282, %v2384
        %v2442 = vadd.f32 %v2283, %v2387
        %v2443 = vadd.f32 %v2284, %v2390
        %v2444 = vadd.f32 %v2285, %v2393
        %v2445 = vadd.f32 %v2286, %v2396
        %v2446 = vadd.f32 %v2287, %v2399
        %v2447 = vadd.f32 %v2288, %v2402
        %v2448 = vadd.f32 %v2289, %v2405
        %v2449 = vadd.f32 %v2290, %v2408
        %v2450 = vadd.f32 %v2291, %v2411
        %v2451 = vadd.f32 %v2292, %v2414
        %v2452 = vadd.f32 %v2293, %v2417
        %v2453 = vadd.f32 %v2294, %v2420
        %s2454 = scalar_lea.vmem %s1, 40
        %v2455 = vld [vmem:[%s2454] sm:$0xf]
        %v2457 = vsel %vm415, %v274, 0
        %v2460 = vsel %vm415, %v275, 0
        %v2463 = vsel %vm480, %v2455, 0
        %2465 = vmatpush.msra.mxu0 0.0
        %2466 = vmatpush.msra.mxu0 0.0
        %2467 = vmatpush.msra.mxu0 0.0
        %2468 = vmatpush.msra.mxu0 0.0
        %2469 = vmatpush.msra.mxu0 0.0
        %2470 = vmatpush.msra.mxu0 0.0
        %2471 = vmatpush.msra.mxu0 0.0
        %2472 = vmatpush.msra.mxu0 0.0
        %2473 = vmatpush.msra.mxu0 0.0
        %2474 = vmatpush.msra.mxu0 0.0
        %2475 = vmatpush.msra.mxu0 0.0
        %2476 = vmatpush.msra.mxu0 0.0
        %2477 = vmatpush.msra.mxu0 0.0
        %2478 = vmatpush.msra.mxu0 0.0
        %2479 = vmatpush.msra.mxu0 0.0
        %2480 = vmatpush.msra.mxu0 %v2463
        %2481 = vmatmul.f32.gmra.mxu0 %v605
        %v2482 = vpop.f32.mrf.mxu0
        %v2483 = vadd.f32 0.0, %v2482
        %2484 = vmatmul.f32.gmra.mxu0 %v607
        %v2485 = vpop.f32.mrf.mxu0
        %v2486 = vadd.f32 0.0, %v2485
        %2487 = vmatmul.f32.gmra.mxu0 %v609
        %v2488 = vpop.f32.mrf.mxu0
        %v2489 = vadd.f32 0.0, %v2488
        %2490 = vmatmul.f32.gmra.mxu0 %v611
        %v2491 = vpop.f32.mrf.mxu0
        %v2492 = vadd.f32 0.0, %v2491
        %2493 = vmatmul.f32.gmra.mxu0 %v613
        %v2494 = vpop.f32.mrf.mxu0
        %v2495 = vadd.f32 0.0, %v2494
        %2496 = vmatmul.f32.gmra.mxu0 %v615
        %v2497 = vpop.f32.mrf.mxu0
        %v2498 = vadd.f32 0.0, %v2497
        %2499 = vmatmul.f32.gmra.mxu0 %v617
        %v2500 = vpop.f32.mrf.mxu0
        %v2501 = vadd.f32 0.0, %v2500
        %2502 = vmatmul.f32.gmra.mxu0 %v619
        %v2503 = vpop.f32.mrf.mxu0
        %v2504 = vadd.f32 0.0, %v2503
        %2505 = vmatmul.f32.gmra.mxu0 %v621
        %v2506 = vpop.f32.mrf.mxu0
        %v2507 = vadd.f32 0.0, %v2506
        %2508 = vmatmul.f32.gmra.mxu0 %v623
        %v2509 = vpop.f32.mrf.mxu0
        %v2510 = vadd.f32 0.0, %v2509
        %2511 = vmatmul.f32.gmra.mxu0 %v625
        %v2512 = vpop.f32.mrf.mxu0
        %v2513 = vadd.f32 0.0, %v2512
        %2514 = vmatmul.f32.gmra.mxu0 %v627
        %v2515 = vpop.f32.mrf.mxu0
        %v2516 = vadd.f32 0.0, %v2515
        %2517 = vmatmul.f32.gmra.mxu0 %v629
        %v2518 = vpop.f32.mrf.mxu0
        %v2519 = vadd.f32 0.0, %v2518
        %2520 = vmatmul.f32.gmra.mxu0 %v631
        %v2521 = vpop.f32.mrf.mxu0
        %v2522 = vadd.f32 0.0, %v2521
        %2523 = vmatmul.f32.gmra.mxu0 %v633
        %v2524 = vpop.f32.mrf.mxu0
        %v2525 = vadd.f32 0.0, %v2524
        %2526 = vmatmul.f32.gmra.mxu0 %v635
        %v2527 = vpop.f32.mrf.mxu0
        %v2528 = vadd.f32 0.0, %v2527
        %2529 = vmatmul.f32.gmra.mxu0 %v637
        %v2530 = vpop.f32.mrf.mxu0
        %v2531 = vadd.f32 0.0, %v2530
        %2532 = vmatmul.f32.gmra.mxu0 %v639
        %v2533 = vpop.f32.mrf.mxu0
        %v2534 = vadd.f32 0.0, %v2533
        %2535 = vmatmul.f32.gmra.mxu0 %v641
        %v2536 = vpop.f32.mrf.mxu0
        %v2537 = vadd.f32 0.0, %v2536
        %2538 = vmatmul.f32.gmra.mxu0 %v643
        %v2539 = vpop.f32.mrf.mxu0
        %v2540 = vadd.f32 0.0, %v2539
        %2541 = vmatmul.f32.gmra.mxu0 %v645
        %v2542 = vpop.f32.mrf.mxu0
        %v2543 = vadd.f32 0.0, %v2542
        %2544 = vmatmul.f32.gmra.mxu0 %v647
        %v2545 = vpop.f32.mrf.mxu0
        %v2546 = vadd.f32 0.0, %v2545
        %2547 = vmatmul.f32.gmra.mxu0 %v649
        %v2548 = vpop.f32.mrf.mxu0
        %v2549 = vadd.f32 0.0, %v2548
        %2550 = vmatmul.f32.gmra.mxu0 %v651
        %v2551 = vpop.f32.mrf.mxu0
        %v2552 = vadd.f32 0.0, %v2551
        %2553 = vmatmul.f32.gmra.mxu0 %v653
        %v2554 = vpop.f32.mrf.mxu0
        %v2555 = vadd.f32 0.0, %v2554
        %2556 = vmatmul.f32.gmra.mxu0 %v655
        %v2557 = vpop.f32.mrf.mxu0
        %v2558 = vadd.f32 0.0, %v2557
        %2559 = vmatmul.f32.gmra.mxu0 %v657
        %v2560 = vpop.f32.mrf.mxu0
        %v2561 = vadd.f32 0.0, %v2560
        %2562 = vmatmul.f32.gmra.mxu0 %v659
        %v2563 = vpop.f32.mrf.mxu0
        %v2564 = vadd.f32 0.0, %v2563
        %2565 = vmatmul.f32.gmra.mxu0 %v1664
        %v2566 = vpop.f32.mrf.mxu0
        %v2567 = vadd.f32 0.0, %v2566
        %2568 = vmatmul.f32.gmra.mxu0 %v1667
        %v2569 = vpop.f32.mrf.mxu0
        %v2570 = vadd.f32 0.0, %v2569
        %2571 = vmatmul.f32.gmra.mxu0 %v2457
        %v2572 = vpop.f32.mrf.mxu0
        %v2573 = vadd.f32 0.0, %v2572
        %2574 = vmatmul.f32.gmra.mxu0 %v2460
        %v2575 = vpop.f32.mrf.mxu0
        %v2576 = vadd.f32 0.0, %v2575
        %2577 = vdwg.mxu0
        %v2578 = vadd.f32 %v2422, %v2483
        %v2579 = vadd.f32 %v2423, %v2486
        %v2580 = vadd.f32 %v2424, %v2489
        %v2581 = vadd.f32 %v2425, %v2492
        %v2582 = vadd.f32 %v2426, %v2495
        %v2583 = vadd.f32 %v2427, %v2498
        %v2584 = vadd.f32 %v2428, %v2501
        %v2585 = vadd.f32 %v2429, %v2504
        %v2586 = vadd.f32 %v2430, %v2507
        %v2587 = vadd.f32 %v2431, %v2510
        %v2588 = vadd.f32 %v2432, %v2513
        %v2589 = vadd.f32 %v2433, %v2516
        %v2590 = vadd.f32 %v2434, %v2519
        %v2591 = vadd.f32 %v2435, %v2522
        %v2592 = vadd.f32 %v2436, %v2525
        %v2593 = vadd.f32 %v2437, %v2528
        %v2594 = vadd.f32 %v2438, %v2531
        %v2595 = vadd.f32 %v2439, %v2534
        %v2596 = vadd.f32 %v2440, %v2537
        %v2597 = vadd.f32 %v2441, %v2540
        %v2598 = vadd.f32 %v2442, %v2543
        %v2599 = vadd.f32 %v2443, %v2546
        %v2600 = vadd.f32 %v2444, %v2549
        %v2601 = vadd.f32 %v2445, %v2552
        %v2602 = vadd.f32 %v2446, %v2555
        %v2603 = vadd.f32 %v2447, %v2558
        %v2604 = vadd.f32 %v2448, %v2561
        %v2605 = vadd.f32 %v2449, %v2564
        %v2606 = vadd.f32 %v2450, %v2567
        %v2607 = vadd.f32 %v2451, %v2570
        %v2608 = vadd.f32 %v2452, %v2573
        %v2609 = vadd.f32 %v2453, %v2576
        %v2611 = vrot.slane %v274, 1
        %v2612 = vrot.slane %v275, 1
        %v2613 = vsel %vm332, %v2611, %v2612
        %v2614 = vrot.slane %v276, 1
        %v2615 = vsel %vm332, %v2612, %v2614
        %s2616 = scalar_lea.vmem %s1, 44
        %v2617 = vld [vmem:[%s2616] sm:$0xf]
        %v2618 = vsel %vm415, %v2613, 0
        %v2620 = vsel %vm415, %v2615, 0
        %v2623 = vsel %vm480, %v2617, 0
        %2625 = vmatpush.msra.mxu0 0.0
        %2626 = vmatpush.msra.mxu0 0.0
        %2627 = vmatpush.msra.mxu0 0.0
        %2628 = vmatpush.msra.mxu0 0.0
        %2629 = vmatpush.msra.mxu0 0.0
        %2630 = vmatpush.msra.mxu0 0.0
        %2631 = vmatpush.msra.mxu0 0.0
        %2632 = vmatpush.msra.mxu0 0.0
        %2633 = vmatpush.msra.mxu0 0.0
        %2634 = vmatpush.msra.mxu0 0.0
        %2635 = vmatpush.msra.mxu0 0.0
        %2636 = vmatpush.msra.mxu0 0.0
        %2637 = vmatpush.msra.mxu0 0.0
        %2638 = vmatpush.msra.mxu0 0.0
        %2639 = vmatpush.msra.mxu0 0.0
        %2640 = vmatpush.msra.mxu0 %v2623
        %2641 = vmatmul.f32.gmra.mxu0 %v424
        %v2642 = vpop.f32.mrf.mxu0
        %v2643 = vadd.f32 0.0, %v2642
        %2644 = vmatmul.f32.gmra.mxu0 %v426
        %v2645 = vpop.f32.mrf.mxu0
        %v2646 = vadd.f32 0.0, %v2645
        %2647 = vmatmul.f32.gmra.mxu0 %v428
        %v2648 = vpop.f32.mrf.mxu0
        %v2649 = vadd.f32 0.0, %v2648
        %2650 = vmatmul.f32.gmra.mxu0 %v430
        %v2651 = vpop.f32.mrf.mxu0
        %v2652 = vadd.f32 0.0, %v2651
        %2653 = vmatmul.f32.gmra.mxu0 %v432
        %v2654 = vpop.f32.mrf.mxu0
        %v2655 = vadd.f32 0.0, %v2654
        %2656 = vmatmul.f32.gmra.mxu0 %v434
        %v2657 = vpop.f32.mrf.mxu0
        %v2658 = vadd.f32 0.0, %v2657
        %2659 = vmatmul.f32.gmra.mxu0 %v436
        %v2660 = vpop.f32.mrf.mxu0
        %v2661 = vadd.f32 0.0, %v2660
        %2662 = vmatmul.f32.gmra.mxu0 %v438
        %v2663 = vpop.f32.mrf.mxu0
        %v2664 = vadd.f32 0.0, %v2663
        %2665 = vmatmul.f32.gmra.mxu0 %v440
        %v2666 = vpop.f32.mrf.mxu0
        %v2667 = vadd.f32 0.0, %v2666
        %2668 = vmatmul.f32.gmra.mxu0 %v442
        %v2669 = vpop.f32.mrf.mxu0
        %v2670 = vadd.f32 0.0, %v2669
        %2671 = vmatmul.f32.gmra.mxu0 %v444
        %v2672 = vpop.f32.mrf.mxu0
        %v2673 = vadd.f32 0.0, %v2672
        %2674 = vmatmul.f32.gmra.mxu0 %v446
        %v2675 = vpop.f32.mrf.mxu0
        %v2676 = vadd.f32 0.0, %v2675
        %2677 = vmatmul.f32.gmra.mxu0 %v448
        %v2678 = vpop.f32.mrf.mxu0
        %v2679 = vadd.f32 0.0, %v2678
        %2680 = vmatmul.f32.gmra.mxu0 %v450
        %v2681 = vpop.f32.mrf.mxu0
        %v2682 = vadd.f32 0.0, %v2681
        %2683 = vmatmul.f32.gmra.mxu0 %v452
        %v2684 = vpop.f32.mrf.mxu0
        %v2685 = vadd.f32 0.0, %v2684
        %2686 = vmatmul.f32.gmra.mxu0 %v454
        %v2687 = vpop.f32.mrf.mxu0
        %v2688 = vadd.f32 0.0, %v2687
        %2689 = vmatmul.f32.gmra.mxu0 %v456
        %v2690 = vpop.f32.mrf.mxu0
        %v2691 = vadd.f32 0.0, %v2690
        %2692 = vmatmul.f32.gmra.mxu0 %v458
        %v2693 = vpop.f32.mrf.mxu0
        %v2694 = vadd.f32 0.0, %v2693
        %2695 = vmatmul.f32.gmra.mxu0 %v460
        %v2696 = vpop.f32.mrf.mxu0
        %v2697 = vadd.f32 0.0, %v2696
        %2698 = vmatmul.f32.gmra.mxu0 %v462
        %v2699 = vpop.f32.mrf.mxu0
        %v2700 = vadd.f32 0.0, %v2699
        %2701 = vmatmul.f32.gmra.mxu0 %v464
        %v2702 = vpop.f32.mrf.mxu0
        %v2703 = vadd.f32 0.0, %v2702
        %2704 = vmatmul.f32.gmra.mxu0 %v466
        %v2705 = vpop.f32.mrf.mxu0
        %v2706 = vadd.f32 0.0, %v2705
        %2707 = vmatmul.f32.gmra.mxu0 %v468
        %v2708 = vpop.f32.mrf.mxu0
        %v2709 = vadd.f32 0.0, %v2708
        %2710 = vmatmul.f32.gmra.mxu0 %v470
        %v2711 = vpop.f32.mrf.mxu0
        %v2712 = vadd.f32 0.0, %v2711
        %2713 = vmatmul.f32.gmra.mxu0 %v472
        %v2714 = vpop.f32.mrf.mxu0
        %v2715 = vadd.f32 0.0, %v2714
        %2716 = vmatmul.f32.gmra.mxu0 %v474
        %v2717 = vpop.f32.mrf.mxu0
        %v2718 = vadd.f32 0.0, %v2717
        %2719 = vmatmul.f32.gmra.mxu0 %v476
        %v2720 = vpop.f32.mrf.mxu0
        %v2721 = vadd.f32 0.0, %v2720
        %2722 = vmatmul.f32.gmra.mxu0 %v478
        %v2723 = vpop.f32.mrf.mxu0
        %v2724 = vadd.f32 0.0, %v2723
        %2725 = vmatmul.f32.gmra.mxu0 %v1825
        %v2726 = vpop.f32.mrf.mxu0
        %v2727 = vadd.f32 0.0, %v2726
        %2728 = vmatmul.f32.gmra.mxu0 %v1827
        %v2729 = vpop.f32.mrf.mxu0
        %v2730 = vadd.f32 0.0, %v2729
        %2731 = vmatmul.f32.gmra.mxu0 %v2618
        %v2732 = vpop.f32.mrf.mxu0
        %v2733 = vadd.f32 0.0, %v2732
        %2734 = vmatmul.f32.gmra.mxu0 %v2620
        %v2735 = vpop.f32.mrf.mxu0
        %v2736 = vadd.f32 0.0, %v2735
        %2737 = vdwg.mxu0
        %v2738 = vadd.f32 %v2578, %v2643
        %v2739 = vadd.f32 %v2579, %v2646
        %v2740 = vadd.f32 %v2580, %v2649
        %v2741 = vadd.f32 %v2581, %v2652
        %v2742 = vadd.f32 %v2582, %v2655
        %v2743 = vadd.f32 %v2583, %v2658
        %v2744 = vadd.f32 %v2584, %v2661
        %v2745 = vadd.f32 %v2585, %v2664
        %v2746 = vadd.f32 %v2586, %v2667
        %v2747 = vadd.f32 %v2587, %v2670
        %v2748 = vadd.f32 %v2588, %v2673
        %v2749 = vadd.f32 %v2589, %v2676
        %v2750 = vadd.f32 %v2590, %v2679
        %v2751 = vadd.f32 %v2591, %v2682
        %v2752 = vadd.f32 %v2592, %v2685
        %v2753 = vadd.f32 %v2593, %v2688
        %v2754 = vadd.f32 %v2594, %v2691
        %v2755 = vadd.f32 %v2595, %v2694
        %v2756 = vadd.f32 %v2596, %v2697
        %v2757 = vadd.f32 %v2597, %v2700
        %v2758 = vadd.f32 %v2598, %v2703
        %v2759 = vadd.f32 %v2599, %v2706
        %v2760 = vadd.f32 %v2600, %v2709
        %v2761 = vadd.f32 %v2601, %v2712
        %v2762 = vadd.f32 %v2602, %v2715
        %v2763 = vadd.f32 %v2603, %v2718
        %v2764 = vadd.f32 %v2604, %v2721
        %v2765 = vadd.f32 %v2605, %v2724
        %v2766 = vadd.f32 %v2606, %v2727
        %v2767 = vadd.f32 %v2607, %v2730
        %v2768 = vadd.f32 %v2608, %v2733
        %v2769 = vadd.f32 %v2609, %v2736
        %v2770 = vrot.slane %v274, 2
        %v2771 = vrot.slane %v275, 2
        %v2772 = vsel %vm777, %v2770, %v2771
        %v2773 = vrot.slane %v276, 2
        %v2774 = vsel %vm777, %v2771, %v2773
        %s2775 = scalar_lea.vmem %s1, 48
        %v2776 = vld [vmem:[%s2775] sm:$0xf]
        %v2777 = vsel %vm415, %v2772, 0
        %v2779 = vsel %vm415, %v2774, 0
        %v2782 = vsel %vm480, %v2776, 0
        %2784 = vmatpush.msra.mxu0 0.0
        %2785 = vmatpush.msra.mxu0 0.0
        %2786 = vmatpush.msra.mxu0 0.0
        %2787 = vmatpush.msra.mxu0 0.0
        %2788 = vmatpush.msra.mxu0 0.0
        %2789 = vmatpush.msra.mxu0 0.0
        %2790 = vmatpush.msra.mxu0 0.0
        %2791 = vmatpush.msra.mxu0 0.0
        %2792 = vmatpush.msra.mxu0 0.0
        %2793 = vmatpush.msra.mxu0 0.0
        %2794 = vmatpush.msra.mxu0 0.0
        %2795 = vmatpush.msra.mxu0 0.0
        %2796 = vmatpush.msra.mxu0 0.0
        %2797 = vmatpush.msra.mxu0 0.0
        %2798 = vmatpush.msra.mxu0 0.0
        %2799 = vmatpush.msra.mxu0 %v2782
        %2800 = vmatmul.f32.gmra.mxu0 %v868
        %v2801 = vpop.f32.mrf.mxu0
        %v2802 = vadd.f32 0.0, %v2801
        %2803 = vmatmul.f32.gmra.mxu0 %v870
        %v2804 = vpop.f32.mrf.mxu0
        %v2805 = vadd.f32 0.0, %v2804
        %2806 = vmatmul.f32.gmra.mxu0 %v872
        %v2807 = vpop.f32.mrf.mxu0
        %v2808 = vadd.f32 0.0, %v2807
        %2809 = vmatmul.f32.gmra.mxu0 %v874
        %v2810 = vpop.f32.mrf.mxu0
        %v2811 = vadd.f32 0.0, %v2810
        %2812 = vmatmul.f32.gmra.mxu0 %v876
        %v2813 = vpop.f32.mrf.mxu0
        %v2814 = vadd.f32 0.0, %v2813
        %2815 = vmatmul.f32.gmra.mxu0 %v878
        %v2816 = vpop.f32.mrf.mxu0
        %v2817 = vadd.f32 0.0, %v2816
        %2818 = vmatmul.f32.gmra.mxu0 %v880
        %v2819 = vpop.f32.mrf.mxu0
        %v2820 = vadd.f32 0.0, %v2819
        %2821 = vmatmul.f32.gmra.mxu0 %v882
        %v2822 = vpop.f32.mrf.mxu0
        %v2823 = vadd.f32 0.0, %v2822
        %2824 = vmatmul.f32.gmra.mxu0 %v884
        %v2825 = vpop.f32.mrf.mxu0
        %v2826 = vadd.f32 0.0, %v2825
        %2827 = vmatmul.f32.gmra.mxu0 %v886
        %v2828 = vpop.f32.mrf.mxu0
        %v2829 = vadd.f32 0.0, %v2828
        %2830 = vmatmul.f32.gmra.mxu0 %v888
        %v2831 = vpop.f32.mrf.mxu0
        %v2832 = vadd.f32 0.0, %v2831
        %2833 = vmatmul.f32.gmra.mxu0 %v890
        %v2834 = vpop.f32.mrf.mxu0
        %v2835 = vadd.f32 0.0, %v2834
        %2836 = vmatmul.f32.gmra.mxu0 %v892
        %v2837 = vpop.f32.mrf.mxu0
        %v2838 = vadd.f32 0.0, %v2837
        %2839 = vmatmul.f32.gmra.mxu0 %v894
        %v2840 = vpop.f32.mrf.mxu0
        %v2841 = vadd.f32 0.0, %v2840
        %2842 = vmatmul.f32.gmra.mxu0 %v896
        %v2843 = vpop.f32.mrf.mxu0
        %v2844 = vadd.f32 0.0, %v2843
        %2845 = vmatmul.f32.gmra.mxu0 %v898
        %v2846 = vpop.f32.mrf.mxu0
        %v2847 = vadd.f32 0.0, %v2846
        %2848 = vmatmul.f32.gmra.mxu0 %v900
        %v2849 = vpop.f32.mrf.mxu0
        %v2850 = vadd.f32 0.0, %v2849
        %2851 = vmatmul.f32.gmra.mxu0 %v902
        %v2852 = vpop.f32.mrf.mxu0
        %v2853 = vadd.f32 0.0, %v2852
        %2854 = vmatmul.f32.gmra.mxu0 %v904
        %v2855 = vpop.f32.mrf.mxu0
        %v2856 = vadd.f32 0.0, %v2855
        %2857 = vmatmul.f32.gmra.mxu0 %v906
        %v2858 = vpop.f32.mrf.mxu0
        %v2859 = vadd.f32 0.0, %v2858
        %2860 = vmatmul.f32.gmra.mxu0 %v908
        %v2861 = vpop.f32.mrf.mxu0
        %v2862 = vadd.f32 0.0, %v2861
        %2863 = vmatmul.f32.gmra.mxu0 %v910
        %v2864 = vpop.f32.mrf.mxu0
        %v2865 = vadd.f32 0.0, %v2864
        %2866 = vmatmul.f32.gmra.mxu0 %v912
        %v2867 = vpop.f32.mrf.mxu0
        %v2868 = vadd.f32 0.0, %v2867
        %2869 = vmatmul.f32.gmra.mxu0 %v914
        %v2870 = vpop.f32.mrf.mxu0
        %v2871 = vadd.f32 0.0, %v2870
        %2872 = vmatmul.f32.gmra.mxu0 %v916
        %v2873 = vpop.f32.mrf.mxu0
        %v2874 = vadd.f32 0.0, %v2873
        %2875 = vmatmul.f32.gmra.mxu0 %v918
        %v2876 = vpop.f32.mrf.mxu0
        %v2877 = vadd.f32 0.0, %v2876
        %2878 = vmatmul.f32.gmra.mxu0 %v920
        %v2879 = vpop.f32.mrf.mxu0
        %v2880 = vadd.f32 0.0, %v2879
        %2881 = vmatmul.f32.gmra.mxu0 %v922
        %v2882 = vpop.f32.mrf.mxu0
        %v2883 = vadd.f32 0.0, %v2882
        %2884 = vmatmul.f32.gmra.mxu0 %v1984
        %v2885 = vpop.f32.mrf.mxu0
        %v2886 = vadd.f32 0.0, %v2885
        %2887 = vmatmul.f32.gmra.mxu0 %v1986
        %v2888 = vpop.f32.mrf.mxu0
        %v2889 = vadd.f32 0.0, %v2888
        %2890 = vmatmul.f32.gmra.mxu0 %v2777
        %v2891 = vpop.f32.mrf.mxu0
        %v2892 = vadd.f32 0.0, %v2891
        %2893 = vmatmul.f32.gmra.mxu0 %v2779
        %v2894 = vpop.f32.mrf.mxu0
        %v2895 = vadd.f32 0.0, %v2894
        %2896 = vdwg.mxu0
        %v2897 = vadd.f32 %v2738, %v2802
        %v2898 = vadd.f32 %v2739, %v2805
        %v2899 = vadd.f32 %v2740, %v2808
        %v2900 = vadd.f32 %v2741, %v2811
        %v2901 = vadd.f32 %v2742, %v2814
        %v2902 = vadd.f32 %v2743, %v2817
        %v2903 = vadd.f32 %v2744, %v2820
        %v2904 = vadd.f32 %v2745, %v2823
        %v2905 = vadd.f32 %v2746, %v2826
        %v2906 = vadd.f32 %v2747, %v2829
        %v2907 = vadd.f32 %v2748, %v2832
        %v2908 = vadd.f32 %v2749, %v2835
        %v2909 = vadd.f32 %v2750, %v2838
        %v2910 = vadd.f32 %v2751, %v2841
        %v2911 = vadd.f32 %v2752, %v2844
        %v2912 = vadd.f32 %v2753, %v2847
        %v2913 = vadd.f32 %v2754, %v2850
        %v2914 = vadd.f32 %v2755, %v2853
        %v2915 = vadd.f32 %v2756, %v2856
        %v2916 = vadd.f32 %v2757, %v2859
        %v2917 = vadd.f32 %v2758, %v2862
        %v2918 = vadd.f32 %v2759, %v2865
        %v2919 = vadd.f32 %v2760, %v2868
        %v2920 = vadd.f32 %v2761, %v2871
        %v2921 = vadd.f32 %v2762, %v2874
        %v2922 = vadd.f32 %v2763, %v2877
        %v2923 = vadd.f32 %v2764, %v2880
        %v2924 = vadd.f32 %v2765, %v2883
        %v2925 = vadd.f32 %v2766, %v2886
        %v2926 = vadd.f32 %v2767, %v2889
        %v2927 = vadd.f32 %v2768, %v2892
        %v2928 = vadd.f32 %v2769, %v2895
        %v2929 = vrot.slane %v274, 3
        %v2930 = vrot.slane %v275, 3
        %v2931 = vsel %vm1072, %v2929, %v2930
        %v2932 = vrot.slane %v276, 3
        %v2933 = vsel %vm1072, %v2930, %v2932
        %s2934 = scalar_lea.vmem %s1, 52
        %v2935 = vld [vmem:[%s2934] sm:$0xf]
        %v2936 = vsel %vm415, %v2931, 0
        %v2938 = vsel %vm415, %v2933, 0
        %v2941 = vsel %vm480, %v2935, 0
        %2943 = vmatpush.msra.mxu0 0.0
        %2944 = vmatpush.msra.mxu0 0.0
        %2945 = vmatpush.msra.mxu0 0.0
        %2946 = vmatpush.msra.mxu0 0.0
        %2947 = vmatpush.msra.mxu0 0.0
        %2948 = vmatpush.msra.mxu0 0.0
        %2949 = vmatpush.msra.mxu0 0.0
        %2950 = vmatpush.msra.mxu0 0.0
        %2951 = vmatpush.msra.mxu0 0.0
        %2952 = vmatpush.msra.mxu0 0.0
        %2953 = vmatpush.msra.mxu0 0.0
        %2954 = vmatpush.msra.mxu0 0.0
        %2955 = vmatpush.msra.mxu0 0.0
        %2956 = vmatpush.msra.mxu0 0.0
        %2957 = vmatpush.msra.mxu0 0.0
        %2958 = vmatpush.msra.mxu0 %v2941
        %2959 = vmatmul.f32.gmra.mxu0 %v1163
        %v2960 = vpop.f32.mrf.mxu0
        %v2961 = vadd.f32 0.0, %v2960
        %2962 = vmatmul.f32.gmra.mxu0 %v1165
        %v2963 = vpop.f32.mrf.mxu0
        %v2964 = vadd.f32 0.0, %v2963
        %2965 = vmatmul.f32.gmra.mxu0 %v1167
        %v2966 = vpop.f32.mrf.mxu0
        %v2967 = vadd.f32 0.0, %v2966
        %2968 = vmatmul.f32.gmra.mxu0 %v1169
        %v2969 = vpop.f32.mrf.mxu0
        %v2970 = vadd.f32 0.0, %v2969
        %2971 = vmatmul.f32.gmra.mxu0 %v1171
        %v2972 = vpop.f32.mrf.mxu0
        %v2973 = vadd.f32 0.0, %v2972
        %2974 = vmatmul.f32.gmra.mxu0 %v1173
        %v2975 = vpop.f32.mrf.mxu0
        %v2976 = vadd.f32 0.0, %v2975
        %2977 = vmatmul.f32.gmra.mxu0 %v1175
        %v2978 = vpop.f32.mrf.mxu0
        %v2979 = vadd.f32 0.0, %v2978
        %2980 = vmatmul.f32.gmra.mxu0 %v1177
        %v2981 = vpop.f32.mrf.mxu0
        %v2982 = vadd.f32 0.0, %v2981
        %2983 = vmatmul.f32.gmra.mxu0 %v1179
        %v2984 = vpop.f32.mrf.mxu0
        %v2985 = vadd.f32 0.0, %v2984
        %2986 = vmatmul.f32.gmra.mxu0 %v1181
        %v2987 = vpop.f32.mrf.mxu0
        %v2988 = vadd.f32 0.0, %v2987
        %2989 = vmatmul.f32.gmra.mxu0 %v1183
        %v2990 = vpop.f32.mrf.mxu0
        %v2991 = vadd.f32 0.0, %v2990
        %2992 = vmatmul.f32.gmra.mxu0 %v1185
        %v2993 = vpop.f32.mrf.mxu0
        %v2994 = vadd.f32 0.0, %v2993
        %2995 = vmatmul.f32.gmra.mxu0 %v1187
        %v2996 = vpop.f32.mrf.mxu0
        %v2997 = vadd.f32 0.0, %v2996
        %2998 = vmatmul.f32.gmra.mxu0 %v1189
        %v2999 = vpop.f32.mrf.mxu0
        %v3000 = vadd.f32 0.0, %v2999
        %3001 = vmatmul.f32.gmra.mxu0 %v1191
        %v3002 = vpop.f32.mrf.mxu0
        %v3003 = vadd.f32 0.0, %v3002
        %3004 = vmatmul.f32.gmra.mxu0 %v1193
        %v3005 = vpop.f32.mrf.mxu0
        %v3006 = vadd.f32 0.0, %v3005
        %3007 = vmatmul.f32.gmra.mxu0 %v1195
        %v3008 = vpop.f32.mrf.mxu0
        %v3009 = vadd.f32 0.0, %v3008
        %3010 = vmatmul.f32.gmra.mxu0 %v1197
        %v3011 = vpop.f32.mrf.mxu0
        %v3012 = vadd.f32 0.0, %v3011
        %3013 = vmatmul.f32.gmra.mxu0 %v1199
        %v3014 = vpop.f32.mrf.mxu0
        %v3015 = vadd.f32 0.0, %v3014
        %3016 = vmatmul.f32.gmra.mxu0 %v1201
        %v3017 = vpop.f32.mrf.mxu0
        %v3018 = vadd.f32 0.0, %v3017
        %3019 = vmatmul.f32.gmra.mxu0 %v1203
        %v3020 = vpop.f32.mrf.mxu0
        %v3021 = vadd.f32 0.0, %v3020
        %3022 = vmatmul.f32.gmra.mxu0 %v1205
        %v3023 = vpop.f32.mrf.mxu0
        %v3024 = vadd.f32 0.0, %v3023
        %3025 = vmatmul.f32.gmra.mxu0 %v1207
        %v3026 = vpop.f32.mrf.mxu0
        %v3027 = vadd.f32 0.0, %v3026
        %3028 = vmatmul.f32.gmra.mxu0 %v1209
        %v3029 = vpop.f32.mrf.mxu0
        %v3030 = vadd.f32 0.0, %v3029
        %3031 = vmatmul.f32.gmra.mxu0 %v1211
        %v3032 = vpop.f32.mrf.mxu0
        %v3033 = vadd.f32 0.0, %v3032
        %3034 = vmatmul.f32.gmra.mxu0 %v1213
        %v3035 = vpop.f32.mrf.mxu0
        %v3036 = vadd.f32 0.0, %v3035
        %3037 = vmatmul.f32.gmra.mxu0 %v1215
        %v3038 = vpop.f32.mrf.mxu0
        %v3039 = vadd.f32 0.0, %v3038
        %3040 = vmatmul.f32.gmra.mxu0 %v1217
        %v3041 = vpop.f32.mrf.mxu0
        %v3042 = vadd.f32 0.0, %v3041
        %3043 = vmatmul.f32.gmra.mxu0 %v2143
        %v3044 = vpop.f32.mrf.mxu0
        %v3045 = vadd.f32 0.0, %v3044
        %3046 = vmatmul.f32.gmra.mxu0 %v2145
        %v3047 = vpop.f32.mrf.mxu0
        %v3048 = vadd.f32 0.0, %v3047
        %3049 = vmatmul.f32.gmra.mxu0 %v2936
        %v3050 = vpop.f32.mrf.mxu0
        %v3051 = vadd.f32 0.0, %v3050
        %3052 = vmatmul.f32.gmra.mxu0 %v2938
        %v3053 = vpop.f32.mrf.mxu0
        %v3054 = vadd.f32 0.0, %v3053
        %3055 = vdwg.mxu0
        %v3056 = vadd.f32 %v2897, %v2961
        %v3057 = vadd.f32 %v2898, %v2964
        %v3058 = vadd.f32 %v2899, %v2967
        %v3059 = vadd.f32 %v2900, %v2970
        %v3060 = vadd.f32 %v2901, %v2973
        %v3061 = vadd.f32 %v2902, %v2976
        %v3062 = vadd.f32 %v2903, %v2979
        %v3063 = vadd.f32 %v2904, %v2982
        %v3064 = vadd.f32 %v2905, %v2985
        %v3065 = vadd.f32 %v2906, %v2988
        %v3066 = vadd.f32 %v2907, %v2991
        %v3067 = vadd.f32 %v2908, %v2994
        %v3068 = vadd.f32 %v2909, %v2997
        %v3069 = vadd.f32 %v2910, %v3000
        %v3070 = vadd.f32 %v2911, %v3003
        %v3071 = vadd.f32 %v2912, %v3006
        %v3072 = vadd.f32 %v2913, %v3009
        %v3073 = vadd.f32 %v2914, %v3012
        %v3074 = vadd.f32 %v2915, %v3015
        %v3075 = vadd.f32 %v2916, %v3018
        %v3076 = vadd.f32 %v2917, %v3021
        %v3077 = vadd.f32 %v2918, %v3024
        %v3078 = vadd.f32 %v2919, %v3027
        %v3079 = vadd.f32 %v2920, %v3030
        %v3080 = vadd.f32 %v2921, %v3033
        %v3081 = vadd.f32 %v2922, %v3036
        %v3082 = vadd.f32 %v2923, %v3039
        %v3083 = vadd.f32 %v2924, %v3042
        %v3084 = vadd.f32 %v2925, %v3045
        %v3085 = vadd.f32 %v2926, %v3048
        %v3086 = vadd.f32 %v2927, %v3051
        %v3087 = vadd.f32 %v2928, %v3054
        %v3088 = vrot.slane %v274, 4
        %v3089 = vrot.slane %v275, 4
        %v3090 = vsel %vm480, %v3088, %v3089
        %v3091 = vrot.slane %v276, 4
        %v3092 = vsel %vm480, %v3089, %v3091
        %s3093 = scalar_lea.vmem %s1, 56
        %v3094 = vld [vmem:[%s3093] sm:$0xf]
        %v3095 = vsel %vm415, %v3090, 0
        %v3097 = vsel %vm415, %v3092, 0
        %v3100 = vsel %vm480, %v3094, 0
        %3102 = vmatpush.msra.mxu0 0.0
        %3103 = vmatpush.msra.mxu0 0.0
        %3104 = vmatpush.msra.mxu0 0.0
        %3105 = vmatpush.msra.mxu0 0.0
        %3106 = vmatpush.msra.mxu0 0.0
        %3107 = vmatpush.msra.mxu0 0.0
        %3108 = vmatpush.msra.mxu0 0.0
        %3109 = vmatpush.msra.mxu0 0.0
        %3110 = vmatpush.msra.mxu0 0.0
        %3111 = vmatpush.msra.mxu0 0.0
        %3112 = vmatpush.msra.mxu0 0.0
        %3113 = vmatpush.msra.mxu0 0.0
        %3114 = vmatpush.msra.mxu0 0.0
        %3115 = vmatpush.msra.mxu0 0.0
        %3116 = vmatpush.msra.mxu0 0.0
        %3117 = vmatpush.msra.mxu0 %v3100
        %3118 = vmatmul.f32.gmra.mxu0 %v1457
        %v3119 = vpop.f32.mrf.mxu0
        %v3120 = vadd.f32 0.0, %v3119
        %3121 = vmatmul.f32.gmra.mxu0 %v1459
        %v3122 = vpop.f32.mrf.mxu0
        %v3123 = vadd.f32 0.0, %v3122
        %3124 = vmatmul.f32.gmra.mxu0 %v1461
        %v3125 = vpop.f32.mrf.mxu0
        %v3126 = vadd.f32 0.0, %v3125
        %3127 = vmatmul.f32.gmra.mxu0 %v1463
        %v3128 = vpop.f32.mrf.mxu0
        %v3129 = vadd.f32 0.0, %v3128
        %3130 = vmatmul.f32.gmra.mxu0 %v1465
        %v3131 = vpop.f32.mrf.mxu0
        %v3132 = vadd.f32 0.0, %v3131
        %3133 = vmatmul.f32.gmra.mxu0 %v1467
        %v3134 = vpop.f32.mrf.mxu0
        %v3135 = vadd.f32 0.0, %v3134
        %3136 = vmatmul.f32.gmra.mxu0 %v1469
        %v3137 = vpop.f32.mrf.mxu0
        %v3138 = vadd.f32 0.0, %v3137
        %3139 = vmatmul.f32.gmra.mxu0 %v1471
        %v3140 = vpop.f32.mrf.mxu0
        %v3141 = vadd.f32 0.0, %v3140
        %3142 = vmatmul.f32.gmra.mxu0 %v1473
        %v3143 = vpop.f32.mrf.mxu0
        %v3144 = vadd.f32 0.0, %v3143
        %3145 = vmatmul.f32.gmra.mxu0 %v1475
        %v3146 = vpop.f32.mrf.mxu0
        %v3147 = vadd.f32 0.0, %v3146
        %3148 = vmatmul.f32.gmra.mxu0 %v1477
        %v3149 = vpop.f32.mrf.mxu0
        %v3150 = vadd.f32 0.0, %v3149
        %3151 = vmatmul.f32.gmra.mxu0 %v1479
        %v3152 = vpop.f32.mrf.mxu0
        %v3153 = vadd.f32 0.0, %v3152
        %3154 = vmatmul.f32.gmra.mxu0 %v1481
        %v3155 = vpop.f32.mrf.mxu0
        %v3156 = vadd.f32 0.0, %v3155
        %3157 = vmatmul.f32.gmra.mxu0 %v1483
        %v3158 = vpop.f32.mrf.mxu0
        %v3159 = vadd.f32 0.0, %v3158
        %3160 = vmatmul.f32.gmra.mxu0 %v1485
        %v3161 = vpop.f32.mrf.mxu0
        %v3162 = vadd.f32 0.0, %v3161
        %3163 = vmatmul.f32.gmra.mxu0 %v1487
        %v3164 = vpop.f32.mrf.mxu0
        %v3165 = vadd.f32 0.0, %v3164
        %3166 = vmatmul.f32.gmra.mxu0 %v1489
        %v3167 = vpop.f32.mrf.mxu0
        %v3168 = vadd.f32 0.0, %v3167
        %3169 = vmatmul.f32.gmra.mxu0 %v1491
        %v3170 = vpop.f32.mrf.mxu0
        %v3171 = vadd.f32 0.0, %v3170
        %3172 = vmatmul.f32.gmra.mxu0 %v1493
        %v3173 = vpop.f32.mrf.mxu0
        %v3174 = vadd.f32 0.0, %v3173
        %3175 = vmatmul.f32.gmra.mxu0 %v1495
        %v3176 = vpop.f32.mrf.mxu0
        %v3177 = vadd.f32 0.0, %v3176
        %3178 = vmatmul.f32.gmra.mxu0 %v1497
        %v3179 = vpop.f32.mrf.mxu0
        %v3180 = vadd.f32 0.0, %v3179
        %3181 = vmatmul.f32.gmra.mxu0 %v1499
        %v3182 = vpop.f32.mrf.mxu0
        %v3183 = vadd.f32 0.0, %v3182
        %3184 = vmatmul.f32.gmra.mxu0 %v1501
        %v3185 = vpop.f32.mrf.mxu0
        %v3186 = vadd.f32 0.0, %v3185
        %3187 = vmatmul.f32.gmra.mxu0 %v1503
        %v3188 = vpop.f32.mrf.mxu0
        %v3189 = vadd.f32 0.0, %v3188
        %3190 = vmatmul.f32.gmra.mxu0 %v1505
        %v3191 = vpop.f32.mrf.mxu0
        %v3192 = vadd.f32 0.0, %v3191
        %3193 = vmatmul.f32.gmra.mxu0 %v1507
        %v3194 = vpop.f32.mrf.mxu0
        %v3195 = vadd.f32 0.0, %v3194
        %3196 = vmatmul.f32.gmra.mxu0 %v1509
        %v3197 = vpop.f32.mrf.mxu0
        %v3198 = vadd.f32 0.0, %v3197
        %3199 = vmatmul.f32.gmra.mxu0 %v1511
        %v3200 = vpop.f32.mrf.mxu0
        %v3201 = vadd.f32 0.0, %v3200
        %3202 = vmatmul.f32.gmra.mxu0 %v2302
        %v3203 = vpop.f32.mrf.mxu0
        %v3204 = vadd.f32 0.0, %v3203
        %3205 = vmatmul.f32.gmra.mxu0 %v2304
        %v3206 = vpop.f32.mrf.mxu0
        %v3207 = vadd.f32 0.0, %v3206
        %3208 = vmatmul.f32.gmra.mxu0 %v3095
        %v3209 = vpop.f32.mrf.mxu0
        %v3210 = vadd.f32 0.0, %v3209
        %3211 = vmatmul.f32.gmra.mxu0 %v3097
        %v3212 = vpop.f32.mrf.mxu0
        %v3213 = vadd.f32 0.0, %v3212
        %3214 = vdwg.mxu0
        %v3215 = vadd.f32 %v3056, %v3120
        %v3216 = vadd.f32 %v3057, %v3123
        %v3217 = vadd.f32 %v3058, %v3126
        %v3218 = vadd.f32 %v3059, %v3129
        %v3219 = vadd.f32 %v3060, %v3132
        %v3220 = vadd.f32 %v3061, %v3135
        %v3221 = vadd.f32 %v3062, %v3138
        %v3222 = vadd.f32 %v3063, %v3141
        %v3223 = vadd.f32 %v3064, %v3144
        %v3224 = vadd.f32 %v3065, %v3147
        %v3225 = vadd.f32 %v3066, %v3150
        %v3226 = vadd.f32 %v3067, %v3153
        %v3227 = vadd.f32 %v3068, %v3156
        %v3228 = vadd.f32 %v3069, %v3159
        %v3229 = vadd.f32 %v3070, %v3162
        %v3230 = vadd.f32 %v3071, %v3165
        %v3231 = vadd.f32 %v3072, %v3168
        %v3232 = vadd.f32 %v3073, %v3171
        %v3233 = vadd.f32 %v3074, %v3174
        %v3234 = vadd.f32 %v3075, %v3177
        %v3235 = vadd.f32 %v3076, %v3180
        %v3236 = vadd.f32 %v3077, %v3183
        %v3237 = vadd.f32 %v3078, %v3186
        %v3238 = vadd.f32 %v3079, %v3189
        %v3239 = vadd.f32 %v3080, %v3192
        %v3240 = vadd.f32 %v3081, %v3195
        %v3241 = vadd.f32 %v3082, %v3198
        %v3242 = vadd.f32 %v3083, %v3201
        %v3243 = vadd.f32 %v3084, %v3204
        %v3244 = vadd.f32 %v3085, %v3207
        %v3245 = vadd.f32 %v3086, %v3210
        %v3246 = vadd.f32 %v3087, %v3213
        %s3247 = scalar_lea.vmem %s1, 60
        %v3248 = vld [vmem:[%s3247] sm:$0xf]
        %v3250 = vsel %vm415, %v277, 0
        %v3253 = vsel %vm415, %v278, 0
        %v3256 = vsel %vm480, %v3248, 0
        %3258 = vmatpush.msra.mxu0 0.0
        %3259 = vmatpush.msra.mxu0 0.0
        %3260 = vmatpush.msra.mxu0 0.0
        %3261 = vmatpush.msra.mxu0 0.0
        %3262 = vmatpush.msra.mxu0 0.0
        %3263 = vmatpush.msra.mxu0 0.0
        %3264 = vmatpush.msra.mxu0 0.0
        %3265 = vmatpush.msra.mxu0 0.0
        %3266 = vmatpush.msra.mxu0 0.0
        %3267 = vmatpush.msra.mxu0 0.0
        %3268 = vmatpush.msra.mxu0 0.0
        %3269 = vmatpush.msra.mxu0 0.0
        %3270 = vmatpush.msra.mxu0 0.0
        %3271 = vmatpush.msra.mxu0 0.0
        %3272 = vmatpush.msra.mxu0 0.0
        %3273 = vmatpush.msra.mxu0 %v3256
        %3274 = vmatmul.f32.gmra.mxu0 %v609
        %v3275 = vpop.f32.mrf.mxu0
        %v3276 = vadd.f32 0.0, %v3275
        %3277 = vmatmul.f32.gmra.mxu0 %v611
        %v3278 = vpop.f32.mrf.mxu0
        %v3279 = vadd.f32 0.0, %v3278
        %3280 = vmatmul.f32.gmra.mxu0 %v613
        %v3281 = vpop.f32.mrf.mxu0
        %v3282 = vadd.f32 0.0, %v3281
        %3283 = vmatmul.f32.gmra.mxu0 %v615
        %v3284 = vpop.f32.mrf.mxu0
        %v3285 = vadd.f32 0.0, %v3284
        %3286 = vmatmul.f32.gmra.mxu0 %v617
        %v3287 = vpop.f32.mrf.mxu0
        %v3288 = vadd.f32 0.0, %v3287
        %3289 = vmatmul.f32.gmra.mxu0 %v619
        %v3290 = vpop.f32.mrf.mxu0
        %v3291 = vadd.f32 0.0, %v3290
        %3292 = vmatmul.f32.gmra.mxu0 %v621
        %v3293 = vpop.f32.mrf.mxu0
        %v3294 = vadd.f32 0.0, %v3293
        %3295 = vmatmul.f32.gmra.mxu0 %v623
        %v3296 = vpop.f32.mrf.mxu0
        %v3297 = vadd.f32 0.0, %v3296
        %3298 = vmatmul.f32.gmra.mxu0 %v625
        %v3299 = vpop.f32.mrf.mxu0
        %v3300 = vadd.f32 0.0, %v3299
        %3301 = vmatmul.f32.gmra.mxu0 %v627
        %v3302 = vpop.f32.mrf.mxu0
        %v3303 = vadd.f32 0.0, %v3302
        %3304 = vmatmul.f32.gmra.mxu0 %v629
        %v3305 = vpop.f32.mrf.mxu0
        %v3306 = vadd.f32 0.0, %v3305
        %3307 = vmatmul.f32.gmra.mxu0 %v631
        %v3308 = vpop.f32.mrf.mxu0
        %v3309 = vadd.f32 0.0, %v3308
        %3310 = vmatmul.f32.gmra.mxu0 %v633
        %v3311 = vpop.f32.mrf.mxu0
        %v3312 = vadd.f32 0.0, %v3311
        %3313 = vmatmul.f32.gmra.mxu0 %v635
        %v3314 = vpop.f32.mrf.mxu0
        %v3315 = vadd.f32 0.0, %v3314
        %3316 = vmatmul.f32.gmra.mxu0 %v637
        %v3317 = vpop.f32.mrf.mxu0
        %v3318 = vadd.f32 0.0, %v3317
        %3319 = vmatmul.f32.gmra.mxu0 %v639
        %v3320 = vpop.f32.mrf.mxu0
        %v3321 = vadd.f32 0.0, %v3320
        %3322 = vmatmul.f32.gmra.mxu0 %v641
        %v3323 = vpop.f32.mrf.mxu0
        %v3324 = vadd.f32 0.0, %v3323
        %3325 = vmatmul.f32.gmra.mxu0 %v643
        %v3326 = vpop.f32.mrf.mxu0
        %v3327 = vadd.f32 0.0, %v3326
        %3328 = vmatmul.f32.gmra.mxu0 %v645
        %v3329 = vpop.f32.mrf.mxu0
        %v3330 = vadd.f32 0.0, %v3329
        %3331 = vmatmul.f32.gmra.mxu0 %v647
        %v3332 = vpop.f32.mrf.mxu0
        %v3333 = vadd.f32 0.0, %v3332
        %3334 = vmatmul.f32.gmra.mxu0 %v649
        %v3335 = vpop.f32.mrf.mxu0
        %v3336 = vadd.f32 0.0, %v3335
        %3337 = vmatmul.f32.gmra.mxu0 %v651
        %v3338 = vpop.f32.mrf.mxu0
        %v3339 = vadd.f32 0.0, %v3338
        %3340 = vmatmul.f32.gmra.mxu0 %v653
        %v3341 = vpop.f32.mrf.mxu0
        %v3342 = vadd.f32 0.0, %v3341
        %3343 = vmatmul.f32.gmra.mxu0 %v655
        %v3344 = vpop.f32.mrf.mxu0
        %v3345 = vadd.f32 0.0, %v3344
        %3346 = vmatmul.f32.gmra.mxu0 %v657
        %v3347 = vpop.f32.mrf.mxu0
        %v3348 = vadd.f32 0.0, %v3347
        %3349 = vmatmul.f32.gmra.mxu0 %v659
        %v3350 = vpop.f32.mrf.mxu0
        %v3351 = vadd.f32 0.0, %v3350
        %3352 = vmatmul.f32.gmra.mxu0 %v1664
        %v3353 = vpop.f32.mrf.mxu0
        %v3354 = vadd.f32 0.0, %v3353
        %3355 = vmatmul.f32.gmra.mxu0 %v1667
        %v3356 = vpop.f32.mrf.mxu0
        %v3357 = vadd.f32 0.0, %v3356
        %3358 = vmatmul.f32.gmra.mxu0 %v2457
        %v3359 = vpop.f32.mrf.mxu0
        %v3360 = vadd.f32 0.0, %v3359
        %3361 = vmatmul.f32.gmra.mxu0 %v2460
        %v3362 = vpop.f32.mrf.mxu0
        %v3363 = vadd.f32 0.0, %v3362
        %3364 = vmatmul.f32.gmra.mxu0 %v3250
        %v3365 = vpop.f32.mrf.mxu0
        %v3366 = vadd.f32 0.0, %v3365
        %3367 = vmatmul.f32.gmra.mxu0 %v3253
        %v3368 = vpop.f32.mrf.mxu0
        %v3369 = vadd.f32 0.0, %v3368
        %3370 = vdwg.mxu0
        %v3371 = vadd.f32 %v3215, %v3276
        %v3372 = vadd.f32 %v3216, %v3279
        %v3373 = vadd.f32 %v3217, %v3282
        %v3374 = vadd.f32 %v3218, %v3285
        %v3375 = vadd.f32 %v3219, %v3288
        %v3376 = vadd.f32 %v3220, %v3291
        %v3377 = vadd.f32 %v3221, %v3294
        %v3378 = vadd.f32 %v3222, %v3297
        %v3379 = vadd.f32 %v3223, %v3300
        %v3380 = vadd.f32 %v3224, %v3303
        %v3381 = vadd.f32 %v3225, %v3306
        %v3382 = vadd.f32 %v3226, %v3309
        %v3383 = vadd.f32 %v3227, %v3312
        %v3384 = vadd.f32 %v3228, %v3315
        %v3385 = vadd.f32 %v3229, %v3318
        %v3386 = vadd.f32 %v3230, %v3321
        %v3387 = vadd.f32 %v3231, %v3324
        %v3388 = vadd.f32 %v3232, %v3327
        %v3389 = vadd.f32 %v3233, %v3330
        %v3390 = vadd.f32 %v3234, %v3333
        %v3391 = vadd.f32 %v3235, %v3336
        %v3392 = vadd.f32 %v3236, %v3339
        %v3393 = vadd.f32 %v3237, %v3342
        %v3394 = vadd.f32 %v3238, %v3345
        %v3395 = vadd.f32 %v3239, %v3348
        %v3396 = vadd.f32 %v3240, %v3351
        %v3397 = vadd.f32 %v3241, %v3354
        %v3398 = vadd.f32 %v3242, %v3357
        %v3399 = vadd.f32 %v3243, %v3360
        %v3400 = vadd.f32 %v3244, %v3363
        %v3401 = vadd.f32 %v3245, %v3366
        %v3402 = vadd.f32 %v3246, %v3369
        %v3404 = vrot.slane %v277, 1
        %v3405 = vrot.slane %v278, 1
        %v3406 = vsel %vm332, %v3404, %v3405
        %v3407 = vrot.slane %v279, 1
        %v3408 = vsel %vm332, %v3405, %v3407
        %s3409 = scalar_lea.vmem %s1, 64
        %v3410 = vld [vmem:[%s3409] sm:$0xf]
        %v3411 = vsel %vm415, %v3406, 0
        %v3413 = vsel %vm415, %v3408, 0
        %v3416 = vsel %vm480, %v3410, 0
        %3418 = vmatpush.msra.mxu0 0.0
        %3419 = vmatpush.msra.mxu0 0.0
        %3420 = vmatpush.msra.mxu0 0.0
        %3421 = vmatpush.msra.mxu0 0.0
        %3422 = vmatpush.msra.mxu0 0.0
        %3423 = vmatpush.msra.mxu0 0.0
        %3424 = vmatpush.msra.mxu0 0.0
        %3425 = vmatpush.msra.mxu0 0.0
        %3426 = vmatpush.msra.mxu0 0.0
        %3427 = vmatpush.msra.mxu0 0.0
        %3428 = vmatpush.msra.mxu0 0.0
        %3429 = vmatpush.msra.mxu0 0.0
        %3430 = vmatpush.msra.mxu0 0.0
        %3431 = vmatpush.msra.mxu0 0.0
        %3432 = vmatpush.msra.mxu0 0.0
        %3433 = vmatpush.msra.mxu0 %v3416
        %3434 = vmatmul.f32.gmra.mxu0 %v428
        %v3435 = vpop.f32.mrf.mxu0
        %v3436 = vadd.f32 0.0, %v3435
        %3437 = vmatmul.f32.gmra.mxu0 %v430
        %v3438 = vpop.f32.mrf.mxu0
        %v3439 = vadd.f32 0.0, %v3438
        %3440 = vmatmul.f32.gmra.mxu0 %v432
        %v3441 = vpop.f32.mrf.mxu0
        %v3442 = vadd.f32 0.0, %v3441
        %3443 = vmatmul.f32.gmra.mxu0 %v434
        %v3444 = vpop.f32.mrf.mxu0
        %v3445 = vadd.f32 0.0, %v3444
        %3446 = vmatmul.f32.gmra.mxu0 %v436
        %v3447 = vpop.f32.mrf.mxu0
        %v3448 = vadd.f32 0.0, %v3447
        %3449 = vmatmul.f32.gmra.mxu0 %v438
        %v3450 = vpop.f32.mrf.mxu0
        %v3451 = vadd.f32 0.0, %v3450
        %3452 = vmatmul.f32.gmra.mxu0 %v440
        %v3453 = vpop.f32.mrf.mxu0
        %v3454 = vadd.f32 0.0, %v3453
        %3455 = vmatmul.f32.gmra.mxu0 %v442
        %v3456 = vpop.f32.mrf.mxu0
        %v3457 = vadd.f32 0.0, %v3456
        %3458 = vmatmul.f32.gmra.mxu0 %v444
        %v3459 = vpop.f32.mrf.mxu0
        %v3460 = vadd.f32 0.0, %v3459
        %3461 = vmatmul.f32.gmra.mxu0 %v446
        %v3462 = vpop.f32.mrf.mxu0
        %v3463 = vadd.f32 0.0, %v3462
        %3464 = vmatmul.f32.gmra.mxu0 %v448
        %v3465 = vpop.f32.mrf.mxu0
        %v3466 = vadd.f32 0.0, %v3465
        %3467 = vmatmul.f32.gmra.mxu0 %v450
        %v3468 = vpop.f32.mrf.mxu0
        %v3469 = vadd.f32 0.0, %v3468
        %3470 = vmatmul.f32.gmra.mxu0 %v452
        %v3471 = vpop.f32.mrf.mxu0
        %v3472 = vadd.f32 0.0, %v3471
        %3473 = vmatmul.f32.gmra.mxu0 %v454
        %v3474 = vpop.f32.mrf.mxu0
        %v3475 = vadd.f32 0.0, %v3474
        %3476 = vmatmul.f32.gmra.mxu0 %v456
        %v3477 = vpop.f32.mrf.mxu0
        %v3478 = vadd.f32 0.0, %v3477
        %3479 = vmatmul.f32.gmra.mxu0 %v458
        %v3480 = vpop.f32.mrf.mxu0
        %v3481 = vadd.f32 0.0, %v3480
        %3482 = vmatmul.f32.gmra.mxu0 %v460
        %v3483 = vpop.f32.mrf.mxu0
        %v3484 = vadd.f32 0.0, %v3483
        %3485 = vmatmul.f32.gmra.mxu0 %v462
        %v3486 = vpop.f32.mrf.mxu0
        %v3487 = vadd.f32 0.0, %v3486
        %3488 = vmatmul.f32.gmra.mxu0 %v464
        %v3489 = vpop.f32.mrf.mxu0
        %v3490 = vadd.f32 0.0, %v3489
        %3491 = vmatmul.f32.gmra.mxu0 %v466
        %v3492 = vpop.f32.mrf.mxu0
        %v3493 = vadd.f32 0.0, %v3492
        %3494 = vmatmul.f32.gmra.mxu0 %v468
        %v3495 = vpop.f32.mrf.mxu0
        %v3496 = vadd.f32 0.0, %v3495
        %3497 = vmatmul.f32.gmra.mxu0 %v470
        %v3498 = vpop.f32.mrf.mxu0
        %v3499 = vadd.f32 0.0, %v3498
        %3500 = vmatmul.f32.gmra.mxu0 %v472
        %v3501 = vpop.f32.mrf.mxu0
        %v3502 = vadd.f32 0.0, %v3501
        %3503 = vmatmul.f32.gmra.mxu0 %v474
        %v3504 = vpop.f32.mrf.mxu0
        %v3505 = vadd.f32 0.0, %v3504
        %3506 = vmatmul.f32.gmra.mxu0 %v476
        %v3507 = vpop.f32.mrf.mxu0
        %v3508 = vadd.f32 0.0, %v3507
        %3509 = vmatmul.f32.gmra.mxu0 %v478
        %v3510 = vpop.f32.mrf.mxu0
        %v3511 = vadd.f32 0.0, %v3510
        %3512 = vmatmul.f32.gmra.mxu0 %v1825
        %v3513 = vpop.f32.mrf.mxu0
        %v3514 = vadd.f32 0.0, %v3513
        %3515 = vmatmul.f32.gmra.mxu0 %v1827
        %v3516 = vpop.f32.mrf.mxu0
        %v3517 = vadd.f32 0.0, %v3516
        %3518 = vmatmul.f32.gmra.mxu0 %v2618
        %v3519 = vpop.f32.mrf.mxu0
        %v3520 = vadd.f32 0.0, %v3519
        %3521 = vmatmul.f32.gmra.mxu0 %v2620
        %v3522 = vpop.f32.mrf.mxu0
        %v3523 = vadd.f32 0.0, %v3522
        %3524 = vmatmul.f32.gmra.mxu0 %v3411
        %v3525 = vpop.f32.mrf.mxu0
        %v3526 = vadd.f32 0.0, %v3525
        %3527 = vmatmul.f32.gmra.mxu0 %v3413
        %v3528 = vpop.f32.mrf.mxu0
        %v3529 = vadd.f32 0.0, %v3528
        %3530 = vdwg.mxu0
        %v3531 = vadd.f32 %v3371, %v3436
        %v3532 = vadd.f32 %v3372, %v3439
        %v3533 = vadd.f32 %v3373, %v3442
        %v3534 = vadd.f32 %v3374, %v3445
        %v3535 = vadd.f32 %v3375, %v3448
        %v3536 = vadd.f32 %v3376, %v3451
        %v3537 = vadd.f32 %v3377, %v3454
        %v3538 = vadd.f32 %v3378, %v3457
        %v3539 = vadd.f32 %v3379, %v3460
        %v3540 = vadd.f32 %v3380, %v3463
        %v3541 = vadd.f32 %v3381, %v3466
        %v3542 = vadd.f32 %v3382, %v3469
        %v3543 = vadd.f32 %v3383, %v3472
        %v3544 = vadd.f32 %v3384, %v3475
        %v3545 = vadd.f32 %v3385, %v3478
        %v3546 = vadd.f32 %v3386, %v3481
        %v3547 = vadd.f32 %v3387, %v3484
        %v3548 = vadd.f32 %v3388, %v3487
        %v3549 = vadd.f32 %v3389, %v3490
        %v3550 = vadd.f32 %v3390, %v3493
        %v3551 = vadd.f32 %v3391, %v3496
        %v3552 = vadd.f32 %v3392, %v3499
        %v3553 = vadd.f32 %v3393, %v3502
        %v3554 = vadd.f32 %v3394, %v3505
        %v3555 = vadd.f32 %v3395, %v3508
        %v3556 = vadd.f32 %v3396, %v3511
        %v3557 = vadd.f32 %v3397, %v3514
        %v3558 = vadd.f32 %v3398, %v3517
        %v3559 = vadd.f32 %v3399, %v3520
        %v3560 = vadd.f32 %v3400, %v3523
        %v3561 = vadd.f32 %v3401, %v3526
        %v3562 = vadd.f32 %v3402, %v3529
        %v3563 = vrot.slane %v277, 2
        %v3564 = vrot.slane %v278, 2
        %v3565 = vsel %vm777, %v3563, %v3564
        %v3566 = vrot.slane %v279, 2
        %v3567 = vsel %vm777, %v3564, %v3566
        %s3568 = scalar_lea.vmem %s1, 68
        %v3569 = vld [vmem:[%s3568] sm:$0xf]
        %v3570 = vsel %vm415, %v3565, 0
        %v3572 = vsel %vm415, %v3567, 0
        %v3575 = vsel %vm480, %v3569, 0
        %3577 = vmatpush.msra.mxu0 0.0
        %3578 = vmatpush.msra.mxu0 0.0
        %3579 = vmatpush.msra.mxu0 0.0
        %3580 = vmatpush.msra.mxu0 0.0
        %3581 = vmatpush.msra.mxu0 0.0
        %3582 = vmatpush.msra.mxu0 0.0
        %3583 = vmatpush.msra.mxu0 0.0
        %3584 = vmatpush.msra.mxu0 0.0
        %3585 = vmatpush.msra.mxu0 0.0
        %3586 = vmatpush.msra.mxu0 0.0
        %3587 = vmatpush.msra.mxu0 0.0
        %3588 = vmatpush.msra.mxu0 0.0
        %3589 = vmatpush.msra.mxu0 0.0
        %3590 = vmatpush.msra.mxu0 0.0
        %3591 = vmatpush.msra.mxu0 0.0
        %3592 = vmatpush.msra.mxu0 %v3575
        %3593 = vmatmul.f32.gmra.mxu0 %v872
        %v3594 = vpop.f32.mrf.mxu0
        %v3595 = vadd.f32 0.0, %v3594
        %3596 = vmatmul.f32.gmra.mxu0 %v874
        %v3597 = vpop.f32.mrf.mxu0
        %v3598 = vadd.f32 0.0, %v3597
        %3599 = vmatmul.f32.gmra.mxu0 %v876
        %v3600 = vpop.f32.mrf.mxu0
        %v3601 = vadd.f32 0.0, %v3600
        %3602 = vmatmul.f32.gmra.mxu0 %v878
        %v3603 = vpop.f32.mrf.mxu0
        %v3604 = vadd.f32 0.0, %v3603
        %3605 = vmatmul.f32.gmra.mxu0 %v880
        %v3606 = vpop.f32.mrf.mxu0
        %v3607 = vadd.f32 0.0, %v3606
        %3608 = vmatmul.f32.gmra.mxu0 %v882
        %v3609 = vpop.f32.mrf.mxu0
        %v3610 = vadd.f32 0.0, %v3609
        %3611 = vmatmul.f32.gmra.mxu0 %v884
        %v3612 = vpop.f32.mrf.mxu0
        %v3613 = vadd.f32 0.0, %v3612
        %3614 = vmatmul.f32.gmra.mxu0 %v886
        %v3615 = vpop.f32.mrf.mxu0
        %v3616 = vadd.f32 0.0, %v3615
        %3617 = vmatmul.f32.gmra.mxu0 %v888
        %v3618 = vpop.f32.mrf.mxu0
        %v3619 = vadd.f32 0.0, %v3618
        %3620 = vmatmul.f32.gmra.mxu0 %v890
        %v3621 = vpop.f32.mrf.mxu0
        %v3622 = vadd.f32 0.0, %v3621
        %3623 = vmatmul.f32.gmra.mxu0 %v892
        %v3624 = vpop.f32.mrf.mxu0
        %v3625 = vadd.f32 0.0, %v3624
        %3626 = vmatmul.f32.gmra.mxu0 %v894
        %v3627 = vpop.f32.mrf.mxu0
        %v3628 = vadd.f32 0.0, %v3627
        %3629 = vmatmul.f32.gmra.mxu0 %v896
        %v3630 = vpop.f32.mrf.mxu0
        %v3631 = vadd.f32 0.0, %v3630
        %3632 = vmatmul.f32.gmra.mxu0 %v898
        %v3633 = vpop.f32.mrf.mxu0
        %v3634 = vadd.f32 0.0, %v3633
        %3635 = vmatmul.f32.gmra.mxu0 %v900
        %v3636 = vpop.f32.mrf.mxu0
        %v3637 = vadd.f32 0.0, %v3636
        %3638 = vmatmul.f32.gmra.mxu0 %v902
        %v3639 = vpop.f32.mrf.mxu0
        %v3640 = vadd.f32 0.0, %v3639
        %3641 = vmatmul.f32.gmra.mxu0 %v904
        %v3642 = vpop.f32.mrf.mxu0
        %v3643 = vadd.f32 0.0, %v3642
        %3644 = vmatmul.f32.gmra.mxu0 %v906
        %v3645 = vpop.f32.mrf.mxu0
        %v3646 = vadd.f32 0.0, %v3645
        %3647 = vmatmul.f32.gmra.mxu0 %v908
        %v3648 = vpop.f32.mrf.mxu0
        %v3649 = vadd.f32 0.0, %v3648
        %3650 = vmatmul.f32.gmra.mxu0 %v910
        %v3651 = vpop.f32.mrf.mxu0
        %v3652 = vadd.f32 0.0, %v3651
        %3653 = vmatmul.f32.gmra.mxu0 %v912
        %v3654 = vpop.f32.mrf.mxu0
        %v3655 = vadd.f32 0.0, %v3654
        %3656 = vmatmul.f32.gmra.mxu0 %v914
        %v3657 = vpop.f32.mrf.mxu0
        %v3658 = vadd.f32 0.0, %v3657
        %3659 = vmatmul.f32.gmra.mxu0 %v916
        %v3660 = vpop.f32.mrf.mxu0
        %v3661 = vadd.f32 0.0, %v3660
        %3662 = vmatmul.f32.gmra.mxu0 %v918
        %v3663 = vpop.f32.mrf.mxu0
        %v3664 = vadd.f32 0.0, %v3663
        %3665 = vmatmul.f32.gmra.mxu0 %v920
        %v3666 = vpop.f32.mrf.mxu0
        %v3667 = vadd.f32 0.0, %v3666
        %3668 = vmatmul.f32.gmra.mxu0 %v922
        %v3669 = vpop.f32.mrf.mxu0
        %v3670 = vadd.f32 0.0, %v3669
        %3671 = vmatmul.f32.gmra.mxu0 %v1984
        %v3672 = vpop.f32.mrf.mxu0
        %v3673 = vadd.f32 0.0, %v3672
        %3674 = vmatmul.f32.gmra.mxu0 %v1986
        %v3675 = vpop.f32.mrf.mxu0
        %v3676 = vadd.f32 0.0, %v3675
        %3677 = vmatmul.f32.gmra.mxu0 %v2777
        %v3678 = vpop.f32.mrf.mxu0
        %v3679 = vadd.f32 0.0, %v3678
        %3680 = vmatmul.f32.gmra.mxu0 %v2779
        %v3681 = vpop.f32.mrf.mxu0
        %v3682 = vadd.f32 0.0, %v3681
        %3683 = vmatmul.f32.gmra.mxu0 %v3570
        %v3684 = vpop.f32.mrf.mxu0
        %v3685 = vadd.f32 0.0, %v3684
        %3686 = vmatmul.f32.gmra.mxu0 %v3572
        %v3687 = vpop.f32.mrf.mxu0
        %v3688 = vadd.f32 0.0, %v3687
        %3689 = vdwg.mxu0
        %v3690 = vadd.f32 %v3531, %v3595
        %v3691 = vadd.f32 %v3532, %v3598
        %v3692 = vadd.f32 %v3533, %v3601
        %v3693 = vadd.f32 %v3534, %v3604
        %v3694 = vadd.f32 %v3535, %v3607
        %v3695 = vadd.f32 %v3536, %v3610
        %v3696 = vadd.f32 %v3537, %v3613
        %v3697 = vadd.f32 %v3538, %v3616
        %v3698 = vadd.f32 %v3539, %v3619
        %v3699 = vadd.f32 %v3540, %v3622
        %v3700 = vadd.f32 %v3541, %v3625
        %v3701 = vadd.f32 %v3542, %v3628
        %v3702 = vadd.f32 %v3543, %v3631
        %v3703 = vadd.f32 %v3544, %v3634
        %v3704 = vadd.f32 %v3545, %v3637
        %v3705 = vadd.f32 %v3546, %v3640
        %v3706 = vadd.f32 %v3547, %v3643
        %v3707 = vadd.f32 %v3548, %v3646
        %v3708 = vadd.f32 %v3549, %v3649
        %v3709 = vadd.f32 %v3550, %v3652
        %v3710 = vadd.f32 %v3551, %v3655
        %v3711 = vadd.f32 %v3552, %v3658
        %v3712 = vadd.f32 %v3553, %v3661
        %v3713 = vadd.f32 %v3554, %v3664
        %v3714 = vadd.f32 %v3555, %v3667
        %v3715 = vadd.f32 %v3556, %v3670
        %v3716 = vadd.f32 %v3557, %v3673
        %v3717 = vadd.f32 %v3558, %v3676
        %v3718 = vadd.f32 %v3559, %v3679
        %v3719 = vadd.f32 %v3560, %v3682
        %v3720 = vadd.f32 %v3561, %v3685
        %v3721 = vadd.f32 %v3562, %v3688
        %v3722 = vrot.slane %v277, 3
        %v3723 = vrot.slane %v278, 3
        %v3724 = vsel %vm1072, %v3722, %v3723
        %v3725 = vrot.slane %v279, 3
        %v3726 = vsel %vm1072, %v3723, %v3725
        %s3727 = scalar_lea.vmem %s1, 72
        %v3728 = vld [vmem:[%s3727] sm:$0xf]
        %v3729 = vsel %vm415, %v3724, 0
        %v3731 = vsel %vm415, %v3726, 0
        %v3734 = vsel %vm480, %v3728, 0
        %3736 = vmatpush.msra.mxu0 0.0
        %3737 = vmatpush.msra.mxu0 0.0
        %3738 = vmatpush.msra.mxu0 0.0
        %3739 = vmatpush.msra.mxu0 0.0
        %3740 = vmatpush.msra.mxu0 0.0
        %3741 = vmatpush.msra.mxu0 0.0
        %3742 = vmatpush.msra.mxu0 0.0
        %3743 = vmatpush.msra.mxu0 0.0
        %3744 = vmatpush.msra.mxu0 0.0
        %3745 = vmatpush.msra.mxu0 0.0
        %3746 = vmatpush.msra.mxu0 0.0
        %3747 = vmatpush.msra.mxu0 0.0
        %3748 = vmatpush.msra.mxu0 0.0
        %3749 = vmatpush.msra.mxu0 0.0
        %3750 = vmatpush.msra.mxu0 0.0
        %3751 = vmatpush.msra.mxu0 %v3734
        %3752 = vmatmul.f32.gmra.mxu0 %v1167
        %v3753 = vpop.f32.mrf.mxu0
        %v3754 = vadd.f32 0.0, %v3753
        %3755 = vmatmul.f32.gmra.mxu0 %v1169
        %v3756 = vpop.f32.mrf.mxu0
        %v3757 = vadd.f32 0.0, %v3756
        %3758 = vmatmul.f32.gmra.mxu0 %v1171
        %v3759 = vpop.f32.mrf.mxu0
        %v3760 = vadd.f32 0.0, %v3759
        %3761 = vmatmul.f32.gmra.mxu0 %v1173
        %v3762 = vpop.f32.mrf.mxu0
        %v3763 = vadd.f32 0.0, %v3762
        %3764 = vmatmul.f32.gmra.mxu0 %v1175
        %v3765 = vpop.f32.mrf.mxu0
        %v3766 = vadd.f32 0.0, %v3765
        %3767 = vmatmul.f32.gmra.mxu0 %v1177
        %v3768 = vpop.f32.mrf.mxu0
        %v3769 = vadd.f32 0.0, %v3768
        %3770 = vmatmul.f32.gmra.mxu0 %v1179
        %v3771 = vpop.f32.mrf.mxu0
        %v3772 = vadd.f32 0.0, %v3771
        %3773 = vmatmul.f32.gmra.mxu0 %v1181
        %v3774 = vpop.f32.mrf.mxu0
        %v3775 = vadd.f32 0.0, %v3774
        %3776 = vmatmul.f32.gmra.mxu0 %v1183
        %v3777 = vpop.f32.mrf.mxu0
        %v3778 = vadd.f32 0.0, %v3777
        %3779 = vmatmul.f32.gmra.mxu0 %v1185
        %v3780 = vpop.f32.mrf.mxu0
        %v3781 = vadd.f32 0.0, %v3780
        %3782 = vmatmul.f32.gmra.mxu0 %v1187
        %v3783 = vpop.f32.mrf.mxu0
        %v3784 = vadd.f32 0.0, %v3783
        %3785 = vmatmul.f32.gmra.mxu0 %v1189
        %v3786 = vpop.f32.mrf.mxu0
        %v3787 = vadd.f32 0.0, %v3786
        %3788 = vmatmul.f32.gmra.mxu0 %v1191
        %v3789 = vpop.f32.mrf.mxu0
        %v3790 = vadd.f32 0.0, %v3789
        %3791 = vmatmul.f32.gmra.mxu0 %v1193
        %v3792 = vpop.f32.mrf.mxu0
        %v3793 = vadd.f32 0.0, %v3792
        %3794 = vmatmul.f32.gmra.mxu0 %v1195
        %v3795 = vpop.f32.mrf.mxu0
        %v3796 = vadd.f32 0.0, %v3795
        %3797 = vmatmul.f32.gmra.mxu0 %v1197
        %v3798 = vpop.f32.mrf.mxu0
        %v3799 = vadd.f32 0.0, %v3798
        %3800 = vmatmul.f32.gmra.mxu0 %v1199
        %v3801 = vpop.f32.mrf.mxu0
        %v3802 = vadd.f32 0.0, %v3801
        %3803 = vmatmul.f32.gmra.mxu0 %v1201
        %v3804 = vpop.f32.mrf.mxu0
        %v3805 = vadd.f32 0.0, %v3804
        %3806 = vmatmul.f32.gmra.mxu0 %v1203
        %v3807 = vpop.f32.mrf.mxu0
        %v3808 = vadd.f32 0.0, %v3807
        %3809 = vmatmul.f32.gmra.mxu0 %v1205
        %v3810 = vpop.f32.mrf.mxu0
        %v3811 = vadd.f32 0.0, %v3810
        %3812 = vmatmul.f32.gmra.mxu0 %v1207
        %v3813 = vpop.f32.mrf.mxu0
        %v3814 = vadd.f32 0.0, %v3813
        %3815 = vmatmul.f32.gmra.mxu0 %v1209
        %v3816 = vpop.f32.mrf.mxu0
        %v3817 = vadd.f32 0.0, %v3816
        %3818 = vmatmul.f32.gmra.mxu0 %v1211
        %v3819 = vpop.f32.mrf.mxu0
        %v3820 = vadd.f32 0.0, %v3819
        %3821 = vmatmul.f32.gmra.mxu0 %v1213
        %v3822 = vpop.f32.mrf.mxu0
        %v3823 = vadd.f32 0.0, %v3822
        %3824 = vmatmul.f32.gmra.mxu0 %v1215
        %v3825 = vpop.f32.mrf.mxu0
        %v3826 = vadd.f32 0.0, %v3825
        %3827 = vmatmul.f32.gmra.mxu0 %v1217
        %v3828 = vpop.f32.mrf.mxu0
        %v3829 = vadd.f32 0.0, %v3828
        %3830 = vmatmul.f32.gmra.mxu0 %v2143
        %v3831 = vpop.f32.mrf.mxu0
        %v3832 = vadd.f32 0.0, %v3831
        %3833 = vmatmul.f32.gmra.mxu0 %v2145
        %v3834 = vpop.f32.mrf.mxu0
        %v3835 = vadd.f32 0.0, %v3834
        %3836 = vmatmul.f32.gmra.mxu0 %v2936
        %v3837 = vpop.f32.mrf.mxu0
        %v3838 = vadd.f32 0.0, %v3837
        %3839 = vmatmul.f32.gmra.mxu0 %v2938
        %v3840 = vpop.f32.mrf.mxu0
        %v3841 = vadd.f32 0.0, %v3840
        %3842 = vmatmul.f32.gmra.mxu0 %v3729
        %v3843 = vpop.f32.mrf.mxu0
        %v3844 = vadd.f32 0.0, %v3843
        %3845 = vmatmul.f32.gmra.mxu0 %v3731
        %v3846 = vpop.f32.mrf.mxu0
        %v3847 = vadd.f32 0.0, %v3846
        %3848 = vdwg.mxu0
        %v3849 = vadd.f32 %v3690, %v3754
        %v3850 = vadd.f32 %v3691, %v3757
        %v3851 = vadd.f32 %v3692, %v3760
        %v3852 = vadd.f32 %v3693, %v3763
        %v3853 = vadd.f32 %v3694, %v3766
        %v3854 = vadd.f32 %v3695, %v3769
        %v3855 = vadd.f32 %v3696, %v3772
        %v3856 = vadd.f32 %v3697, %v3775
        %v3857 = vadd.f32 %v3698, %v3778
        %v3858 = vadd.f32 %v3699, %v3781
        %v3859 = vadd.f32 %v3700, %v3784
        %v3860 = vadd.f32 %v3701, %v3787
        %v3861 = vadd.f32 %v3702, %v3790
        %v3862 = vadd.f32 %v3703, %v3793
        %v3863 = vadd.f32 %v3704, %v3796
        %v3864 = vadd.f32 %v3705, %v3799
        %v3865 = vadd.f32 %v3706, %v3802
        %v3866 = vadd.f32 %v3707, %v3805
        %v3867 = vadd.f32 %v3708, %v3808
        %v3868 = vadd.f32 %v3709, %v3811
        %v3869 = vadd.f32 %v3710, %v3814
        %v3870 = vadd.f32 %v3711, %v3817
        %v3871 = vadd.f32 %v3712, %v3820
        %v3872 = vadd.f32 %v3713, %v3823
        %v3873 = vadd.f32 %v3714, %v3826
        %v3874 = vadd.f32 %v3715, %v3829
        %v3875 = vadd.f32 %v3716, %v3832
        %v3876 = vadd.f32 %v3717, %v3835
        %v3877 = vadd.f32 %v3718, %v3838
        %v3878 = vadd.f32 %v3719, %v3841
        %v3879 = vadd.f32 %v3720, %v3844
        %v3880 = vadd.f32 %v3721, %v3847
        %v3881 = vrot.slane %v277, 4
        %v3882 = vrot.slane %v278, 4
        %v3883 = vsel %vm480, %v3881, %v3882
        %v3884 = vrot.slane %v279, 4
        %v3885 = vsel %vm480, %v3882, %v3884
        %s3886 = scalar_lea.vmem %s1, 76
        %v3887 = vld [vmem:[%s3886] sm:$0xf]
        %v3888 = vsel %vm415, %v3883, 0
        %v3890 = vsel %vm415, %v3885, 0
        %v3893 = vsel %vm480, %v3887, 0
        %3895 = vmatpush.msra.mxu0 0.0
        %3896 = vmatpush.msra.mxu0 0.0
        %3897 = vmatpush.msra.mxu0 0.0
        %3898 = vmatpush.msra.mxu0 0.0
        %3899 = vmatpush.msra.mxu0 0.0
        %3900 = vmatpush.msra.mxu0 0.0
        %3901 = vmatpush.msra.mxu0 0.0
        %3902 = vmatpush.msra.mxu0 0.0
        %3903 = vmatpush.msra.mxu0 0.0
        %3904 = vmatpush.msra.mxu0 0.0
        %3905 = vmatpush.msra.mxu0 0.0
        %3906 = vmatpush.msra.mxu0 0.0
        %3907 = vmatpush.msra.mxu0 0.0
        %3908 = vmatpush.msra.mxu0 0.0
        %3909 = vmatpush.msra.mxu0 0.0
        %3910 = vmatpush.msra.mxu0 %v3893
        %3911 = vmatmul.f32.gmra.mxu0 %v1461
        %v3912 = vpop.f32.mrf.mxu0
        %v3913 = vadd.f32 0.0, %v3912
        %3914 = vmatmul.f32.gmra.mxu0 %v1463
        %v3915 = vpop.f32.mrf.mxu0
        %v3916 = vadd.f32 0.0, %v3915
        %3917 = vmatmul.f32.gmra.mxu0 %v1465
        %v3918 = vpop.f32.mrf.mxu0
        %v3919 = vadd.f32 0.0, %v3918
        %3920 = vmatmul.f32.gmra.mxu0 %v1467
        %v3921 = vpop.f32.mrf.mxu0
        %v3922 = vadd.f32 0.0, %v3921
        %3923 = vmatmul.f32.gmra.mxu0 %v1469
        %v3924 = vpop.f32.mrf.mxu0
        %v3925 = vadd.f32 0.0, %v3924
        %3926 = vmatmul.f32.gmra.mxu0 %v1471
        %v3927 = vpop.f32.mrf.mxu0
        %v3928 = vadd.f32 0.0, %v3927
        %3929 = vmatmul.f32.gmra.mxu0 %v1473
        %v3930 = vpop.f32.mrf.mxu0
        %v3931 = vadd.f32 0.0, %v3930
        %3932 = vmatmul.f32.gmra.mxu0 %v1475
        %v3933 = vpop.f32.mrf.mxu0
        %v3934 = vadd.f32 0.0, %v3933
        %3935 = vmatmul.f32.gmra.mxu0 %v1477
        %v3936 = vpop.f32.mrf.mxu0
        %v3937 = vadd.f32 0.0, %v3936
        %3938 = vmatmul.f32.gmra.mxu0 %v1479
        %v3939 = vpop.f32.mrf.mxu0
        %v3940 = vadd.f32 0.0, %v3939
        %3941 = vmatmul.f32.gmra.mxu0 %v1481
        %v3942 = vpop.f32.mrf.mxu0
        %v3943 = vadd.f32 0.0, %v3942
        %3944 = vmatmul.f32.gmra.mxu0 %v1483
        %v3945 = vpop.f32.mrf.mxu0
        %v3946 = vadd.f32 0.0, %v3945
        %3947 = vmatmul.f32.gmra.mxu0 %v1485
        %v3948 = vpop.f32.mrf.mxu0
        %v3949 = vadd.f32 0.0, %v3948
        %3950 = vmatmul.f32.gmra.mxu0 %v1487
        %v3951 = vpop.f32.mrf.mxu0
        %v3952 = vadd.f32 0.0, %v3951
        %3953 = vmatmul.f32.gmra.mxu0 %v1489
        %v3954 = vpop.f32.mrf.mxu0
        %v3955 = vadd.f32 0.0, %v3954
        %3956 = vmatmul.f32.gmra.mxu0 %v1491
        %v3957 = vpop.f32.mrf.mxu0
        %v3958 = vadd.f32 0.0, %v3957
        %3959 = vmatmul.f32.gmra.mxu0 %v1493
        %v3960 = vpop.f32.mrf.mxu0
        %v3961 = vadd.f32 0.0, %v3960
        %3962 = vmatmul.f32.gmra.mxu0 %v1495
        %v3963 = vpop.f32.mrf.mxu0
        %v3964 = vadd.f32 0.0, %v3963
        %3965 = vmatmul.f32.gmra.mxu0 %v1497
        %v3966 = vpop.f32.mrf.mxu0
        %v3967 = vadd.f32 0.0, %v3966
        %3968 = vmatmul.f32.gmra.mxu0 %v1499
        %v3969 = vpop.f32.mrf.mxu0
        %v3970 = vadd.f32 0.0, %v3969
        %3971 = vmatmul.f32.gmra.mxu0 %v1501
        %v3972 = vpop.f32.mrf.mxu0
        %v3973 = vadd.f32 0.0, %v3972
        %3974 = vmatmul.f32.gmra.mxu0 %v1503
        %v3975 = vpop.f32.mrf.mxu0
        %v3976 = vadd.f32 0.0, %v3975
        %3977 = vmatmul.f32.gmra.mxu0 %v1505
        %v3978 = vpop.f32.mrf.mxu0
        %v3979 = vadd.f32 0.0, %v3978
        %3980 = vmatmul.f32.gmra.mxu0 %v1507
        %v3981 = vpop.f32.mrf.mxu0
        %v3982 = vadd.f32 0.0, %v3981
        %3983 = vmatmul.f32.gmra.mxu0 %v1509
        %v3984 = vpop.f32.mrf.mxu0
        %v3985 = vadd.f32 0.0, %v3984
        %3986 = vmatmul.f32.gmra.mxu0 %v1511
        %v3987 = vpop.f32.mrf.mxu0
        %v3988 = vadd.f32 0.0, %v3987
        %3989 = vmatmul.f32.gmra.mxu0 %v2302
        %v3990 = vpop.f32.mrf.mxu0
        %v3991 = vadd.f32 0.0, %v3990
        %3992 = vmatmul.f32.gmra.mxu0 %v2304
        %v3993 = vpop.f32.mrf.mxu0
        %v3994 = vadd.f32 0.0, %v3993
        %3995 = vmatmul.f32.gmra.mxu0 %v3095
        %v3996 = vpop.f32.mrf.mxu0
        %v3997 = vadd.f32 0.0, %v3996
        %3998 = vmatmul.f32.gmra.mxu0 %v3097
        %v3999 = vpop.f32.mrf.mxu0
        %v4000 = vadd.f32 0.0, %v3999
        %4001 = vmatmul.f32.gmra.mxu0 %v3888
        %v4002 = vpop.f32.mrf.mxu0
        %v4003 = vadd.f32 0.0, %v4002
        %4004 = vmatmul.f32.gmra.mxu0 %v3890
        %v4005 = vpop.f32.mrf.mxu0
        %v4006 = vadd.f32 0.0, %v4005
        %4007 = vdwg.mxu0
        %v4008 = vadd.f32 %v3849, %v3913
        %v4009 = vadd.f32 %v3850, %v3916
        %v4010 = vadd.f32 %v3851, %v3919
        %v4011 = vadd.f32 %v3852, %v3922
        %v4012 = vadd.f32 %v3853, %v3925
        %v4013 = vadd.f32 %v3854, %v3928
        %v4014 = vadd.f32 %v3855, %v3931
        %v4015 = vadd.f32 %v3856, %v3934
        %v4016 = vadd.f32 %v3857, %v3937
        %v4017 = vadd.f32 %v3858, %v3940
        %v4018 = vadd.f32 %v3859, %v3943
        %v4019 = vadd.f32 %v3860, %v3946
        %v4020 = vadd.f32 %v3861, %v3949
        %v4021 = vadd.f32 %v3862, %v3952
        %v4022 = vadd.f32 %v3863, %v3955
        %v4023 = vadd.f32 %v3864, %v3958
        %v4024 = vadd.f32 %v3865, %v3961
        %v4025 = vadd.f32 %v3866, %v3964
        %v4026 = vadd.f32 %v3867, %v3967
        %v4027 = vadd.f32 %v3868, %v3970
        %v4028 = vadd.f32 %v3869, %v3973
        %v4029 = vadd.f32 %v3870, %v3976
        %v4030 = vadd.f32 %v3871, %v3979
        %v4031 = vadd.f32 %v3872, %v3982
        %v4032 = vadd.f32 %v3873, %v3985
        %v4033 = vadd.f32 %v3874, %v3988
        %v4034 = vadd.f32 %v3875, %v3991
        %v4035 = vadd.f32 %v3876, %v3994
        %v4036 = vadd.f32 %v3877, %v3997
        %v4037 = vadd.f32 %v3878, %v4000
        %v4038 = vadd.f32 %v3879, %v4003
        %v4039 = vadd.f32 %v3880, %v4006
        %s4040 = scalar_lea.vmem %s1, 80
        %v4041 = vld [vmem:[%s4040] sm:$0xf]
        %v4043 = vsel %vm415, %v280, 0
        %v4046 = vsel %vm415, %v281, 0
        %v4049 = vsel %vm480, %v4041, 0
        %4051 = vmatpush.msra.mxu0 0.0
        %4052 = vmatpush.msra.mxu0 0.0
        %4053 = vmatpush.msra.mxu0 0.0
        %4054 = vmatpush.msra.mxu0 0.0
        %4055 = vmatpush.msra.mxu0 0.0
        %4056 = vmatpush.msra.mxu0 0.0
        %4057 = vmatpush.msra.mxu0 0.0
        %4058 = vmatpush.msra.mxu0 0.0
        %4059 = vmatpush.msra.mxu0 0.0
        %4060 = vmatpush.msra.mxu0 0.0
        %4061 = vmatpush.msra.mxu0 0.0
        %4062 = vmatpush.msra.mxu0 0.0
        %4063 = vmatpush.msra.mxu0 0.0
        %4064 = vmatpush.msra.mxu0 0.0
        %4065 = vmatpush.msra.mxu0 0.0
        %4066 = vmatpush.msra.mxu0 %v4049
        %4067 = vmatmul.f32.gmra.mxu0 %v613
        %v4068 = vpop.f32.mrf.mxu0
        %v4069 = vadd.f32 0.0, %v4068
        %4070 = vmatmul.f32.gmra.mxu0 %v615
        %v4071 = vpop.f32.mrf.mxu0
        %v4072 = vadd.f32 0.0, %v4071
        %4073 = vmatmul.f32.gmra.mxu0 %v617
        %v4074 = vpop.f32.mrf.mxu0
        %v4075 = vadd.f32 0.0, %v4074
        %4076 = vmatmul.f32.gmra.mxu0 %v619
        %v4077 = vpop.f32.mrf.mxu0
        %v4078 = vadd.f32 0.0, %v4077
        %4079 = vmatmul.f32.gmra.mxu0 %v621
        %v4080 = vpop.f32.mrf.mxu0
        %v4081 = vadd.f32 0.0, %v4080
        %4082 = vmatmul.f32.gmra.mxu0 %v623
        %v4083 = vpop.f32.mrf.mxu0
        %v4084 = vadd.f32 0.0, %v4083
        %4085 = vmatmul.f32.gmra.mxu0 %v625
        %v4086 = vpop.f32.mrf.mxu0
        %v4087 = vadd.f32 0.0, %v4086
        %4088 = vmatmul.f32.gmra.mxu0 %v627
        %v4089 = vpop.f32.mrf.mxu0
        %v4090 = vadd.f32 0.0, %v4089
        %4091 = vmatmul.f32.gmra.mxu0 %v629
        %v4092 = vpop.f32.mrf.mxu0
        %v4093 = vadd.f32 0.0, %v4092
        %4094 = vmatmul.f32.gmra.mxu0 %v631
        %v4095 = vpop.f32.mrf.mxu0
        %v4096 = vadd.f32 0.0, %v4095
        %4097 = vmatmul.f32.gmra.mxu0 %v633
        %v4098 = vpop.f32.mrf.mxu0
        %v4099 = vadd.f32 0.0, %v4098
        %4100 = vmatmul.f32.gmra.mxu0 %v635
        %v4101 = vpop.f32.mrf.mxu0
        %v4102 = vadd.f32 0.0, %v4101
        %4103 = vmatmul.f32.gmra.mxu0 %v637
        %v4104 = vpop.f32.mrf.mxu0
        %v4105 = vadd.f32 0.0, %v4104
        %4106 = vmatmul.f32.gmra.mxu0 %v639
        %v4107 = vpop.f32.mrf.mxu0
        %v4108 = vadd.f32 0.0, %v4107
        %4109 = vmatmul.f32.gmra.mxu0 %v641
        %v4110 = vpop.f32.mrf.mxu0
        %v4111 = vadd.f32 0.0, %v4110
        %4112 = vmatmul.f32.gmra.mxu0 %v643
        %v4113 = vpop.f32.mrf.mxu0
        %v4114 = vadd.f32 0.0, %v4113
        %4115 = vmatmul.f32.gmra.mxu0 %v645
        %v4116 = vpop.f32.mrf.mxu0
        %v4117 = vadd.f32 0.0, %v4116
        %4118 = vmatmul.f32.gmra.mxu0 %v647
        %v4119 = vpop.f32.mrf.mxu0
        %v4120 = vadd.f32 0.0, %v4119
        %4121 = vmatmul.f32.gmra.mxu0 %v649
        %v4122 = vpop.f32.mrf.mxu0
        %v4123 = vadd.f32 0.0, %v4122
        %4124 = vmatmul.f32.gmra.mxu0 %v651
        %v4125 = vpop.f32.mrf.mxu0
        %v4126 = vadd.f32 0.0, %v4125
        %4127 = vmatmul.f32.gmra.mxu0 %v653
        %v4128 = vpop.f32.mrf.mxu0
        %v4129 = vadd.f32 0.0, %v4128
        %4130 = vmatmul.f32.gmra.mxu0 %v655
        %v4131 = vpop.f32.mrf.mxu0
        %v4132 = vadd.f32 0.0, %v4131
        %4133 = vmatmul.f32.gmra.mxu0 %v657
        %v4134 = vpop.f32.mrf.mxu0
        %v4135 = vadd.f32 0.0, %v4134
        %4136 = vmatmul.f32.gmra.mxu0 %v659
        %v4137 = vpop.f32.mrf.mxu0
        %v4138 = vadd.f32 0.0, %v4137
        %4139 = vmatmul.f32.gmra.mxu0 %v1664
        %v4140 = vpop.f32.mrf.mxu0
        %v4141 = vadd.f32 0.0, %v4140
        %4142 = vmatmul.f32.gmra.mxu0 %v1667
        %v4143 = vpop.f32.mrf.mxu0
        %v4144 = vadd.f32 0.0, %v4143
        %4145 = vmatmul.f32.gmra.mxu0 %v2457
        %v4146 = vpop.f32.mrf.mxu0
        %v4147 = vadd.f32 0.0, %v4146
        %4148 = vmatmul.f32.gmra.mxu0 %v2460
        %v4149 = vpop.f32.mrf.mxu0
        %v4150 = vadd.f32 0.0, %v4149
        %4151 = vmatmul.f32.gmra.mxu0 %v3250
        %v4152 = vpop.f32.mrf.mxu0
        %v4153 = vadd.f32 0.0, %v4152
        %4154 = vmatmul.f32.gmra.mxu0 %v3253
        %v4155 = vpop.f32.mrf.mxu0
        %v4156 = vadd.f32 0.0, %v4155
        %4157 = vmatmul.f32.gmra.mxu0 %v4043
        %v4158 = vpop.f32.mrf.mxu0
        %v4159 = vadd.f32 0.0, %v4158
        %4160 = vmatmul.f32.gmra.mxu0 %v4046
        %v4161 = vpop.f32.mrf.mxu0
        %v4162 = vadd.f32 0.0, %v4161
        %4163 = vdwg.mxu0
        %v4164 = vadd.f32 %v4008, %v4069
        %v4165 = vadd.f32 %v4009, %v4072
        %v4166 = vadd.f32 %v4010, %v4075
        %v4167 = vadd.f32 %v4011, %v4078
        %v4168 = vadd.f32 %v4012, %v4081
        %v4169 = vadd.f32 %v4013, %v4084
        %v4170 = vadd.f32 %v4014, %v4087
        %v4171 = vadd.f32 %v4015, %v4090
        %v4172 = vadd.f32 %v4016, %v4093
        %v4173 = vadd.f32 %v4017, %v4096
        %v4174 = vadd.f32 %v4018, %v4099
        %v4175 = vadd.f32 %v4019, %v4102
        %v4176 = vadd.f32 %v4020, %v4105
        %v4177 = vadd.f32 %v4021, %v4108
        %v4178 = vadd.f32 %v4022, %v4111
        %v4179 = vadd.f32 %v4023, %v4114
        %v4180 = vadd.f32 %v4024, %v4117
        %v4181 = vadd.f32 %v4025, %v4120
        %v4182 = vadd.f32 %v4026, %v4123
        %v4183 = vadd.f32 %v4027, %v4126
        %v4184 = vadd.f32 %v4028, %v4129
        %v4185 = vadd.f32 %v4029, %v4132
        %v4186 = vadd.f32 %v4030, %v4135
        %v4187 = vadd.f32 %v4031, %v4138
        %v4188 = vadd.f32 %v4032, %v4141
        %v4189 = vadd.f32 %v4033, %v4144
        %v4190 = vadd.f32 %v4034, %v4147
        %v4191 = vadd.f32 %v4035, %v4150
        %v4192 = vadd.f32 %v4036, %v4153
        %v4193 = vadd.f32 %v4037, %v4156
        %v4194 = vadd.f32 %v4038, %v4159
        %v4195 = vadd.f32 %v4039, %v4162
        %v4197 = vrot.slane %v280, 1
        %v4198 = vrot.slane %v281, 1
        %v4199 = vsel %vm332, %v4197, %v4198
        %v4200 = vrot.slane %v282, 1
        %v4201 = vsel %vm332, %v4198, %v4200
        %s4202 = scalar_lea.vmem %s1, 84
        %v4203 = vld [vmem:[%s4202] sm:$0xf]
        %v4204 = vsel %vm415, %v4199, 0
        %v4206 = vsel %vm415, %v4201, 0
        %v4209 = vsel %vm480, %v4203, 0
        %4211 = vmatpush.msra.mxu0 0.0
        %4212 = vmatpush.msra.mxu0 0.0
        %4213 = vmatpush.msra.mxu0 0.0
        %4214 = vmatpush.msra.mxu0 0.0
        %4215 = vmatpush.msra.mxu0 0.0
        %4216 = vmatpush.msra.mxu0 0.0
        %4217 = vmatpush.msra.mxu0 0.0
        %4218 = vmatpush.msra.mxu0 0.0
        %4219 = vmatpush.msra.mxu0 0.0
        %4220 = vmatpush.msra.mxu0 0.0
        %4221 = vmatpush.msra.mxu0 0.0
        %4222 = vmatpush.msra.mxu0 0.0
        %4223 = vmatpush.msra.mxu0 0.0
        %4224 = vmatpush.msra.mxu0 0.0
        %4225 = vmatpush.msra.mxu0 0.0
        %4226 = vmatpush.msra.mxu0 %v4209
        %4227 = vmatmul.f32.gmra.mxu0 %v432
        %v4228 = vpop.f32.mrf.mxu0
        %v4229 = vadd.f32 0.0, %v4228
        %4230 = vmatmul.f32.gmra.mxu0 %v434
        %v4231 = vpop.f32.mrf.mxu0
        %v4232 = vadd.f32 0.0, %v4231
        %4233 = vmatmul.f32.gmra.mxu0 %v436
        %v4234 = vpop.f32.mrf.mxu0
        %v4235 = vadd.f32 0.0, %v4234
        %4236 = vmatmul.f32.gmra.mxu0 %v438
        %v4237 = vpop.f32.mrf.mxu0
        %v4238 = vadd.f32 0.0, %v4237
        %4239 = vmatmul.f32.gmra.mxu0 %v440
        %v4240 = vpop.f32.mrf.mxu0
        %v4241 = vadd.f32 0.0, %v4240
        %4242 = vmatmul.f32.gmra.mxu0 %v442
        %v4243 = vpop.f32.mrf.mxu0
        %v4244 = vadd.f32 0.0, %v4243
        %4245 = vmatmul.f32.gmra.mxu0 %v444
        %v4246 = vpop.f32.mrf.mxu0
        %v4247 = vadd.f32 0.0, %v4246
        %4248 = vmatmul.f32.gmra.mxu0 %v446
        %v4249 = vpop.f32.mrf.mxu0
        %v4250 = vadd.f32 0.0, %v4249
        %4251 = vmatmul.f32.gmra.mxu0 %v448
        %v4252 = vpop.f32.mrf.mxu0
        %v4253 = vadd.f32 0.0, %v4252
        %4254 = vmatmul.f32.gmra.mxu0 %v450
        %v4255 = vpop.f32.mrf.mxu0
        %v4256 = vadd.f32 0.0, %v4255
        %4257 = vmatmul.f32.gmra.mxu0 %v452
        %v4258 = vpop.f32.mrf.mxu0
        %v4259 = vadd.f32 0.0, %v4258
        %4260 = vmatmul.f32.gmra.mxu0 %v454
        %v4261 = vpop.f32.mrf.mxu0
        %v4262 = vadd.f32 0.0, %v4261
        %4263 = vmatmul.f32.gmra.mxu0 %v456
        %v4264 = vpop.f32.mrf.mxu0
        %v4265 = vadd.f32 0.0, %v4264
        %4266 = vmatmul.f32.gmra.mxu0 %v458
        %v4267 = vpop.f32.mrf.mxu0
        %v4268 = vadd.f32 0.0, %v4267
        %4269 = vmatmul.f32.gmra.mxu0 %v460
        %v4270 = vpop.f32.mrf.mxu0
        %v4271 = vadd.f32 0.0, %v4270
        %4272 = vmatmul.f32.gmra.mxu0 %v462
        %v4273 = vpop.f32.mrf.mxu0
        %v4274 = vadd.f32 0.0, %v4273
        %4275 = vmatmul.f32.gmra.mxu0 %v464
        %v4276 = vpop.f32.mrf.mxu0
        %v4277 = vadd.f32 0.0, %v4276
        %4278 = vmatmul.f32.gmra.mxu0 %v466
        %v4279 = vpop.f32.mrf.mxu0
        %v4280 = vadd.f32 0.0, %v4279
        %4281 = vmatmul.f32.gmra.mxu0 %v468
        %v4282 = vpop.f32.mrf.mxu0
        %v4283 = vadd.f32 0.0, %v4282
        %4284 = vmatmul.f32.gmra.mxu0 %v470
        %v4285 = vpop.f32.mrf.mxu0
        %v4286 = vadd.f32 0.0, %v4285
        %4287 = vmatmul.f32.gmra.mxu0 %v472
        %v4288 = vpop.f32.mrf.mxu0
        %v4289 = vadd.f32 0.0, %v4288
        %4290 = vmatmul.f32.gmra.mxu0 %v474
        %v4291 = vpop.f32.mrf.mxu0
        %v4292 = vadd.f32 0.0, %v4291
        %4293 = vmatmul.f32.gmra.mxu0 %v476
        %v4294 = vpop.f32.mrf.mxu0
        %v4295 = vadd.f32 0.0, %v4294
        %4296 = vmatmul.f32.gmra.mxu0 %v478
        %v4297 = vpop.f32.mrf.mxu0
        %v4298 = vadd.f32 0.0, %v4297
        %4299 = vmatmul.f32.gmra.mxu0 %v1825
        %v4300 = vpop.f32.mrf.mxu0
        %v4301 = vadd.f32 0.0, %v4300
        %4302 = vmatmul.f32.gmra.mxu0 %v1827
        %v4303 = vpop.f32.mrf.mxu0
        %v4304 = vadd.f32 0.0, %v4303
        %4305 = vmatmul.f32.gmra.mxu0 %v2618
        %v4306 = vpop.f32.mrf.mxu0
        %v4307 = vadd.f32 0.0, %v4306
        %4308 = vmatmul.f32.gmra.mxu0 %v2620
        %v4309 = vpop.f32.mrf.mxu0
        %v4310 = vadd.f32 0.0, %v4309
        %4311 = vmatmul.f32.gmra.mxu0 %v3411
        %v4312 = vpop.f32.mrf.mxu0
        %v4313 = vadd.f32 0.0, %v4312
        %4314 = vmatmul.f32.gmra.mxu0 %v3413
        %v4315 = vpop.f32.mrf.mxu0
        %v4316 = vadd.f32 0.0, %v4315
        %4317 = vmatmul.f32.gmra.mxu0 %v4204
        %v4318 = vpop.f32.mrf.mxu0
        %v4319 = vadd.f32 0.0, %v4318
        %4320 = vmatmul.f32.gmra.mxu0 %v4206
        %v4321 = vpop.f32.mrf.mxu0
        %v4322 = vadd.f32 0.0, %v4321
        %4323 = vdwg.mxu0
        %v4324 = vadd.f32 %v4164, %v4229
        %v4325 = vadd.f32 %v4165, %v4232
        %v4326 = vadd.f32 %v4166, %v4235
        %v4327 = vadd.f32 %v4167, %v4238
        %v4328 = vadd.f32 %v4168, %v4241
        %v4329 = vadd.f32 %v4169, %v4244
        %v4330 = vadd.f32 %v4170, %v4247
        %v4331 = vadd.f32 %v4171, %v4250
        %v4332 = vadd.f32 %v4172, %v4253
        %v4333 = vadd.f32 %v4173, %v4256
        %v4334 = vadd.f32 %v4174, %v4259
        %v4335 = vadd.f32 %v4175, %v4262
        %v4336 = vadd.f32 %v4176, %v4265
        %v4337 = vadd.f32 %v4177, %v4268
        %v4338 = vadd.f32 %v4178, %v4271
        %v4339 = vadd.f32 %v4179, %v4274
        %v4340 = vadd.f32 %v4180, %v4277
        %v4341 = vadd.f32 %v4181, %v4280
        %v4342 = vadd.f32 %v4182, %v4283
        %v4343 = vadd.f32 %v4183, %v4286
        %v4344 = vadd.f32 %v4184, %v4289
        %v4345 = vadd.f32 %v4185, %v4292
        %v4346 = vadd.f32 %v4186, %v4295
        %v4347 = vadd.f32 %v4187, %v4298
        %v4348 = vadd.f32 %v4188, %v4301
        %v4349 = vadd.f32 %v4189, %v4304
        %v4350 = vadd.f32 %v4190, %v4307
        %v4351 = vadd.f32 %v4191, %v4310
        %v4352 = vadd.f32 %v4192, %v4313
        %v4353 = vadd.f32 %v4193, %v4316
        %v4354 = vadd.f32 %v4194, %v4319
        %v4355 = vadd.f32 %v4195, %v4322
        %v4356 = vrot.slane %v280, 2
        %v4357 = vrot.slane %v281, 2
        %v4358 = vsel %vm777, %v4356, %v4357
        %v4359 = vrot.slane %v282, 2
        %v4360 = vsel %vm777, %v4357, %v4359
        %s4361 = scalar_lea.vmem %s1, 88
        %v4362 = vld [vmem:[%s4361] sm:$0xf]
        %v4363 = vsel %vm415, %v4358, 0
        %v4365 = vsel %vm415, %v4360, 0
        %v4368 = vsel %vm480, %v4362, 0
        %4370 = vmatpush.msra.mxu0 0.0
        %4371 = vmatpush.msra.mxu0 0.0
        %4372 = vmatpush.msra.mxu0 0.0
        %4373 = vmatpush.msra.mxu0 0.0
        %4374 = vmatpush.msra.mxu0 0.0
        %4375 = vmatpush.msra.mxu0 0.0
        %4376 = vmatpush.msra.mxu0 0.0
        %4377 = vmatpush.msra.mxu0 0.0
        %4378 = vmatpush.msra.mxu0 0.0
        %4379 = vmatpush.msra.mxu0 0.0
        %4380 = vmatpush.msra.mxu0 0.0
        %4381 = vmatpush.msra.mxu0 0.0
        %4382 = vmatpush.msra.mxu0 0.0
        %4383 = vmatpush.msra.mxu0 0.0
        %4384 = vmatpush.msra.mxu0 0.0
        %4385 = vmatpush.msra.mxu0 %v4368
        %4386 = vmatmul.f32.gmra.mxu0 %v876
        %v4387 = vpop.f32.mrf.mxu0
        %v4388 = vadd.f32 0.0, %v4387
        %4389 = vmatmul.f32.gmra.mxu0 %v878
        %v4390 = vpop.f32.mrf.mxu0
        %v4391 = vadd.f32 0.0, %v4390
        %4392 = vmatmul.f32.gmra.mxu0 %v880
        %v4393 = vpop.f32.mrf.mxu0
        %v4394 = vadd.f32 0.0, %v4393
        %4395 = vmatmul.f32.gmra.mxu0 %v882
        %v4396 = vpop.f32.mrf.mxu0
        %v4397 = vadd.f32 0.0, %v4396
        %4398 = vmatmul.f32.gmra.mxu0 %v884
        %v4399 = vpop.f32.mrf.mxu0
        %v4400 = vadd.f32 0.0, %v4399
        %4401 = vmatmul.f32.gmra.mxu0 %v886
        %v4402 = vpop.f32.mrf.mxu0
        %v4403 = vadd.f32 0.0, %v4402
        %4404 = vmatmul.f32.gmra.mxu0 %v888
        %v4405 = vpop.f32.mrf.mxu0
        %v4406 = vadd.f32 0.0, %v4405
        %4407 = vmatmul.f32.gmra.mxu0 %v890
        %v4408 = vpop.f32.mrf.mxu0
        %v4409 = vadd.f32 0.0, %v4408
        %4410 = vmatmul.f32.gmra.mxu0 %v892
        %v4411 = vpop.f32.mrf.mxu0
        %v4412 = vadd.f32 0.0, %v4411
        %4413 = vmatmul.f32.gmra.mxu0 %v894
        %v4414 = vpop.f32.mrf.mxu0
        %v4415 = vadd.f32 0.0, %v4414
        %4416 = vmatmul.f32.gmra.mxu0 %v896
        %v4417 = vpop.f32.mrf.mxu0
        %v4418 = vadd.f32 0.0, %v4417
        %4419 = vmatmul.f32.gmra.mxu0 %v898
        %v4420 = vpop.f32.mrf.mxu0
        %v4421 = vadd.f32 0.0, %v4420
        %4422 = vmatmul.f32.gmra.mxu0 %v900
        %v4423 = vpop.f32.mrf.mxu0
        %v4424 = vadd.f32 0.0, %v4423
        %4425 = vmatmul.f32.gmra.mxu0 %v902
        %v4426 = vpop.f32.mrf.mxu0
        %v4427 = vadd.f32 0.0, %v4426
        %4428 = vmatmul.f32.gmra.mxu0 %v904
        %v4429 = vpop.f32.mrf.mxu0
        %v4430 = vadd.f32 0.0, %v4429
        %4431 = vmatmul.f32.gmra.mxu0 %v906
        %v4432 = vpop.f32.mrf.mxu0
        %v4433 = vadd.f32 0.0, %v4432
        %4434 = vmatmul.f32.gmra.mxu0 %v908
        %v4435 = vpop.f32.mrf.mxu0
        %v4436 = vadd.f32 0.0, %v4435
        %4437 = vmatmul.f32.gmra.mxu0 %v910
        %v4438 = vpop.f32.mrf.mxu0
        %v4439 = vadd.f32 0.0, %v4438
        %4440 = vmatmul.f32.gmra.mxu0 %v912
        %v4441 = vpop.f32.mrf.mxu0
        %v4442 = vadd.f32 0.0, %v4441
        %4443 = vmatmul.f32.gmra.mxu0 %v914
        %v4444 = vpop.f32.mrf.mxu0
        %v4445 = vadd.f32 0.0, %v4444
        %4446 = vmatmul.f32.gmra.mxu0 %v916
        %v4447 = vpop.f32.mrf.mxu0
        %v4448 = vadd.f32 0.0, %v4447
        %4449 = vmatmul.f32.gmra.mxu0 %v918
        %v4450 = vpop.f32.mrf.mxu0
        %v4451 = vadd.f32 0.0, %v4450
        %4452 = vmatmul.f32.gmra.mxu0 %v920
        %v4453 = vpop.f32.mrf.mxu0
        %v4454 = vadd.f32 0.0, %v4453
        %4455 = vmatmul.f32.gmra.mxu0 %v922
        %v4456 = vpop.f32.mrf.mxu0
        %v4457 = vadd.f32 0.0, %v4456
        %4458 = vmatmul.f32.gmra.mxu0 %v1984
        %v4459 = vpop.f32.mrf.mxu0
        %v4460 = vadd.f32 0.0, %v4459
        %4461 = vmatmul.f32.gmra.mxu0 %v1986
        %v4462 = vpop.f32.mrf.mxu0
        %v4463 = vadd.f32 0.0, %v4462
        %4464 = vmatmul.f32.gmra.mxu0 %v2777
        %v4465 = vpop.f32.mrf.mxu0
        %v4466 = vadd.f32 0.0, %v4465
        %4467 = vmatmul.f32.gmra.mxu0 %v2779
        %v4468 = vpop.f32.mrf.mxu0
        %v4469 = vadd.f32 0.0, %v4468
        %4470 = vmatmul.f32.gmra.mxu0 %v3570
        %v4471 = vpop.f32.mrf.mxu0
        %v4472 = vadd.f32 0.0, %v4471
        %4473 = vmatmul.f32.gmra.mxu0 %v3572
        %v4474 = vpop.f32.mrf.mxu0
        %v4475 = vadd.f32 0.0, %v4474
        %4476 = vmatmul.f32.gmra.mxu0 %v4363
        %v4477 = vpop.f32.mrf.mxu0
        %v4478 = vadd.f32 0.0, %v4477
        %4479 = vmatmul.f32.gmra.mxu0 %v4365
        %v4480 = vpop.f32.mrf.mxu0
        %v4481 = vadd.f32 0.0, %v4480
        %4482 = vdwg.mxu0
        %v4483 = vadd.f32 %v4324, %v4388
        %v4484 = vadd.f32 %v4325, %v4391
        %v4485 = vadd.f32 %v4326, %v4394
        %v4486 = vadd.f32 %v4327, %v4397
        %v4487 = vadd.f32 %v4328, %v4400
        %v4488 = vadd.f32 %v4329, %v4403
        %v4489 = vadd.f32 %v4330, %v4406
        %v4490 = vadd.f32 %v4331, %v4409
        %v4491 = vadd.f32 %v4332, %v4412
        %v4492 = vadd.f32 %v4333, %v4415
        %v4493 = vadd.f32 %v4334, %v4418
        %v4494 = vadd.f32 %v4335, %v4421
        %v4495 = vadd.f32 %v4336, %v4424
        %v4496 = vadd.f32 %v4337, %v4427
        %v4497 = vadd.f32 %v4338, %v4430
        %v4498 = vadd.f32 %v4339, %v4433
        %v4499 = vadd.f32 %v4340, %v4436
        %v4500 = vadd.f32 %v4341, %v4439
        %v4501 = vadd.f32 %v4342, %v4442
        %v4502 = vadd.f32 %v4343, %v4445
        %v4503 = vadd.f32 %v4344, %v4448
        %v4504 = vadd.f32 %v4345, %v4451
        %v4505 = vadd.f32 %v4346, %v4454
        %v4506 = vadd.f32 %v4347, %v4457
        %v4507 = vadd.f32 %v4348, %v4460
        %v4508 = vadd.f32 %v4349, %v4463
        %v4509 = vadd.f32 %v4350, %v4466
        %v4510 = vadd.f32 %v4351, %v4469
        %v4511 = vadd.f32 %v4352, %v4472
        %v4512 = vadd.f32 %v4353, %v4475
        %v4513 = vadd.f32 %v4354, %v4478
        %v4514 = vadd.f32 %v4355, %v4481
        %v4515 = vrot.slane %v280, 3
        %v4516 = vrot.slane %v281, 3
        %v4517 = vsel %vm1072, %v4515, %v4516
        %v4518 = vrot.slane %v282, 3
        %v4519 = vsel %vm1072, %v4516, %v4518
        %s4520 = scalar_lea.vmem %s1, 92
        %v4521 = vld [vmem:[%s4520] sm:$0xf]
        %v4522 = vsel %vm415, %v4517, 0
        %v4524 = vsel %vm415, %v4519, 0
        %v4527 = vsel %vm480, %v4521, 0
        %4529 = vmatpush.msra.mxu0 0.0
        %4530 = vmatpush.msra.mxu0 0.0
        %4531 = vmatpush.msra.mxu0 0.0
        %4532 = vmatpush.msra.mxu0 0.0
        %4533 = vmatpush.msra.mxu0 0.0
        %4534 = vmatpush.msra.mxu0 0.0
        %4535 = vmatpush.msra.mxu0 0.0
        %4536 = vmatpush.msra.mxu0 0.0
        %4537 = vmatpush.msra.mxu0 0.0
        %4538 = vmatpush.msra.mxu0 0.0
        %4539 = vmatpush.msra.mxu0 0.0
        %4540 = vmatpush.msra.mxu0 0.0
        %4541 = vmatpush.msra.mxu0 0.0
        %4542 = vmatpush.msra.mxu0 0.0
        %4543 = vmatpush.msra.mxu0 0.0
        %4544 = vmatpush.msra.mxu0 %v4527
        %4545 = vmatmul.f32.gmra.mxu0 %v1171
        %v4546 = vpop.f32.mrf.mxu0
        %v4547 = vadd.f32 0.0, %v4546
        %4548 = vmatmul.f32.gmra.mxu0 %v1173
        %v4549 = vpop.f32.mrf.mxu0
        %v4550 = vadd.f32 0.0, %v4549
        %4551 = vmatmul.f32.gmra.mxu0 %v1175
        %v4552 = vpop.f32.mrf.mxu0
        %v4553 = vadd.f32 0.0, %v4552
        %4554 = vmatmul.f32.gmra.mxu0 %v1177
        %v4555 = vpop.f32.mrf.mxu0
        %v4556 = vadd.f32 0.0, %v4555
        %4557 = vmatmul.f32.gmra.mxu0 %v1179
        %v4558 = vpop.f32.mrf.mxu0
        %v4559 = vadd.f32 0.0, %v4558
        %4560 = vmatmul.f32.gmra.mxu0 %v1181
        %v4561 = vpop.f32.mrf.mxu0
        %v4562 = vadd.f32 0.0, %v4561
        %4563 = vmatmul.f32.gmra.mxu0 %v1183
        %v4564 = vpop.f32.mrf.mxu0
        %v4565 = vadd.f32 0.0, %v4564
        %4566 = vmatmul.f32.gmra.mxu0 %v1185
        %v4567 = vpop.f32.mrf.mxu0
        %v4568 = vadd.f32 0.0, %v4567
        %4569 = vmatmul.f32.gmra.mxu0 %v1187
        %v4570 = vpop.f32.mrf.mxu0
        %v4571 = vadd.f32 0.0, %v4570
        %4572 = vmatmul.f32.gmra.mxu0 %v1189
        %v4573 = vpop.f32.mrf.mxu0
        %v4574 = vadd.f32 0.0, %v4573
        %4575 = vmatmul.f32.gmra.mxu0 %v1191
        %v4576 = vpop.f32.mrf.mxu0
        %v4577 = vadd.f32 0.0, %v4576
        %4578 = vmatmul.f32.gmra.mxu0 %v1193
        %v4579 = vpop.f32.mrf.mxu0
        %v4580 = vadd.f32 0.0, %v4579
        %4581 = vmatmul.f32.gmra.mxu0 %v1195
        %v4582 = vpop.f32.mrf.mxu0
        %v4583 = vadd.f32 0.0, %v4582
        %4584 = vmatmul.f32.gmra.mxu0 %v1197
        %v4585 = vpop.f32.mrf.mxu0
        %v4586 = vadd.f32 0.0, %v4585
        %4587 = vmatmul.f32.gmra.mxu0 %v1199
        %v4588 = vpop.f32.mrf.mxu0
        %v4589 = vadd.f32 0.0, %v4588
        %4590 = vmatmul.f32.gmra.mxu0 %v1201
        %v4591 = vpop.f32.mrf.mxu0
        %v4592 = vadd.f32 0.0, %v4591
        %4593 = vmatmul.f32.gmra.mxu0 %v1203
        %v4594 = vpop.f32.mrf.mxu0
        %v4595 = vadd.f32 0.0, %v4594
        %4596 = vmatmul.f32.gmra.mxu0 %v1205
        %v4597 = vpop.f32.mrf.mxu0
        %v4598 = vadd.f32 0.0, %v4597
        %4599 = vmatmul.f32.gmra.mxu0 %v1207
        %v4600 = vpop.f32.mrf.mxu0
        %v4601 = vadd.f32 0.0, %v4600
        %4602 = vmatmul.f32.gmra.mxu0 %v1209
        %v4603 = vpop.f32.mrf.mxu0
        %v4604 = vadd.f32 0.0, %v4603
        %4605 = vmatmul.f32.gmra.mxu0 %v1211
        %v4606 = vpop.f32.mrf.mxu0
        %v4607 = vadd.f32 0.0, %v4606
        %4608 = vmatmul.f32.gmra.mxu0 %v1213
        %v4609 = vpop.f32.mrf.mxu0
        %v4610 = vadd.f32 0.0, %v4609
        %4611 = vmatmul.f32.gmra.mxu0 %v1215
        %v4612 = vpop.f32.mrf.mxu0
        %v4613 = vadd.f32 0.0, %v4612
        %4614 = vmatmul.f32.gmra.mxu0 %v1217
        %v4615 = vpop.f32.mrf.mxu0
        %v4616 = vadd.f32 0.0, %v4615
        %4617 = vmatmul.f32.gmra.mxu0 %v2143
        %v4618 = vpop.f32.mrf.mxu0
        %v4619 = vadd.f32 0.0, %v4618
        %4620 = vmatmul.f32.gmra.mxu0 %v2145
        %v4621 = vpop.f32.mrf.mxu0
        %v4622 = vadd.f32 0.0, %v4621
        %4623 = vmatmul.f32.gmra.mxu0 %v2936
        %v4624 = vpop.f32.mrf.mxu0
        %v4625 = vadd.f32 0.0, %v4624
        %4626 = vmatmul.f32.gmra.mxu0 %v2938
        %v4627 = vpop.f32.mrf.mxu0
        %v4628 = vadd.f32 0.0, %v4627
        %4629 = vmatmul.f32.gmra.mxu0 %v3729
        %v4630 = vpop.f32.mrf.mxu0
        %v4631 = vadd.f32 0.0, %v4630
        %4632 = vmatmul.f32.gmra.mxu0 %v3731
        %v4633 = vpop.f32.mrf.mxu0
        %v4634 = vadd.f32 0.0, %v4633
        %4635 = vmatmul.f32.gmra.mxu0 %v4522
        %v4636 = vpop.f32.mrf.mxu0
        %v4637 = vadd.f32 0.0, %v4636
        %4638 = vmatmul.f32.gmra.mxu0 %v4524
        %v4639 = vpop.f32.mrf.mxu0
        %v4640 = vadd.f32 0.0, %v4639
        %4641 = vdwg.mxu0
        %v4642 = vadd.f32 %v4483, %v4547
        %v4643 = vadd.f32 %v4484, %v4550
        %v4644 = vadd.f32 %v4485, %v4553
        %v4645 = vadd.f32 %v4486, %v4556
        %v4646 = vadd.f32 %v4487, %v4559
        %v4647 = vadd.f32 %v4488, %v4562
        %v4648 = vadd.f32 %v4489, %v4565
        %v4649 = vadd.f32 %v4490, %v4568
        %v4650 = vadd.f32 %v4491, %v4571
        %v4651 = vadd.f32 %v4492, %v4574
        %v4652 = vadd.f32 %v4493, %v4577
        %v4653 = vadd.f32 %v4494, %v4580
        %v4654 = vadd.f32 %v4495, %v4583
        %v4655 = vadd.f32 %v4496, %v4586
        %v4656 = vadd.f32 %v4497, %v4589
        %v4657 = vadd.f32 %v4498, %v4592
        %v4658 = vadd.f32 %v4499, %v4595
        %v4659 = vadd.f32 %v4500, %v4598
        %v4660 = vadd.f32 %v4501, %v4601
        %v4661 = vadd.f32 %v4502, %v4604
        %v4662 = vadd.f32 %v4503, %v4607
        %v4663 = vadd.f32 %v4504, %v4610
        %v4664 = vadd.f32 %v4505, %v4613
        %v4665 = vadd.f32 %v4506, %v4616
        %v4666 = vadd.f32 %v4507, %v4619
        %v4667 = vadd.f32 %v4508, %v4622
        %v4668 = vadd.f32 %v4509, %v4625
        %v4669 = vadd.f32 %v4510, %v4628
        %v4670 = vadd.f32 %v4511, %v4631
        %v4671 = vadd.f32 %v4512, %v4634
        %v4672 = vadd.f32 %v4513, %v4637
        %v4673 = vadd.f32 %v4514, %v4640
        %v4674 = vrot.slane %v280, 4
        %v4675 = vrot.slane %v281, 4
        %v4676 = vsel %vm480, %v4674, %v4675
        %v4677 = vrot.slane %v282, 4
        %v4678 = vsel %vm480, %v4675, %v4677
        %s4679 = scalar_lea.vmem %s1, 96
        %v4680 = vld [vmem:[%s4679] sm:$0xf]
        %v4681 = vsel %vm415, %v4676, 0
        %v4683 = vsel %vm415, %v4678, 0
        %v4686 = vsel %vm480, %v4680, 0
        %4688 = vmatpush.msra.mxu0 0.0
        %4689 = vmatpush.msra.mxu0 0.0
        %4690 = vmatpush.msra.mxu0 0.0
        %4691 = vmatpush.msra.mxu0 0.0
        %4692 = vmatpush.msra.mxu0 0.0
        %4693 = vmatpush.msra.mxu0 0.0
        %4694 = vmatpush.msra.mxu0 0.0
        %4695 = vmatpush.msra.mxu0 0.0
        %4696 = vmatpush.msra.mxu0 0.0
        %4697 = vmatpush.msra.mxu0 0.0
        %4698 = vmatpush.msra.mxu0 0.0
        %4699 = vmatpush.msra.mxu0 0.0
        %4700 = vmatpush.msra.mxu0 0.0
        %4701 = vmatpush.msra.mxu0 0.0
        %4702 = vmatpush.msra.mxu0 0.0
        %4703 = vmatpush.msra.mxu0 %v4686
        %4704 = vmatmul.f32.gmra.mxu0 %v1465
        %v4705 = vpop.f32.mrf.mxu0
        %v4706 = vadd.f32 0.0, %v4705
        %4707 = vmatmul.f32.gmra.mxu0 %v1467
        %v4708 = vpop.f32.mrf.mxu0
        %v4709 = vadd.f32 0.0, %v4708
        %4710 = vmatmul.f32.gmra.mxu0 %v1469
        %v4711 = vpop.f32.mrf.mxu0
        %v4712 = vadd.f32 0.0, %v4711
        %4713 = vmatmul.f32.gmra.mxu0 %v1471
        %v4714 = vpop.f32.mrf.mxu0
        %v4715 = vadd.f32 0.0, %v4714
        %4716 = vmatmul.f32.gmra.mxu0 %v1473
        %v4717 = vpop.f32.mrf.mxu0
        %v4718 = vadd.f32 0.0, %v4717
        %4719 = vmatmul.f32.gmra.mxu0 %v1475
        %v4720 = vpop.f32.mrf.mxu0
        %v4721 = vadd.f32 0.0, %v4720
        %4722 = vmatmul.f32.gmra.mxu0 %v1477
        %v4723 = vpop.f32.mrf.mxu0
        %v4724 = vadd.f32 0.0, %v4723
        %4725 = vmatmul.f32.gmra.mxu0 %v1479
        %v4726 = vpop.f32.mrf.mxu0
        %v4727 = vadd.f32 0.0, %v4726
        %4728 = vmatmul.f32.gmra.mxu0 %v1481
        %v4729 = vpop.f32.mrf.mxu0
        %v4730 = vadd.f32 0.0, %v4729
        %4731 = vmatmul.f32.gmra.mxu0 %v1483
        %v4732 = vpop.f32.mrf.mxu0
        %v4733 = vadd.f32 0.0, %v4732
        %4734 = vmatmul.f32.gmra.mxu0 %v1485
        %v4735 = vpop.f32.mrf.mxu0
        %v4736 = vadd.f32 0.0, %v4735
        %4737 = vmatmul.f32.gmra.mxu0 %v1487
        %v4738 = vpop.f32.mrf.mxu0
        %v4739 = vadd.f32 0.0, %v4738
        %4740 = vmatmul.f32.gmra.mxu0 %v1489
        %v4741 = vpop.f32.mrf.mxu0
        %v4742 = vadd.f32 0.0, %v4741
        %4743 = vmatmul.f32.gmra.mxu0 %v1491
        %v4744 = vpop.f32.mrf.mxu0
        %v4745 = vadd.f32 0.0, %v4744
        %4746 = vmatmul.f32.gmra.mxu0 %v1493
        %v4747 = vpop.f32.mrf.mxu0
        %v4748 = vadd.f32 0.0, %v4747
        %4749 = vmatmul.f32.gmra.mxu0 %v1495
        %v4750 = vpop.f32.mrf.mxu0
        %v4751 = vadd.f32 0.0, %v4750
        %4752 = vmatmul.f32.gmra.mxu0 %v1497
        %v4753 = vpop.f32.mrf.mxu0
        %v4754 = vadd.f32 0.0, %v4753
        %4755 = vmatmul.f32.gmra.mxu0 %v1499
        %v4756 = vpop.f32.mrf.mxu0
        %v4757 = vadd.f32 0.0, %v4756
        %4758 = vmatmul.f32.gmra.mxu0 %v1501
        %v4759 = vpop.f32.mrf.mxu0
        %v4760 = vadd.f32 0.0, %v4759
        %4761 = vmatmul.f32.gmra.mxu0 %v1503
        %v4762 = vpop.f32.mrf.mxu0
        %v4763 = vadd.f32 0.0, %v4762
        %4764 = vmatmul.f32.gmra.mxu0 %v1505
        %v4765 = vpop.f32.mrf.mxu0
        %v4766 = vadd.f32 0.0, %v4765
        %4767 = vmatmul.f32.gmra.mxu0 %v1507
        %v4768 = vpop.f32.mrf.mxu0
        %v4769 = vadd.f32 0.0, %v4768
        %4770 = vmatmul.f32.gmra.mxu0 %v1509
        %v4771 = vpop.f32.mrf.mxu0
        %v4772 = vadd.f32 0.0, %v4771
        %4773 = vmatmul.f32.gmra.mxu0 %v1511
        %v4774 = vpop.f32.mrf.mxu0
        %v4775 = vadd.f32 0.0, %v4774
        %4776 = vmatmul.f32.gmra.mxu0 %v2302
        %v4777 = vpop.f32.mrf.mxu0
        %v4778 = vadd.f32 0.0, %v4777
        %4779 = vmatmul.f32.gmra.mxu0 %v2304
        %v4780 = vpop.f32.mrf.mxu0
        %v4781 = vadd.f32 0.0, %v4780
        %4782 = vmatmul.f32.gmra.mxu0 %v3095
        %v4783 = vpop.f32.mrf.mxu0
        %v4784 = vadd.f32 0.0, %v4783
        %4785 = vmatmul.f32.gmra.mxu0 %v3097
        %v4786 = vpop.f32.mrf.mxu0
        %v4787 = vadd.f32 0.0, %v4786
        %4788 = vmatmul.f32.gmra.mxu0 %v3888
        %v4789 = vpop.f32.mrf.mxu0
        %v4790 = vadd.f32 0.0, %v4789
        %4791 = vmatmul.f32.gmra.mxu0 %v3890
        %v4792 = vpop.f32.mrf.mxu0
        %v4793 = vadd.f32 0.0, %v4792
        %4794 = vmatmul.f32.gmra.mxu0 %v4681
        %v4795 = vpop.f32.mrf.mxu0
        %v4796 = vadd.f32 0.0, %v4795
        %4797 = vmatmul.f32.gmra.mxu0 %v4683
        %v4798 = vpop.f32.mrf.mxu0
        %v4799 = vadd.f32 0.0, %v4798
        %4800 = vdwg.mxu0
        %v4801 = vadd.f32 %v4642, %v4706
        %v4802 = vadd.f32 %v4643, %v4709
        %v4803 = vadd.f32 %v4644, %v4712
        %v4804 = vadd.f32 %v4645, %v4715
        %v4805 = vadd.f32 %v4646, %v4718
        %v4806 = vadd.f32 %v4647, %v4721
        %v4807 = vadd.f32 %v4648, %v4724
        %v4808 = vadd.f32 %v4649, %v4727
        %v4809 = vadd.f32 %v4650, %v4730
        %v4810 = vadd.f32 %v4651, %v4733
        %v4811 = vadd.f32 %v4652, %v4736
        %v4812 = vadd.f32 %v4653, %v4739
        %v4813 = vadd.f32 %v4654, %v4742
        %v4814 = vadd.f32 %v4655, %v4745
        %v4815 = vadd.f32 %v4656, %v4748
        %v4816 = vadd.f32 %v4657, %v4751
        %v4817 = vadd.f32 %v4658, %v4754
        %v4818 = vadd.f32 %v4659, %v4757
        %v4819 = vadd.f32 %v4660, %v4760
        %v4820 = vadd.f32 %v4661, %v4763
        %v4821 = vadd.f32 %v4662, %v4766
        %v4822 = vadd.f32 %v4663, %v4769
        %v4823 = vadd.f32 %v4664, %v4772
        %v4824 = vadd.f32 %v4665, %v4775
        %v4825 = vadd.f32 %v4666, %v4778
        %v4826 = vadd.f32 %v4667, %v4781
        %v4827 = vadd.f32 %v4668, %v4784
        %v4828 = vadd.f32 %v4669, %v4787
        %v4829 = vadd.f32 %v4670, %v4790
        %v4830 = vadd.f32 %v4671, %v4793
        %v4831 = vadd.f32 %v4672, %v4796
        %v4832 = vadd.f32 %v4673, %v4799
        %v4833 = vld [vmem:[%s2] sm:$0x1]
        %v4835 = vperm.slane %v4833, 0
        %v4837 = vadd.f32 %v4801, %v4835
        %v4838 = vadd.f32 %v4802, %v4835
        %v4839 = vadd.f32 %v4803, %v4835
        %v4840 = vadd.f32 %v4804, %v4835
        %v4841 = vadd.f32 %v4805, %v4835
        %v4842 = vadd.f32 %v4806, %v4835
        %v4843 = vadd.f32 %v4807, %v4835
        %v4844 = vadd.f32 %v4808, %v4835
        %v4845 = vadd.f32 %v4809, %v4835
        %v4846 = vadd.f32 %v4810, %v4835
        %v4847 = vadd.f32 %v4811, %v4835
        %v4848 = vadd.f32 %v4812, %v4835
        %v4849 = vadd.f32 %v4813, %v4835
        %v4850 = vadd.f32 %v4814, %v4835
        %v4851 = vadd.f32 %v4815, %v4835
        %v4852 = vadd.f32 %v4816, %v4835
        %v4853 = vadd.f32 %v4817, %v4835
        %v4854 = vadd.f32 %v4818, %v4835
        %v4855 = vadd.f32 %v4819, %v4835
        %v4856 = vadd.f32 %v4820, %v4835
        %v4857 = vadd.f32 %v4821, %v4835
        %v4858 = vadd.f32 %v4822, %v4835
        %v4859 = vadd.f32 %v4823, %v4835
        %v4860 = vadd.f32 %v4824, %v4835
        %v4861 = vadd.f32 %v4825, %v4835
        %v4862 = vadd.f32 %v4826, %v4835
        %v4863 = vadd.f32 %v4827, %v4835
        %v4864 = vadd.f32 %v4828, %v4835
        %v4865 = vadd.f32 %v4829, %v4835
        %v4866 = vadd.f32 %v4830, %v4835
        %v4867 = vadd.f32 %v4831, %v4835
        %v4868 = vadd.f32 %v4832, %v4835
        %v4869 = vtanh.pop %v4837
        %v4870 = vtanh.pop %v4838
        %v4871 = vtanh.pop %v4839
        %v4872 = vtanh.pop %v4840
        %v4873 = vtanh.pop %v4841
        %v4874 = vtanh.pop %v4842
        %v4875 = vtanh.pop %v4843
        %v4876 = vtanh.pop %v4844
        %v4877 = vtanh.pop %v4845
        %v4878 = vtanh.pop %v4846
        %v4879 = vtanh.pop %v4847
        %v4880 = vtanh.pop %v4848
        %v4881 = vtanh.pop %v4849
        %v4882 = vtanh.pop %v4850
        %v4883 = vtanh.pop %v4851
        %v4884 = vtanh.pop %v4852
        %v4885 = vtanh.pop %v4853
        %v4886 = vtanh.pop %v4854
        %v4887 = vtanh.pop %v4855
        %v4888 = vtanh.pop %v4856
        %v4889 = vtanh.pop %v4857
        %v4890 = vtanh.pop %v4858
        %v4891 = vtanh.pop %v4859
        %v4892 = vtanh.pop %v4860
        %v4893 = vtanh.pop %v4861
        %v4894 = vtanh.pop %v4862
        %v4895 = vtanh.pop %v4863
        %v4896 = vtanh.pop %v4864
        %v4897 = vtanh.pop %v4865
        %v4898 = vtanh.pop %v4866
        %v4899 = vtanh.pop %v4867
        %v4900 = vtanh.pop %v4868
        %vm4901 = vcmask 64512
        %4902 = vst.msk [vmem:[#allocation3] sm:$0xff] %vm4901, %v4869
        %4903 = vst.msk [vmem:[#allocation3 + $0x8] sm:$0xff] %vm4901, %v4870
        %4904 = vst.msk [vmem:[#allocation3 + $0x10] sm:$0xff] %vm4901, %v4871
        %4905 = vst.msk [vmem:[#allocation3 + $0x18] sm:$0xff] %vm4901, %v4872
        %4906 = vst.msk [vmem:[#allocation3 + $0x20] sm:$0xff] %vm4901, %v4873
        %4907 = vst.msk [vmem:[#allocation3 + $0x28] sm:$0xff] %vm4901, %v4874
        %4908 = vst.msk [vmem:[#allocation3 + $0x30] sm:$0xff] %vm4901, %v4875
        %4909 = vst.msk [vmem:[#allocation3 + $0x38] sm:$0xff] %vm4901, %v4876
        %4910 = vst.msk [vmem:[#allocation3 + $0x40] sm:$0xff] %vm4901, %v4877
        %4911 = vst.msk [vmem:[#allocation3 + $0x48] sm:$0xff] %vm4901, %v4878
        %4912 = vst.msk [vmem:[#allocation3 + $0x50] sm:$0xff] %vm4901, %v4879
        %4913 = vst.msk [vmem:[#allocation3 + $0x58] sm:$0xff] %vm4901, %v4880
        %4914 = vst.msk [vmem:[#allocation3 + $0x60] sm:$0xff] %vm4901, %v4881
        %4915 = vst.msk [vmem:[#allocation3 + $0x68] sm:$0xff] %vm4901, %v4882
        %4916 = vst.msk [vmem:[#allocation3 + $0x70] sm:$0xff] %vm4901, %v4883
        %4917 = vst.msk [vmem:[#allocation3 + $0x78] sm:$0xff] %vm4901, %v4884
        %4918 = vst.msk [vmem:[#allocation3 + $0x80] sm:$0xff] %vm4901, %v4885
        %4919 = vst.msk [vmem:[#allocation3 + $0x88] sm:$0xff] %vm4901, %v4886
        %4920 = vst.msk [vmem:[#allocation3 + $0x90] sm:$0xff] %vm4901, %v4887
        %4921 = vst.msk [vmem:[#allocation3 + $0x98] sm:$0xff] %vm4901, %v4888
        %4922 = vst.msk [vmem:[#allocation3 + $0xa0] sm:$0xff] %vm4901, %v4889
        %4923 = vst.msk [vmem:[#allocation3 + $0xa8] sm:$0xff] %vm4901, %v4890
        %4924 = vst.msk [vmem:[#allocation3 + $0xb0] sm:$0xff] %vm4901, %v4891
        %4925 = vst.msk [vmem:[#allocation3 + $0xb8] sm:$0xff] %vm4901, %v4892
        %4926 = vst.msk [vmem:[#allocation3 + $0xc0] sm:$0xff] %vm4901, %v4893
        %4927 = vst.msk [vmem:[#allocation3 + $0xc8] sm:$0xff] %vm4901, %v4894
        %4928 = vst.msk [vmem:[#allocation3 + $0xd0] sm:$0xff] %vm4901, %v4895
        %4929 = vst.msk [vmem:[#allocation3 + $0xd8] sm:$0xff] %vm4901, %v4896
        %4930 = vst.msk [vmem:[#allocation3 + $0xe0] sm:$0xff] %vm4901, %v4897
        %4931 = vst.msk [vmem:[#allocation3 + $0xe8] sm:$0xff] %vm4901, %v4898
        %4932 = vst.msk [vmem:[#allocation3 + $0xf0] sm:$0xff] %vm4901, %v4899
        %4933 = vst.msk [vmem:[#allocation3 + $0xf8] sm:$0xff] %vm4901, %v4900
        %v4934 = vld [vmem:[#allocation3] ss:$2 sm:$0xff]
        %s4935 = scalar_lea.vmem [#allocation3], 16
        %v4936 = vld [vmem:[%s4935] ss:$2 sm:$0xff]
        %s4937 = scalar_lea.vmem [#allocation3], 32
        %v4938 = vld [vmem:[%s4937] ss:$2 sm:$0xff]
        %s4939 = scalar_lea.vmem [#allocation3], 48
        %v4940 = vld [vmem:[%s4939] ss:$2 sm:$0xff]
        %s4941 = scalar_lea.vmem [#allocation3], 64
        %v4942 = vld [vmem:[%s4941] ss:$2 sm:$0xff]
        %s4943 = scalar_lea.vmem [#allocation3], 80
        %v4944 = vld [vmem:[%s4943] ss:$2 sm:$0xff]
        %s4945 = scalar_lea.vmem [#allocation3], 96
        %v4946 = vld [vmem:[%s4945] ss:$2 sm:$0xff]
        %s4947 = scalar_lea.vmem [#allocation3], 112
        %v4948 = vld [vmem:[%s4947] ss:$2 sm:$0xff]
        %s4949 = scalar_lea.vmem [#allocation3], 128
        %v4950 = vld [vmem:[%s4949] ss:$2 sm:$0xff]
        %s4951 = scalar_lea.vmem [#allocation3], 144
        %v4952 = vld [vmem:[%s4951] ss:$2 sm:$0xff]
        %s4953 = scalar_lea.vmem [#allocation3], 160
        %v4954 = vld [vmem:[%s4953] ss:$2 sm:$0xff]
        %s4955 = scalar_lea.vmem [#allocation3], 176
        %v4956 = vld [vmem:[%s4955] ss:$2 sm:$0xff]
        %s4957 = scalar_lea.vmem [#allocation3], 192
        %v4958 = vld [vmem:[%s4957] ss:$2 sm:$0xff]
        %s4959 = scalar_lea.vmem [#allocation3], 208
        %v4960 = vld [vmem:[%s4959] ss:$2 sm:$0xff]
        %s4961 = scalar_lea.vmem [#allocation3], 224
        %v4962 = vld [vmem:[%s4961] ss:$2 sm:$0xff]
        %s4963 = scalar_lea.vmem [#allocation3], 240
        %v4964 = vld [vmem:[%s4963] ss:$2 sm:$0xff]
        %s4965 = scalar_lea.vmem [#allocation3], 1
        %v4966 = vld [vmem:[%s4965] ss:$2 sm:$0xff]
        %s4967 = scalar_lea.vmem [#allocation3], 17
        %v4968 = vld [vmem:[%s4967] ss:$2 sm:$0xff]
        %s4969 = scalar_lea.vmem [#allocation3], 33
        %v4970 = vld [vmem:[%s4969] ss:$2 sm:$0xff]
        %s4971 = scalar_lea.vmem [#allocation3], 49
        %v4972 = vld [vmem:[%s4971] ss:$2 sm:$0xff]
        %s4973 = scalar_lea.vmem [#allocation3], 65
        %v4974 = vld [vmem:[%s4973] ss:$2 sm:$0xff]
        %s4975 = scalar_lea.vmem [#allocation3], 81
        %v4976 = vld [vmem:[%s4975] ss:$2 sm:$0xff]
        %s4977 = scalar_lea.vmem [#allocation3], 97
        %v4978 = vld [vmem:[%s4977] ss:$2 sm:$0xff]
        %s4979 = scalar_lea.vmem [#allocation3], 113
        %v4980 = vld [vmem:[%s4979] ss:$2 sm:$0xff]
        %s4981 = scalar_lea.vmem [#allocation3], 129
        %v4982 = vld [vmem:[%s4981] ss:$2 sm:$0xff]
        %s4983 = scalar_lea.vmem [#allocation3], 145
        %v4984 = vld [vmem:[%s4983] ss:$2 sm:$0xff]
        %s4985 = scalar_lea.vmem [#allocation3], 161
        %v4986 = vld [vmem:[%s4985] ss:$2 sm:$0xff]
        %s4987 = scalar_lea.vmem [#allocation3], 177
        %v4988 = vld [vmem:[%s4987] ss:$2 sm:$0xff]
        %s4989 = scalar_lea.vmem [#allocation3], 193
        %v4990 = vld [vmem:[%s4989] ss:$2 sm:$0xff]
        %s4991 = scalar_lea.vmem [#allocation3], 209
        %v4992 = vld [vmem:[%s4991] ss:$2 sm:$0xff]
        %s4993 = scalar_lea.vmem [#allocation3], 225
        %v4994 = vld [vmem:[%s4993] ss:$2 sm:$0xff]
        %s4995 = scalar_lea.vmem [#allocation3], 241
        %v4996 = vld [vmem:[%s4995] ss:$2 sm:$0xff]
        %v4997 = vmax.f32 %v4934, %v4966
        %v4998 = vmax.f32 %v4936, %v4968
        %v4999 = vmax.f32 %v4938, %v4970
        %v5000 = vmax.f32 %v4940, %v4972
        %v5001 = vmax.f32 %v4942, %v4974
        %v5002 = vmax.f32 %v4944, %v4976
        %v5003 = vmax.f32 %v4946, %v4978
        %v5004 = vmax.f32 %v4948, %v4980
        %v5005 = vmax.f32 %v4950, %v4982
        %v5006 = vmax.f32 %v4952, %v4984
        %v5007 = vmax.f32 %v4954, %v4986
        %v5008 = vmax.f32 %v4956, %v4988
        %v5009 = vmax.f32 %v4958, %v4990
        %v5010 = vmax.f32 %v4960, %v4992
        %v5011 = vmax.f32 %v4962, %v4994
        %v5012 = vmax.f32 %v4964, %v4996
        %v5013 = vsel %vm4901, %v4997, -inf
        %v5014 = vsel %vm4901, %v4998, -inf
        %v5015 = vmax.f32 %v5013, %v5014
        %v5016 = vsel %vm4901, %v4999, -inf
        %v5017 = vsel %vm4901, %v5000, -inf
        %v5018 = vmax.f32 %v5016, %v5017
        %v5019 = vsel %vm4901, %v5001, -inf
        %v5020 = vsel %vm4901, %v5002, -inf
        %v5021 = vmax.f32 %v5019, %v5020
        %v5022 = vsel %vm4901, %v5003, -inf
        %v5023 = vsel %vm4901, %v5004, -inf
        %v5024 = vmax.f32 %v5022, %v5023
        %v5025 = vsel %vm4901, %v5005, -inf
        %v5026 = vsel %vm4901, %v5006, -inf
        %v5027 = vmax.f32 %v5025, %v5026
        %v5028 = vsel %vm4901, %v5007, -inf
        %v5029 = vsel %vm4901, %v5008, -inf
        %v5030 = vmax.f32 %v5028, %v5029
        %v5031 = vsel %vm4901, %v5009, -inf
        %v5032 = vsel %vm4901, %v5010, -inf
        %v5033 = vmax.f32 %v5031, %v5032
        %v5034 = vsel %vm4901, %v5011, -inf
        %v5035 = vsel %vm4901, %v5012, -inf
        %v5036 = vmax.f32 %v5034, %v5035
        %5037 = vst.msk [vmem:[#allocation2] sm:$0xff] %vm4901, 0.0
        %vm5038 = vcmask 60416
        %5039 = vst.msk [vmem:[#allocation2 + $0x8] sm:$0xf] %vm5038, 0.0
        %5040 = vst.msk [vmem:[#allocation2 + $0x10] sm:$0xff] %vm4901, 0.0
        %5041 = vst.msk [vmem:[#allocation2 + $0x18] sm:$0xf] %vm5038, 0.0
        %5042 = vst.msk [vmem:[#allocation2 + $0x20] sm:$0xff] %vm4901, 0.0
        %5043 = vst.msk [vmem:[#allocation2 + $0x28] sm:$0xf] %vm5038, 0.0
        %5044 = vst.msk [vmem:[#allocation2 + $0x30] sm:$0xff] %vm4901, 0.0
        %5045 = vst.msk [vmem:[#allocation2 + $0x38] sm:$0xf] %vm5038, 0.0
        %5046 = vst.msk [vmem:[#allocation2 + $0x40] sm:$0xff] %vm4901, 0.0
        %5047 = vst.msk [vmem:[#allocation2 + $0x48] sm:$0xf] %vm5038, 0.0
        %5048 = vst.msk [vmem:[#allocation2 + $0x50] sm:$0xff] %vm4901, 0.0
        %5049 = vst.msk [vmem:[#allocation2 + $0x58] sm:$0xf] %vm5038, 0.0
        %5050 = vst.msk [vmem:[#allocation2 + $0x60] sm:$0xff] %vm4901, 0.0
        %5051 = vst.msk [vmem:[#allocation2 + $0x68] sm:$0xf] %vm5038, 0.0
        %5052 = vst.msk [vmem:[#allocation2 + $0x70] sm:$0xff] %vm4901, 0.0
        %5053 = vst.msk [vmem:[#allocation2 + $0x78] sm:$0xf] %vm5038, 0.0
        %5054 = vst.msk [vmem:[#allocation2 + $0x80] sm:$0xff] %vm4901, 0.0
        %5055 = vst.msk [vmem:[#allocation2 + $0x88] sm:$0xf] %vm5038, 0.0
        %5056 = vst.msk [vmem:[#allocation2 + $0x90] sm:$0xff] %vm4901, 0.0
        %5057 = vst.msk [vmem:[#allocation2 + $0x98] sm:$0xf] %vm5038, 0.0
        %5058 = vst.msk [vmem:[#allocation2 + $0xa0] sm:$0xff] %vm4901, 0.0
        %5059 = vst.msk [vmem:[#allocation2 + $0xa8] sm:$0xf] %vm5038, 0.0
        %5060 = vst.msk [vmem:[#allocation2 + $0xb0] sm:$0xff] %vm4901, 0.0
        %5061 = vst.msk [vmem:[#allocation2 + $0xb8] sm:$0xf] %vm5038, 0.0
        %s5062 = scalar_lea.vmem [#allocation2], 32
        %5063 = vst.msk [vmem:[%s5062 + $0x2] sm:$0xff] %vm4901, %v5015
        %5064 = vst.msk [vmem:[%s5062 + $0x12] sm:$0xff] %vm4901, %v5018
        %5065 = vst.msk [vmem:[%s5062 + $0x22] sm:$0xff] %vm4901, %v5021
        %5066 = vst.msk [vmem:[%s5062 + $0x32] sm:$0xff] %vm4901, %v5024
        %5067 = vst.msk [vmem:[%s5062 + $0x42] sm:$0xff] %vm4901, %v5027
        %5068 = vst.msk [vmem:[%s5062 + $0x52] sm:$0xff] %vm4901, %v5030
        %5069 = vst.msk [vmem:[%s5062 + $0x62] sm:$0xff] %vm4901, %v5033
        %5070 = vst.msk [vmem:[%s5062 + $0x72] sm:$0xff] %vm4901, %v5036
        %v5071 = vld [vmem:[#allocation2] sm:$0xff]
        %v5072 = vld [vmem:[#allocation2 + $0x8] sm:$0xf]
        %v5073 = vld [vmem:[#allocation2 + $0x10] sm:$0xff]
        %v5074 = vld [vmem:[#allocation2 + $0x18] sm:$0xf]
        %v5075 = vld [vmem:[#allocation2 + $0x20] sm:$0xff]
        %v5076 = vld [vmem:[#allocation2 + $0x28] sm:$0xf]
        %v5077 = vld [vmem:[#allocation2 + $0x30] sm:$0xff]
        %v5078 = vld [vmem:[#allocation2 + $0x38] sm:$0xf]
        %v5079 = vld [vmem:[#allocation2 + $0x40] sm:$0xff]
        %v5080 = vld [vmem:[#allocation2 + $0x48] sm:$0xf]
        %v5081 = vld [vmem:[#allocation2 + $0x50] sm:$0xff]
        %v5082 = vld [vmem:[#allocation2 + $0x58] sm:$0xf]
        %v5083 = vld [vmem:[#allocation2 + $0x60] sm:$0xff]
        %v5084 = vld [vmem:[#allocation2 + $0x68] sm:$0xf]
        %v5085 = vld [vmem:[#allocation2 + $0x70] sm:$0xff]
        %v5086 = vld [vmem:[#allocation2 + $0x78] sm:$0xf]
        %v5087 = vld [vmem:[#allocation2 + $0x80] sm:$0xff]
        %v5088 = vld [vmem:[#allocation2 + $0x88] sm:$0xf]
        %v5089 = vld [vmem:[#allocation2 + $0x90] sm:$0xff]
        %v5090 = vld [vmem:[#allocation2 + $0x98] sm:$0xf]
        %v5091 = vld [vmem:[#allocation2 + $0xa0] sm:$0xff]
        %v5092 = vld [vmem:[#allocation2 + $0xa8] sm:$0xf]
        %v5093 = vld [vmem:[#allocation2 + $0xb0] sm:$0xff]
        %v5094 = vld [vmem:[#allocation2 + $0xb8] sm:$0xf]
        %v5095 = vld [vmem:[%s3] sm:$0xff]
        %v5112 = vrot.slane %v5071, 1
        %v5113 = vrot.slane %v5072, 1
        %v5114 = vsel %vm332, %v5112, %v5113
        %v5115 = vrot.slane %v5073, 1
        %v5116 = vrot.slane %v5074, 1
        %v5117 = vsel %vm332, %v5115, %v5116
        %v5118 = vrot.slane %v5075, 1
        %v5119 = vrot.slane %v5076, 1
        %v5120 = vsel %vm332, %v5118, %v5119
        %v5121 = vrot.slane %v5077, 1
        %v5122 = vrot.slane %v5078, 1
        %v5123 = vsel %vm332, %v5121, %v5122
        %v5124 = vrot.slane %v5079, 1
        %v5125 = vrot.slane %v5080, 1
        %v5126 = vsel %vm332, %v5124, %v5125
        %v5127 = vrot.slane %v5081, 1
        %v5128 = vrot.slane %v5082, 1
        %v5129 = vsel %vm332, %v5127, %v5128
        %v5130 = vrot.slane %v5083, 1
        %v5131 = vrot.slane %v5084, 1
        %v5132 = vsel %vm332, %v5130, %v5131
        %v5133 = vrot.slane %v5085, 1
        %v5134 = vrot.slane %v5086, 1
        %v5135 = vsel %vm332, %v5133, %v5134
        %s5136 = scalar_lea.vmem %s3, 8
        %v5137 = vld [vmem:[%s5136] sm:$0xff]
        %v5138 = vsel %vm4901, %v5114, 0
        %v5140 = vsel %vm4901, %v5117, 0
        %v5142 = vsel %vm4901, %v5120, 0
        %v5144 = vsel %vm4901, %v5123, 0
        %v5146 = vsel %vm4901, %v5126, 0
        %v5148 = vsel %vm4901, %v5129, 0
        %v5150 = vsel %vm4901, %v5132, 0
        %v5152 = vsel %vm4901, %v5135, 0
        %5154 = vmatpush.msra.mxu0 0.0
        %5155 = vmatpush.msra.mxu0 0.0
        %5156 = vmatpush.msra.mxu0 0.0
        %5157 = vmatpush.msra.mxu0 0.0
        %5158 = vmatpush.msra.mxu0 0.0
        %5159 = vmatpush.msra.mxu0 0.0
        %5160 = vmatpush.msra.mxu0 0.0
        %5161 = vmatpush.msra.mxu0 0.0
        %5162 = vmatpush.msra.mxu0 0.0
        %5163 = vmatpush.msra.mxu0 0.0
        %5164 = vmatpush.msra.mxu0 0.0
        %5165 = vmatpush.msra.mxu0 0.0
        %5166 = vmatpush.msra.mxu0 0.0
        %5167 = vmatpush.msra.mxu0 0.0
        %5168 = vmatpush.msra.mxu0 0.0
        %5169 = vmatpush.msra.mxu0 %v5137
        %5170 = vmatmul.f32.gmra.mxu0 %v5138
        %v5171 = vpop.f32.mrf.mxu0
        %v5172 = vadd.f32 0.0, %v5171
        %5173 = vmatmul.f32.gmra.mxu0 %v5140
        %v5174 = vpop.f32.mrf.mxu0
        %v5175 = vadd.f32 0.0, %v5174
        %5176 = vmatmul.f32.gmra.mxu0 %v5142
        %v5177 = vpop.f32.mrf.mxu0
        %v5178 = vadd.f32 0.0, %v5177
        %5179 = vmatmul.f32.gmra.mxu0 %v5144
        %v5180 = vpop.f32.mrf.mxu0
        %v5181 = vadd.f32 0.0, %v5180
        %5182 = vmatmul.f32.gmra.mxu0 %v5146
        %v5183 = vpop.f32.mrf.mxu0
        %v5184 = vadd.f32 0.0, %v5183
        %5185 = vmatmul.f32.gmra.mxu0 %v5148
        %v5186 = vpop.f32.mrf.mxu0
        %v5187 = vadd.f32 0.0, %v5186
        %5188 = vmatmul.f32.gmra.mxu0 %v5150
        %v5189 = vpop.f32.mrf.mxu0
        %v5190 = vadd.f32 0.0, %v5189
        %5191 = vmatmul.f32.gmra.mxu0 %v5152
        %v5192 = vpop.f32.mrf.mxu0
        %v5193 = vadd.f32 0.0, %v5192
        %5194 = vdwg.mxu0
        %v5195 = vsel %vm4901, %v5071, 0
        %v5197 = vsel %vm4901, %v5073, 0
        %v5199 = vsel %vm4901, %v5075, 0
        %v5201 = vsel %vm4901, %v5077, 0
        %v5203 = vsel %vm4901, %v5079, 0
        %v5205 = vsel %vm4901, %v5081, 0
        %v5207 = vsel %vm4901, %v5083, 0
        %v5209 = vsel %vm4901, %v5085, 0
        %5211 = vmatpush.msra.mxu0 0.0
        %5212 = vmatpush.msra.mxu0 0.0
        %5213 = vmatpush.msra.mxu0 0.0
        %5214 = vmatpush.msra.mxu0 0.0
        %5215 = vmatpush.msra.mxu0 0.0
        %5216 = vmatpush.msra.mxu0 0.0
        %5217 = vmatpush.msra.mxu0 0.0
        %5218 = vmatpush.msra.mxu0 0.0
        %5219 = vmatpush.msra.mxu0 0.0
        %5220 = vmatpush.msra.mxu0 0.0
        %5221 = vmatpush.msra.mxu0 0.0
        %5222 = vmatpush.msra.mxu0 0.0
        %5223 = vmatpush.msra.mxu0 0.0
        %5224 = vmatpush.msra.mxu0 0.0
        %5225 = vmatpush.msra.mxu0 0.0
        %5226 = vmatpush.msra.mxu0 %v5095
        %5227 = vmatmul.f32.gmra.mxu0 %v5195
        %v5228 = vpop.f32.mrf.mxu0
        %v5229 = vadd.f32 %v5172, %v5228
        %5230 = vmatmul.f32.gmra.mxu0 %v5197
        %v5231 = vpop.f32.mrf.mxu0
        %v5232 = vadd.f32 %v5175, %v5231
        %5233 = vmatmul.f32.gmra.mxu0 %v5199
        %v5234 = vpop.f32.mrf.mxu0
        %v5235 = vadd.f32 %v5178, %v5234
        %5236 = vmatmul.f32.gmra.mxu0 %v5201
        %v5237 = vpop.f32.mrf.mxu0
        %v5238 = vadd.f32 %v5181, %v5237
        %5239 = vmatmul.f32.gmra.mxu0 %v5203
        %v5240 = vpop.f32.mrf.mxu0
        %v5241 = vadd.f32 %v5184, %v5240
        %5242 = vmatmul.f32.gmra.mxu0 %v5205
        %v5243 = vpop.f32.mrf.mxu0
        %v5244 = vadd.f32 %v5187, %v5243
        %5245 = vmatmul.f32.gmra.mxu0 %v5207
        %v5246 = vpop.f32.mrf.mxu0
        %v5247 = vadd.f32 %v5190, %v5246
        %5248 = vmatmul.f32.gmra.mxu0 %v5209
        %v5249 = vpop.f32.mrf.mxu0
        %v5250 = vadd.f32 %v5193, %v5249
        %5251 = vdwg.mxu0
        %v5252 = vrot.slane %v5071, 2
        %v5253 = vrot.slane %v5072, 2
        %v5254 = vsel %vm777, %v5252, %v5253
        %v5255 = vrot.slane %v5073, 2
        %v5256 = vrot.slane %v5074, 2
        %v5257 = vsel %vm777, %v5255, %v5256
        %v5258 = vrot.slane %v5075, 2
        %v5259 = vrot.slane %v5076, 2
        %v5260 = vsel %vm777, %v5258, %v5259
        %v5261 = vrot.slane %v5077, 2
        %v5262 = vrot.slane %v5078, 2
        %v5263 = vsel %vm777, %v5261, %v5262
        %v5264 = vrot.slane %v5079, 2
        %v5265 = vrot.slane %v5080, 2
        %v5266 = vsel %vm777, %v5264, %v5265
        %v5267 = vrot.slane %v5081, 2
        %v5268 = vrot.slane %v5082, 2
        %v5269 = vsel %vm777, %v5267, %v5268
        %v5270 = vrot.slane %v5083, 2
        %v5271 = vrot.slane %v5084, 2
        %v5272 = vsel %vm777, %v5270, %v5271
        %v5273 = vrot.slane %v5085, 2
        %v5274 = vrot.slane %v5086, 2
        %v5275 = vsel %vm777, %v5273, %v5274
        %s5276 = scalar_lea.vmem %s3, 16
        %v5277 = vld [vmem:[%s5276] sm:$0xff]
        %v5278 = vsel %vm4901, %v5254, 0
        %v5280 = vsel %vm4901, %v5257, 0
        %v5282 = vsel %vm4901, %v5260, 0
        %v5284 = vsel %vm4901, %v5263, 0
        %v5286 = vsel %vm4901, %v5266, 0
        %v5288 = vsel %vm4901, %v5269, 0
        %v5290 = vsel %vm4901, %v5272, 0
        %v5292 = vsel %vm4901, %v5275, 0
        %5294 = vmatpush.msra.mxu0 0.0
        %5295 = vmatpush.msra.mxu0 0.0
        %5296 = vmatpush.msra.mxu0 0.0
        %5297 = vmatpush.msra.mxu0 0.0
        %5298 = vmatpush.msra.mxu0 0.0
        %5299 = vmatpush.msra.mxu0 0.0
        %5300 = vmatpush.msra.mxu0 0.0
        %5301 = vmatpush.msra.mxu0 0.0
        %5302 = vmatpush.msra.mxu0 0.0
        %5303 = vmatpush.msra.mxu0 0.0
        %5304 = vmatpush.msra.mxu0 0.0
        %5305 = vmatpush.msra.mxu0 0.0
        %5306 = vmatpush.msra.mxu0 0.0
        %5307 = vmatpush.msra.mxu0 0.0
        %5308 = vmatpush.msra.mxu0 0.0
        %5309 = vmatpush.msra.mxu0 %v5277
        %5310 = vmatmul.f32.gmra.mxu0 %v5278
        %v5311 = vpop.f32.mrf.mxu0
        %v5312 = vadd.f32 0.0, %v5311
        %5313 = vmatmul.f32.gmra.mxu0 %v5280
        %v5314 = vpop.f32.mrf.mxu0
        %v5315 = vadd.f32 0.0, %v5314
        %5316 = vmatmul.f32.gmra.mxu0 %v5282
        %v5317 = vpop.f32.mrf.mxu0
        %v5318 = vadd.f32 0.0, %v5317
        %5319 = vmatmul.f32.gmra.mxu0 %v5284
        %v5320 = vpop.f32.mrf.mxu0
        %v5321 = vadd.f32 0.0, %v5320
        %5322 = vmatmul.f32.gmra.mxu0 %v5286
        %v5323 = vpop.f32.mrf.mxu0
        %v5324 = vadd.f32 0.0, %v5323
        %5325 = vmatmul.f32.gmra.mxu0 %v5288
        %v5326 = vpop.f32.mrf.mxu0
        %v5327 = vadd.f32 0.0, %v5326
        %5328 = vmatmul.f32.gmra.mxu0 %v5290
        %v5329 = vpop.f32.mrf.mxu0
        %v5330 = vadd.f32 0.0, %v5329
        %5331 = vmatmul.f32.gmra.mxu0 %v5292
        %v5332 = vpop.f32.mrf.mxu0
        %v5333 = vadd.f32 0.0, %v5332
        %5334 = vdwg.mxu0
        %v5335 = vadd.f32 %v5229, %v5312
        %v5336 = vadd.f32 %v5232, %v5315
        %v5337 = vadd.f32 %v5235, %v5318
        %v5338 = vadd.f32 %v5238, %v5321
        %v5339 = vadd.f32 %v5241, %v5324
        %v5340 = vadd.f32 %v5244, %v5327
        %v5341 = vadd.f32 %v5247, %v5330
        %v5342 = vadd.f32 %v5250, %v5333
        %v5343 = vrot.slane %v5071, 3
        %v5344 = vrot.slane %v5072, 3
        %v5345 = vsel %vm1072, %v5343, %v5344
        %v5346 = vrot.slane %v5073, 3
        %v5347 = vrot.slane %v5074, 3
        %v5348 = vsel %vm1072, %v5346, %v5347
        %v5349 = vrot.slane %v5075, 3
        %v5350 = vrot.slane %v5076, 3
        %v5351 = vsel %vm1072, %v5349, %v5350
        %v5352 = vrot.slane %v5077, 3
        %v5353 = vrot.slane %v5078, 3
        %v5354 = vsel %vm1072, %v5352, %v5353
        %v5355 = vrot.slane %v5079, 3
        %v5356 = vrot.slane %v5080, 3
        %v5357 = vsel %vm1072, %v5355, %v5356
        %v5358 = vrot.slane %v5081, 3
        %v5359 = vrot.slane %v5082, 3
        %v5360 = vsel %vm1072, %v5358, %v5359
        %v5361 = vrot.slane %v5083, 3
        %v5362 = vrot.slane %v5084, 3
        %v5363 = vsel %vm1072, %v5361, %v5362
        %v5364 = vrot.slane %v5085, 3
        %v5365 = vrot.slane %v5086, 3
        %v5366 = vsel %vm1072, %v5364, %v5365
        %s5367 = scalar_lea.vmem %s3, 24
        %v5368 = vld [vmem:[%s5367] sm:$0xff]
        %v5369 = vsel %vm4901, %v5345, 0
        %v5371 = vsel %vm4901, %v5348, 0
        %v5373 = vsel %vm4901, %v5351, 0
        %v5375 = vsel %vm4901, %v5354, 0
        %v5377 = vsel %vm4901, %v5357, 0
        %v5379 = vsel %vm4901, %v5360, 0
        %v5381 = vsel %vm4901, %v5363, 0
        %v5383 = vsel %vm4901, %v5366, 0
        %5385 = vmatpush.msra.mxu0 0.0
        %5386 = vmatpush.msra.mxu0 0.0
        %5387 = vmatpush.msra.mxu0 0.0
        %5388 = vmatpush.msra.mxu0 0.0
        %5389 = vmatpush.msra.mxu0 0.0
        %5390 = vmatpush.msra.mxu0 0.0
        %5391 = vmatpush.msra.mxu0 0.0
        %5392 = vmatpush.msra.mxu0 0.0
        %5393 = vmatpush.msra.mxu0 0.0
        %5394 = vmatpush.msra.mxu0 0.0
        %5395 = vmatpush.msra.mxu0 0.0
        %5396 = vmatpush.msra.mxu0 0.0
        %5397 = vmatpush.msra.mxu0 0.0
        %5398 = vmatpush.msra.mxu0 0.0
        %5399 = vmatpush.msra.mxu0 0.0
        %5400 = vmatpush.msra.mxu0 %v5368
        %5401 = vmatmul.f32.gmra.mxu0 %v5369
        %v5402 = vpop.f32.mrf.mxu0
        %v5403 = vadd.f32 0.0, %v5402
        %5404 = vmatmul.f32.gmra.mxu0 %v5371
        %v5405 = vpop.f32.mrf.mxu0
        %v5406 = vadd.f32 0.0, %v5405
        %5407 = vmatmul.f32.gmra.mxu0 %v5373
        %v5408 = vpop.f32.mrf.mxu0
        %v5409 = vadd.f32 0.0, %v5408
        %5410 = vmatmul.f32.gmra.mxu0 %v5375
        %v5411 = vpop.f32.mrf.mxu0
        %v5412 = vadd.f32 0.0, %v5411
        %5413 = vmatmul.f32.gmra.mxu0 %v5377
        %v5414 = vpop.f32.mrf.mxu0
        %v5415 = vadd.f32 0.0, %v5414
        %5416 = vmatmul.f32.gmra.mxu0 %v5379
        %v5417 = vpop.f32.mrf.mxu0
        %v5418 = vadd.f32 0.0, %v5417
        %5419 = vmatmul.f32.gmra.mxu0 %v5381
        %v5420 = vpop.f32.mrf.mxu0
        %v5421 = vadd.f32 0.0, %v5420
        %5422 = vmatmul.f32.gmra.mxu0 %v5383
        %v5423 = vpop.f32.mrf.mxu0
        %v5424 = vadd.f32 0.0, %v5423
        %5425 = vdwg.mxu0
        %v5426 = vadd.f32 %v5335, %v5403
        %v5427 = vadd.f32 %v5336, %v5406
        %v5428 = vadd.f32 %v5337, %v5409
        %v5429 = vadd.f32 %v5338, %v5412
        %v5430 = vadd.f32 %v5339, %v5415
        %v5431 = vadd.f32 %v5340, %v5418
        %v5432 = vadd.f32 %v5341, %v5421
        %v5433 = vadd.f32 %v5342, %v5424
        %v5434 = vrot.slane %v5071, 4
        %v5435 = vrot.slane %v5072, 4
        %v5436 = vsel %vm480, %v5434, %v5435
        %v5437 = vrot.slane %v5073, 4
        %v5438 = vrot.slane %v5074, 4
        %v5439 = vsel %vm480, %v5437, %v5438
        %v5440 = vrot.slane %v5075, 4
        %v5441 = vrot.slane %v5076, 4
        %v5442 = vsel %vm480, %v5440, %v5441
        %v5443 = vrot.slane %v5077, 4
        %v5444 = vrot.slane %v5078, 4
        %v5445 = vsel %vm480, %v5443, %v5444
        %v5446 = vrot.slane %v5079, 4
        %v5447 = vrot.slane %v5080, 4
        %v5448 = vsel %vm480, %v5446, %v5447
        %v5449 = vrot.slane %v5081, 4
        %v5450 = vrot.slane %v5082, 4
        %v5451 = vsel %vm480, %v5449, %v5450
        %v5452 = vrot.slane %v5083, 4
        %v5453 = vrot.slane %v5084, 4
        %v5454 = vsel %vm480, %v5452, %v5453
        %v5455 = vrot.slane %v5085, 4
        %v5456 = vrot.slane %v5086, 4
        %v5457 = vsel %vm480, %v5455, %v5456
        %s5458 = scalar_lea.vmem %s3, 32
        %v5459 = vld [vmem:[%s5458] sm:$0xff]
        %v5460 = vsel %vm4901, %v5436, 0
        %v5462 = vsel %vm4901, %v5439, 0
        %v5464 = vsel %vm4901, %v5442, 0
        %v5466 = vsel %vm4901, %v5445, 0
        %v5468 = vsel %vm4901, %v5448, 0
        %v5470 = vsel %vm4901, %v5451, 0
        %v5472 = vsel %vm4901, %v5454, 0
        %v5474 = vsel %vm4901, %v5457, 0
        %5476 = vmatpush.msra.mxu0 0.0
        %5477 = vmatpush.msra.mxu0 0.0
        %5478 = vmatpush.msra.mxu0 0.0
        %5479 = vmatpush.msra.mxu0 0.0
        %5480 = vmatpush.msra.mxu0 0.0
        %5481 = vmatpush.msra.mxu0 0.0
        %5482 = vmatpush.msra.mxu0 0.0
        %5483 = vmatpush.msra.mxu0 0.0
        %5484 = vmatpush.msra.mxu0 0.0
        %5485 = vmatpush.msra.mxu0 0.0
        %5486 = vmatpush.msra.mxu0 0.0
        %5487 = vmatpush.msra.mxu0 0.0
        %5488 = vmatpush.msra.mxu0 0.0
        %5489 = vmatpush.msra.mxu0 0.0
        %5490 = vmatpush.msra.mxu0 0.0
        %5491 = vmatpush.msra.mxu0 %v5459
        %5492 = vmatmul.f32.gmra.mxu0 %v5460
        %v5493 = vpop.f32.mrf.mxu0
        %v5494 = vadd.f32 0.0, %v5493
        %5495 = vmatmul.f32.gmra.mxu0 %v5462
        %v5496 = vpop.f32.mrf.mxu0
        %v5497 = vadd.f32 0.0, %v5496
        %5498 = vmatmul.f32.gmra.mxu0 %v5464
        %v5499 = vpop.f32.mrf.mxu0
        %v5500 = vadd.f32 0.0, %v5499
        %5501 = vmatmul.f32.gmra.mxu0 %v5466
        %v5502 = vpop.f32.mrf.mxu0
        %v5503 = vadd.f32 0.0, %v5502
        %5504 = vmatmul.f32.gmra.mxu0 %v5468
        %v5505 = vpop.f32.mrf.mxu0
        %v5506 = vadd.f32 0.0, %v5505
        %5507 = vmatmul.f32.gmra.mxu0 %v5470
        %v5508 = vpop.f32.mrf.mxu0
        %v5509 = vadd.f32 0.0, %v5508
        %5510 = vmatmul.f32.gmra.mxu0 %v5472
        %v5511 = vpop.f32.mrf.mxu0
        %v5512 = vadd.f32 0.0, %v5511
        %5513 = vmatmul.f32.gmra.mxu0 %v5474
        %v5514 = vpop.f32.mrf.mxu0
        %v5515 = vadd.f32 0.0, %v5514
        %5516 = vdwg.mxu0
        %v5517 = vadd.f32 %v5426, %v5494
        %v5518 = vadd.f32 %v5427, %v5497
        %v5519 = vadd.f32 %v5428, %v5500
        %v5520 = vadd.f32 %v5429, %v5503
        %v5521 = vadd.f32 %v5430, %v5506
        %v5522 = vadd.f32 %v5431, %v5509
        %v5523 = vadd.f32 %v5432, %v5512
        %v5524 = vadd.f32 %v5433, %v5515
        %s5525 = scalar_lea.vmem %s3, 40
        %v5526 = vld [vmem:[%s5525] sm:$0xff]
        %v5528 = vsel %vm4901, %v5087, 0
        %5530 = vmatpush.msra.mxu0 0.0
        %5531 = vmatpush.msra.mxu0 0.0
        %5532 = vmatpush.msra.mxu0 0.0
        %5533 = vmatpush.msra.mxu0 0.0
        %5534 = vmatpush.msra.mxu0 0.0
        %5535 = vmatpush.msra.mxu0 0.0
        %5536 = vmatpush.msra.mxu0 0.0
        %5537 = vmatpush.msra.mxu0 0.0
        %5538 = vmatpush.msra.mxu0 0.0
        %5539 = vmatpush.msra.mxu0 0.0
        %5540 = vmatpush.msra.mxu0 0.0
        %5541 = vmatpush.msra.mxu0 0.0
        %5542 = vmatpush.msra.mxu0 0.0
        %5543 = vmatpush.msra.mxu0 0.0
        %5544 = vmatpush.msra.mxu0 0.0
        %5545 = vmatpush.msra.mxu0 %v5526
        %5546 = vmatmul.f32.gmra.mxu0 %v5197
        %v5547 = vpop.f32.mrf.mxu0
        %v5548 = vadd.f32 0.0, %v5547
        %5549 = vmatmul.f32.gmra.mxu0 %v5199
        %v5550 = vpop.f32.mrf.mxu0
        %v5551 = vadd.f32 0.0, %v5550
        %5552 = vmatmul.f32.gmra.mxu0 %v5201
        %v5553 = vpop.f32.mrf.mxu0
        %v5554 = vadd.f32 0.0, %v5553
        %5555 = vmatmul.f32.gmra.mxu0 %v5203
        %v5556 = vpop.f32.mrf.mxu0
        %v5557 = vadd.f32 0.0, %v5556
        %5558 = vmatmul.f32.gmra.mxu0 %v5205
        %v5559 = vpop.f32.mrf.mxu0
        %v5560 = vadd.f32 0.0, %v5559
        %5561 = vmatmul.f32.gmra.mxu0 %v5207
        %v5562 = vpop.f32.mrf.mxu0
        %v5563 = vadd.f32 0.0, %v5562
        %5564 = vmatmul.f32.gmra.mxu0 %v5209
        %v5565 = vpop.f32.mrf.mxu0
        %v5566 = vadd.f32 0.0, %v5565
        %5567 = vmatmul.f32.gmra.mxu0 %v5528
        %v5568 = vpop.f32.mrf.mxu0
        %v5569 = vadd.f32 0.0, %v5568
        %5570 = vdwg.mxu0
        %v5571 = vadd.f32 %v5517, %v5548
        %v5572 = vadd.f32 %v5518, %v5551
        %v5573 = vadd.f32 %v5519, %v5554
        %v5574 = vadd.f32 %v5520, %v5557
        %v5575 = vadd.f32 %v5521, %v5560
        %v5576 = vadd.f32 %v5522, %v5563
        %v5577 = vadd.f32 %v5523, %v5566
        %v5578 = vadd.f32 %v5524, %v5569
        %v5580 = vrot.slane %v5087, 1
        %v5581 = vrot.slane %v5088, 1
        %v5582 = vsel %vm332, %v5580, %v5581
        %s5583 = scalar_lea.vmem %s3, 48
        %v5584 = vld [vmem:[%s5583] sm:$0xff]
        %v5585 = vsel %vm4901, %v5582, 0
        %5587 = vmatpush.msra.mxu0 0.0
        %5588 = vmatpush.msra.mxu0 0.0
        %5589 = vmatpush.msra.mxu0 0.0
        %5590 = vmatpush.msra.mxu0 0.0
        %5591 = vmatpush.msra.mxu0 0.0
        %5592 = vmatpush.msra.mxu0 0.0
        %5593 = vmatpush.msra.mxu0 0.0
        %5594 = vmatpush.msra.mxu0 0.0
        %5595 = vmatpush.msra.mxu0 0.0
        %5596 = vmatpush.msra.mxu0 0.0
        %5597 = vmatpush.msra.mxu0 0.0
        %5598 = vmatpush.msra.mxu0 0.0
        %5599 = vmatpush.msra.mxu0 0.0
        %5600 = vmatpush.msra.mxu0 0.0
        %5601 = vmatpush.msra.mxu0 0.0
        %5602 = vmatpush.msra.mxu0 %v5584
        %5603 = vmatmul.f32.gmra.mxu0 %v5140
        %v5604 = vpop.f32.mrf.mxu0
        %v5605 = vadd.f32 0.0, %v5604
        %5606 = vmatmul.f32.gmra.mxu0 %v5142
        %v5607 = vpop.f32.mrf.mxu0
        %v5608 = vadd.f32 0.0, %v5607
        %5609 = vmatmul.f32.gmra.mxu0 %v5144
        %v5610 = vpop.f32.mrf.mxu0
        %v5611 = vadd.f32 0.0, %v5610
        %5612 = vmatmul.f32.gmra.mxu0 %v5146
        %v5613 = vpop.f32.mrf.mxu0
        %v5614 = vadd.f32 0.0, %v5613
        %5615 = vmatmul.f32.gmra.mxu0 %v5148
        %v5616 = vpop.f32.mrf.mxu0
        %v5617 = vadd.f32 0.0, %v5616
        %5618 = vmatmul.f32.gmra.mxu0 %v5150
        %v5619 = vpop.f32.mrf.mxu0
        %v5620 = vadd.f32 0.0, %v5619
        %5621 = vmatmul.f32.gmra.mxu0 %v5152
        %v5622 = vpop.f32.mrf.mxu0
        %v5623 = vadd.f32 0.0, %v5622
        %5624 = vmatmul.f32.gmra.mxu0 %v5585
        %v5625 = vpop.f32.mrf.mxu0
        %v5626 = vadd.f32 0.0, %v5625
        %5627 = vdwg.mxu0
        %v5628 = vadd.f32 %v5571, %v5605
        %v5629 = vadd.f32 %v5572, %v5608
        %v5630 = vadd.f32 %v5573, %v5611
        %v5631 = vadd.f32 %v5574, %v5614
        %v5632 = vadd.f32 %v5575, %v5617
        %v5633 = vadd.f32 %v5576, %v5620
        %v5634 = vadd.f32 %v5577, %v5623
        %v5635 = vadd.f32 %v5578, %v5626
        %v5636 = vrot.slane %v5087, 2
        %v5637 = vrot.slane %v5088, 2
        %v5638 = vsel %vm777, %v5636, %v5637
        %s5639 = scalar_lea.vmem %s3, 56
        %v5640 = vld [vmem:[%s5639] sm:$0xff]
        %v5641 = vsel %vm4901, %v5638, 0
        %5643 = vmatpush.msra.mxu0 0.0
        %5644 = vmatpush.msra.mxu0 0.0
        %5645 = vmatpush.msra.mxu0 0.0
        %5646 = vmatpush.msra.mxu0 0.0
        %5647 = vmatpush.msra.mxu0 0.0
        %5648 = vmatpush.msra.mxu0 0.0
        %5649 = vmatpush.msra.mxu0 0.0
        %5650 = vmatpush.msra.mxu0 0.0
        %5651 = vmatpush.msra.mxu0 0.0
        %5652 = vmatpush.msra.mxu0 0.0
        %5653 = vmatpush.msra.mxu0 0.0
        %5654 = vmatpush.msra.mxu0 0.0
        %5655 = vmatpush.msra.mxu0 0.0
        %5656 = vmatpush.msra.mxu0 0.0
        %5657 = vmatpush.msra.mxu0 0.0
        %5658 = vmatpush.msra.mxu0 %v5640
        %5659 = vmatmul.f32.gmra.mxu0 %v5280
        %v5660 = vpop.f32.mrf.mxu0
        %v5661 = vadd.f32 0.0, %v5660
        %5662 = vmatmul.f32.gmra.mxu0 %v5282
        %v5663 = vpop.f32.mrf.mxu0
        %v5664 = vadd.f32 0.0, %v5663
        %5665 = vmatmul.f32.gmra.mxu0 %v5284
        %v5666 = vpop.f32.mrf.mxu0
        %v5667 = vadd.f32 0.0, %v5666
        %5668 = vmatmul.f32.gmra.mxu0 %v5286
        %v5669 = vpop.f32.mrf.mxu0
        %v5670 = vadd.f32 0.0, %v5669
        %5671 = vmatmul.f32.gmra.mxu0 %v5288
        %v5672 = vpop.f32.mrf.mxu0
        %v5673 = vadd.f32 0.0, %v5672
        %5674 = vmatmul.f32.gmra.mxu0 %v5290
        %v5675 = vpop.f32.mrf.mxu0
        %v5676 = vadd.f32 0.0, %v5675
        %5677 = vmatmul.f32.gmra.mxu0 %v5292
        %v5678 = vpop.f32.mrf.mxu0
        %v5679 = vadd.f32 0.0, %v5678
        %5680 = vmatmul.f32.gmra.mxu0 %v5641
        %v5681 = vpop.f32.mrf.mxu0
        %v5682 = vadd.f32 0.0, %v5681
        %5683 = vdwg.mxu0
        %v5684 = vadd.f32 %v5628, %v5661
        %v5685 = vadd.f32 %v5629, %v5664
        %v5686 = vadd.f32 %v5630, %v5667
        %v5687 = vadd.f32 %v5631, %v5670
        %v5688 = vadd.f32 %v5632, %v5673
        %v5689 = vadd.f32 %v5633, %v5676
        %v5690 = vadd.f32 %v5634, %v5679
        %v5691 = vadd.f32 %v5635, %v5682
        %v5692 = vrot.slane %v5087, 3
        %v5693 = vrot.slane %v5088, 3
        %v5694 = vsel %vm1072, %v5692, %v5693
        %s5695 = scalar_lea.vmem %s3, 64
        %v5696 = vld [vmem:[%s5695] sm:$0xff]
        %v5697 = vsel %vm4901, %v5694, 0
        %5699 = vmatpush.msra.mxu0 0.0
        %5700 = vmatpush.msra.mxu0 0.0
        %5701 = vmatpush.msra.mxu0 0.0
        %5702 = vmatpush.msra.mxu0 0.0
        %5703 = vmatpush.msra.mxu0 0.0
        %5704 = vmatpush.msra.mxu0 0.0
        %5705 = vmatpush.msra.mxu0 0.0
        %5706 = vmatpush.msra.mxu0 0.0
        %5707 = vmatpush.msra.mxu0 0.0
        %5708 = vmatpush.msra.mxu0 0.0
        %5709 = vmatpush.msra.mxu0 0.0
        %5710 = vmatpush.msra.mxu0 0.0
        %5711 = vmatpush.msra.mxu0 0.0
        %5712 = vmatpush.msra.mxu0 0.0
        %5713 = vmatpush.msra.mxu0 0.0
        %5714 = vmatpush.msra.mxu0 %v5696
        %5715 = vmatmul.f32.gmra.mxu0 %v5371
        %v5716 = vpop.f32.mrf.mxu0
        %v5717 = vadd.f32 0.0, %v5716
        %5718 = vmatmul.f32.gmra.mxu0 %v5373
        %v5719 = vpop.f32.mrf.mxu0
        %v5720 = vadd.f32 0.0, %v5719
        %5721 = vmatmul.f32.gmra.mxu0 %v5375
        %v5722 = vpop.f32.mrf.mxu0
        %v5723 = vadd.f32 0.0, %v5722
        %5724 = vmatmul.f32.gmra.mxu0 %v5377
        %v5725 = vpop.f32.mrf.mxu0
        %v5726 = vadd.f32 0.0, %v5725
        %5727 = vmatmul.f32.gmra.mxu0 %v5379
        %v5728 = vpop.f32.mrf.mxu0
        %v5729 = vadd.f32 0.0, %v5728
        %5730 = vmatmul.f32.gmra.mxu0 %v5381
        %v5731 = vpop.f32.mrf.mxu0
        %v5732 = vadd.f32 0.0, %v5731
        %5733 = vmatmul.f32.gmra.mxu0 %v5383
        %v5734 = vpop.f32.mrf.mxu0
        %v5735 = vadd.f32 0.0, %v5734
        %5736 = vmatmul.f32.gmra.mxu0 %v5697
        %v5737 = vpop.f32.mrf.mxu0
        %v5738 = vadd.f32 0.0, %v5737
        %5739 = vdwg.mxu0
        %v5740 = vadd.f32 %v5684, %v5717
        %v5741 = vadd.f32 %v5685, %v5720
        %v5742 = vadd.f32 %v5686, %v5723
        %v5743 = vadd.f32 %v5687, %v5726
        %v5744 = vadd.f32 %v5688, %v5729
        %v5745 = vadd.f32 %v5689, %v5732
        %v5746 = vadd.f32 %v5690, %v5735
        %v5747 = vadd.f32 %v5691, %v5738
        %v5748 = vrot.slane %v5087, 4
        %v5749 = vrot.slane %v5088, 4
        %v5750 = vsel %vm480, %v5748, %v5749
        %s5751 = scalar_lea.vmem %s3, 72
        %v5752 = vld [vmem:[%s5751] sm:$0xff]
        %v5753 = vsel %vm4901, %v5750, 0
        %5755 = vmatpush.msra.mxu0 0.0
        %5756 = vmatpush.msra.mxu0 0.0
        %5757 = vmatpush.msra.mxu0 0.0
        %5758 = vmatpush.msra.mxu0 0.0
        %5759 = vmatpush.msra.mxu0 0.0
        %5760 = vmatpush.msra.mxu0 0.0
        %5761 = vmatpush.msra.mxu0 0.0
        %5762 = vmatpush.msra.mxu0 0.0
        %5763 = vmatpush.msra.mxu0 0.0
        %5764 = vmatpush.msra.mxu0 0.0
        %5765 = vmatpush.msra.mxu0 0.0
        %5766 = vmatpush.msra.mxu0 0.0
        %5767 = vmatpush.msra.mxu0 0.0
        %5768 = vmatpush.msra.mxu0 0.0
        %5769 = vmatpush.msra.mxu0 0.0
        %5770 = vmatpush.msra.mxu0 %v5752
        %5771 = vmatmul.f32.gmra.mxu0 %v5462
        %v5772 = vpop.f32.mrf.mxu0
        %v5773 = vadd.f32 0.0, %v5772
        %5774 = vmatmul.f32.gmra.mxu0 %v5464
        %v5775 = vpop.f32.mrf.mxu0
        %v5776 = vadd.f32 0.0, %v5775
        %5777 = vmatmul.f32.gmra.mxu0 %v5466
        %v5778 = vpop.f32.mrf.mxu0
        %v5779 = vadd.f32 0.0, %v5778
        %5780 = vmatmul.f32.gmra.mxu0 %v5468
        %v5781 = vpop.f32.mrf.mxu0
        %v5782 = vadd.f32 0.0, %v5781
        %5783 = vmatmul.f32.gmra.mxu0 %v5470
        %v5784 = vpop.f32.mrf.mxu0
        %v5785 = vadd.f32 0.0, %v5784
        %5786 = vmatmul.f32.gmra.mxu0 %v5472
        %v5787 = vpop.f32.mrf.mxu0
        %v5788 = vadd.f32 0.0, %v5787
        %5789 = vmatmul.f32.gmra.mxu0 %v5474
        %v5790 = vpop.f32.mrf.mxu0
        %v5791 = vadd.f32 0.0, %v5790
        %5792 = vmatmul.f32.gmra.mxu0 %v5753
        %v5793 = vpop.f32.mrf.mxu0
        %v5794 = vadd.f32 0.0, %v5793
        %5795 = vdwg.mxu0
        %v5796 = vadd.f32 %v5740, %v5773
        %v5797 = vadd.f32 %v5741, %v5776
        %v5798 = vadd.f32 %v5742, %v5779
        %v5799 = vadd.f32 %v5743, %v5782
        %v5800 = vadd.f32 %v5744, %v5785
        %v5801 = vadd.f32 %v5745, %v5788
        %v5802 = vadd.f32 %v5746, %v5791
        %v5803 = vadd.f32 %v5747, %v5794
        %s5804 = scalar_lea.vmem %s3, 80
        %v5805 = vld [vmem:[%s5804] sm:$0xff]
        %v5807 = vsel %vm4901, %v5089, 0
        %5809 = vmatpush.msra.mxu0 0.0
        %5810 = vmatpush.msra.mxu0 0.0
        %5811 = vmatpush.msra.mxu0 0.0
        %5812 = vmatpush.msra.mxu0 0.0
        %5813 = vmatpush.msra.mxu0 0.0
        %5814 = vmatpush.msra.mxu0 0.0
        %5815 = vmatpush.msra.mxu0 0.0
        %5816 = vmatpush.msra.mxu0 0.0
        %5817 = vmatpush.msra.mxu0 0.0
        %5818 = vmatpush.msra.mxu0 0.0
        %5819 = vmatpush.msra.mxu0 0.0
        %5820 = vmatpush.msra.mxu0 0.0
        %5821 = vmatpush.msra.mxu0 0.0
        %5822 = vmatpush.msra.mxu0 0.0
        %5823 = vmatpush.msra.mxu0 0.0
        %5824 = vmatpush.msra.mxu0 %v5805
        %5825 = vmatmul.f32.gmra.mxu0 %v5199
        %v5826 = vpop.f32.mrf.mxu0
        %v5827 = vadd.f32 0.0, %v5826
        %5828 = vmatmul.f32.gmra.mxu0 %v5201
        %v5829 = vpop.f32.mrf.mxu0
        %v5830 = vadd.f32 0.0, %v5829
        %5831 = vmatmul.f32.gmra.mxu0 %v5203
        %v5832 = vpop.f32.mrf.mxu0
        %v5833 = vadd.f32 0.0, %v5832
        %5834 = vmatmul.f32.gmra.mxu0 %v5205
        %v5835 = vpop.f32.mrf.mxu0
        %v5836 = vadd.f32 0.0, %v5835
        %5837 = vmatmul.f32.gmra.mxu0 %v5207
        %v5838 = vpop.f32.mrf.mxu0
        %v5839 = vadd.f32 0.0, %v5838
        %5840 = vmatmul.f32.gmra.mxu0 %v5209
        %v5841 = vpop.f32.mrf.mxu0
        %v5842 = vadd.f32 0.0, %v5841
        %5843 = vmatmul.f32.gmra.mxu0 %v5528
        %v5844 = vpop.f32.mrf.mxu0
        %v5845 = vadd.f32 0.0, %v5844
        %5846 = vmatmul.f32.gmra.mxu0 %v5807
        %v5847 = vpop.f32.mrf.mxu0
        %v5848 = vadd.f32 0.0, %v5847
        %5849 = vdwg.mxu0
        %v5850 = vadd.f32 %v5796, %v5827
        %v5851 = vadd.f32 %v5797, %v5830
        %v5852 = vadd.f32 %v5798, %v5833
        %v5853 = vadd.f32 %v5799, %v5836
        %v5854 = vadd.f32 %v5800, %v5839
        %v5855 = vadd.f32 %v5801, %v5842
        %v5856 = vadd.f32 %v5802, %v5845
        %v5857 = vadd.f32 %v5803, %v5848
        %v5859 = vrot.slane %v5089, 1
        %v5860 = vrot.slane %v5090, 1
        %v5861 = vsel %vm332, %v5859, %v5860
        %s5862 = scalar_lea.vmem %s3, 88
        %v5863 = vld [vmem:[%s5862] sm:$0xff]
        %v5864 = vsel %vm4901, %v5861, 0
        %5866 = vmatpush.msra.mxu0 0.0
        %5867 = vmatpush.msra.mxu0 0.0
        %5868 = vmatpush.msra.mxu0 0.0
        %5869 = vmatpush.msra.mxu0 0.0
        %5870 = vmatpush.msra.mxu0 0.0
        %5871 = vmatpush.msra.mxu0 0.0
        %5872 = vmatpush.msra.mxu0 0.0
        %5873 = vmatpush.msra.mxu0 0.0
        %5874 = vmatpush.msra.mxu0 0.0
        %5875 = vmatpush.msra.mxu0 0.0
        %5876 = vmatpush.msra.mxu0 0.0
        %5877 = vmatpush.msra.mxu0 0.0
        %5878 = vmatpush.msra.mxu0 0.0
        %5879 = vmatpush.msra.mxu0 0.0
        %5880 = vmatpush.msra.mxu0 0.0
        %5881 = vmatpush.msra.mxu0 %v5863
        %5882 = vmatmul.f32.gmra.mxu0 %v5142
        %v5883 = vpop.f32.mrf.mxu0
        %v5884 = vadd.f32 0.0, %v5883
        %5885 = vmatmul.f32.gmra.mxu0 %v5144
        %v5886 = vpop.f32.mrf.mxu0
        %v5887 = vadd.f32 0.0, %v5886
        %5888 = vmatmul.f32.gmra.mxu0 %v5146
        %v5889 = vpop.f32.mrf.mxu0
        %v5890 = vadd.f32 0.0, %v5889
        %5891 = vmatmul.f32.gmra.mxu0 %v5148
        %v5892 = vpop.f32.mrf.mxu0
        %v5893 = vadd.f32 0.0, %v5892
        %5894 = vmatmul.f32.gmra.mxu0 %v5150
        %v5895 = vpop.f32.mrf.mxu0
        %v5896 = vadd.f32 0.0, %v5895
        %5897 = vmatmul.f32.gmra.mxu0 %v5152
        %v5898 = vpop.f32.mrf.mxu0
        %v5899 = vadd.f32 0.0, %v5898
        %5900 = vmatmul.f32.gmra.mxu0 %v5585
        %v5901 = vpop.f32.mrf.mxu0
        %v5902 = vadd.f32 0.0, %v5901
        %5903 = vmatmul.f32.gmra.mxu0 %v5864
        %v5904 = vpop.f32.mrf.mxu0
        %v5905 = vadd.f32 0.0, %v5904
        %5906 = vdwg.mxu0
        %v5907 = vadd.f32 %v5850, %v5884
        %v5908 = vadd.f32 %v5851, %v5887
        %v5909 = vadd.f32 %v5852, %v5890
        %v5910 = vadd.f32 %v5853, %v5893
        %v5911 = vadd.f32 %v5854, %v5896
        %v5912 = vadd.f32 %v5855, %v5899
        %v5913 = vadd.f32 %v5856, %v5902
        %v5914 = vadd.f32 %v5857, %v5905
        %v5915 = vrot.slane %v5089, 2
        %v5916 = vrot.slane %v5090, 2
        %v5917 = vsel %vm777, %v5915, %v5916
        %s5918 = scalar_lea.vmem %s3, 96
        %v5919 = vld [vmem:[%s5918] sm:$0xff]
        %v5920 = vsel %vm4901, %v5917, 0
        %5922 = vmatpush.msra.mxu0 0.0
        %5923 = vmatpush.msra.mxu0 0.0
        %5924 = vmatpush.msra.mxu0 0.0
        %5925 = vmatpush.msra.mxu0 0.0
        %5926 = vmatpush.msra.mxu0 0.0
        %5927 = vmatpush.msra.mxu0 0.0
        %5928 = vmatpush.msra.mxu0 0.0
        %5929 = vmatpush.msra.mxu0 0.0
        %5930 = vmatpush.msra.mxu0 0.0
        %5931 = vmatpush.msra.mxu0 0.0
        %5932 = vmatpush.msra.mxu0 0.0
        %5933 = vmatpush.msra.mxu0 0.0
        %5934 = vmatpush.msra.mxu0 0.0
        %5935 = vmatpush.msra.mxu0 0.0
        %5936 = vmatpush.msra.mxu0 0.0
        %5937 = vmatpush.msra.mxu0 %v5919
        %5938 = vmatmul.f32.gmra.mxu0 %v5282
        %v5939 = vpop.f32.mrf.mxu0
        %v5940 = vadd.f32 0.0, %v5939
        %5941 = vmatmul.f32.gmra.mxu0 %v5284
        %v5942 = vpop.f32.mrf.mxu0
        %v5943 = vadd.f32 0.0, %v5942
        %5944 = vmatmul.f32.gmra.mxu0 %v5286
        %v5945 = vpop.f32.mrf.mxu0
        %v5946 = vadd.f32 0.0, %v5945
        %5947 = vmatmul.f32.gmra.mxu0 %v5288
        %v5948 = vpop.f32.mrf.mxu0
        %v5949 = vadd.f32 0.0, %v5948
        %5950 = vmatmul.f32.gmra.mxu0 %v5290
        %v5951 = vpop.f32.mrf.mxu0
        %v5952 = vadd.f32 0.0, %v5951
        %5953 = vmatmul.f32.gmra.mxu0 %v5292
        %v5954 = vpop.f32.mrf.mxu0
        %v5955 = vadd.f32 0.0, %v5954
        %5956 = vmatmul.f32.gmra.mxu0 %v5641
        %v5957 = vpop.f32.mrf.mxu0
        %v5958 = vadd.f32 0.0, %v5957
        %5959 = vmatmul.f32.gmra.mxu0 %v5920
        %v5960 = vpop.f32.mrf.mxu0
        %v5961 = vadd.f32 0.0, %v5960
        %5962 = vdwg.mxu0
        %v5963 = vadd.f32 %v5907, %v5940
        %v5964 = vadd.f32 %v5908, %v5943
        %v5965 = vadd.f32 %v5909, %v5946
        %v5966 = vadd.f32 %v5910, %v5949
        %v5967 = vadd.f32 %v5911, %v5952
        %v5968 = vadd.f32 %v5912, %v5955
        %v5969 = vadd.f32 %v5913, %v5958
        %v5970 = vadd.f32 %v5914, %v5961
        %v5971 = vrot.slane %v5089, 3
        %v5972 = vrot.slane %v5090, 3
        %v5973 = vsel %vm1072, %v5971, %v5972
        %s5974 = scalar_lea.vmem %s3, 104
        %v5975 = vld [vmem:[%s5974] sm:$0xff]
        %v5976 = vsel %vm4901, %v5973, 0
        %5978 = vmatpush.msra.mxu0 0.0
        %5979 = vmatpush.msra.mxu0 0.0
        %5980 = vmatpush.msra.mxu0 0.0
        %5981 = vmatpush.msra.mxu0 0.0
        %5982 = vmatpush.msra.mxu0 0.0
        %5983 = vmatpush.msra.mxu0 0.0
        %5984 = vmatpush.msra.mxu0 0.0
        %5985 = vmatpush.msra.mxu0 0.0
        %5986 = vmatpush.msra.mxu0 0.0
        %5987 = vmatpush.msra.mxu0 0.0
        %5988 = vmatpush.msra.mxu0 0.0
        %5989 = vmatpush.msra.mxu0 0.0
        %5990 = vmatpush.msra.mxu0 0.0
        %5991 = vmatpush.msra.mxu0 0.0
        %5992 = vmatpush.msra.mxu0 0.0
        %5993 = vmatpush.msra.mxu0 %v5975
        %5994 = vmatmul.f32.gmra.mxu0 %v5373
        %v5995 = vpop.f32.mrf.mxu0
        %v5996 = vadd.f32 0.0, %v5995
        %5997 = vmatmul.f32.gmra.mxu0 %v5375
        %v5998 = vpop.f32.mrf.mxu0
        %v5999 = vadd.f32 0.0, %v5998
        %6000 = vmatmul.f32.gmra.mxu0 %v5377
        %v6001 = vpop.f32.mrf.mxu0
        %v6002 = vadd.f32 0.0, %v6001
        %6003 = vmatmul.f32.gmra.mxu0 %v5379
        %v6004 = vpop.f32.mrf.mxu0
        %v6005 = vadd.f32 0.0, %v6004
        %6006 = vmatmul.f32.gmra.mxu0 %v5381
        %v6007 = vpop.f32.mrf.mxu0
        %v6008 = vadd.f32 0.0, %v6007
        %6009 = vmatmul.f32.gmra.mxu0 %v5383
        %v6010 = vpop.f32.mrf.mxu0
        %v6011 = vadd.f32 0.0, %v6010
        %6012 = vmatmul.f32.gmra.mxu0 %v5697
        %v6013 = vpop.f32.mrf.mxu0
        %v6014 = vadd.f32 0.0, %v6013
        %6015 = vmatmul.f32.gmra.mxu0 %v5976
        %v6016 = vpop.f32.mrf.mxu0
        %v6017 = vadd.f32 0.0, %v6016
        %6018 = vdwg.mxu0
        %v6019 = vadd.f32 %v5963, %v5996
        %v6020 = vadd.f32 %v5964, %v5999
        %v6021 = vadd.f32 %v5965, %v6002
        %v6022 = vadd.f32 %v5966, %v6005
        %v6023 = vadd.f32 %v5967, %v6008
        %v6024 = vadd.f32 %v5968, %v6011
        %v6025 = vadd.f32 %v5969, %v6014
        %v6026 = vadd.f32 %v5970, %v6017
        %v6027 = vrot.slane %v5089, 4
        %v6028 = vrot.slane %v5090, 4
        %v6029 = vsel %vm480, %v6027, %v6028
        %s6030 = scalar_lea.vmem %s3, 112
        %v6031 = vld [vmem:[%s6030] sm:$0xff]
        %v6032 = vsel %vm4901, %v6029, 0
        %6034 = vmatpush.msra.mxu0 0.0
        %6035 = vmatpush.msra.mxu0 0.0
        %6036 = vmatpush.msra.mxu0 0.0
        %6037 = vmatpush.msra.mxu0 0.0
        %6038 = vmatpush.msra.mxu0 0.0
        %6039 = vmatpush.msra.mxu0 0.0
        %6040 = vmatpush.msra.mxu0 0.0
        %6041 = vmatpush.msra.mxu0 0.0
        %6042 = vmatpush.msra.mxu0 0.0
        %6043 = vmatpush.msra.mxu0 0.0
        %6044 = vmatpush.msra.mxu0 0.0
        %6045 = vmatpush.msra.mxu0 0.0
        %6046 = vmatpush.msra.mxu0 0.0
        %6047 = vmatpush.msra.mxu0 0.0
        %6048 = vmatpush.msra.mxu0 0.0
        %6049 = vmatpush.msra.mxu0 %v6031
        %6050 = vmatmul.f32.gmra.mxu0 %v5464
        %v6051 = vpop.f32.mrf.mxu0
        %v6052 = vadd.f32 0.0, %v6051
        %6053 = vmatmul.f32.gmra.mxu0 %v5466
        %v6054 = vpop.f32.mrf.mxu0
        %v6055 = vadd.f32 0.0, %v6054
        %6056 = vmatmul.f32.gmra.mxu0 %v5468
        %v6057 = vpop.f32.mrf.mxu0
        %v6058 = vadd.f32 0.0, %v6057
        %6059 = vmatmul.f32.gmra.mxu0 %v5470
        %v6060 = vpop.f32.mrf.mxu0
        %v6061 = vadd.f32 0.0, %v6060
        %6062 = vmatmul.f32.gmra.mxu0 %v5472
        %v6063 = vpop.f32.mrf.mxu0
        %v6064 = vadd.f32 0.0, %v6063
        %6065 = vmatmul.f32.gmra.mxu0 %v5474
        %v6066 = vpop.f32.mrf.mxu0
        %v6067 = vadd.f32 0.0, %v6066
        %6068 = vmatmul.f32.gmra.mxu0 %v5753
        %v6069 = vpop.f32.mrf.mxu0
        %v6070 = vadd.f32 0.0, %v6069
        %6071 = vmatmul.f32.gmra.mxu0 %v6032
        %v6072 = vpop.f32.mrf.mxu0
        %v6073 = vadd.f32 0.0, %v6072
        %6074 = vdwg.mxu0
        %v6075 = vadd.f32 %v6019, %v6052
        %v6076 = vadd.f32 %v6020, %v6055
        %v6077 = vadd.f32 %v6021, %v6058
        %v6078 = vadd.f32 %v6022, %v6061
        %v6079 = vadd.f32 %v6023, %v6064
        %v6080 = vadd.f32 %v6024, %v6067
        %v6081 = vadd.f32 %v6025, %v6070
        %v6082 = vadd.f32 %v6026, %v6073
        %s6083 = scalar_lea.vmem %s3, 120
        %v6084 = vld [vmem:[%s6083] sm:$0xff]
        %v6086 = vsel %vm4901, %v5091, 0
        %6088 = vmatpush.msra.mxu0 0.0
        %6089 = vmatpush.msra.mxu0 0.0
        %6090 = vmatpush.msra.mxu0 0.0
        %6091 = vmatpush.msra.mxu0 0.0
        %6092 = vmatpush.msra.mxu0 0.0
        %6093 = vmatpush.msra.mxu0 0.0
        %6094 = vmatpush.msra.mxu0 0.0
        %6095 = vmatpush.msra.mxu0 0.0
        %6096 = vmatpush.msra.mxu0 0.0
        %6097 = vmatpush.msra.mxu0 0.0
        %6098 = vmatpush.msra.mxu0 0.0
        %6099 = vmatpush.msra.mxu0 0.0
        %6100 = vmatpush.msra.mxu0 0.0
        %6101 = vmatpush.msra.mxu0 0.0
        %6102 = vmatpush.msra.mxu0 0.0
        %6103 = vmatpush.msra.mxu0 %v6084
        %6104 = vmatmul.f32.gmra.mxu0 %v5201
        %v6105 = vpop.f32.mrf.mxu0
        %v6106 = vadd.f32 0.0, %v6105
        %6107 = vmatmul.f32.gmra.mxu0 %v5203
        %v6108 = vpop.f32.mrf.mxu0
        %v6109 = vadd.f32 0.0, %v6108
        %6110 = vmatmul.f32.gmra.mxu0 %v5205
        %v6111 = vpop.f32.mrf.mxu0
        %v6112 = vadd.f32 0.0, %v6111
        %6113 = vmatmul.f32.gmra.mxu0 %v5207
        %v6114 = vpop.f32.mrf.mxu0
        %v6115 = vadd.f32 0.0, %v6114
        %6116 = vmatmul.f32.gmra.mxu0 %v5209
        %v6117 = vpop.f32.mrf.mxu0
        %v6118 = vadd.f32 0.0, %v6117
        %6119 = vmatmul.f32.gmra.mxu0 %v5528
        %v6120 = vpop.f32.mrf.mxu0
        %v6121 = vadd.f32 0.0, %v6120
        %6122 = vmatmul.f32.gmra.mxu0 %v5807
        %v6123 = vpop.f32.mrf.mxu0
        %v6124 = vadd.f32 0.0, %v6123
        %6125 = vmatmul.f32.gmra.mxu0 %v6086
        %v6126 = vpop.f32.mrf.mxu0
        %v6127 = vadd.f32 0.0, %v6126
        %6128 = vdwg.mxu0
        %v6129 = vadd.f32 %v6075, %v6106
        %v6130 = vadd.f32 %v6076, %v6109
        %v6131 = vadd.f32 %v6077, %v6112
        %v6132 = vadd.f32 %v6078, %v6115
        %v6133 = vadd.f32 %v6079, %v6118
        %v6134 = vadd.f32 %v6080, %v6121
        %v6135 = vadd.f32 %v6081, %v6124
        %v6136 = vadd.f32 %v6082, %v6127
        %v6138 = vrot.slane %v5091, 1
        %v6139 = vrot.slane %v5092, 1
        %v6140 = vsel %vm332, %v6138, %v6139
        %s6141 = scalar_lea.vmem %s3, 128
        %v6142 = vld [vmem:[%s6141] sm:$0xff]
        %v6143 = vsel %vm4901, %v6140, 0
        %6145 = vmatpush.msra.mxu0 0.0
        %6146 = vmatpush.msra.mxu0 0.0
        %6147 = vmatpush.msra.mxu0 0.0
        %6148 = vmatpush.msra.mxu0 0.0
        %6149 = vmatpush.msra.mxu0 0.0
        %6150 = vmatpush.msra.mxu0 0.0
        %6151 = vmatpush.msra.mxu0 0.0
        %6152 = vmatpush.msra.mxu0 0.0
        %6153 = vmatpush.msra.mxu0 0.0
        %6154 = vmatpush.msra.mxu0 0.0
        %6155 = vmatpush.msra.mxu0 0.0
        %6156 = vmatpush.msra.mxu0 0.0
        %6157 = vmatpush.msra.mxu0 0.0
        %6158 = vmatpush.msra.mxu0 0.0
        %6159 = vmatpush.msra.mxu0 0.0
        %6160 = vmatpush.msra.mxu0 %v6142
        %6161 = vmatmul.f32.gmra.mxu0 %v5144
        %v6162 = vpop.f32.mrf.mxu0
        %v6163 = vadd.f32 0.0, %v6162
        %6164 = vmatmul.f32.gmra.mxu0 %v5146
        %v6165 = vpop.f32.mrf.mxu0
        %v6166 = vadd.f32 0.0, %v6165
        %6167 = vmatmul.f32.gmra.mxu0 %v5148
        %v6168 = vpop.f32.mrf.mxu0
        %v6169 = vadd.f32 0.0, %v6168
        %6170 = vmatmul.f32.gmra.mxu0 %v5150
        %v6171 = vpop.f32.mrf.mxu0
        %v6172 = vadd.f32 0.0, %v6171
        %6173 = vmatmul.f32.gmra.mxu0 %v5152
        %v6174 = vpop.f32.mrf.mxu0
        %v6175 = vadd.f32 0.0, %v6174
        %6176 = vmatmul.f32.gmra.mxu0 %v5585
        %v6177 = vpop.f32.mrf.mxu0
        %v6178 = vadd.f32 0.0, %v6177
        %6179 = vmatmul.f32.gmra.mxu0 %v5864
        %v6180 = vpop.f32.mrf.mxu0
        %v6181 = vadd.f32 0.0, %v6180
        %6182 = vmatmul.f32.gmra.mxu0 %v6143
        %v6183 = vpop.f32.mrf.mxu0
        %v6184 = vadd.f32 0.0, %v6183
        %6185 = vdwg.mxu0
        %v6186 = vadd.f32 %v6129, %v6163
        %v6187 = vadd.f32 %v6130, %v6166
        %v6188 = vadd.f32 %v6131, %v6169
        %v6189 = vadd.f32 %v6132, %v6172
        %v6190 = vadd.f32 %v6133, %v6175
        %v6191 = vadd.f32 %v6134, %v6178
        %v6192 = vadd.f32 %v6135, %v6181
        %v6193 = vadd.f32 %v6136, %v6184
        %v6194 = vrot.slane %v5091, 2
        %v6195 = vrot.slane %v5092, 2
        %v6196 = vsel %vm777, %v6194, %v6195
        %s6197 = scalar_lea.vmem %s3, 136
        %v6198 = vld [vmem:[%s6197] sm:$0xff]
        %v6199 = vsel %vm4901, %v6196, 0
        %6201 = vmatpush.msra.mxu0 0.0
        %6202 = vmatpush.msra.mxu0 0.0
        %6203 = vmatpush.msra.mxu0 0.0
        %6204 = vmatpush.msra.mxu0 0.0
        %6205 = vmatpush.msra.mxu0 0.0
        %6206 = vmatpush.msra.mxu0 0.0
        %6207 = vmatpush.msra.mxu0 0.0
        %6208 = vmatpush.msra.mxu0 0.0
        %6209 = vmatpush.msra.mxu0 0.0
        %6210 = vmatpush.msra.mxu0 0.0
        %6211 = vmatpush.msra.mxu0 0.0
        %6212 = vmatpush.msra.mxu0 0.0
        %6213 = vmatpush.msra.mxu0 0.0
        %6214 = vmatpush.msra.mxu0 0.0
        %6215 = vmatpush.msra.mxu0 0.0
        %6216 = vmatpush.msra.mxu0 %v6198
        %6217 = vmatmul.f32.gmra.mxu0 %v5284
        %v6218 = vpop.f32.mrf.mxu0
        %v6219 = vadd.f32 0.0, %v6218
        %6220 = vmatmul.f32.gmra.mxu0 %v5286
        %v6221 = vpop.f32.mrf.mxu0
        %v6222 = vadd.f32 0.0, %v6221
        %6223 = vmatmul.f32.gmra.mxu0 %v5288
        %v6224 = vpop.f32.mrf.mxu0
        %v6225 = vadd.f32 0.0, %v6224
        %6226 = vmatmul.f32.gmra.mxu0 %v5290
        %v6227 = vpop.f32.mrf.mxu0
        %v6228 = vadd.f32 0.0, %v6227
        %6229 = vmatmul.f32.gmra.mxu0 %v5292
        %v6230 = vpop.f32.mrf.mxu0
        %v6231 = vadd.f32 0.0, %v6230
        %6232 = vmatmul.f32.gmra.mxu0 %v5641
        %v6233 = vpop.f32.mrf.mxu0
        %v6234 = vadd.f32 0.0, %v6233
        %6235 = vmatmul.f32.gmra.mxu0 %v5920
        %v6236 = vpop.f32.mrf.mxu0
        %v6237 = vadd.f32 0.0, %v6236
        %6238 = vmatmul.f32.gmra.mxu0 %v6199
        %v6239 = vpop.f32.mrf.mxu0
        %v6240 = vadd.f32 0.0, %v6239
        %6241 = vdwg.mxu0
        %v6242 = vadd.f32 %v6186, %v6219
        %v6243 = vadd.f32 %v6187, %v6222
        %v6244 = vadd.f32 %v6188, %v6225
        %v6245 = vadd.f32 %v6189, %v6228
        %v6246 = vadd.f32 %v6190, %v6231
        %v6247 = vadd.f32 %v6191, %v6234
        %v6248 = vadd.f32 %v6192, %v6237
        %v6249 = vadd.f32 %v6193, %v6240
        %v6250 = vrot.slane %v5091, 3
        %v6251 = vrot.slane %v5092, 3
        %v6252 = vsel %vm1072, %v6250, %v6251
        %s6253 = scalar_lea.vmem %s3, 144
        %v6254 = vld [vmem:[%s6253] sm:$0xff]
        %v6255 = vsel %vm4901, %v6252, 0
        %6257 = vmatpush.msra.mxu0 0.0
        %6258 = vmatpush.msra.mxu0 0.0
        %6259 = vmatpush.msra.mxu0 0.0
        %6260 = vmatpush.msra.mxu0 0.0
        %6261 = vmatpush.msra.mxu0 0.0
        %6262 = vmatpush.msra.mxu0 0.0
        %6263 = vmatpush.msra.mxu0 0.0
        %6264 = vmatpush.msra.mxu0 0.0
        %6265 = vmatpush.msra.mxu0 0.0
        %6266 = vmatpush.msra.mxu0 0.0
        %6267 = vmatpush.msra.mxu0 0.0
        %6268 = vmatpush.msra.mxu0 0.0
        %6269 = vmatpush.msra.mxu0 0.0
        %6270 = vmatpush.msra.mxu0 0.0
        %6271 = vmatpush.msra.mxu0 0.0
        %6272 = vmatpush.msra.mxu0 %v6254
        %6273 = vmatmul.f32.gmra.mxu0 %v5375
        %v6274 = vpop.f32.mrf.mxu0
        %v6275 = vadd.f32 0.0, %v6274
        %6276 = vmatmul.f32.gmra.mxu0 %v5377
        %v6277 = vpop.f32.mrf.mxu0
        %v6278 = vadd.f32 0.0, %v6277
        %6279 = vmatmul.f32.gmra.mxu0 %v5379
        %v6280 = vpop.f32.mrf.mxu0
        %v6281 = vadd.f32 0.0, %v6280
        %6282 = vmatmul.f32.gmra.mxu0 %v5381
        %v6283 = vpop.f32.mrf.mxu0
        %v6284 = vadd.f32 0.0, %v6283
        %6285 = vmatmul.f32.gmra.mxu0 %v5383
        %v6286 = vpop.f32.mrf.mxu0
        %v6287 = vadd.f32 0.0, %v6286
        %6288 = vmatmul.f32.gmra.mxu0 %v5697
        %v6289 = vpop.f32.mrf.mxu0
        %v6290 = vadd.f32 0.0, %v6289
        %6291 = vmatmul.f32.gmra.mxu0 %v5976
        %v6292 = vpop.f32.mrf.mxu0
        %v6293 = vadd.f32 0.0, %v6292
        %6294 = vmatmul.f32.gmra.mxu0 %v6255
        %v6295 = vpop.f32.mrf.mxu0
        %v6296 = vadd.f32 0.0, %v6295
        %6297 = vdwg.mxu0
        %v6298 = vadd.f32 %v6242, %v6275
        %v6299 = vadd.f32 %v6243, %v6278
        %v6300 = vadd.f32 %v6244, %v6281
        %v6301 = vadd.f32 %v6245, %v6284
        %v6302 = vadd.f32 %v6246, %v6287
        %v6303 = vadd.f32 %v6247, %v6290
        %v6304 = vadd.f32 %v6248, %v6293
        %v6305 = vadd.f32 %v6249, %v6296
        %v6306 = vrot.slane %v5091, 4
        %v6307 = vrot.slane %v5092, 4
        %v6308 = vsel %vm480, %v6306, %v6307
        %s6309 = scalar_lea.vmem %s3, 152
        %v6310 = vld [vmem:[%s6309] sm:$0xff]
        %v6311 = vsel %vm4901, %v6308, 0
        %6313 = vmatpush.msra.mxu0 0.0
        %6314 = vmatpush.msra.mxu0 0.0
        %6315 = vmatpush.msra.mxu0 0.0
        %6316 = vmatpush.msra.mxu0 0.0
        %6317 = vmatpush.msra.mxu0 0.0
        %6318 = vmatpush.msra.mxu0 0.0
        %6319 = vmatpush.msra.mxu0 0.0
        %6320 = vmatpush.msra.mxu0 0.0
        %6321 = vmatpush.msra.mxu0 0.0
        %6322 = vmatpush.msra.mxu0 0.0
        %6323 = vmatpush.msra.mxu0 0.0
        %6324 = vmatpush.msra.mxu0 0.0
        %6325 = vmatpush.msra.mxu0 0.0
        %6326 = vmatpush.msra.mxu0 0.0
        %6327 = vmatpush.msra.mxu0 0.0
        %6328 = vmatpush.msra.mxu0 %v6310
        %6329 = vmatmul.f32.gmra.mxu0 %v5466
        %v6330 = vpop.f32.mrf.mxu0
        %v6331 = vadd.f32 0.0, %v6330
        %6332 = vmatmul.f32.gmra.mxu0 %v5468
        %v6333 = vpop.f32.mrf.mxu0
        %v6334 = vadd.f32 0.0, %v6333
        %6335 = vmatmul.f32.gmra.mxu0 %v5470
        %v6336 = vpop.f32.mrf.mxu0
        %v6337 = vadd.f32 0.0, %v6336
        %6338 = vmatmul.f32.gmra.mxu0 %v5472
        %v6339 = vpop.f32.mrf.mxu0
        %v6340 = vadd.f32 0.0, %v6339
        %6341 = vmatmul.f32.gmra.mxu0 %v5474
        %v6342 = vpop.f32.mrf.mxu0
        %v6343 = vadd.f32 0.0, %v6342
        %6344 = vmatmul.f32.gmra.mxu0 %v5753
        %v6345 = vpop.f32.mrf.mxu0
        %v6346 = vadd.f32 0.0, %v6345
        %6347 = vmatmul.f32.gmra.mxu0 %v6032
        %v6348 = vpop.f32.mrf.mxu0
        %v6349 = vadd.f32 0.0, %v6348
        %6350 = vmatmul.f32.gmra.mxu0 %v6311
        %v6351 = vpop.f32.mrf.mxu0
        %v6352 = vadd.f32 0.0, %v6351
        %6353 = vdwg.mxu0
        %v6354 = vadd.f32 %v6298, %v6331
        %v6355 = vadd.f32 %v6299, %v6334
        %v6356 = vadd.f32 %v6300, %v6337
        %v6357 = vadd.f32 %v6301, %v6340
        %v6358 = vadd.f32 %v6302, %v6343
        %v6359 = vadd.f32 %v6303, %v6346
        %v6360 = vadd.f32 %v6304, %v6349
        %v6361 = vadd.f32 %v6305, %v6352
        %s6362 = scalar_lea.vmem %s3, 160
        %v6363 = vld [vmem:[%s6362] sm:$0xff]
        %v6365 = vsel %vm4901, %v5093, 0
        %6367 = vmatpush.msra.mxu0 0.0
        %6368 = vmatpush.msra.mxu0 0.0
        %6369 = vmatpush.msra.mxu0 0.0
        %6370 = vmatpush.msra.mxu0 0.0
        %6371 = vmatpush.msra.mxu0 0.0
        %6372 = vmatpush.msra.mxu0 0.0
        %6373 = vmatpush.msra.mxu0 0.0
        %6374 = vmatpush.msra.mxu0 0.0
        %6375 = vmatpush.msra.mxu0 0.0
        %6376 = vmatpush.msra.mxu0 0.0
        %6377 = vmatpush.msra.mxu0 0.0
        %6378 = vmatpush.msra.mxu0 0.0
        %6379 = vmatpush.msra.mxu0 0.0
        %6380 = vmatpush.msra.mxu0 0.0
        %6381 = vmatpush.msra.mxu0 0.0
        %6382 = vmatpush.msra.mxu0 %v6363
        %6383 = vmatmul.f32.gmra.mxu0 %v5203
        %v6384 = vpop.f32.mrf.mxu0
        %v6385 = vadd.f32 0.0, %v6384
        %6386 = vmatmul.f32.gmra.mxu0 %v5205
        %v6387 = vpop.f32.mrf.mxu0
        %v6388 = vadd.f32 0.0, %v6387
        %6389 = vmatmul.f32.gmra.mxu0 %v5207
        %v6390 = vpop.f32.mrf.mxu0
        %v6391 = vadd.f32 0.0, %v6390
        %6392 = vmatmul.f32.gmra.mxu0 %v5209
        %v6393 = vpop.f32.mrf.mxu0
        %v6394 = vadd.f32 0.0, %v6393
        %6395 = vmatmul.f32.gmra.mxu0 %v5528
        %v6396 = vpop.f32.mrf.mxu0
        %v6397 = vadd.f32 0.0, %v6396
        %6398 = vmatmul.f32.gmra.mxu0 %v5807
        %v6399 = vpop.f32.mrf.mxu0
        %v6400 = vadd.f32 0.0, %v6399
        %6401 = vmatmul.f32.gmra.mxu0 %v6086
        %v6402 = vpop.f32.mrf.mxu0
        %v6403 = vadd.f32 0.0, %v6402
        %6404 = vmatmul.f32.gmra.mxu0 %v6365
        %v6405 = vpop.f32.mrf.mxu0
        %v6406 = vadd.f32 0.0, %v6405
        %6407 = vdwg.mxu0
        %v6408 = vadd.f32 %v6354, %v6385
        %v6409 = vadd.f32 %v6355, %v6388
        %v6410 = vadd.f32 %v6356, %v6391
        %v6411 = vadd.f32 %v6357, %v6394
        %v6412 = vadd.f32 %v6358, %v6397
        %v6413 = vadd.f32 %v6359, %v6400
        %v6414 = vadd.f32 %v6360, %v6403
        %v6415 = vadd.f32 %v6361, %v6406
        %v6417 = vrot.slane %v5093, 1
        %v6418 = vrot.slane %v5094, 1
        %v6419 = vsel %vm332, %v6417, %v6418
        %s6420 = scalar_lea.vmem %s3, 168
        %v6421 = vld [vmem:[%s6420] sm:$0xff]
        %v6422 = vsel %vm4901, %v6419, 0
        %6424 = vmatpush.msra.mxu0 0.0
        %6425 = vmatpush.msra.mxu0 0.0
        %6426 = vmatpush.msra.mxu0 0.0
        %6427 = vmatpush.msra.mxu0 0.0
        %6428 = vmatpush.msra.mxu0 0.0
        %6429 = vmatpush.msra.mxu0 0.0
        %6430 = vmatpush.msra.mxu0 0.0
        %6431 = vmatpush.msra.mxu0 0.0
        %6432 = vmatpush.msra.mxu0 0.0
        %6433 = vmatpush.msra.mxu0 0.0
        %6434 = vmatpush.msra.mxu0 0.0
        %6435 = vmatpush.msra.mxu0 0.0
        %6436 = vmatpush.msra.mxu0 0.0
        %6437 = vmatpush.msra.mxu0 0.0
        %6438 = vmatpush.msra.mxu0 0.0
        %6439 = vmatpush.msra.mxu0 %v6421
        %6440 = vmatmul.f32.gmra.mxu0 %v5146
        %v6441 = vpop.f32.mrf.mxu0
        %v6442 = vadd.f32 0.0, %v6441
        %6443 = vmatmul.f32.gmra.mxu0 %v5148
        %v6444 = vpop.f32.mrf.mxu0
        %v6445 = vadd.f32 0.0, %v6444
        %6446 = vmatmul.f32.gmra.mxu0 %v5150
        %v6447 = vpop.f32.mrf.mxu0
        %v6448 = vadd.f32 0.0, %v6447
        %6449 = vmatmul.f32.gmra.mxu0 %v5152
        %v6450 = vpop.f32.mrf.mxu0
        %v6451 = vadd.f32 0.0, %v6450
        %6452 = vmatmul.f32.gmra.mxu0 %v5585
        %v6453 = vpop.f32.mrf.mxu0
        %v6454 = vadd.f32 0.0, %v6453
        %6455 = vmatmul.f32.gmra.mxu0 %v5864
        %v6456 = vpop.f32.mrf.mxu0
        %v6457 = vadd.f32 0.0, %v6456
        %6458 = vmatmul.f32.gmra.mxu0 %v6143
        %v6459 = vpop.f32.mrf.mxu0
        %v6460 = vadd.f32 0.0, %v6459
        %6461 = vmatmul.f32.gmra.mxu0 %v6422
        %v6462 = vpop.f32.mrf.mxu0
        %v6463 = vadd.f32 0.0, %v6462
        %6464 = vdwg.mxu0
        %v6465 = vadd.f32 %v6408, %v6442
        %v6466 = vadd.f32 %v6409, %v6445
        %v6467 = vadd.f32 %v6410, %v6448
        %v6468 = vadd.f32 %v6411, %v6451
        %v6469 = vadd.f32 %v6412, %v6454
        %v6470 = vadd.f32 %v6413, %v6457
        %v6471 = vadd.f32 %v6414, %v6460
        %v6472 = vadd.f32 %v6415, %v6463
        %v6473 = vrot.slane %v5093, 2
        %v6474 = vrot.slane %v5094, 2
        %v6475 = vsel %vm777, %v6473, %v6474
        %s6476 = scalar_lea.vmem %s3, 176
        %v6477 = vld [vmem:[%s6476] sm:$0xff]
        %v6478 = vsel %vm4901, %v6475, 0
        %6480 = vmatpush.msra.mxu0 0.0
        %6481 = vmatpush.msra.mxu0 0.0
        %6482 = vmatpush.msra.mxu0 0.0
        %6483 = vmatpush.msra.mxu0 0.0
        %6484 = vmatpush.msra.mxu0 0.0
        %6485 = vmatpush.msra.mxu0 0.0
        %6486 = vmatpush.msra.mxu0 0.0
        %6487 = vmatpush.msra.mxu0 0.0
        %6488 = vmatpush.msra.mxu0 0.0
        %6489 = vmatpush.msra.mxu0 0.0
        %6490 = vmatpush.msra.mxu0 0.0
        %6491 = vmatpush.msra.mxu0 0.0
        %6492 = vmatpush.msra.mxu0 0.0
        %6493 = vmatpush.msra.mxu0 0.0
        %6494 = vmatpush.msra.mxu0 0.0
        %6495 = vmatpush.msra.mxu0 %v6477
        %6496 = vmatmul.f32.gmra.mxu0 %v5286
        %v6497 = vpop.f32.mrf.mxu0
        %v6498 = vadd.f32 0.0, %v6497
        %6499 = vmatmul.f32.gmra.mxu0 %v5288
        %v6500 = vpop.f32.mrf.mxu0
        %v6501 = vadd.f32 0.0, %v6500
        %6502 = vmatmul.f32.gmra.mxu0 %v5290
        %v6503 = vpop.f32.mrf.mxu0
        %v6504 = vadd.f32 0.0, %v6503
        %6505 = vmatmul.f32.gmra.mxu0 %v5292
        %v6506 = vpop.f32.mrf.mxu0
        %v6507 = vadd.f32 0.0, %v6506
        %6508 = vmatmul.f32.gmra.mxu0 %v5641
        %v6509 = vpop.f32.mrf.mxu0
        %v6510 = vadd.f32 0.0, %v6509
        %6511 = vmatmul.f32.gmra.mxu0 %v5920
        %v6512 = vpop.f32.mrf.mxu0
        %v6513 = vadd.f32 0.0, %v6512
        %6514 = vmatmul.f32.gmra.mxu0 %v6199
        %v6515 = vpop.f32.mrf.mxu0
        %v6516 = vadd.f32 0.0, %v6515
        %6517 = vmatmul.f32.gmra.mxu0 %v6478
        %v6518 = vpop.f32.mrf.mxu0
        %v6519 = vadd.f32 0.0, %v6518
        %6520 = vdwg.mxu0
        %v6521 = vadd.f32 %v6465, %v6498
        %v6522 = vadd.f32 %v6466, %v6501
        %v6523 = vadd.f32 %v6467, %v6504
        %v6524 = vadd.f32 %v6468, %v6507
        %v6525 = vadd.f32 %v6469, %v6510
        %v6526 = vadd.f32 %v6470, %v6513
        %v6527 = vadd.f32 %v6471, %v6516
        %v6528 = vadd.f32 %v6472, %v6519
        %v6529 = vrot.slane %v5093, 3
        %v6530 = vrot.slane %v5094, 3
        %v6531 = vsel %vm1072, %v6529, %v6530
        %s6532 = scalar_lea.vmem %s3, 184
        %v6533 = vld [vmem:[%s6532] sm:$0xff]
        %v6534 = vsel %vm4901, %v6531, 0
        %6536 = vmatpush.msra.mxu0 0.0
        %6537 = vmatpush.msra.mxu0 0.0
        %6538 = vmatpush.msra.mxu0 0.0
        %6539 = vmatpush.msra.mxu0 0.0
        %6540 = vmatpush.msra.mxu0 0.0
        %6541 = vmatpush.msra.mxu0 0.0
        %6542 = vmatpush.msra.mxu0 0.0
        %6543 = vmatpush.msra.mxu0 0.0
        %6544 = vmatpush.msra.mxu0 0.0
        %6545 = vmatpush.msra.mxu0 0.0
        %6546 = vmatpush.msra.mxu0 0.0
        %6547 = vmatpush.msra.mxu0 0.0
        %6548 = vmatpush.msra.mxu0 0.0
        %6549 = vmatpush.msra.mxu0 0.0
        %6550 = vmatpush.msra.mxu0 0.0
        %6551 = vmatpush.msra.mxu0 %v6533
        %6552 = vmatmul.f32.gmra.mxu0 %v5377
        %v6553 = vpop.f32.mrf.mxu0
        %v6554 = vadd.f32 0.0, %v6553
        %6555 = vmatmul.f32.gmra.mxu0 %v5379
        %v6556 = vpop.f32.mrf.mxu0
        %v6557 = vadd.f32 0.0, %v6556
        %6558 = vmatmul.f32.gmra.mxu0 %v5381
        %v6559 = vpop.f32.mrf.mxu0
        %v6560 = vadd.f32 0.0, %v6559
        %6561 = vmatmul.f32.gmra.mxu0 %v5383
        %v6562 = vpop.f32.mrf.mxu0
        %v6563 = vadd.f32 0.0, %v6562
        %6564 = vmatmul.f32.gmra.mxu0 %v5697
        %v6565 = vpop.f32.mrf.mxu0
        %v6566 = vadd.f32 0.0, %v6565
        %6567 = vmatmul.f32.gmra.mxu0 %v5976
        %v6568 = vpop.f32.mrf.mxu0
        %v6569 = vadd.f32 0.0, %v6568
        %6570 = vmatmul.f32.gmra.mxu0 %v6255
        %v6571 = vpop.f32.mrf.mxu0
        %v6572 = vadd.f32 0.0, %v6571
        %6573 = vmatmul.f32.gmra.mxu0 %v6534
        %v6574 = vpop.f32.mrf.mxu0
        %v6575 = vadd.f32 0.0, %v6574
        %6576 = vdwg.mxu0
        %v6577 = vadd.f32 %v6521, %v6554
        %v6578 = vadd.f32 %v6522, %v6557
        %v6579 = vadd.f32 %v6523, %v6560
        %v6580 = vadd.f32 %v6524, %v6563
        %v6581 = vadd.f32 %v6525, %v6566
        %v6582 = vadd.f32 %v6526, %v6569
        %v6583 = vadd.f32 %v6527, %v6572
        %v6584 = vadd.f32 %v6528, %v6575
        %v6585 = vrot.slane %v5093, 4
        %v6586 = vrot.slane %v5094, 4
        %v6587 = vsel %vm480, %v6585, %v6586
        %s6588 = scalar_lea.vmem %s3, 192
        %v6589 = vld [vmem:[%s6588] sm:$0xff]
        %v6590 = vsel %vm4901, %v6587, 0
        %6592 = vmatpush.msra.mxu0 0.0
        %6593 = vmatpush.msra.mxu0 0.0
        %6594 = vmatpush.msra.mxu0 0.0
        %6595 = vmatpush.msra.mxu0 0.0
        %6596 = vmatpush.msra.mxu0 0.0
        %6597 = vmatpush.msra.mxu0 0.0
        %6598 = vmatpush.msra.mxu0 0.0
        %6599 = vmatpush.msra.mxu0 0.0
        %6600 = vmatpush.msra.mxu0 0.0
        %6601 = vmatpush.msra.mxu0 0.0
        %6602 = vmatpush.msra.mxu0 0.0
        %6603 = vmatpush.msra.mxu0 0.0
        %6604 = vmatpush.msra.mxu0 0.0
        %6605 = vmatpush.msra.mxu0 0.0
        %6606 = vmatpush.msra.mxu0 0.0
        %6607 = vmatpush.msra.mxu0 %v6589
        %6608 = vmatmul.f32.gmra.mxu0 %v5468
        %v6609 = vpop.f32.mrf.mxu0
        %v6610 = vadd.f32 0.0, %v6609
        %6611 = vmatmul.f32.gmra.mxu0 %v5470
        %v6612 = vpop.f32.mrf.mxu0
        %v6613 = vadd.f32 0.0, %v6612
        %6614 = vmatmul.f32.gmra.mxu0 %v5472
        %v6615 = vpop.f32.mrf.mxu0
        %v6616 = vadd.f32 0.0, %v6615
        %6617 = vmatmul.f32.gmra.mxu0 %v5474
        %v6618 = vpop.f32.mrf.mxu0
        %v6619 = vadd.f32 0.0, %v6618
        %6620 = vmatmul.f32.gmra.mxu0 %v5753
        %v6621 = vpop.f32.mrf.mxu0
        %v6622 = vadd.f32 0.0, %v6621
        %6623 = vmatmul.f32.gmra.mxu0 %v6032
        %v6624 = vpop.f32.mrf.mxu0
        %v6625 = vadd.f32 0.0, %v6624
        %6626 = vmatmul.f32.gmra.mxu0 %v6311
        %v6627 = vpop.f32.mrf.mxu0
        %v6628 = vadd.f32 0.0, %v6627
        %6629 = vmatmul.f32.gmra.mxu0 %v6590
        %v6630 = vpop.f32.mrf.mxu0
        %v6631 = vadd.f32 0.0, %v6630
        %6632 = vdwg.mxu0
        %v6633 = vadd.f32 %v6577, %v6610
        %v6634 = vadd.f32 %v6578, %v6613
        %v6635 = vadd.f32 %v6579, %v6616
        %v6636 = vadd.f32 %v6580, %v6619
        %v6637 = vadd.f32 %v6581, %v6622
        %v6638 = vadd.f32 %v6582, %v6625
        %v6639 = vadd.f32 %v6583, %v6628
        %v6640 = vadd.f32 %v6584, %v6631
        %v6641 = vld [vmem:[%s4] sm:$0x1]
        %v6643 = vperm.slane %v6641, 0
        %v6645 = vadd.f32 %v6633, %v6643
        %v6646 = vadd.f32 %v6634, %v6643
        %v6647 = vadd.f32 %v6635, %v6643
        %v6648 = vadd.f32 %v6636, %v6643
        %v6649 = vadd.f32 %v6637, %v6643
        %v6650 = vadd.f32 %v6638, %v6643
        %v6651 = vadd.f32 %v6639, %v6643
        %v6652 = vadd.f32 %v6640, %v6643
        %v6653 = vtanh.pop %v6645
        %v6654 = vtanh.pop %v6646
        %v6655 = vtanh.pop %v6647
        %v6656 = vtanh.pop %v6648
        %v6657 = vtanh.pop %v6649
        %v6658 = vtanh.pop %v6650
        %v6659 = vtanh.pop %v6651
        %v6660 = vtanh.pop %v6652
        %vm6661 = vcmask 130048
        %6662 = vst.msk [vmem:[#allocation4] sm:$0xff] %vm6661, %v6653
        %6663 = vst.msk [vmem:[#allocation4 + $0x8] sm:$0xff] %vm6661, %v6654
        %6664 = vst.msk [vmem:[#allocation4 + $0x10] sm:$0xff] %vm6661, %v6655
        %6665 = vst.msk [vmem:[#allocation4 + $0x18] sm:$0xff] %vm6661, %v6656
        %6666 = vst.msk [vmem:[#allocation4 + $0x20] sm:$0xff] %vm6661, %v6657
        %6667 = vst.msk [vmem:[#allocation4 + $0x28] sm:$0xff] %vm6661, %v6658
        %6668 = vst.msk [vmem:[#allocation4 + $0x30] sm:$0xff] %vm6661, %v6659
        %6669 = vst.msk [vmem:[#allocation4 + $0x38] sm:$0xff] %vm6661, %v6660
        %v6670 = vld [vmem:[#allocation4] ss:$2 sm:$0xf]
        %s6671 = scalar_lea.vmem [#allocation4], 8
        %v6672 = vld [vmem:[%s6671] ss:$2 sm:$0xf]
        %s6673 = scalar_lea.vmem [#allocation4], 16
        %v6674 = vld [vmem:[%s6673] ss:$2 sm:$0xf]
        %s6675 = scalar_lea.vmem [#allocation4], 24
        %v6676 = vld [vmem:[%s6675] ss:$2 sm:$0xf]
        %s6677 = scalar_lea.vmem [#allocation4], 32
        %v6678 = vld [vmem:[%s6677] ss:$2 sm:$0xf]
        %s6679 = scalar_lea.vmem [#allocation4], 40
        %v6680 = vld [vmem:[%s6679] ss:$2 sm:$0xf]
        %s6681 = scalar_lea.vmem [#allocation4], 48
        %v6682 = vld [vmem:[%s6681] ss:$2 sm:$0xf]
        %s6683 = scalar_lea.vmem [#allocation4], 56
        %v6684 = vld [vmem:[%s6683] ss:$2 sm:$0xf]
        %s6685 = scalar_lea.vmem [#allocation4], 1
        %v6686 = vld [vmem:[%s6685] ss:$2 sm:$0xf]
        %s6687 = scalar_lea.vmem [#allocation4], 9
        %v6688 = vld [vmem:[%s6687] ss:$2 sm:$0xf]
        %s6689 = scalar_lea.vmem [#allocation4], 17
        %v6690 = vld [vmem:[%s6689] ss:$2 sm:$0xf]
        %s6691 = scalar_lea.vmem [#allocation4], 25
        %v6692 = vld [vmem:[%s6691] ss:$2 sm:$0xf]
        %s6693 = scalar_lea.vmem [#allocation4], 33
        %v6694 = vld [vmem:[%s6693] ss:$2 sm:$0xf]
        %s6695 = scalar_lea.vmem [#allocation4], 41
        %v6696 = vld [vmem:[%s6695] ss:$2 sm:$0xf]
        %s6697 = scalar_lea.vmem [#allocation4], 49
        %v6698 = vld [vmem:[%s6697] ss:$2 sm:$0xf]
        %s6699 = scalar_lea.vmem [#allocation4], 57
        %v6700 = vld [vmem:[%s6699] ss:$2 sm:$0xf]
        %v6701 = vmax.f32 %v6670, %v6686
        %v6702 = vmax.f32 %v6672, %v6688
        %v6703 = vmax.f32 %v6674, %v6690
        %v6704 = vmax.f32 %v6676, %v6692
        %v6705 = vmax.f32 %v6678, %v6694
        %v6706 = vmax.f32 %v6680, %v6696
        %v6707 = vmax.f32 %v6682, %v6698
        %v6708 = vmax.f32 %v6684, %v6700
        %vm6709 = vcmask 125952
        %v6710 = vsel %vm6709, %v6701, -inf
        %v6711 = vsel %vm6709, %v6702, -inf
        %v6712 = vmax.f32 %v6710, %v6711
        %v6713 = vsel %vm6709, %v6703, -inf
        %v6714 = vsel %vm6709, %v6704, -inf
        %v6715 = vmax.f32 %v6713, %v6714
        %v6716 = vsel %vm6709, %v6705, -inf
        %v6717 = vsel %vm6709, %v6706, -inf
        %v6718 = vmax.f32 %v6716, %v6717
        %v6719 = vsel %vm6709, %v6707, -inf
        %v6720 = vsel %vm6709, %v6708, -inf
        %v6721 = vmax.f32 %v6719, %v6720
        %6722 = vst.msk [vmem:[%s217] sm:$0xf] %vm6709, %v6712
        %6723 = vst.msk [vmem:[%s217 + $0x4] sm:$0xf] %vm6709, %v6715
        %6724 = vst.msk [vmem:[%s217 + $0x8] sm:$0xf] %vm6709, %v6718
        %6725 = vst.msk [vmem:[%s217 + $0xc] sm:$0xf] %vm6709, %v6721
        %s6726 = sand.u32 %s137, 1
        %s6727 = scalar_lea.sflag [#allocation6], %s6726
        %s6728 = sand.u32 %s137, 1
        %s6729 = smul.addr %s6728, 16
        %s6730 = scalar_lea.vmem [#allocation5], %s6729
        // Predicated region
        $region41: #{a_call__.1} parent=39 // pred_check
          %p6731 = pneg %p147
        $region42: #{a_call__.1} parent=39 // pred_check_branch
          %6733 = sbr.rel (%p6731) target = $region44
        $region43: #{a_call__.1} parent=39 // pred_region
          %6735 = vsyncadd %s6727, 0
          %s6736 = smul.addr %s19, 4
          %s6737 = smul.addr %s6736, 4
          %s6738 = scalar_lea.hbm %s5, %s6737
          %s6739 = sshll.u32 %s6730, 4
          %s6740 = int_to_ptr.vmem [resolvable:$true] %s6739
          %s6741 = sshll.u32 %s6738, 4
          %s6742 = int_to_ptr.hbm [resolvable:$true] %s6741
          %6747 = dma.vmem_to_hbm [thread:$0]  %s6740, 256, %s6742, %s6727, 64, 64, 4
        $region44: #{a_call__.1} parent=39 // pred_fallthru
          _
      $region40: #{a_call__.1} parent=5 // pred_fallthru
        _
      %p6748 = scmp.le.s32.totalorder 2, %s14
      // Predicated region
      $region45: #{a_call__.1} parent=5 // pred_check
        %p6749 = pneg %p6748
      $region46: #{a_call__.1} parent=5 // pred_check_branch
        %6751 = sbr.rel (%p6749) target = $region48
      $region47: #{a_call__.1} parent=5 // pred_region
        %s6752 = ssub.s32 %s14, 2
        // Predicated region
        $region49: #{a_call__.1} parent=47 // pred_check
          %p6753 = pneg %p153
        $region50: #{a_call__.1} parent=47 // pred_check_branch
          %6755 = sbr.rel (%p6753) target = $region52
        $region51: #{a_call__.1} parent=47 // pred_region
          %s6756 = sand.u32 %s138, 1
          %s6757 = scalar_lea.sflag [#allocation6], %s6756
          %s6758 = sand.u32 %s138, 1
          %s6759 = smul.addr %s6758, 16
          %s6760 = scalar_lea.vmem [#allocation5], %s6759
          %6762 = dma.done %s6757, 256
        $region52: #{a_call__.1} parent=47 // pred_fallthru
          _
      $region48: #{a_call__.1} parent=5 // pred_fallthru
        _
    $region6: #{a_call__.1} parent=1 // loop_footer
      %s18 = sadd.s32 1, %s14
    $region7: #{a_call__.1} parent=1 // loop_footer_branch
      %13 = sbr.rel target = $region3
    $region8: #{a_call__.1} parent=1 // loop_exit
      _
    %6763 = vsyncpa [#allocation6], 1
    %s6764 = scalar_lea.sflag [#allocation6], 1
    %6765 = vsyncpa %s6764, 1

</llo_original>
